<compile_context>
chip_gen: v6e
topology: v6e:2x2x1
jax: 0.10.0
libtpu: 0.0.40
codegen_flags: <defaults>
</compile_context>

<pallas_src>
import functools
import math

import jax
import jax.numpy as jnp
from jax import lax
from jax.experimental import pallas as pl
from jax.experimental.pallas import tpu as pltpu


def _default_vmem_limit():
    # ~3/4 of physical VMEM (96 MiB on v5e/v6e, 48 MiB on v7x); safe fallback otherwise.
    try:
        cap = int(pltpu.get_tpu_info().vmem_capacity_bytes)
    except Exception:
        cap = 64 * 1024 * 1024
    return max(32 * 1024 * 1024, min(cap * 3 // 4, 100 * 1024 * 1024))


_VMEM_LIMIT = _default_vmem_limit()


def _pick_tile_m(M):
    for t in (512, 256, 128, 64, 32, 16, 8):
        if M % t == 0:
            return t
    return M


def _pick_tile_n(N):
    # Prefer wide (>=128, ideally 256-wide) lane-dense output tiles.
    for t in (512, 256, 128):
        if N % t == 0:
            return t
    return N


# ------------------ fused (LN -> gate -> matmul -> bias / residual) ------------------

def _fused_matmul_kernel(*refs, has_ln, has_gate, has_res, has_bias, eps):
    it = iter(refs)
    x_ref = next(it)
    g_ref = next(it) if has_gate else None
    r_ref = next(it) if has_res else None
    lnw_ref = next(it) if has_ln else None
    lnb_ref = next(it) if has_ln else None
    w_ref = next(it)
    b_ref = next(it) if has_bias else None
    o_ref = next(it)

    t = x_ref[...].astype(jnp.float32)
    if has_ln:                                           # LayerNorm prologue (f32 stats)
        mean = jnp.mean(t, axis=-1, keepdims=True)
        tc = t - mean
        var = jnp.mean(tc * tc, axis=-1, keepdims=True)
        t = tc * lax.rsqrt(var + eps) * lnw_ref[...] + lnb_ref[...]
    if has_gate:                                         # t * silu(gate)
        g = g_ref[...].astype(jnp.float32)
        t = t * (g * (1.0 / (1.0 + jnp.exp(-g))))
    acc = jnp.dot(t.astype(jnp.bfloat16), w_ref[...].astype(jnp.bfloat16),
                  preferred_element_type=jnp.float32)    # MXU bf16, f32 accumulate
    if has_bias:
        acc = acc + b_ref[...]
    if has_res:
        acc = acc + r_ref[...].astype(jnp.float32)
    o_ref[...] = acc.astype(o_ref.dtype)


def fused_matmul(x, w, *, bias=None, gate=None, residual=None, ln=None,
                 out_dtype=jnp.float32):
    """out = [residual +] ( [LN](x) [* silu(gate)] ) @ w [+ bias]."""
    M, K = x.shape
    N = w.shape[1]
    tm, tn = _pick_tile_m(M), _pick_tile_n(N)
    has_ln, has_gate = ln is not None, gate is not None
    has_res, has_bias = residual is not None, bias is not None
    eps = ln[2] if has_ln else 0.0

    args = [x]
    in_specs = [pl.BlockSpec((tm, K), lambda m, n: (m, 0))]
    if has_gate:
        args.append(gate)
        in_specs.append(pl.BlockSpec((tm, K), lambda m, n: (m, 0)))
    if has_res:
        args.append(residual)
        in_specs.append(pl.BlockSpec((tm, tn), lambda m, n: (m, n)))
    if has_ln:
        args += [ln[0].reshape(1, K), ln[1].reshape(1, K)]
        in_specs += [pl.BlockSpec((1, K), lambda m, n: (0, 0)),
                     pl.BlockSpec((1, K), lambda m, n: (0, 0))]
    args.append(w)
    in_specs.append(pl.BlockSpec((K, tn), lambda m, n: (0, n)))
    if has_bias:
        args.append(bias.reshape(1, N))
        in_specs.append(pl.BlockSpec((1, tn), lambda m, n: (0, n)))

    kernel = functools.partial(_fused_matmul_kernel, has_ln=has_ln, has_gate=has_gate,
                               has_res=has_res, has_bias=has_bias, eps=eps)
    return pl.pallas_call(
        kernel,
        out_shape=jax.ShapeDtypeStruct((M, N), out_dtype),
        grid=(M // tm, N // tn),
        in_specs=in_specs,
        out_specs=pl.BlockSpec((tm, tn), lambda m, n: (m, n)),
        compiler_params=pltpu.CompilerParams(
            dimension_semantics=("parallel", "parallel"),
            vmem_limit_bytes=_VMEM_LIMIT),
    )(*args)


# ------------- per-layout (x_proj o dt_proj) projection, fwd+rev dirs fused -------------

def _dir_proj_kernel(x_ref, w_ref, o_ref):
    o_ref[...] = jnp.dot(x_ref[...].astype(jnp.bfloat16),
                         w_ref[...].astype(jnp.bfloat16),
                         preferred_element_type=jnp.float32).astype(o_ref.dtype)


def dir_proj(xs2, w_pair, out_dtype=jnp.bfloat16):
    """xs2: (2, M, Dm) -- the hw / wh layouts, each streamed ONCE.
       w_pair: (2, Dm, 2*Cout) -- this layout's fwd- and rev-direction weights,
       concatenated along Cout so the matmul output is twice as wide."""
    K2, M, Dm = xs2.shape
    Nout = w_pair.shape[-1]
    tm = _pick_tile_m(M)
    return pl.pallas_call(
        _dir_proj_kernel,
        out_shape=jax.ShapeDtypeStruct((K2, M, Nout), out_dtype),
        grid=(K2, M // tm),
        in_specs=[
            pl.BlockSpec((None, tm, Dm), lambda k, m: (k, m, 0)),
            pl.BlockSpec((None, Dm, Nout), lambda k, m: (k, 0, 0)),
        ],
        out_specs=pl.BlockSpec((None, tm, Nout), lambda k, m: (k, m, 0)),
        compiler_params=pltpu.CompilerParams(
            dimension_semantics=("parallel", "parallel"),
            vmem_limit_bytes=_VMEM_LIMIT),
    )(xs2, w_pair)


# ---------------- depthwise 3x3 conv + SiLU (+ GLU gate), halo in VMEM ----------------

def _dwconv3x3_kernel(*refs, H, W, has_gate):
    if has_gate:
        x_ref, w_ref, b_ref, v_ref, o_ref, xpad = refs
    else:
        x_ref, w_ref, b_ref, o_ref, xpad = refs
        v_ref = None
    C = o_ref.shape[-1]
    # zero-padded halo built in VMEM scratch (no HBM pad pass in the wrapper)
    xpad[...] = jnp.zeros_like(xpad)
    xpad[1:H + 1, 1:W + 1, :] = x_ref[...].astype(jnp.float32)
    acc = jnp.zeros((H, W, C), jnp.float32)
    for dy in range(3):
        for dx in range(3):
            tap = xpad[dy:dy + H, dx:dx + W, :]
            acc = acc + tap * w_ref[pl.ds(dy * 3 + dx, 1), :].reshape(1, 1, C)
    acc = acc + b_ref[...].reshape(1, 1, C)
    act = acc * (1.0 / (1.0 + jnp.exp(-acc)))            # SiLU fused in the epilogue
    if has_gate:
        act = act * v_ref[...].astype(jnp.float32)       # GLU gate fused too
    o_ref[...] = act.astype(o_ref.dtype)


def dwconv3x3_silu(x_nhwc, w33c, bc, gate=None, out_dtype=jnp.bfloat16):
    """silu(depthwise3x3(x) + b) [* gate], NHWC, grid over batch."""
    # TODO(synk): for very large H*W*C images, tile over H-row strips (1-row halo) so the
    # per-step footprint stays inside v7x's 64 MiB VMEM and the grid can pipeline / shard.
    B, H, W, C = x_nhwc.shape
    has_gate = gate is not None
    kernel = functools.partial(_dwconv3x3_kernel, H=H, W=W, has_gate=has_gate)
    in_specs = [
        pl.BlockSpec((None, H, W, C), lambda b: (b, 0, 0, 0)),
        pl.BlockSpec((9, C), lambda b: (0, 0)),
        pl.BlockSpec((1, C), lambda b: (0, 0)),
    ]
    args = [x_nhwc, w33c.reshape(9, C), bc.reshape(1, C)]
    if has_gate:
        in_specs.append(pl.BlockSpec((None, H, W, C), lambda b: (b, 0, 0, 0)))
        args.append(gate)
    return pl.pallas_call(
        kernel,
        out_shape=jax.ShapeDtypeStruct((B, H, W, C), out_dtype),
        grid=(B,),
        in_specs=in_specs,
        out_specs=pl.BlockSpec((None, H, W, C), lambda b: (b, 0, 0, 0)),
        scratch_shapes=[pltpu.VMEM((H + 2, W + 2, C), jnp.float32)],
        compiler_params=pltpu.CompilerParams(
            dimension_semantics=("parallel",),
            vmem_limit_bytes=_VMEM_LIMIT),
    )(*args)


# -------------- selective scan: chunked, exp hoisted, fwd+rev fused per layout --------------

def _ssm_scan_kernel(u_ref, xdbl_ref, A_ref, D_ref, dtb_ref, y_ref, yacc,
                     *, L, N, Dm, CH):
    # u_ref: (L, Dm)  xdbl_ref: (L, 2*Cout) rows = [dt|B|C]_fwd | [dt|B|C]_rev
    # A_ref: (2, N, Dm)   D_ref / dtb_ref: (2, 1, Dm)   yacc scratch: (L, Dm) f32
    Cout = Dm + 2 * N
    nchunks = L // CH

    def softplus(z):
        return jnp.where(z > 20.0, z, jnp.log(1.0 + jnp.exp(jnp.minimum(z, 20.0))))

    def make_chunk(col0, A, Dp, dtb, reverse):
        def chunk(c, h):
            if reverse:
                start = pl.multiple_of(L - (c + 1) * CH, CH)
            else:
                start = pl.multiple_of(c * CH, CH)
            u = u_ref[pl.ds(start, CH), :].astype(jnp.float32)           # (CH, Dm)
            blk = xdbl_ref[pl.ds(start, CH), :].astype(jnp.float32)      # (CH, 2*Cout)
            dt = blk[:, col0:col0 + Dm]
            Bc = blk[:, col0 + Dm:col0 + Dm + N]                         # (CH, N)
            Cc = blk[:, col0 + Dm + N:col0 + Dm + 2 * N]                 # (CH, N)
            # ---- vectorized per-chunk precompute (EUP exp & broadcasts off the
            #      serial critical path) ----
            delta = softplus(dt + dtb)                                   # (CH, Dm)
            du = delta * u                                               # (CH, Dm)
            dA = jnp.exp(delta[:, None, :] * A[None, :, :])              # (CH, N, Dm)
            X = Bc[:, :, None] * du[:, None, :]                          # (CH, N, Dm)
            Cx = jnp.broadcast_to(Cc[:, :, None], (CH, N, Dm))           # (CH, N, Dm)
            # ---- serial recurrence: one FMA + one reduce per step ----
            rows = [None] * CH
            steps = range(CH - 1, -1, -1) if reverse else range(CH)
            for t in steps:
                h = dA[t] * h + X[t]                                     # (N, Dm)
                rows[t] = jnp.sum(h * Cx[t], axis=0, keepdims=True)      # (1, Dm)
            ych = jnp.concatenate(rows, axis=0) + Dp * u                 # (CH, Dm)
            if reverse:   # reverse dir writes already un-flipped; add to fwd result
                yacc[pl.ds(start, CH), :] = yacc[pl.ds(start, CH), :] + ych
            else:
                yacc[pl.ds(start, CH), :] = ych
            return h
        return chunk

    h0 = jnp.zeros((N, Dm), jnp.float32)
    lax.fori_loop(0, nchunks,
                  make_chunk(0, A_ref[0].astype(jnp.float32), D_ref[0], dtb_ref[0], False),
                  h0)
    lax.fori_loop(0, nchunks,
                  make_chunk(Cout, A_ref[1].astype(jnp.float32), D_ref[1], dtb_ref[1], True),
                  h0)
    y_ref[...] = yacc[...].astype(y_ref.dtype)


def selective_scan(xs2, x_dbl, A_pair, D_pair, dtb_pair, *, B, L, Dm, N,
                   out_dtype=jnp.bfloat16):
    """xs2: (2, B, L, Dm); x_dbl: (2, B, L, 2*Cout); A_pair: (2, 2, N, Dm);
       D_pair / dtb_pair: (2, 2, 1, Dm).  Returns (2, B, L, Dm): per-layout sum of the
       forward and reverse scan, already in forward order (delta_softplus=True)."""
    # TODO(synk): for very long L, add an 'arbitrary' L-chunk grid axis (carry h in
    # persistent scratch) so whole-L tiles are not required on v7x's 64 MiB VMEM.
    Cout = Dm + 2 * N
    CH = max(c for c in (8, 4, 2, 1) if L % c == 0)
    kernel = functools.partial(_ssm_scan_kernel, L=L, N=N, Dm=Dm, CH=CH)
    return pl.pallas_call(
        kernel,
        out_shape=jax.ShapeDtypeStruct((2, B, L, Dm), out_dtype),
        grid=(B, 2),
        in_specs=[
            pl.BlockSpec((None, None, L, Dm), lambda b, k: (k, b, 0, 0)),        # u
            pl.BlockSpec((None, None, L, 2 * Cout), lambda b, k: (k, b, 0, 0)),  # dt|B|C rows
            pl.BlockSpec((None, 2, N, Dm), lambda b, k: (k, 0, 0, 0)),           # A (fwd,rev)
            pl.BlockSpec((None, 2, 1, Dm), lambda b, k: (k, 0, 0, 0)),           # D
            pl.BlockSpec((None, 2, 1, Dm), lambda b, k: (k, 0, 0, 0)),           # dt bias
        ],
        out_specs=pl.BlockSpec((None, None, L, Dm), lambda b, k: (k, b, 0, 0)),
        scratch_shapes=[pltpu.VMEM((L, Dm), jnp.float32)],       # fwd+rev accumulator
        compiler_params=pltpu.CompilerParams(
            dimension_semantics=("parallel", "parallel"),
            vmem_limit_bytes=_VMEM_LIMIT),
    )(xs2, x_dbl, A_pair, D_pair, dtb_pair)


# ----------------------------- parameter init -----------------------------

def init_params(key, C, d_state=16, expand=2, mlp_ratio=2.0 / 3.0):
    Dm = int(expand * C)
    R = math.ceil(C / 16)
    hidden = int(mlp_ratio * C)
    K = 4
    ks = jax.random.split(key, 12)

    def nrm(k, shape, scale=0.02):
        return (scale * jax.random.normal(k, shape)).astype(jnp.float32)

    p = {
        "ln1_w": jnp.ones((C,), jnp.float32), "ln1_b": jnp.zeros((C,), jnp.float32),
        "ln2_w": jnp.ones((C,), jnp.float32), "ln2_b": jnp.zeros((C,), jnp.float32),
        "out_norm_w": jnp.ones((Dm,), jnp.float32), "out_norm_b": jnp.zeros((Dm,), jnp.float32),
        # SS2D
        "in_proj_w": nrm(ks[0], (C, 2 * Dm)),            # bias=False
        "conv2d_w": nrm(ks[1], (3, 3, Dm), 0.1),         # depthwise taps (ky, kx, ch)
        "conv2d_b": jnp.zeros((Dm,), jnp.float32),
        "x_proj_w": nrm(ks[2], (K, R + 2 * d_state, Dm)),
        "out_proj_w": nrm(ks[3], (Dm, C)),               # bias=False
        # ConvolutionalGLU
        "fc1_w": nrm(ks[4], (C, 2 * hidden)), "fc1_b": jnp.zeros((2 * hidden,), jnp.float32),
        "glu_dw_w": nrm(ks[5], (3, 3, hidden), 0.1), "glu_dw_b": jnp.zeros((hidden,), jnp.float32),
        "fc2_w": nrm(ks[6], (hidden, C)), "fc2_b": jnp.zeros((C,), jnp.float32),
    }
    # dt projections (SS2D.dt_init): uniform weight, inverse-softplus bias
    dt_init_std = R ** (-0.5)
    p["dt_projs_w"] = jax.random.uniform(
        ks[7], (K, Dm, R), minval=-dt_init_std, maxval=dt_init_std).astype(jnp.float32)
    dt = jnp.exp(jax.random.uniform(ks[8], (K, Dm)) *
                 (math.log(0.1) - math.log(0.001)) + math.log(0.001))
    dt = jnp.maximum(dt, 1e-4)
    p["dt_projs_b"] = (dt + jnp.log(-jnp.expm1(-dt))).astype(jnp.float32)   # (K, Dm)
    # A_log_init / D_init
    A = jnp.tile(jnp.arange(1, d_state + 1, dtype=jnp.float32)[None, :], (Dm, 1))
    p["A_logs"] = jnp.tile(jnp.log(A)[None], (K, 1, 1))                     # (K, Dm, N)
    p["Ds"] = jnp.ones((K, Dm), jnp.float32)

    dims = dict(C=C, Dm=Dm, N=d_state, R=R, K=K, hidden=hidden)
    return p, dims


# ----------------------------- forward pass -----------------------------

def vss_convg_forward(x, p, dims):
    B, H, W, C = x.shape
    Dm, N, R, K, hidden = dims["Dm"], dims["N"], dims["R"], dims["K"], dims["hidden"]
    L = H * W
    M = B * L
    Cout = Dm + 2 * N
    x2d = x.reshape(M, C)                                   # residual stream stays f32

    # ---------------- branch 1: x + SS2D(ln_1(x)) ----------------
    xz = fused_matmul(x2d, p["in_proj_w"], ln=(p["ln1_w"], p["ln1_b"], 1e-6),
                      out_dtype=jnp.bfloat16)                               # (M, 2*Dm)
    x1 = xz[:, :Dm].reshape(B, H, W, Dm)
    z2d = xz[:, Dm:]                                                        # gate (M, Dm)

    xc = dwconv3x3_silu(x1, p["conv2d_w"], p["conv2d_b"])                   # (B,H,W,Dm) bf16

    # two data layouts (hw / wh); reverse directions reuse them inside the scan kernel
    x_hw = xc.reshape(B, L, Dm)
    x_wh = jnp.transpose(xc, (0, 2, 1, 3)).reshape(B, L, Dm)
    xs2 = jnp.stack([x_hw, x_wh], axis=0)                                   # (2, B, L, Dm)

    # fold dt_proj into x_proj; pack (dt | B | C) for the fwd and rev dir of each layout
    Wx = p["x_proj_w"]                                                      # (K, R+2N, Dm)
    W_dt = jnp.einsum("krd,ker->kde", Wx[:, :R, :], p["dt_projs_w"])        # (K, Dm, Dm)
    W_B = jnp.transpose(Wx[:, R:R + N, :], (0, 2, 1))                       # (K, Dm, N)
    W_C = jnp.transpose(Wx[:, R + N:, :], (0, 2, 1))                        # (K, Dm, N)
    W_comb = jnp.concatenate([W_dt, W_B, W_C], axis=-1)                     # (K, Dm, Cout)
    W_pair = jnp.concatenate([W_comb[:2], W_comb[2:]], axis=-1)             # (2, Dm, 2*Cout)

    x_dbl = dir_proj(xs2.reshape(2, M, Dm), W_pair)                         # (2, M, 2*Cout)

    A_T = -jnp.exp(jnp.transpose(p["A_logs"], (0, 2, 1)))                   # (K, N, Dm)
    A_pair = jnp.stack([A_T[:2], A_T[2:]], axis=1)                          # (2, 2, N, Dm)
    D_pair = jnp.stack([p["Ds"][:2], p["Ds"][2:]], axis=1).reshape(2, 2, 1, Dm)
    dtb_pair = jnp.stack([p["dt_projs_b"][:2], p["dt_projs_b"][2:]],
                         axis=1).reshape(2, 2, 1, Dm)

    out_y = selective_scan(xs2, x_dbl.reshape(2, B, L, 2 * Cout),
                           A_pair, D_pair, dtb_pair, B=B, L=L, Dm=Dm, N=N)  # (2, B, L, Dm)

    # recombine layouts (fwd + rev were already summed in-kernel; wh -> hw reorder here)
    y = out_y[0] + jnp.transpose(out_y[1].reshape(B, W, H, Dm),
                                 (0, 2, 1, 3)).reshape(B, L, Dm)

    # out_norm + (* silu(z)) + out_proj + residual, all fused in one matmul kernel.
    x2d = fused_matmul(y.reshape(M, Dm), p["out_proj_w"], gate=z2d, residual=x2d,
                       ln=(p["out_norm_w"], p["out_norm_b"], 1e-5))         # (M, C) f32

    # ---------------- branch 2: x + ConvolutionalGLU(ln_2(x)) ----------------
    h12 = fused_matmul(x2d, p["fc1_w"], bias=p["fc1_b"],
                       ln=(p["ln2_w"], p["ln2_b"], 1e-6),
                       out_dtype=jnp.bfloat16)                              # (M, 2*hidden)
    hx = h12[:, :hidden].reshape(B, H, W, hidden)
    hv = h12[:, hidden:].reshape(B, H, W, hidden)
    hg = dwconv3x3_silu(hx, p["glu_dw_w"], p["glu_dw_b"], gate=hv)          # silu(dw(hx))*hv
    out = fused_matmul(hg.reshape(M, hidden), p["fc2_w"], bias=p["fc2_b"],
                       residual=x2d)                                        # (M, C) f32
    return out.reshape(B, H, W, C)


# ----------------------------- main -----------------------------

if __name__ == "__main__":
    key = jax.random.PRNGKey(0)
    kx, kp = jax.random.split(key)

    B, H, W, C = 2, 8, 8, 16           # hidden_dim = 16, d_state = 16
    x = jax.random.normal(kx, (B, H, W, C), dtype=jnp.float32)
    params, dims = init_params(kp, C, d_state=16, expand=2, mlp_ratio=2.0 / 3.0)

    fwd = jax.jit(functools.partial(vss_convg_forward, dims=dims))
    out = jax.block_until_ready(fwd(x, params))
    assert out.shape == (B, H, W, C)
    assert bool(jnp.all(jnp.isfinite(out)))
    print("KERNEL_OK")
</pallas_src>

<mosaic_0001>
module attributes {stable_mosaic.version = 11 : i64} {
  func.func @_fused_matmul_kernel(%arg0: i32, %arg1: i32, %arg2: memref<128x16xf32, #tpu.memory_space<vmem>>, %arg3: memref<1x16xf32, #tpu.memory_space<vmem>>, %arg4: memref<1x16xf32, #tpu.memory_space<vmem>>, %arg5: memref<16x64xf32, #tpu.memory_space<vmem>>, %arg6: memref<128x64xbf16, #tpu.memory_space<vmem>>) attributes {dimension_semantics = [#tpu.dimension_semantics<parallel>, #tpu.dimension_semantics<parallel>], iteration_bounds = array<i64: 1, 1>, scalar_prefetch = 0 : i64, scratch_operands = 0 : i64, tpu.core_type = #tpu.core_type<tc>, window_params = [{transform_indices = @transform_0, window_bounds = array<i64: 128, 16>}, {pipeline_mode = #tpu.pipeline_mode<synchronous>, transform_indices = @transform_1, window_bounds = array<i64: 1, 16>}, {pipeline_mode = #tpu.pipeline_mode<synchronous>, transform_indices = @transform_2, window_bounds = array<i64: 1, 16>}, {transform_indices = @transform_3, window_bounds = array<i64: 16, 64>}, {transform_indices = @transform_4, window_bounds = array<i64: 128, 64>}]} {
    %c0 = arith.constant 0 : index
    %c0_0 = arith.constant 0 : index
    %0 = vector.load %arg2[%c0, %c0_0] : memref<128x16xf32, #tpu.memory_space<vmem>>, vector<128x16xf32>
    %cst = arith.constant dense<0.000000e+00> : vector<128xf32>
    %1 = vector.multi_reduction <add>, %0, %cst [1] : vector<128x16xf32> to vector<128xf32>
    %2 = vector.shape_cast %1 : vector<128xf32> to vector<128x1xf32>
    %cst_1 = arith.constant 1.600000e+01 : f32
    %3 = vector.broadcast %cst_1 : f32 to vector<128x1xf32>
    %4 = arith.divf %2, %3 : vector<128x1xf32>
    %5 = vector.broadcast %4 : vector<128x1xf32> to vector<128x16xf32>
    %6 = arith.subf %0, %5 : vector<128x16xf32>
    %7 = arith.mulf %6, %6 : vector<128x16xf32>
    %cst_2 = arith.constant dense<0.000000e+00> : vector<128xf32>
    %8 = vector.multi_reduction <add>, %7, %cst_2 [1] : vector<128x16xf32> to vector<128xf32>
    %9 = vector.shape_cast %8 : vector<128xf32> to vector<128x1xf32>
    %cst_3 = arith.constant 1.600000e+01 : f32
    %10 = vector.broadcast %cst_3 : f32 to vector<128x1xf32>
    %11 = arith.divf %9, %10 : vector<128x1xf32>
    %cst_4 = arith.constant 9.99999997E-7 : f32
    %12 = vector.broadcast %cst_4 : f32 to vector<128x1xf32>
    %13 = arith.addf %11, %12 : vector<128x1xf32>
    %14 = math.rsqrt %13 : vector<128x1xf32>
    %15 = vector.broadcast %14 : vector<128x1xf32> to vector<128x16xf32>
    %16 = arith.mulf %6, %15 : vector<128x16xf32>
    %c0_5 = arith.constant 0 : index
    %c0_6 = arith.constant 0 : index
    %17 = vector.load %arg3[%c0_5, %c0_6] : memref<1x16xf32, #tpu.memory_space<vmem>>, vector<1x16xf32>
    %18 = vector.broadcast %17 : vector<1x16xf32> to vector<128x16xf32>
    %19 = arith.mulf %16, %18 : vector<128x16xf32>
    %c0_7 = arith.constant 0 : index
    %c0_8 = arith.constant 0 : index
    %20 = vector.load %arg4[%c0_7, %c0_8] : memref<1x16xf32, #tpu.memory_space<vmem>>, vector<1x16xf32>
    %21 = vector.broadcast %20 : vector<1x16xf32> to vector<128x16xf32>
    %22 = arith.addf %19, %21 : vector<128x16xf32>
    %23 = arith.truncf %22 : vector<128x16xf32> to vector<128x16xbf16>
    %c0_9 = arith.constant 0 : index
    %c0_10 = arith.constant 0 : index
    %24 = vector.load %arg5[%c0_9, %c0_10] : memref<16x64xf32, #tpu.memory_space<vmem>>, vector<16x64xf32>
    %25 = arith.truncf %24 : vector<16x64xf32> to vector<16x64xbf16>
    %cst_11 = arith.constant dense<0.000000e+00> : vector<128x64xf32>
    %26 = tpu.matmul %23, %25, %cst_11 {dimension_numbers = #tpu.dot_dimension_numbers<[1], [0], [0], [1], [0, 0, 1, 1], [], []>} : vector<128x16xbf16>, vector<16x64xbf16>, vector<128x64xf32> -> vector<128x64xf32>
    %27 = arith.truncf %26 : vector<128x64xf32> to vector<128x64xbf16>
    %c0_12 = arith.constant 0 : index
    %c0_13 = arith.constant 0 : index
    %28 = vector.load %arg6[%c0_12, %c0_13] : memref<128x64xbf16, #tpu.memory_space<vmem>>, vector<128x64xbf16>
    tpu.vector_store %arg6[%c0_12, %c0_13], %27 {strides = array<i32>} : memref<128x64xbf16, #tpu.memory_space<vmem>>, vector<128x64xbf16>,
    return
  }
  func.func @transform_0(%arg0: i32, %arg1: i32) -> (i32, i32) {
    %c0_i32 = arith.constant 0 : i32
    %c0_i32_0 = arith.constant 0 : i32
    return %arg0, %c0_i32 : i32, i32
  }
  func.func @transform_1(%arg0: i32, %arg1: i32) -> (i32, i32) {
    %c0_i32 = arith.constant 0 : i32
    %c0_i32_0 = arith.constant 0 : i32
    %c0_i32_1 = arith.constant 0 : i32
    return %c0_i32, %c0_i32_0 : i32, i32
  }
  func.func @transform_2(%arg0: i32, %arg1: i32) -> (i32, i32) {
    %c0_i32 = arith.constant 0 : i32
    %c0_i32_0 = arith.constant 0 : i32
    %c0_i32_1 = arith.constant 0 : i32
    return %c0_i32, %c0_i32_0 : i32, i32
  }
  func.func @transform_3(%arg0: i32, %arg1: i32) -> (i32, i32) {
    %c0_i32 = arith.constant 0 : i32
    %c0_i32_0 = arith.constant 0 : i32
    return %c0_i32, %arg1 : i32, i32
  }
  func.func @transform_4(%arg0: i32, %arg1: i32) -> (i32, i32) {
    %c0_i32 = arith.constant 0 : i32
    return %arg0, %arg1 : i32, i32
  }
}

module attributes {stable_mosaic.version = 11 : i64} {
  func.func @_dwconv3x3_kernel(%arg0: i32, %arg1: memref<1x8x8x32xbf16, #tpu.memory_space<vmem>>, %arg2: memref<9x32xf32, #tpu.memory_space<vmem>>, %arg3: memref<1x32xf32, #tpu.memory_space<vmem>>, %arg4: memref<1x8x8x32xbf16, #tpu.memory_space<vmem>>, %arg5: memref<10x10x32xf32, #tpu.memory_space<vmem>>) attributes {dimension_semantics = [#tpu.dimension_semantics<parallel>], iteration_bounds = array<i64: 2>, scalar_prefetch = 0 : i64, scratch_operands = 1 : i64, tpu.core_type = #tpu.core_type<tc>, window_params = [{transform_indices = @transform_0, window_bounds = array<i64: 1, 8, 8, 32>}, {pipeline_mode = #tpu.pipeline_mode<synchronous>, transform_indices = @transform_1, window_bounds = array<i64: 9, 32>}, {pipeline_mode = #tpu.pipeline_mode<synchronous>, transform_indices = @transform_2, window_bounds = array<i64: 1, 32>}, {transform_indices = @transform_3, window_bounds = array<i64: 1, 8, 8, 32>}]} {
    %cst = arith.constant 0.000000e+00 : f32
    %0 = vector.broadcast %cst : f32 to vector<10x10x32xf32>
    %c0 = arith.constant 0 : index
    %c0_0 = arith.constant 0 : index
    %c0_1 = arith.constant 0 : index
    %1 = vector.load %arg5[%c0, %c0_0, %c0_1] : memref<10x10x32xf32, #tpu.memory_space<vmem>>, vector<10x10x32xf32>
    tpu.vector_store %arg5[%c0, %c0_0, %c0_1], %0 {strides = array<i32>} : memref<10x10x32xf32, #tpu.memory_space<vmem>>, vector<10x10x32xf32>,
    %c0_2 = arith.constant 0 : index
    %c0_3 = arith.constant 0 : index
    %c0_4 = arith.constant 0 : index
    %c0_5 = arith.constant 0 : index
    %2 = vector.load %arg1[%c0_2, %c0_3, %c0_4, %c0_5] : memref<1x8x8x32xbf16, #tpu.memory_space<vmem>>, vector<1x8x8x32xbf16>
    %3 = vector.shape_cast %2 : vector<1x8x8x32xbf16> to vector<8x8x32xbf16>
    %4 = arith.extf %3 : vector<8x8x32xbf16> to vector<8x8x32xf32>
    %c1 = arith.constant 1 : index
    %c1_6 = arith.constant 1 : index
    %c0_7 = arith.constant 0 : index
    %5 = vector.load %arg5[%c1, %c1_6, %c0_7] : memref<10x10x32xf32, #tpu.memory_space<vmem>>, vector<8x8x32xf32>
    tpu.vector_store %arg5[%c1, %c1_6, %c0_7], %4 {strides = array<i32>} : memref<10x10x32xf32, #tpu.memory_space<vmem>>, vector<8x8x32xf32>,
    %cst_8 = arith.constant 0.000000e+00 : f32
    %6 = vector.broadcast %cst_8 : f32 to vector<8x8x32xf32>
    %c0_9 = arith.constant 0 : index
    %c0_10 = arith.constant 0 : index
    %c0_11 = arith.constant 0 : index
    %7 = vector.load %arg5[%c0_9, %c0_10, %c0_11] : memref<10x10x32xf32, #tpu.memory_space<vmem>>, vector<8x8x32xf32>
    %c0_12 = arith.constant 0 : index
    %c0_13 = arith.constant 0 : index
    %8 = vector.load %arg2[%c0_12, %c0_13] : memref<9x32xf32, #tpu.memory_space<vmem>>, vector<1x32xf32>
    %9 = vector.shape_cast %8 : vector<1x32xf32> to vector<1x1x32xf32>
    %10 = vector.broadcast %9 : vector<1x1x32xf32> to vector<8x8x32xf32>
    %11 = arith.mulf %7, %10 : vector<8x8x32xf32>
    %12 = arith.addf %6, %11 : vector<8x8x32xf32>
    %c0_14 = arith.constant 0 : index
    %c1_15 = arith.constant 1 : index
    %c0_16 = arith.constant 0 : index
    %13 = vector.load %arg5[%c0_14, %c1_15, %c0_16] : memref<10x10x32xf32, #tpu.memory_space<vmem>>, vector<8x8x32xf32>
    %c1_17 = arith.constant 1 : index
    %c0_18 = arith.constant 0 : index
    %14 = vector.load %arg2[%c1_17, %c0_18] : memref<9x32xf32, #tpu.memory_space<vmem>>, vector<1x32xf32>
    %15 = vector.shape_cast %14 : vector<1x32xf32> to vector<1x1x32xf32>
    %16 = vector.broadcast %15 : vector<1x1x32xf32> to vector<8x8x32xf32>
    %17 = arith.mulf %13, %16 : vector<8x8x32xf32>
    %18 = arith.addf %12, %17 : vector<8x8x32xf32>
    %c0_19 = arith.constant 0 : index
    %c2 = arith.constant 2 : index
    %c0_20 = arith.constant 0 : index
    %19 = vector.load %arg5[%c0_19, %c2, %c0_20] : memref<10x10x32xf32, #tpu.memory_space<vmem>>, vector<8x8x32xf32>
    %c2_21 = arith.constant 2 : index
    %c0_22 = arith.constant 0 : index
    %20 = vector.load %arg2[%c2_21, %c0_22] : memref<9x32xf32, #tpu.memory_space<vmem>>, vector<1x32xf32>
    %21 = vector.shape_cast %20 : vector<1x32xf32> to vector<1x1x32xf32>
    %22 = vector.broadcast %21 : vector<1x1x32xf32> to vector<8x8x32xf32>
    %23 = arith.mulf %19, %22 : vector<8x8x32xf32>
    %24 = arith.addf %18, %23 : vector<8x8x32xf32>
    %c1_23 = arith.constant 1 : index
    %c0_24 = arith.constant 0 : index
    %c0_25 = arith.constant 0 : index
    %25 = vector.load %arg5[%c1_23, %c0_24, %c0_25] : memref<10x10x32xf32, #tpu.memory_space<vmem>>, vector<8x8x32xf32>
    %c3 = arith.constant 3 : index
    %c0_26 = arith.constant 0 : index
    %26 = vector.load %arg2[%c3, %c0_26] : memref<9x32xf32, #tpu.memory_space<vmem>>, vector<1x32xf32>
    %27 = vector.shape_cast %26 : vector<1x32xf32> to vector<1x1x32xf32>
    %28 = vector.broadcast %27 : vector<1x1x32xf32> to vector<8x8x32xf32>
    %29 = arith.mulf %25, %28 : vector<8x8x32xf32>
    %30 = arith.addf %24, %29 : vector<8x8x32xf32>
    %c1_27 = arith.constant 1 : index
    %c1_28 = arith.constant 1 : index
    %c0_29 = arith.constant 0 : index
    %31 = vector.load %arg5[%c1_27, %c1_28, %c0_29] : memref<10x10x32xf32, #tpu.memory_space<vmem>>, vector<8x8x32xf32>
    %c4 = arith.constant 4 : index
    %c0_30 = arith.constant 0 : index
    %32 = vector.load %arg2[%c4, %c0_30] : memref<9x32xf32, #tpu.memory_space<vmem>>, vector<1x32xf32>
    %33 = vector.shape_cast %32 : vector<1x32xf32> to vector<1x1x32xf32>
    %34 = vector.broadcast %33 : vector<1x1x32xf32> to vector<8x8x32xf32>
    %35 = arith.mulf %31, %34 : vector<8x8x32xf32>
    %36 = arith.addf %30, %35 : vector<8x8x32xf32>
    %c1_31 = arith.constant 1 : index
    %c2_32 = arith.constant 2 : index
    %c0_33 = arith.constant 0 : index
    %37 = vector.load %arg5[%c1_31, %c2_32, %c0_33] : memref<10x10x32xf32, #tpu.memory_space<vmem>>, vector<8x8x32xf32>
    %c5 = arith.constant 5 : index
    %c0_34 = arith.constant 0 : index
    %38 = vector.load %arg2[%c5, %c0_34] : memref<9x32xf32, #tpu.memory_space<vmem>>, vector<1x32xf32>
    %39 = vector.shape_cast %38 : vector<1x32xf32> to vector<1x1x32xf32>
    %40 = vector.broadcast %39 : vector<1x1x32xf32> to vector<8x8x32xf32>
    %41 = arith.mulf %37, %40 : vector<8x8x32xf32>
    %42 = arith.addf %36, %41 : vector<8x8x32xf32>
    %c2_35 = arith.constant 2 : index
    %c0_36 = arith.constant 0 : index
    %c0_37 = arith.constant 0 : index
    %43 = vector.load %arg5[%c2_35, %c0_36, %c0_37] : memref<10x10x32xf32, #tpu.memory_space<vmem>>, vector<8x8x32xf32>
    %c6 = arith.constant 6 : index
    %c0_38 = arith.constant 0 : index
    %44 = vector.load %arg2[%c6, %c0_38] : memref<9x32xf32, #tpu.memory_space<vmem>>, vector<1x32xf32>
    %45 = vector.shape_cast %44 : vector<1x32xf32> to vector<1x1x32xf32>
    %46 = vector.broadcast %45 : vector<1x1x32xf32> to vector<8x8x32xf32>
    %47 = arith.mulf %43, %46 : vector<8x8x32xf32>
    %48 = arith.addf %42, %47 : vector<8x8x32xf32>
    %c2_39 = arith.constant 2 : index
    %c1_40 = arith.constant 1 : index
    %c0_41 = arith.constant 0 : index
    %49 = vector.load %arg5[%c2_39, %c1_40, %c0_41] : memref<10x10x32xf32, #tpu.memory_space<vmem>>, vector<8x8x32xf32>
    %c7 = arith.constant 7 : index
    %c0_42 = arith.constant 0 : index
    %50 = vector.load %arg2[%c7, %c0_42] : memref<9x32xf32, #tpu.memory_space<vmem>>, vector<1x32xf32>
    %51 = vector.shape_cast %50 : vector<1x32xf32> to vector<1x1x32xf32>
    %52 = vector.broadcast %51 : vector<1x1x32xf32> to vector<8x8x32xf32>
    %53 = arith.mulf %49, %52 : vector<8x8x32xf32>
    %54 = arith.addf %48, %53 : vector<8x8x32xf32>
    %c2_43 = arith.constant 2 : index
    %c2_44 = arith.constant 2 : index
    %c0_45 = arith.constant 0 : index
    %55 = vector.load %arg5[%c2_43, %c2_44, %c0_45] : memref<10x10x32xf32, #tpu.memory_space<vmem>>, vector<8x8x32xf32>
    %c8 = arith.constant 8 : index
    %c0_46 = arith.constant 0 : index
    %56 = vector.load %arg2[%c8, %c0_46] : memref<9x32xf32, #tpu.memory_space<vmem>>, vector<1x32xf32>
    %57 = vector.shape_cast %56 : vector<1x32xf32> to vector<1x1x32xf32>
    %58 = vector.broadcast %57 : vector<1x1x32xf32> to vector<8x8x32xf32>
    %59 = arith.mulf %55, %58 : vector<8x8x32xf32>
    %60 = arith.addf %54, %59 : vector<8x8x32xf32>
    %c0_47 = arith.constant 0 : index
    %c0_48 = arith.constant 0 : index
    %61 = vector.load %arg3[%c0_47, %c0_48] : memref<1x32xf32, #tpu.memory_space<vmem>>, vector<1x32xf32>
    %62 = vector.shape_cast %61 : vector<1x32xf32> to vector<1x1x32xf32>
    %63 = vector.broadcast %62 : vector<1x1x32xf32> to vector<8x8x32xf32>
    %64 = arith.addf %60, %63 : vector<8x8x32xf32>
    %cst_49 = arith.constant 0.000000e+00 : f32
    %65 = vector.broadcast %cst_49 : f32 to vector<8x8x32xf32>
    %66 = arith.subf %65, %64 : vector<8x8x32xf32>
    %67 = math.exp %66 : vector<8x8x32xf32>
    %cst_50 = arith.constant 1.000000e+00 : f32
    %68 = vector.broadcast %cst_50 : f32 to vector<8x8x32xf32>
    %69 = arith.addf %68, %67 : vector<8x8x32xf32>
    %cst_51 = arith.constant 1.000000e+00 : f32
    %70 = vector.broadcast %cst_51 : f32 to vector<8x8x32xf32>
    %71 = arith.divf %70, %69 : vector<8x8x32xf32>
    %72 = arith.mulf %64, %71 : vector<8x8x32xf32>
    %73 = arith.truncf %72 : vector<8x8x32xf32> to vector<8x8x32xbf16>
    %c0_52 = arith.constant 0 : index
    %c0_53 = arith.constant 0 : index
    %c0_54 = arith.constant 0 : index
    %c0_55 = arith.constant 0 : index
    %74 = vector.load %arg4[%c0_52, %c0_53, %c0_54, %c0_55] : memref<1x8x8x32xbf16, #tpu.memory_space<vmem>>, vector<1x8x8x32xbf16>
    %75 = vector.shape_cast %74 : vector<1x8x8x32xbf16> to vector<8x8x32xbf16>
    %76 = vector.shape_cast %73 : vector<8x8x32xbf16> to vector<1x8x8x32xbf16>
    tpu.vector_store %arg4[%c0_52, %c0_53, %c0_54, %c0_55], %76 {strides = array<i32>} : memref<1x8x8x32xbf16, #tpu.memory_space<vmem>>, vector<1x8x8x32xbf16>,
    return
  }
  func.func @transform_0(%arg0: i32) -> (i32, i32, i32, i32) {
    %c0_i32 = arith.constant 0 : i32
    %c0_i32_0 = arith.constant 0 : i32
    %c0_i32_1 = arith.constant 0 : i32
    %c0_i32_2 = arith.constant 0 : i32
    return %arg0, %c0_i32, %c0_i32_0, %c0_i32_1 : i32, i32, i32, i32
  }
  func.func @transform_1(%arg0: i32) -> (i32, i32) {
    %c0_i32 = arith.constant 0 : i32
    %c0_i32_0 = arith.constant 0 : i32
    %c0_i32_1 = arith.constant 0 : i32
    return %c0_i32, %c0_i32_0 : i32, i32
  }
  func.func @transform_2(%arg0: i32) -> (i32, i32) {
    %c0_i32 = arith.constant 0 : i32
    %c0_i32_0 = arith.constant 0 : i32
    %c0_i32_1 = arith.constant 0 : i32
    return %c0_i32, %c0_i32_0 : i32, i32
  }
  func.func @transform_3(%arg0: i32) -> (i32, i32, i32, i32) {
    %c0_i32 = arith.constant 0 : i32
    %c0_i32_0 = arith.constant 0 : i32
    %c0_i32_1 = arith.constant 0 : i32
    %c0_i32_2 = arith.constant 0 : i32
    return %arg0, %c0_i32, %c0_i32_0, %c0_i32_1 : i32, i32, i32, i32
  }
}

module attributes {stable_mosaic.version = 11 : i64} {
  func.func @_dir_proj_kernel(%arg0: i32, %arg1: i32, %arg2: memref<1x128x32xbf16, #tpu.memory_space<vmem>>, %arg3: memref<1x32x128xf32, #tpu.memory_space<vmem>>, %arg4: memref<1x128x128xbf16, #tpu.memory_space<vmem>>) attributes {dimension_semantics = [#tpu.dimension_semantics<parallel>, #tpu.dimension_semantics<parallel>], iteration_bounds = array<i64: 2, 1>, scalar_prefetch = 0 : i64, scratch_operands = 0 : i64, tpu.core_type = #tpu.core_type<tc>, window_params = [{transform_indices = @transform_0, window_bounds = array<i64: 1, 128, 32>}, {transform_indices = @transform_1, window_bounds = array<i64: 1, 32, 128>}, {transform_indices = @transform_2, window_bounds = array<i64: 1, 128, 128>}]} {
    %c0 = arith.constant 0 : index
    %c0_0 = arith.constant 0 : index
    %c0_1 = arith.constant 0 : index
    %0 = vector.load %arg2[%c0, %c0_0, %c0_1] : memref<1x128x32xbf16, #tpu.memory_space<vmem>>, vector<1x128x32xbf16>
    %1 = vector.shape_cast %0 : vector<1x128x32xbf16> to vector<128x32xbf16>
    %c0_2 = arith.constant 0 : index
    %c0_3 = arith.constant 0 : index
    %c0_4 = arith.constant 0 : index
    %2 = vector.load %arg3[%c0_2, %c0_3, %c0_4] : memref<1x32x128xf32, #tpu.memory_space<vmem>>, vector<1x32x128xf32>
    %3 = vector.shape_cast %2 : vector<1x32x128xf32> to vector<32x128xf32>
    %4 = arith.truncf %3 : vector<32x128xf32> to vector<32x128xbf16>
    %cst = arith.constant dense<0.000000e+00> : vector<128x128xf32>
    %5 = tpu.matmul %1, %4, %cst {dimension_numbers = #tpu.dot_dimension_numbers<[1], [0], [0], [1], [0, 0, 1, 1], [], []>} : vector<128x32xbf16>, vector<32x128xbf16>, vector<128x128xf32> -> vector<128x128xf32>
    %6 = arith.truncf %5 : vector<128x128xf32> to vector<128x128xbf16>
    %c0_5 = arith.constant 0 : index
    %c0_6 = arith.constant 0 : index
    %c0_7 = arith.constant 0 : index
    %7 = vector.load %arg4[%c0_5, %c0_6, %c0_7] : memref<1x128x128xbf16, #tpu.memory_space<vmem>>, vector<1x128x128xbf16>
    %8 = vector.shape_cast %7 : vector<1x128x128xbf16> to vector<128x128xbf16>
    %9 = vector.shape_cast %6 : vector<128x128xbf16> to vector<1x128x128xbf16>
    tpu.vector_store %arg4[%c0_5, %c0_6, %c0_7], %9 {strides = array<i32>} : memref<1x128x128xbf16, #tpu.memory_space<vmem>>, vector<1x128x128xbf16>,
    return
  }
  func.func @transform_0(%arg0: i32, %arg1: i32) -> (i32, i32, i32) {
    %c0_i32 = arith.constant 0 : i32
    %c0_i32_0 = arith.constant 0 : i32
    return %arg0, %arg1, %c0_i32 : i32, i32, i32
  }
  func.func @transform_1(%arg0: i32, %arg1: i32) -> (i32, i32, i32) {
    %c0_i32 = arith.constant 0 : i32
    %c0_i32_0 = arith.constant 0 : i32
    %c0_i32_1 = arith.constant 0 : i32
    return %arg0, %c0_i32, %c0_i32_0 : i32, i32, i32
  }
  func.func @transform_2(%arg0: i32, %arg1: i32) -> (i32, i32, i32) {
    %c0_i32 = arith.constant 0 : i32
    %c0_i32_0 = arith.constant 0 : i32
    return %arg0, %arg1, %c0_i32 : i32, i32, i32
  }
}

module attributes {stable_mosaic.version = 11 : i64} {
  func.func @_fused_matmul_kernel(%arg0: i32, %arg1: i32, %arg2: memref<128x16xf32, #tpu.memory_space<vmem>>, %arg3: memref<1x16xf32, #tpu.memory_space<vmem>>, %arg4: memref<1x16xf32, #tpu.memory_space<vmem>>, %arg5: memref<16x20xf32, #tpu.memory_space<vmem>>, %arg6: memref<1x20xf32, #tpu.memory_space<vmem>>, %arg7: memref<128x20xbf16, #tpu.memory_space<vmem>>) attributes {dimension_semantics = [#tpu.dimension_semantics<parallel>, #tpu.dimension_semantics<parallel>], iteration_bounds = array<i64: 1, 1>, scalar_prefetch = 0 : i64, scratch_operands = 0 : i64, tpu.core_type = #tpu.core_type<tc>, window_params = [{transform_indices = @transform_0, window_bounds = array<i64: 128, 16>}, {pipeline_mode = #tpu.pipeline_mode<synchronous>, transform_indices = @transform_1, window_bounds = array<i64: 1, 16>}, {pipeline_mode = #tpu.pipeline_mode<synchronous>, transform_indices = @transform_2, window_bounds = array<i64: 1, 16>}, {transform_indices = @transform_3, window_bounds = array<i64: 16, 20>}, {transform_indices = @transform_4, window_bounds = array<i64: 1, 20>}, {transform_indices = @transform_5, window_bounds = array<i64: 128, 20>}]} {
    %c0 = arith.constant 0 : index
    %c0_0 = arith.constant 0 : index
    %0 = vector.load %arg2[%c0, %c0_0] : memref<128x16xf32, #tpu.memory_space<vmem>>, vector<128x16xf32>
    %cst = arith.constant dense<0.000000e+00> : vector<128xf32>
    %1 = vector.multi_reduction <add>, %0, %cst [1] : vector<128x16xf32> to vector<128xf32>
    %2 = vector.shape_cast %1 : vector<128xf32> to vector<128x1xf32>
    %cst_1 = arith.constant 1.600000e+01 : f32
    %3 = vector.broadcast %cst_1 : f32 to vector<128x1xf32>
    %4 = arith.divf %2, %3 : vector<128x1xf32>
    %5 = vector.broadcast %4 : vector<128x1xf32> to vector<128x16xf32>
    %6 = arith.subf %0, %5 : vector<128x16xf32>
    %7 = arith.mulf %6, %6 : vector<128x16xf32>
    %cst_2 = arith.constant dense<0.000000e+00> : vector<128xf32>
    %8 = vector.multi_reduction <add>, %7, %cst_2 [1] : vector<128x16xf32> to vector<128xf32>
    %9 = vector.shape_cast %8 : vector<128xf32> to vector<128x1xf32>
    %cst_3 = arith.constant 1.600000e+01 : f32
    %10 = vector.broadcast %cst_3 : f32 to vector<128x1xf32>
    %11 = arith.divf %9, %10 : vector<128x1xf32>
    %cst_4 = arith.constant 9.99999997E-7 : f32
    %12 = vector.broadcast %cst_4 : f32 to vector<128x1xf32>
    %13 = arith.addf %11, %12 : vector<128x1xf32>
    %14 = math.rsqrt %13 : vector<128x1xf32>
    %15 = vector.broadcast %14 : vector<128x1xf32> to vector<128x16xf32>
    %16 = arith.mulf %6, %15 : vector<128x16xf32>
    %c0_5 = arith.constant 0 : index
    %c0_6 = arith.constant 0 : index
    %17 = vector.load %arg3[%c0_5, %c0_6] : memref<1x16xf32, #tpu.memory_space<vmem>>, vector<1x16xf32>
    %18 = vector.broadcast %17 : vector<1x16xf32> to vector<128x16xf32>
    %19 = arith.mulf %16, %18 : vector<128x16xf32>
    %c0_7 = arith.constant 0 : index
    %c0_8 = arith.constant 0 : index
    %20 = vector.load %arg4[%c0_7, %c0_8] : memref<1x16xf32, #tpu.memory_space<vmem>>, vector<1x16xf32>
    %21 = vector.broadcast %20 : vector<1x16xf32> to vector<128x16xf32>
    %22 = arith.addf %19, %21 : vector<128x16xf32>
    %23 = arith.truncf %22 : vector<128x16xf32> to vector<128x16xbf16>
    %c0_9 = arith.constant 0 : index
    %c0_10 = arith.constant 0 : index
    %24 = vector.load %arg5[%c0_9, %c0_10] : memref<16x20xf32, #tpu.memory_space<vmem>>, vector<16x20xf32>
    %25 = arith.truncf %24 : vector<16x20xf32> to vector<16x20xbf16>
    %cst_11 = arith.constant dense<0.000000e+00> : vector<128x20xf32>
    %26 = tpu.matmul %23, %25, %cst_11 {dimension_numbers = #tpu.dot_dimension_numbers<[1], [0], [0], [1], [0, 0, 1, 1], [], []>} : vector<128x16xbf16>, vector<16x20xbf16>, vector<128x20xf32> -> vector<128x20xf32>
    %c0_12 = arith.constant 0 : index
    %c0_13 = arith.constant 0 : index
    %27 = vector.load %arg6[%c0_12, %c0_13] : memref<1x20xf32, #tpu.memory_space<vmem>>, vector<1x20xf32>
    %28 = vector.broadcast %27 : vector<1x20xf32> to vector<128x20xf32>
    %29 = arith.addf %26, %28 : vector<128x20xf32>
    %30 = arith.truncf %29 : vector<128x20xf32> to vector<128x20xbf16>
    %c0_14 = arith.constant 0 : index
    %c0_15 = arith.constant 0 : index
    %31 = vector.load %arg7[%c0_14, %c0_15] : memref<128x20xbf16, #tpu.memory_space<vmem>>, vector<128x20xbf16>
    tpu.vector_store %arg7[%c0_14, %c0_15], %30 {strides = array<i32>} : memref<128x20xbf16, #tpu.memory_space<vmem>>, vector<128x20xbf16>,
    return
  }
  func.func @transform_0(%arg0: i32, %arg1: i32) -> (i32, i32) {
    %c0_i32 = arith.constant 0 : i32
    %c0_i32_0 = arith.constant 0 : i32
    return %arg0, %c0_i32 : i32, i32
  }
  func.func @transform_1(%arg0: i32, %arg1: i32) -> (i32, i32) {
    %c0_i32 = arith.constant 0 : i32
    %c0_i32_0 = arith.constant 0 : i32
    %c0_i32_1 = arith.constant 0 : i32
    return %c0_i32, %c0_i32_0 : i32, i32
  }
  func.func @transform_2(%arg0: i32, %arg1: i32) -> (i32, i32) {
    %c0_i32 = arith.constant 0 : i32
    %c0_i32_0 = arith.constant 0 : i32
    %c0_i32_1 = arith.constant 0 : i32
    return %c0_i32, %c0_i32_0 : i32, i32
  }
  func.func @transform_3(%arg0: i32, %arg1: i32) -> (i32, i32) {
    %c0_i32 = arith.constant 0 : i32
    %c0_i32_0 = arith.constant 0 : i32
    return %c0_i32, %arg1 : i32, i32
  }
  func.func @transform_4(%arg0: i32, %arg1: i32) -> (i32, i32) {
    %c0_i32 = arith.constant 0 : i32
    %c0_i32_0 = arith.constant 0 : i32
    return %c0_i32, %arg1 : i32, i32
  }
  func.func @transform_5(%arg0: i32, %arg1: i32) -> (i32, i32) {
    %c0_i32 = arith.constant 0 : i32
    return %arg0, %arg1 : i32, i32
  }
}

module attributes {stable_mosaic.version = 11 : i64} {
  func.func @_fused_matmul_kernel(%arg0: i32, %arg1: i32, %arg2: memref<128x32xbf16, #tpu.memory_space<vmem>>, %arg3: memref<128x32xbf16, #tpu.memory_space<vmem>>, %arg4: memref<128x16xf32, #tpu.memory_space<vmem>>, %arg5: memref<1x32xf32, #tpu.memory_space<vmem>>, %arg6: memref<1x32xf32, #tpu.memory_space<vmem>>, %arg7: memref<32x16xf32, #tpu.memory_space<vmem>>, %arg8: memref<128x16xf32, #tpu.memory_space<vmem>>) attributes {dimension_semantics = [#tpu.dimension_semantics<parallel>, #tpu.dimension_semantics<parallel>], iteration_bounds = array<i64: 1, 1>, scalar_prefetch = 0 : i64, scratch_operands = 0 : i64, tpu.core_type = #tpu.core_type<tc>, window_params = [{transform_indices = @transform_0, window_bounds = array<i64: 128, 32>}, {transform_indices = @transform_1, window_bounds = array<i64: 128, 32>}, {transform_indices = @transform_2, window_bounds = array<i64: 128, 16>}, {pipeline_mode = #tpu.pipeline_mode<synchronous>, transform_indices = @transform_3, window_bounds = array<i64: 1, 32>}, {pipeline_mode = #tpu.pipeline_mode<synchronous>, transform_indices = @transform_4, window_bounds = array<i64: 1, 32>}, {transform_indices = @transform_5, window_bounds = array<i64: 32, 16>}, {transform_indices = @transform_6, window_bounds = array<i64: 128, 16>}]} {
    %c0 = arith.constant 0 : index
    %c0_0 = arith.constant 0 : index
    %0 = vector.load %arg2[%c0, %c0_0] : memref<128x32xbf16, #tpu.memory_space<vmem>>, vector<128x32xbf16>
    %1 = arith.extf %0 : vector<128x32xbf16> to vector<128x32xf32>
    %cst = arith.constant dense<0.000000e+00> : vector<128xf32>
    %2 = vector.multi_reduction <add>, %1, %cst [1] : vector<128x32xf32> to vector<128xf32>
    %3 = vector.shape_cast %2 : vector<128xf32> to vector<128x1xf32>
    %cst_1 = arith.constant 3.200000e+01 : f32
    %4 = vector.broadcast %cst_1 : f32 to vector<128x1xf32>
    %5 = arith.divf %3, %4 : vector<128x1xf32>
    %6 = vector.broadcast %5 : vector<128x1xf32> to vector<128x32xf32>
    %7 = arith.subf %1, %6 : vector<128x32xf32>
    %8 = arith.mulf %7, %7 : vector<128x32xf32>
    %cst_2 = arith.constant dense<0.000000e+00> : vector<128xf32>
    %9 = vector.multi_reduction <add>, %8, %cst_2 [1] : vector<128x32xf32> to vector<128xf32>
    %10 = vector.shape_cast %9 : vector<128xf32> to vector<128x1xf32>
    %cst_3 = arith.constant 3.200000e+01 : f32
    %11 = vector.broadcast %cst_3 : f32 to vector<128x1xf32>
    %12 = arith.divf %10, %11 : vector<128x1xf32>
    %cst_4 = arith.constant 9.99999974E-6 : f32
    %13 = vector.broadcast %cst_4 : f32 to vector<128x1xf32>
    %14 = arith.addf %12, %13 : vector<128x1xf32>
    %15 = math.rsqrt %14 : vector<128x1xf32>
    %16 = vector.broadcast %15 : vector<128x1xf32> to vector<128x32xf32>
    %17 = arith.mulf %7, %16 : vector<128x32xf32>
    %c0_5 = arith.constant 0 : index
    %c0_6 = arith.constant 0 : index
    %18 = vector.load %arg5[%c0_5, %c0_6] : memref<1x32xf32, #tpu.memory_space<vmem>>, vector<1x32xf32>
    %19 = vector.broadcast %18 : vector<1x32xf32> to vector<128x32xf32>
    %20 = arith.mulf %17, %19 : vector<128x32xf32>
    %c0_7 = arith.constant 0 : index
    %c0_8 = arith.constant 0 : index
    %21 = vector.load %arg6[%c0_7, %c0_8] : memref<1x32xf32, #tpu.memory_space<vmem>>, vector<1x32xf32>
    %22 = vector.broadcast %21 : vector<1x32xf32> to vector<128x32xf32>
    %23 = arith.addf %20, %22 : vector<128x32xf32>
    %c0_9 = arith.constant 0 : index
    %c0_10 = arith.constant 0 : index
    %24 = vector.load %arg3[%c0_9, %c0_10] : memref<128x32xbf16, #tpu.memory_space<vmem>>, vector<128x32xbf16>
    %25 = arith.extf %24 : vector<128x32xbf16> to vector<128x32xf32>
    %cst_11 = arith.constant 0.000000e+00 : f32
    %26 = vector.broadcast %cst_11 : f32 to vector<128x32xf32>
    %27 = arith.subf %26, %25 : vector<128x32xf32>
    %28 = math.exp %27 : vector<128x32xf32>
    %cst_12 = arith.constant 1.000000e+00 : f32
    %29 = vector.broadcast %cst_12 : f32 to vector<128x32xf32>
    %30 = arith.addf %29, %28 : vector<128x32xf32>
    %cst_13 = arith.constant 1.000000e+00 : f32
    %31 = vector.broadcast %cst_13 : f32 to vector<128x32xf32>
    %32 = arith.divf %31, %30 : vector<128x32xf32>
    %33 = arith.mulf %25, %32 : vector<128x32xf32>
    %34 = arith.mulf %23, %33 : vector<128x32xf32>
    %35 = arith.truncf %34 : vector<128x32xf32> to vector<128x32xbf16>
    %c0_14 = arith.constant 0 : index
    %c0_15 = arith.constant 0 : index
    %36 = vector.load %arg7[%c0_14, %c0_15] : memref<32x16xf32, #tpu.memory_space<vmem>>, vector<32x16xf32>
    %37 = arith.truncf %36 : vector<32x16xf32> to vector<32x16xbf16>
    %cst_16 = arith.constant dense<0.000000e+00> : vector<128x16xf32>
    %38 = tpu.matmul %35, %37, %cst_16 {dimension_numbers = #tpu.dot_dimension_numbers<[1], [0], [0], [1], [0, 0, 1, 1], [], []>} : vector<128x32xbf16>, vector<32x16xbf16>, vector<128x16xf32> -> vector<128x16xf32>
    %c0_17 = arith.constant 0 : index
    %c0_18 = arith.constant 0 : index
    %39 = vector.load %arg4[%c0_17, %c0_18] : memref<128x16xf32, #tpu.memory_space<vmem>>, vector<128x16xf32>
    %40 = arith.addf %38, %39 : vector<128x16xf32>
    %c0_19 = arith.constant 0 : index
    %c0_20 = arith.constant 0 : index
    %41 = vector.load %arg8[%c0_19, %c0_20] : memref<128x16xf32, #tpu.memory_space<vmem>>, vector<128x16xf32>
    tpu.vector_store %arg8[%c0_19, %c0_20], %40 {strides = array<i32>} : memref<128x16xf32, #tpu.memory_space<vmem>>, vector<128x16xf32>,
    return
  }
  func.func @transform_0(%arg0: i32, %arg1: i32) -> (i32, i32) {
    %c0_i32 = arith.constant 0 : i32
    %c0_i32_0 = arith.constant 0 : i32
    return %arg0, %c0_i32 : i32, i32
  }
  func.func @transform_1(%arg0: i32, %arg1: i32) -> (i32, i32) {
    %c0_i32 = arith.constant 0 : i32
    %c0_i32_0 = arith.constant 0 : i32
    return %arg0, %c0_i32 : i32, i32
  }
  func.func @transform_2(%arg0: i32, %arg1: i32) -> (i32, i32) {
    %c0_i32 = arith.constant 0 : i32
    return %arg0, %arg1 : i32, i32
  }
  func.func @transform_3(%arg0: i32, %arg1: i32) -> (i32, i32) {
    %c0_i32 = arith.constant 0 : i32
    %c0_i32_0 = arith.constant 0 : i32
    %c0_i32_1 = arith.constant 0 : i32
    return %c0_i32, %c0_i32_0 : i32, i32
  }
  func.func @transform_4(%arg0: i32, %arg1: i32) -> (i32, i32) {
    %c0_i32 = arith.constant 0 : i32
    %c0_i32_0 = arith.constant 0 : i32
    %c0_i32_1 = arith.constant 0 : i32
    return %c0_i32, %c0_i32_0 : i32, i32
  }
  func.func @transform_5(%arg0: i32, %arg1: i32) -> (i32, i32) {
    %c0_i32 = arith.constant 0 : i32
    %c0_i32_0 = arith.constant 0 : i32
    return %c0_i32, %arg1 : i32, i32
  }
  func.func @transform_6(%arg0: i32, %arg1: i32) -> (i32, i32) {
    %c0_i32 = arith.constant 0 : i32
    return %arg0, %arg1 : i32, i32
  }
}

module attributes {stable_mosaic.version = 11 : i64} {
  func.func @_ssm_scan_kernel(%arg0: i32, %arg1: i32, %arg2: memref<1x1x64x32xbf16, #tpu.memory_space<vmem>>, %arg3: memref<1x1x64x128xbf16, #tpu.memory_space<vmem>>, %arg4: memref<1x2x16x32xf32, #tpu.memory_space<vmem>>, %arg5: memref<1x2x1x32xf32, #tpu.memory_space<vmem>>, %arg6: memref<1x2x1x32xf32, #tpu.memory_space<vmem>>, %arg7: memref<1x1x64x32xbf16, #tpu.memory_space<vmem>>, %arg8: memref<64x32xf32, #tpu.memory_space<vmem>>) attributes {dimension_semantics = [#tpu.dimension_semantics<parallel>, #tpu.dimension_semantics<parallel>], iteration_bounds = array<i64: 2, 2>, scalar_prefetch = 0 : i64, scratch_operands = 1 : i64, tpu.core_type = #tpu.core_type<tc>, window_params = [{transform_indices = @transform_0, window_bounds = array<i64: 1, 1, 64, 32>}, {transform_indices = @transform_1, window_bounds = array<i64: 1, 1, 64, 128>}, {transform_indices = @transform_2, window_bounds = array<i64: 1, 2, 16, 32>}, {transform_indices = @transform_3, window_bounds = array<i64: 1, 2, 1, 32>}, {transform_indices = @transform_4, window_bounds = array<i64: 1, 2, 1, 32>}, {transform_indices = @transform_5, window_bounds = array<i64: 1, 1, 64, 32>}]} {
    %cst = arith.constant 0.000000e+00 : f32
    %0 = vector.broadcast %cst : f32 to vector<16x32xf32>
    %c0 = arith.constant 0 : index
    %c0_0 = arith.constant 0 : index
    %c0_1 = arith.constant 0 : index
    %c0_2 = arith.constant 0 : index
    %1 = vector.load %arg4[%c0, %c0_0, %c0_1, %c0_2] : memref<1x2x16x32xf32, #tpu.memory_space<vmem>>, vector<1x1x16x32xf32>
    %2 = vector.shape_cast %1 : vector<1x1x16x32xf32> to vector<16x32xf32>
    %c0_3 = arith.constant 0 : index
    %c0_4 = arith.constant 0 : index
    %c0_5 = arith.constant 0 : index
    %c0_6 = arith.constant 0 : index
    %3 = vector.load %arg5[%c0_3, %c0_4, %c0_5, %c0_6] : memref<1x2x1x32xf32, #tpu.memory_space<vmem>>, vector<1x1x1x32xf32>
    %4 = vector.shape_cast %3 : vector<1x1x1x32xf32> to vector<1x32xf32>
    %c0_7 = arith.constant 0 : index
    %c0_8 = arith.constant 0 : index
    %c0_9 = arith.constant 0 : index
    %c0_10 = arith.constant 0 : index
    %5 = vector.load %arg6[%c0_7, %c0_8, %c0_9, %c0_10] : memref<1x2x1x32xf32, #tpu.memory_space<vmem>>, vector<1x1x1x32xf32>
    %6 = vector.shape_cast %5 : vector<1x1x1x32xf32> to vector<1x32xf32>
    %c0_i32 = arith.constant 0 : i32
    %c8_i32 = arith.constant 8 : i32
    %7 = arith.addi %c0_i32, %c8_i32 : i32
    %c1_i32 = arith.constant 1 : i32
    %8 = scf.for %arg9 = %c0_i32 to %7 step %c1_i32 iter_args(%arg10 = %0) -> (vector<16x32xf32>)  : i32 {
      %c8_i32_33 = arith.constant 8 : i32
      %22 = arith.muli %arg9, %c8_i32_33 : i32
      %23 = tpu.assume_multiple %22, 8 : i32
      %c0_34 = arith.constant 0 : index
      %c0_35 = arith.constant 0 : index
      %24 = arith.index_cast %23 : i32 to index
      %c0_36 = arith.constant 0 : index
      %25 = vector.load %arg2[%c0_34, %c0_35, %24, %c0_36] : memref<1x1x64x32xbf16, #tpu.memory_space<vmem>>, vector<1x1x8x32xbf16>
      %26 = vector.shape_cast %25 : vector<1x1x8x32xbf16> to vector<8x32xbf16>
      %27 = arith.extf %26 : vector<8x32xbf16> to vector<8x32xf32>
      %c0_37 = arith.constant 0 : index
      %c0_38 = arith.constant 0 : index
      %28 = arith.index_cast %23 : i32 to index
      %c0_39 = arith.constant 0 : index
      %29 = vector.load %arg3[%c0_37, %c0_38, %28, %c0_39] : memref<1x1x64x128xbf16, #tpu.memory_space<vmem>>, vector<1x1x8x128xbf16>
      %30 = vector.shape_cast %29 : vector<1x1x8x128xbf16> to vector<8x128xbf16>
      %31 = arith.extf %30 : vector<8x128xbf16> to vector<8x128xf32>
      %32 = vector.extract_strided_slice %31 {offsets = [0, 0], sizes = [8, 32], strides = [1, 1]} : vector<8x128xf32> to vector<8x32xf32>
      %33 = vector.extract_strided_slice %31 {offsets = [0, 32], sizes = [8, 16], strides = [1, 1]} : vector<8x128xf32> to vector<8x16xf32>
      %34 = vector.extract_strided_slice %31 {offsets = [0, 48], sizes = [8, 16], strides = [1, 1]} : vector<8x128xf32> to vector<8x16xf32>
      %35 = vector.broadcast %6 : vector<1x32xf32> to vector<8x32xf32>
      %36 = arith.addf %32, %35 : vector<8x32xf32>
      %cst_40 = arith.constant 2.000000e+01 : f32
      %37 = vector.broadcast %cst_40 : f32 to vector<8x32xf32>
      %38 = arith.cmpf ogt, %36, %37 : vector<8x32xf32>
      %cst_41 = arith.constant 2.000000e+01 : f32
      %39 = vector.broadcast %cst_41 : f32 to vector<8x32xf32>
      %40 = arith.minimumf %36, %39 : vector<8x32xf32>
      %41 = math.exp %40 : vector<8x32xf32>
      %cst_42 = arith.constant 1.000000e+00 : f32
      %42 = vector.broadcast %cst_42 : f32 to vector<8x32xf32>
      %43 = arith.addf %42, %41 : vector<8x32xf32>
      %44 = math.log %43 : vector<8x32xf32>
      %45 = arith.select %38, %36, %44 : vector<8x32xi1>, vector<8x32xf32>
      %46 = arith.mulf %45, %27 : vector<8x32xf32>
      %47 = vector.shape_cast %45 : vector<8x32xf32> to vector<8x1x32xf32>
      %48 = vector.shape_cast %2 : vector<16x32xf32> to vector<1x16x32xf32>
      %49 = vector.broadcast %47 : vector<8x1x32xf32> to vector<8x16x32xf32>
      %50 = vector.broadcast %48 : vector<1x16x32xf32> to vector<8x16x32xf32>
      %51 = arith.mulf %49, %50 : vector<8x16x32xf32>
      %52 = math.exp %51 : vector<8x16x32xf32>
      %53 = vector.shape_cast %33 : vector<8x16xf32> to vector<8x16x1xf32>
      %54 = vector.shape_cast %46 : vector<8x32xf32> to vector<8x1x32xf32>
      %55 = vector.broadcast %53 : vector<8x16x1xf32> to vector<8x16x32xf32>
      %56 = vector.broadcast %54 : vector<8x1x32xf32> to vector<8x16x32xf32>
      %57 = arith.mulf %55, %56 : vector<8x16x32xf32>
      %58 = vector.shape_cast %34 : vector<8x16xf32> to vector<8x16x1xf32>
      %59 = vector.shape_cast %58 : vector<8x16x1xf32> to vector<8x16x1xf32>
      %60 = vector.broadcast %59 : vector<8x16x1xf32> to vector<8x16x32xf32>
      %61 = vector.extract_strided_slice %52 {offsets = [0, 0, 0], sizes = [1, 16, 32], strides = [1, 1, 1]} : vector<8x16x32xf32> to vector<1x16x32xf32>
      %62 = vector.shape_cast %61 : vector<1x16x32xf32> to vector<16x32xf32>
      %63 = arith.mulf %62, %arg10 : vector<16x32xf32>
      %64 = vector.extract_strided_slice %57 {offsets = [0, 0, 0], sizes = [1, 16, 32], strides = [1, 1, 1]} : vector<8x16x32xf32> to vector<1x16x32xf32>
      %65 = vector.shape_cast %64 : vector<1x16x32xf32> to vector<16x32xf32>
      %66 = arith.addf %63, %65 : vector<16x32xf32>
      %67 = vector.extract_strided_slice %60 {offsets = [0, 0, 0], sizes = [1, 16, 32], strides = [1, 1, 1]} : vector<8x16x32xf32> to vector<1x16x32xf32>
      %68 = vector.shape_cast %67 : vector<1x16x32xf32> to vector<16x32xf32>
      %69 = arith.mulf %66, %68 : vector<16x32xf32>
      %cst_43 = arith.constant dense<0.000000e+00> : vector<32xf32>
      %70 = vector.multi_reduction <add>, %69, %cst_43 [0] : vector<16x32xf32> to vector<32xf32>
      %71 = vector.shape_cast %70 : vector<32xf32> to vector<1x32xf32>
      %72 = vector.extract_strided_slice %52 {offsets = [1, 0, 0], sizes = [1, 16, 32], strides = [1, 1, 1]} : vector<8x16x32xf32> to vector<1x16x32xf32>
      %73 = vector.shape_cast %72 : vector<1x16x32xf32> to vector<16x32xf32>
      %74 = arith.mulf %73, %66 : vector<16x32xf32>
      %75 = vector.extract_strided_slice %57 {offsets = [1, 0, 0], sizes = [1, 16, 32], strides = [1, 1, 1]} : vector<8x16x32xf32> to vector<1x16x32xf32>
      %76 = vector.shape_cast %75 : vector<1x16x32xf32> to vector<16x32xf32>
      %77 = arith.addf %74, %76 : vector<16x32xf32>
      %78 = vector.extract_strided_slice %60 {offsets = [1, 0, 0], sizes = [1, 16, 32], strides = [1, 1, 1]} : vector<8x16x32xf32> to vector<1x16x32xf32>
      %79 = vector.shape_cast %78 : vector<1x16x32xf32> to vector<16x32xf32>
      %80 = arith.mulf %77, %79 : vector<16x32xf32>
      %cst_44 = arith.constant dense<0.000000e+00> : vector<32xf32>
      %81 = vector.multi_reduction <add>, %80, %cst_44 [0] : vector<16x32xf32> to vector<32xf32>
      %82 = vector.shape_cast %81 : vector<32xf32> to vector<1x32xf32>
      %83 = vector.extract_strided_slice %52 {offsets = [2, 0, 0], sizes = [1, 16, 32], strides = [1, 1, 1]} : vector<8x16x32xf32> to vector<1x16x32xf32>
      %84 = vector.shape_cast %83 : vector<1x16x32xf32> to vector<16x32xf32>
      %85 = arith.mulf %84, %77 : vector<16x32xf32>
      %86 = vector.extract_strided_slice %57 {offsets = [2, 0, 0], sizes = [1, 16, 32], strides = [1, 1, 1]} : vector<8x16x32xf32> to vector<1x16x32xf32>
      %87 = vector.shape_cast %86 : vector<1x16x32xf32> to vector<16x32xf32>
      %88 = arith.addf %85, %87 : vector<16x32xf32>
      %89 = vector.extract_strided_slice %60 {offsets = [2, 0, 0], sizes = [1, 16, 32], strides = [1, 1, 1]} : vector<8x16x32xf32> to vector<1x16x32xf32>
      %90 = vector.shape_cast %89 : vector<1x16x32xf32> to vector<16x32xf32>
      %91 = arith.mulf %88, %90 : vector<16x32xf32>
      %cst_45 = arith.constant dense<0.000000e+00> : vector<32xf32>
      %92 = vector.multi_reduction <add>, %91, %cst_45 [0] : vector<16x32xf32> to vector<32xf32>
      %93 = vector.shape_cast %92 : vector<32xf32> to vector<1x32xf32>
      %94 = vector.extract_strided_slice %52 {offsets = [3, 0, 0], sizes = [1, 16, 32], strides = [1, 1, 1]} : vector<8x16x32xf32> to vector<1x16x32xf32>
      %95 = vector.shape_cast %94 : vector<1x16x32xf32> to vector<16x32xf32>
      %96 = arith.mulf %95, %88 : vector<16x32xf32>
      %97 = vector.extract_strided_slice %57 {offsets = [3, 0, 0], sizes = [1, 16, 32], strides = [1, 1, 1]} : vector<8x16x32xf32> to vector<1x16x32xf32>
      %98 = vector.shape_cast %97 : vector<1x16x32xf32> to vector<16x32xf32>
      %99 = arith.addf %96, %98 : vector<16x32xf32>
      %100 = vector.extract_strided_slice %60 {offsets = [3, 0, 0], sizes = [1, 16, 32], strides = [1, 1, 1]} : vector<8x16x32xf32> to vector<1x16x32xf32>
      %101 = vector.shape_cast %100 : vector<1x16x32xf32> to vector<16x32xf32>
      %102 = arith.mulf %99, %101 : vector<16x32xf32>
      %cst_46 = arith.constant dense<0.000000e+00> : vector<32xf32>
      %103 = vector.multi_reduction <add>, %102, %cst_46 [0] : vector<16x32xf32> to vector<32xf32>
      %104 = vector.shape_cast %103 : vector<32xf32> to vector<1x32xf32>
      %105 = vector.extract_strided_slice %52 {offsets = [4, 0, 0], sizes = [1, 16, 32], strides = [1, 1, 1]} : vector<8x16x32xf32> to vector<1x16x32xf32>
      %106 = vector.shape_cast %105 : vector<1x16x32xf32> to vector<16x32xf32>
      %107 = arith.mulf %106, %99 : vector<16x32xf32>
      %108 = vector.extract_strided_slice %57 {offsets = [4, 0, 0], sizes = [1, 16, 32], strides = [1, 1, 1]} : vector<8x16x32xf32> to vector<1x16x32xf32>
      %109 = vector.shape_cast %108 : vector<1x16x32xf32> to vector<16x32xf32>
      %110 = arith.addf %107, %109 : vector<16x32xf32>
      %111 = vector.extract_strided_slice %60 {offsets = [4, 0, 0], sizes = [1, 16, 32], strides = [1, 1, 1]} : vector<8x16x32xf32> to vector<1x16x32xf32>
      %112 = vector.shape_cast %111 : vector<1x16x32xf32> to vector<16x32xf32>
      %113 = arith.mulf %110, %112 : vector<16x32xf32>
      %cst_47 = arith.constant dense<0.000000e+00> : vector<32xf32>
      %114 = vector.multi_reduction <add>, %113, %cst_47 [0] : vector<16x32xf32> to vector<32xf32>
      %115 = vector.shape_cast %114 : vector<32xf32> to vector<1x32xf32>
      %116 = vector.extract_strided_slice %52 {offsets = [5, 0, 0], sizes = [1, 16, 32], strides = [1, 1, 1]} : vector<8x16x32xf32> to vector<1x16x32xf32>
      %117 = vector.shape_cast %116 : vector<1x16x32xf32> to vector<16x32xf32>
      %118 = arith.mulf %117, %110 : vector<16x32xf32>
      %119 = vector.extract_strided_slice %57 {offsets = [5, 0, 0], sizes = [1, 16, 32], strides = [1, 1, 1]} : vector<8x16x32xf32> to vector<1x16x32xf32>
      %120 = vector.shape_cast %119 : vector<1x16x32xf32> to vector<16x32xf32>
      %121 = arith.addf %118, %120 : vector<16x32xf32>
      %122 = vector.extract_strided_slice %60 {offsets = [5, 0, 0], sizes = [1, 16, 32], strides = [1, 1, 1]} : vector<8x16x32xf32> to vector<1x16x32xf32>
      %123 = vector.shape_cast %122 : vector<1x16x32xf32> to vector<16x32xf32>
      %124 = arith.mulf %121, %123 : vector<16x32xf32>
      %cst_48 = arith.constant dense<0.000000e+00> : vector<32xf32>
      %125 = vector.multi_reduction <add>, %124, %cst_48 [0] : vector<16x32xf32> to vector<32xf32>
      %126 = vector.shape_cast %125 : vector<32xf32> to vector<1x32xf32>
      %127 = vector.extract_strided_slice %52 {offsets = [6, 0, 0], sizes = [1, 16, 32], strides = [1, 1, 1]} : vector<8x16x32xf32> to vector<1x16x32xf32>
      %128 = vector.shape_cast %127 : vector<1x16x32xf32> to vector<16x32xf32>
      %129 = arith.mulf %128, %121 : vector<16x32xf32>
      %130 = vector.extract_strided_slice %57 {offsets = [6, 0, 0], sizes = [1, 16, 32], strides = [1, 1, 1]} : vector<8x16x32xf32> to vector<1x16x32xf32>
      %131 = vector.shape_cast %130 : vector<1x16x32xf32> to vector<16x32xf32>
      %132 = arith.addf %129, %131 : vector<16x32xf32>
      %133 = vector.extract_strided_slice %60 {offsets = [6, 0, 0], sizes = [1, 16, 32], strides = [1, 1, 1]} : vector<8x16x32xf32> to vector<1x16x32xf32>
      %134 = vector.shape_cast %133 : vector<1x16x32xf32> to vector<16x32xf32>
      %135 = arith.mulf %132, %134 : vector<16x32xf32>
      %cst_49 = arith.constant dense<0.000000e+00> : vector<32xf32>
      %136 = vector.multi_reduction <add>, %135, %cst_49 [0] : vector<16x32xf32> to vector<32xf32>
      %137 = vector.shape_cast %136 : vector<32xf32> to vector<1x32xf32>
      %138 = vector.extract_strided_slice %52 {offsets = [7, 0, 0], sizes = [1, 16, 32], strides = [1, 1, 1]} : vector<8x16x32xf32> to vector<1x16x32xf32>
      %139 = vector.shape_cast %138 : vector<1x16x32xf32> to vector<16x32xf32>
      %140 = arith.mulf %139, %132 : vector<16x32xf32>
      %141 = vector.extract_strided_slice %57 {offsets = [7, 0, 0], sizes = [1, 16, 32], strides = [1, 1, 1]} : vector<8x16x32xf32> to vector<1x16x32xf32>
      %142 = vector.shape_cast %141 : vector<1x16x32xf32> to vector<16x32xf32>
      %143 = arith.addf %140, %142 : vector<16x32xf32>
      %144 = vector.extract_strided_slice %60 {offsets = [7, 0, 0], sizes = [1, 16, 32], strides = [1, 1, 1]} : vector<8x16x32xf32> to vector<1x16x32xf32>
      %145 = vector.shape_cast %144 : vector<1x16x32xf32> to vector<16x32xf32>
      %146 = arith.mulf %143, %145 : vector<16x32xf32>
      %cst_50 = arith.constant dense<0.000000e+00> : vector<32xf32>
      %147 = vector.multi_reduction <add>, %146, %cst_50 [0] : vector<16x32xf32> to vector<32xf32>
      %148 = vector.shape_cast %147 : vector<32xf32> to vector<1x32xf32>
      %149 = tpu.concatenate %71, %82, %93, %104, %115, %126, %137, %148 in 0 : vector<1x32xf32>, vector<1x32xf32>, vector<1x32xf32>, vector<1x32xf32>, vector<1x32xf32>, vector<1x32xf32>, vector<1x32xf32>, vector<1x32xf32> -> vector<8x32xf32>
      %150 = vector.broadcast %4 : vector<1x32xf32> to vector<8x32xf32>
      %151 = arith.mulf %150, %27 : vector<8x32xf32>
      %152 = arith.addf %149, %151 : vector<8x32xf32>
      %153 = arith.index_cast %23 : i32 to index
      %c0_51 = arith.constant 0 : index
      %154 = vector.load %arg8[%153, %c0_51] : memref<64x32xf32, #tpu.memory_space<vmem>>, vector<8x32xf32>
      tpu.vector_store %arg8[%153, %c0_51], %152 {strides = array<i32>} : memref<64x32xf32, #tpu.memory_space<vmem>>, vector<8x32xf32>,
      scf.yield %143 : vector<16x32xf32>
    }
    %c8_i32_11 = arith.constant 8 : i32
    %c0_12 = arith.constant 0 : index
    %c1 = arith.constant 1 : index
    %c0_13 = arith.constant 0 : index
    %c0_14 = arith.constant 0 : index
    %9 = vector.load %arg4[%c0_12, %c1, %c0_13, %c0_14] : memref<1x2x16x32xf32, #tpu.memory_space<vmem>>, vector<1x1x16x32xf32>
    %10 = vector.shape_cast %9 : vector<1x1x16x32xf32> to vector<16x32xf32>
    %c0_15 = arith.constant 0 : index
    %c1_16 = arith.constant 1 : index
    %c0_17 = arith.constant 0 : index
    %c0_18 = arith.constant 0 : index
    %11 = vector.load %arg5[%c0_15, %c1_16, %c0_17, %c0_18] : memref<1x2x1x32xf32, #tpu.memory_space<vmem>>, vector<1x1x1x32xf32>
    %12 = vector.shape_cast %11 : vector<1x1x1x32xf32> to vector<1x32xf32>
    %c0_19 = arith.constant 0 : index
    %c1_20 = arith.constant 1 : index
    %c0_21 = arith.constant 0 : index
    %c0_22 = arith.constant 0 : index
    %13 = vector.load %arg6[%c0_19, %c1_20, %c0_21, %c0_22] : memref<1x2x1x32xf32, #tpu.memory_space<vmem>>, vector<1x1x1x32xf32>
    %14 = vector.shape_cast %13 : vector<1x1x1x32xf32> to vector<1x32xf32>
    %c0_i32_23 = arith.constant 0 : i32
    %c8_i32_24 = arith.constant 8 : i32
    %15 = arith.addi %c0_i32_23, %c8_i32_24 : i32
    %c1_i32_25 = arith.constant 1 : i32
    %16 = scf.for %arg9 = %c0_i32_23 to %15 step %c1_i32_25 iter_args(%arg10 = %0) -> (vector<16x32xf32>)  : i32 {
      %c1_i32_33 = arith.constant 1 : i32
      %22 = arith.addi %arg9, %c1_i32_33 : i32
      %c8_i32_34 = arith.constant 8 : i32
      %23 = arith.muli %22, %c8_i32_34 : i32
      %c64_i32 = arith.constant 64 : i32
      %24 = arith.subi %c64_i32, %23 : i32
      %25 = tpu.assume_multiple %24, 8 : i32
      %c0_35 = arith.constant 0 : index
      %c0_36 = arith.constant 0 : index
      %26 = arith.index_cast %25 : i32 to index
      %c0_37 = arith.constant 0 : index
      %27 = vector.load %arg2[%c0_35, %c0_36, %26, %c0_37] : memref<1x1x64x32xbf16, #tpu.memory_space<vmem>>, vector<1x1x8x32xbf16>
      %28 = vector.shape_cast %27 : vector<1x1x8x32xbf16> to vector<8x32xbf16>
      %29 = arith.extf %28 : vector<8x32xbf16> to vector<8x32xf32>
      %c0_38 = arith.constant 0 : index
      %c0_39 = arith.constant 0 : index
      %30 = arith.index_cast %25 : i32 to index
      %c0_40 = arith.constant 0 : index
      %31 = vector.load %arg3[%c0_38, %c0_39, %30, %c0_40] : memref<1x1x64x128xbf16, #tpu.memory_space<vmem>>, vector<1x1x8x128xbf16>
      %32 = vector.shape_cast %31 : vector<1x1x8x128xbf16> to vector<8x128xbf16>
      %33 = arith.extf %32 : vector<8x128xbf16> to vector<8x128xf32>
      %34 = vector.extract_strided_slice %33 {offsets = [0, 64], sizes = [8, 32], strides = [1, 1]} : vector<8x128xf32> to vector<8x32xf32>
      %35 = vector.extract_strided_slice %33 {offsets = [0, 96], sizes = [8, 16], strides = [1, 1]} : vector<8x128xf32> to vector<8x16xf32>
      %36 = vector.extract_strided_slice %33 {offsets = [0, 112], sizes = [8, 16], strides = [1, 1]} : vector<8x128xf32> to vector<8x16xf32>
      %37 = vector.broadcast %14 : vector<1x32xf32> to vector<8x32xf32>
      %38 = arith.addf %34, %37 : vector<8x32xf32>
      %cst_41 = arith.constant 2.000000e+01 : f32
      %39 = vector.broadcast %cst_41 : f32 to vector<8x32xf32>
      %40 = arith.cmpf ogt, %38, %39 : vector<8x32xf32>
      %cst_42 = arith.constant 2.000000e+01 : f32
      %41 = vector.broadcast %cst_42 : f32 to vector<8x32xf32>
      %42 = arith.minimumf %38, %41 : vector<8x32xf32>
      %43 = math.exp %42 : vector<8x32xf32>
      %cst_43 = arith.constant 1.000000e+00 : f32
      %44 = vector.broadcast %cst_43 : f32 to vector<8x32xf32>
      %45 = arith.addf %44, %43 : vector<8x32xf32>
      %46 = math.log %45 : vector<8x32xf32>
      %47 = arith.select %40, %38, %46 : vector<8x32xi1>, vector<8x32xf32>
      %48 = arith.mulf %47, %29 : vector<8x32xf32>
      %49 = vector.shape_cast %47 : vector<8x32xf32> to vector<8x1x32xf32>
      %50 = vector.shape_cast %10 : vector<16x32xf32> to vector<1x16x32xf32>
      %51 = vector.broadcast %49 : vector<8x1x32xf32> to vector<8x16x32xf32>
      %52 = vector.broadcast %50 : vector<1x16x32xf32> to vector<8x16x32xf32>
      %53 = arith.mulf %51, %52 : vector<8x16x32xf32>
      %54 = math.exp %53 : vector<8x16x32xf32>
      %55 = vector.shape_cast %35 : vector<8x16xf32> to vector<8x16x1xf32>
      %56 = vector.shape_cast %48 : vector<8x32xf32> to vector<8x1x32xf32>
      %57 = vector.broadcast %55 : vector<8x16x1xf32> to vector<8x16x32xf32>
      %58 = vector.broadcast %56 : vector<8x1x32xf32> to vector<8x16x32xf32>
      %59 = arith.mulf %57, %58 : vector<8x16x32xf32>
      %60 = vector.shape_cast %36 : vector<8x16xf32> to vector<8x16x1xf32>
      %61 = vector.shape_cast %60 : vector<8x16x1xf32> to vector<8x16x1xf32>
      %62 = vector.broadcast %61 : vector<8x16x1xf32> to vector<8x16x32xf32>
      %63 = vector.extract_strided_slice %54 {offsets = [7, 0, 0], sizes = [1, 16, 32], strides = [1, 1, 1]} : vector<8x16x32xf32> to vector<1x16x32xf32>
      %64 = vector.shape_cast %63 : vector<1x16x32xf32> to vector<16x32xf32>
      %65 = arith.mulf %64, %arg10 : vector<16x32xf32>
      %66 = vector.extract_strided_slice %59 {offsets = [7, 0, 0], sizes = [1, 16, 32], strides = [1, 1, 1]} : vector<8x16x32xf32> to vector<1x16x32xf32>
      %67 = vector.shape_cast %66 : vector<1x16x32xf32> to vector<16x32xf32>
      %68 = arith.addf %65, %67 : vector<16x32xf32>
      %69 = vector.extract_strided_slice %62 {offsets = [7, 0, 0], sizes = [1, 16, 32], strides = [1, 1, 1]} : vector<8x16x32xf32> to vector<1x16x32xf32>
      %70 = vector.shape_cast %69 : vector<1x16x32xf32> to vector<16x32xf32>
      %71 = arith.mulf %68, %70 : vector<16x32xf32>
      %cst_44 = arith.constant dense<0.000000e+00> : vector<32xf32>
      %72 = vector.multi_reduction <add>, %71, %cst_44 [0] : vector<16x32xf32> to vector<32xf32>
      %73 = vector.shape_cast %72 : vector<32xf32> to vector<1x32xf32>
      %74 = vector.extract_strided_slice %54 {offsets = [6, 0, 0], sizes = [1, 16, 32], strides = [1, 1, 1]} : vector<8x16x32xf32> to vector<1x16x32xf32>
      %75 = vector.shape_cast %74 : vector<1x16x32xf32> to vector<16x32xf32>
      %76 = arith.mulf %75, %68 : vector<16x32xf32>
      %77 = vector.extract_strided_slice %59 {offsets = [6, 0, 0], sizes = [1, 16, 32], strides = [1, 1, 1]} : vector<8x16x32xf32> to vector<1x16x32xf32>
      %78 = vector.shape_cast %77 : vector<1x16x32xf32> to vector<16x32xf32>
      %79 = arith.addf %76, %78 : vector<16x32xf32>
      %80 = vector.extract_strided_slice %62 {offsets = [6, 0, 0], sizes = [1, 16, 32], strides = [1, 1, 1]} : vector<8x16x32xf32> to vector<1x16x32xf32>
      %81 = vector.shape_cast %80 : vector<1x16x32xf32> to vector<16x32xf32>
      %82 = arith.mulf %79, %81 : vector<16x32xf32>
      %cst_45 = arith.constant dense<0.000000e+00> : vector<32xf32>
      %83 = vector.multi_reduction <add>, %82, %cst_45 [0] : vector<16x32xf32> to vector<32xf32>
      %84 = vector.shape_cast %83 : vector<32xf32> to vector<1x32xf32>
      %85 = vector.extract_strided_slice %54 {offsets = [5, 0, 0], sizes = [1, 16, 32], strides = [1, 1, 1]} : vector<8x16x32xf32> to vector<1x16x32xf32>
      %86 = vector.shape_cast %85 : vector<1x16x32xf32> to vector<16x32xf32>
      %87 = arith.mulf %86, %79 : vector<16x32xf32>
      %88 = vector.extract_strided_slice %59 {offsets = [5, 0, 0], sizes = [1, 16, 32], strides = [1, 1, 1]} : vector<8x16x32xf32> to vector<1x16x32xf32>
      %89 = vector.shape_cast %88 : vector<1x16x32xf32> to vector<16x32xf32>
      %90 = arith.addf %87, %89 : vector<16x32xf32>
      %91 = vector.extract_strided_slice %62 {offsets = [5, 0, 0], sizes = [1, 16, 32], strides = [1, 1, 1]} : vector<8x16x32xf32> to vector<1x16x32xf32>
      %92 = vector.shape_cast %91 : vector<1x16x32xf32> to vector<16x32xf32>
      %93 = arith.mulf %90, %92 : vector<16x32xf32>
      %cst_46 = arith.constant dense<0.000000e+00> : vector<32xf32>
      %94 = vector.multi_reduction <add>, %93, %cst_46 [0] : vector<16x32xf32> to vector<32xf32>
      %95 = vector.shape_cast %94 : vector<32xf32> to vector<1x32xf32>
      %96 = vector.extract_strided_slice %54 {offsets = [4, 0, 0], sizes = [1, 16, 32], strides = [1, 1, 1]} : vector<8x16x32xf32> to vector<1x16x32xf32>
      %97 = vector.shape_cast %96 : vector<1x16x32xf32> to vector<16x32xf32>
      %98 = arith.mulf %97, %90 : vector<16x32xf32>
      %99 = vector.extract_strided_slice %59 {offsets = [4, 0, 0], sizes = [1, 16, 32], strides = [1, 1, 1]} : vector<8x16x32xf32> to vector<1x16x32xf32>
      %100 = vector.shape_cast %99 : vector<1x16x32xf32> to vector<16x32xf32>
      %101 = arith.addf %98, %100 : vector<16x32xf32>
      %102 = vector.extract_strided_slice %62 {offsets = [4, 0, 0], sizes = [1, 16, 32], strides = [1, 1, 1]} : vector<8x16x32xf32> to vector<1x16x32xf32>
      %103 = vector.shape_cast %102 : vector<1x16x32xf32> to vector<16x32xf32>
      %104 = arith.mulf %101, %103 : vector<16x32xf32>
      %cst_47 = arith.constant dense<0.000000e+00> : vector<32xf32>
      %105 = vector.multi_reduction <add>, %104, %cst_47 [0] : vector<16x32xf32> to vector<32xf32>
      %106 = vector.shape_cast %105 : vector<32xf32> to vector<1x32xf32>
      %107 = vector.extract_strided_slice %54 {offsets = [3, 0, 0], sizes = [1, 16, 32], strides = [1, 1, 1]} : vector<8x16x32xf32> to vector<1x16x32xf32>
      %108 = vector.shape_cast %107 : vector<1x16x32xf32> to vector<16x32xf32>
      %109 = arith.mulf %108, %101 : vector<16x32xf32>
      %110 = vector.extract_strided_slice %59 {offsets = [3, 0, 0], sizes = [1, 16, 32], strides = [1, 1, 1]} : vector<8x16x32xf32> to vector<1x16x32xf32>
      %111 = vector.shape_cast %110 : vector<1x16x32xf32> to vector<16x32xf32>
      %112 = arith.addf %109, %111 : vector<16x32xf32>
      %113 = vector.extract_strided_slice %62 {offsets = [3, 0, 0], sizes = [1, 16, 32], strides = [1, 1, 1]} : vector<8x16x32xf32> to vector<1x16x32xf32>
      %114 = vector.shape_cast %113 : vector<1x16x32xf32> to vector<16x32xf32>
      %115 = arith.mulf %112, %114 : vector<16x32xf32>
      %cst_48 = arith.constant dense<0.000000e+00> : vector<32xf32>
      %116 = vector.multi_reduction <add>, %115, %cst_48 [0] : vector<16x32xf32> to vector<32xf32>
      %117 = vector.shape_cast %116 : vector<32xf32> to vector<1x32xf32>
      %118 = vector.extract_strided_slice %54 {offsets = [2, 0, 0], sizes = [1, 16, 32], strides = [1, 1, 1]} : vector<8x16x32xf32> to vector<1x16x32xf32>
      %119 = vector.shape_cast %118 : vector<1x16x32xf32> to vector<16x32xf32>
      %120 = arith.mulf %119, %112 : vector<16x32xf32>
      %121 = vector.extract_strided_slice %59 {offsets = [2, 0, 0], sizes = [1, 16, 32], strides = [1, 1, 1]} : vector<8x16x32xf32> to vector<1x16x32xf32>
      %122 = vector.shape_cast %121 : vector<1x16x32xf32> to vector<16x32xf32>
      %123 = arith.addf %120, %122 : vector<16x32xf32>
      %124 = vector.extract_strided_slice %62 {offsets = [2, 0, 0], sizes = [1, 16, 32], strides = [1, 1, 1]} : vector<8x16x32xf32> to vector<1x16x32xf32>
      %125 = vector.shape_cast %124 : vector<1x16x32xf32> to vector<16x32xf32>
      %126 = arith.mulf %123, %125 : vector<16x32xf32>
      %cst_49 = arith.constant dense<0.000000e+00> : vector<32xf32>
      %127 = vector.multi_reduction <add>, %126, %cst_49 [0] : vector<16x32xf32> to vector<32xf32>
      %128 = vector.shape_cast %127 : vector<32xf32> to vector<1x32xf32>
      %129 = vector.extract_strided_slice %54 {offsets = [1, 0, 0], sizes = [1, 16, 32], strides = [1, 1, 1]} : vector<8x16x32xf32> to vector<1x16x32xf32>
      %130 = vector.shape_cast %129 : vector<1x16x32xf32> to vector<16x32xf32>
      %131 = arith.mulf %130, %123 : vector<16x32xf32>
      %132 = vector.extract_strided_slice %59 {offsets = [1, 0, 0], sizes = [1, 16, 32], strides = [1, 1, 1]} : vector<8x16x32xf32> to vector<1x16x32xf32>
      %133 = vector.shape_cast %132 : vector<1x16x32xf32> to vector<16x32xf32>
      %134 = arith.addf %131, %133 : vector<16x32xf32>
      %135 = vector.extract_strided_slice %62 {offsets = [1, 0, 0], sizes = [1, 16, 32], strides = [1, 1, 1]} : vector<8x16x32xf32> to vector<1x16x32xf32>
      %136 = vector.shape_cast %135 : vector<1x16x32xf32> to vector<16x32xf32>
      %137 = arith.mulf %134, %136 : vector<16x32xf32>
      %cst_50 = arith.constant dense<0.000000e+00> : vector<32xf32>
      %138 = vector.multi_reduction <add>, %137, %cst_50 [0] : vector<16x32xf32> to vector<32xf32>
      %139 = vector.shape_cast %138 : vector<32xf32> to vector<1x32xf32>
      %140 = vector.extract_strided_slice %54 {offsets = [0, 0, 0], sizes = [1, 16, 32], strides = [1, 1, 1]} : vector<8x16x32xf32> to vector<1x16x32xf32>
      %141 = vector.shape_cast %140 : vector<1x16x32xf32> to vector<16x32xf32>
      %142 = arith.mulf %141, %134 : vector<16x32xf32>
      %143 = vector.extract_strided_slice %59 {offsets = [0, 0, 0], sizes = [1, 16, 32], strides = [1, 1, 1]} : vector<8x16x32xf32> to vector<1x16x32xf32>
      %144 = vector.shape_cast %143 : vector<1x16x32xf32> to vector<16x32xf32>
      %145 = arith.addf %142, %144 : vector<16x32xf32>
      %146 = vector.extract_strided_slice %62 {offsets = [0, 0, 0], sizes = [1, 16, 32], strides = [1, 1, 1]} : vector<8x16x32xf32> to vector<1x16x32xf32>
      %147 = vector.shape_cast %146 : vector<1x16x32xf32> to vector<16x32xf32>
      %148 = arith.mulf %145, %147 : vector<16x32xf32>
      %cst_51 = arith.constant dense<0.000000e+00> : vector<32xf32>
      %149 = vector.multi_reduction <add>, %148, %cst_51 [0] : vector<16x32xf32> to vector<32xf32>
      %150 = vector.shape_cast %149 : vector<32xf32> to vector<1x32xf32>
      %151 = tpu.concatenate %150, %139, %128, %117, %106, %95, %84, %73 in 0 : vector<1x32xf32>, vector<1x32xf32>, vector<1x32xf32>, vector<1x32xf32>, vector<1x32xf32>, vector<1x32xf32>, vector<1x32xf32>, vector<1x32xf32> -> vector<8x32xf32>
      %152 = vector.broadcast %12 : vector<1x32xf32> to vector<8x32xf32>
      %153 = arith.mulf %152, %29 : vector<8x32xf32>
      %154 = arith.addf %151, %153 : vector<8x32xf32>
      %155 = arith.index_cast %25 : i32 to index
      %c0_52 = arith.constant 0 : index
      %156 = vector.load %arg8[%155, %c0_52] : memref<64x32xf32, #tpu.memory_space<vmem>>, vector<8x32xf32>
      %157 = arith.addf %156, %154 : vector<8x32xf32>
      %158 = arith.index_cast %25 : i32 to index
      %c0_53 = arith.constant 0 : index
      %159 = vector.load %arg8[%158, %c0_53] : memref<64x32xf32, #tpu.memory_space<vmem>>, vector<8x32xf32>
      tpu.vector_store %arg8[%158, %c0_53], %157 {strides = array<i32>} : memref<64x32xf32, #tpu.memory_space<vmem>>, vector<8x32xf32>,
      scf.yield %145 : vector<16x32xf32>
    }
    %c8_i32_26 = arith.constant 8 : i32
    %c0_27 = arith.constant 0 : index
    %c0_28 = arith.constant 0 : index
    %17 = vector.load %arg8[%c0_27, %c0_28] : memref<64x32xf32, #tpu.memory_space<vmem>>, vector<64x32xf32>
    %18 = arith.truncf %17 : vector<64x32xf32> to vector<64x32xbf16>
    %c0_29 = arith.constant 0 : index
    %c0_30 = arith.constant 0 : index
    %c0_31 = arith.constant 0 : index
    %c0_32 = arith.constant 0 : index
    %19 = vector.load %arg7[%c0_29, %c0_30, %c0_31, %c0_32] : memref<1x1x64x32xbf16, #tpu.memory_space<vmem>>, vector<1x1x64x32xbf16>
    %20 = vector.shape_cast %19 : vector<1x1x64x32xbf16> to vector<64x32xbf16>
    %21 = vector.shape_cast %18 : vector<64x32xbf16> to vector<1x1x64x32xbf16>
    tpu.vector_store %arg7[%c0_29, %c0_30, %c0_31, %c0_32], %21 {strides = array<i32>} : memref<1x1x64x32xbf16, #tpu.memory_space<vmem>>, vector<1x1x64x32xbf16>,
    return
  }
  func.func @transform_0(%arg0: i32, %arg1: i32) -> (i32, i32, i32, i32) {
    %c0_i32 = arith.constant 0 : i32
    %c0_i32_0 = arith.constant 0 : i32
    %c0_i32_1 = arith.constant 0 : i32
    return %arg1, %arg0, %c0_i32, %c0_i32_0 : i32, i32, i32, i32
  }
  func.func @transform_1(%arg0: i32, %arg1: i32) -> (i32, i32, i32, i32) {
    %c0_i32 = arith.constant 0 : i32
    %c0_i32_0 = arith.constant 0 : i32
    %c0_i32_1 = arith.constant 0 : i32
    return %arg1, %arg0, %c0_i32, %c0_i32_0 : i32, i32, i32, i32
  }
  func.func @transform_2(%arg0: i32, %arg1: i32) -> (i32, i32, i32, i32) {
    %c0_i32 = arith.constant 0 : i32
    %c0_i32_0 = arith.constant 0 : i32
    %c0_i32_1 = arith.constant 0 : i32
    %c0_i32_2 = arith.constant 0 : i32
    return %arg1, %c0_i32, %c0_i32_0, %c0_i32_1 : i32, i32, i32, i32
  }
  func.func @transform_3(%arg0: i32, %arg1: i32) -> (i32, i32, i32, i32) {
    %c0_i32 = arith.constant 0 : i32
    %c0_i32_0 = arith.constant 0 : i32
    %c0_i32_1 = arith.constant 0 : i32
    %c0_i32_2 = arith.constant 0 : i32
    return %arg1, %c0_i32, %c0_i32_0, %c0_i32_1 : i32, i32, i32, i32
  }
  func.func @transform_4(%arg0: i32, %arg1: i32) -> (i32, i32, i32, i32) {
    %c0_i32 = arith.constant 0 : i32
    %c0_i32_0 = arith.constant 0 : i32
    %c0_i32_1 = arith.constant 0 : i32
    %c0_i32_2 = arith.constant 0 : i32
    return %arg1, %c0_i32, %c0_i32_0, %c0_i32_1 : i32, i32, i32, i32
  }
  func.func @transform_5(%arg0: i32, %arg1: i32) -> (i32, i32, i32, i32) {
    %c0_i32 = arith.constant 0 : i32
    %c0_i32_0 = arith.constant 0 : i32
    %c0_i32_1 = arith.constant 0 : i32
    return %arg1, %arg0, %c0_i32, %c0_i32_0 : i32, i32, i32, i32
  }
}

module attributes {stable_mosaic.version = 11 : i64} {
  func.func @_dwconv3x3_kernel(%arg0: i32, %arg1: memref<1x8x8x10xbf16, #tpu.memory_space<vmem>>, %arg2: memref<9x10xf32, #tpu.memory_space<vmem>>, %arg3: memref<1x10xf32, #tpu.memory_space<vmem>>, %arg4: memref<1x8x8x10xbf16, #tpu.memory_space<vmem>>, %arg5: memref<1x8x8x10xbf16, #tpu.memory_space<vmem>>, %arg6: memref<10x10x10xf32, #tpu.memory_space<vmem>>) attributes {dimension_semantics = [#tpu.dimension_semantics<parallel>], iteration_bounds = array<i64: 2>, scalar_prefetch = 0 : i64, scratch_operands = 1 : i64, tpu.core_type = #tpu.core_type<tc>, window_params = [{transform_indices = @transform_0, window_bounds = array<i64: 1, 8, 8, 10>}, {pipeline_mode = #tpu.pipeline_mode<synchronous>, transform_indices = @transform_1, window_bounds = array<i64: 9, 10>}, {pipeline_mode = #tpu.pipeline_mode<synchronous>, transform_indices = @transform_2, window_bounds = array<i64: 1, 10>}, {transform_indices = @transform_3, window_bounds = array<i64: 1, 8, 8, 10>}, {transform_indices = @transform_4, window_bounds = array<i64: 1, 8, 8, 10>}]} {
    %cst = arith.constant 0.000000e+00 : f32
    %0 = vector.broadcast %cst : f32 to vector<10x10x10xf32>
    %c0 = arith.constant 0 : index
    %c0_0 = arith.constant 0 : index
    %c0_1 = arith.constant 0 : index
    %1 = vector.load %arg6[%c0, %c0_0, %c0_1] : memref<10x10x10xf32, #tpu.memory_space<vmem>>, vector<10x10x10xf32>
    tpu.vector_store %arg6[%c0, %c0_0, %c0_1], %0 {strides = array<i32>} : memref<10x10x10xf32, #tpu.memory_space<vmem>>, vector<10x10x10xf32>,
    %c0_2 = arith.constant 0 : index
    %c0_3 = arith.constant 0 : index
    %c0_4 = arith.constant 0 : index
    %c0_5 = arith.constant 0 : index
    %2 = vector.load %arg1[%c0_2, %c0_3, %c0_4, %c0_5] : memref<1x8x8x10xbf16, #tpu.memory_space<vmem>>, vector<1x8x8x10xbf16>
    %3 = vector.shape_cast %2 : vector<1x8x8x10xbf16> to vector<8x8x10xbf16>
    %4 = arith.extf %3 : vector<8x8x10xbf16> to vector<8x8x10xf32>
    %c1 = arith.constant 1 : index
    %c1_6 = arith.constant 1 : index
    %c0_7 = arith.constant 0 : index
    %5 = vector.load %arg6[%c1, %c1_6, %c0_7] : memref<10x10x10xf32, #tpu.memory_space<vmem>>, vector<8x8x10xf32>
    tpu.vector_store %arg6[%c1, %c1_6, %c0_7], %4 {strides = array<i32>} : memref<10x10x10xf32, #tpu.memory_space<vmem>>, vector<8x8x10xf32>,
    %cst_8 = arith.constant 0.000000e+00 : f32
    %6 = vector.broadcast %cst_8 : f32 to vector<8x8x10xf32>
    %c0_9 = arith.constant 0 : index
    %c0_10 = arith.constant 0 : index
    %c0_11 = arith.constant 0 : index
    %7 = vector.load %arg6[%c0_9, %c0_10, %c0_11] : memref<10x10x10xf32, #tpu.memory_space<vmem>>, vector<8x8x10xf32>
    %c0_12 = arith.constant 0 : index
    %c0_13 = arith.constant 0 : index
    %8 = vector.load %arg2[%c0_12, %c0_13] : memref<9x10xf32, #tpu.memory_space<vmem>>, vector<1x10xf32>
    %9 = vector.shape_cast %8 : vector<1x10xf32> to vector<1x1x10xf32>
    %10 = vector.broadcast %9 : vector<1x1x10xf32> to vector<8x8x10xf32>
    %11 = arith.mulf %7, %10 : vector<8x8x10xf32>
    %12 = arith.addf %6, %11 : vector<8x8x10xf32>
    %c0_14 = arith.constant 0 : index
    %c1_15 = arith.constant 1 : index
    %c0_16 = arith.constant 0 : index
    %13 = vector.load %arg6[%c0_14, %c1_15, %c0_16] : memref<10x10x10xf32, #tpu.memory_space<vmem>>, vector<8x8x10xf32>
    %c1_17 = arith.constant 1 : index
    %c0_18 = arith.constant 0 : index
    %14 = vector.load %arg2[%c1_17, %c0_18] : memref<9x10xf32, #tpu.memory_space<vmem>>, vector<1x10xf32>
    %15 = vector.shape_cast %14 : vector<1x10xf32> to vector<1x1x10xf32>
    %16 = vector.broadcast %15 : vector<1x1x10xf32> to vector<8x8x10xf32>
    %17 = arith.mulf %13, %16 : vector<8x8x10xf32>
    %18 = arith.addf %12, %17 : vector<8x8x10xf32>
    %c0_19 = arith.constant 0 : index
    %c2 = arith.constant 2 : index
    %c0_20 = arith.constant 0 : index
    %19 = vector.load %arg6[%c0_19, %c2, %c0_20] : memref<10x10x10xf32, #tpu.memory_space<vmem>>, vector<8x8x10xf32>
    %c2_21 = arith.constant 2 : index
    %c0_22 = arith.constant 0 : index
    %20 = vector.load %arg2[%c2_21, %c0_22] : memref<9x10xf32, #tpu.memory_space<vmem>>, vector<1x10xf32>
    %21 = vector.shape_cast %20 : vector<1x10xf32> to vector<1x1x10xf32>
    %22 = vector.broadcast %21 : vector<1x1x10xf32> to vector<8x8x10xf32>
    %23 = arith.mulf %19, %22 : vector<8x8x10xf32>
    %24 = arith.addf %18, %23 : vector<8x8x10xf32>
    %c1_23 = arith.constant 1 : index
    %c0_24 = arith.constant 0 : index
    %c0_25 = arith.constant 0 : index
    %25 = vector.load %arg6[%c1_23, %c0_24, %c0_25] : memref<10x10x10xf32, #tpu.memory_space<vmem>>, vector<8x8x10xf32>
    %c3 = arith.constant 3 : index
    %c0_26 = arith.constant 0 : index
    %26 = vector.load %arg2[%c3, %c0_26] : memref<9x10xf32, #tpu.memory_space<vmem>>, vector<1x10xf32>
    %27 = vector.shape_cast %26 : vector<1x10xf32> to vector<1x1x10xf32>
    %28 = vector.broadcast %27 : vector<1x1x10xf32> to vector<8x8x10xf32>
    %29 = arith.mulf %25, %28 : vector<8x8x10xf32>
    %30 = arith.addf %24, %29 : vector<8x8x10xf32>
    %c1_27 = arith.constant 1 : index
    %c1_28 = arith.constant 1 : index
    %c0_29 = arith.constant 0 : index
    %31 = vector.load %arg6[%c1_27, %c1_28, %c0_29] : memref<10x10x10xf32, #tpu.memory_space<vmem>>, vector<8x8x10xf32>
    %c4 = arith.constant 4 : index
    %c0_30 = arith.constant 0 : index
    %32 = vector.load %arg2[%c4, %c0_30] : memref<9x10xf32, #tpu.memory_space<vmem>>, vector<1x10xf32>
    %33 = vector.shape_cast %32 : vector<1x10xf32> to vector<1x1x10xf32>
    %34 = vector.broadcast %33 : vector<1x1x10xf32> to vector<8x8x10xf32>
    %35 = arith.mulf %31, %34 : vector<8x8x10xf32>
    %36 = arith.addf %30, %35 : vector<8x8x10xf32>
    %c1_31 = arith.constant 1 : index
    %c2_32 = arith.constant 2 : index
    %c0_33 = arith.constant 0 : index
    %37 = vector.load %arg6[%c1_31, %c2_32, %c0_33] : memref<10x10x10xf32, #tpu.memory_space<vmem>>, vector<8x8x10xf32>
    %c5 = arith.constant 5 : index
    %c0_34 = arith.constant 0 : index
    %38 = vector.load %arg2[%c5, %c0_34] : memref<9x10xf32, #tpu.memory_space<vmem>>, vector<1x10xf32>
    %39 = vector.shape_cast %38 : vector<1x10xf32> to vector<1x1x10xf32>
    %40 = vector.broadcast %39 : vector<1x1x10xf32> to vector<8x8x10xf32>
    %41 = arith.mulf %37, %40 : vector<8x8x10xf32>
    %42 = arith.addf %36, %41 : vector<8x8x10xf32>
    %c2_35 = arith.constant 2 : index
    %c0_36 = arith.constant 0 : index
    %c0_37 = arith.constant 0 : index
    %43 = vector.load %arg6[%c2_35, %c0_36, %c0_37] : memref<10x10x10xf32, #tpu.memory_space<vmem>>, vector<8x8x10xf32>
    %c6 = arith.constant 6 : index
    %c0_38 = arith.constant 0 : index
    %44 = vector.load %arg2[%c6, %c0_38] : memref<9x10xf32, #tpu.memory_space<vmem>>, vector<1x10xf32>
    %45 = vector.shape_cast %44 : vector<1x10xf32> to vector<1x1x10xf32>
    %46 = vector.broadcast %45 : vector<1x1x10xf32> to vector<8x8x10xf32>
    %47 = arith.mulf %43, %46 : vector<8x8x10xf32>
    %48 = arith.addf %42, %47 : vector<8x8x10xf32>
    %c2_39 = arith.constant 2 : index
    %c1_40 = arith.constant 1 : index
    %c0_41 = arith.constant 0 : index
    %49 = vector.load %arg6[%c2_39, %c1_40, %c0_41] : memref<10x10x10xf32, #tpu.memory_space<vmem>>, vector<8x8x10xf32>
    %c7 = arith.constant 7 : index
    %c0_42 = arith.constant 0 : index
    %50 = vector.load %arg2[%c7, %c0_42] : memref<9x10xf32, #tpu.memory_space<vmem>>, vector<1x10xf32>
    %51 = vector.shape_cast %50 : vector<1x10xf32> to vector<1x1x10xf32>
    %52 = vector.broadcast %51 : vector<1x1x10xf32> to vector<8x8x10xf32>
    %53 = arith.mulf %49, %52 : vector<8x8x10xf32>
    %54 = arith.addf %48, %53 : vector<8x8x10xf32>
    %c2_43 = arith.constant 2 : index
    %c2_44 = arith.constant 2 : index
    %c0_45 = arith.constant 0 : index
    %55 = vector.load %arg6[%c2_43, %c2_44, %c0_45] : memref<10x10x10xf32, #tpu.memory_space<vmem>>, vector<8x8x10xf32>
    %c8 = arith.constant 8 : index
    %c0_46 = arith.constant 0 : index
    %56 = vector.load %arg2[%c8, %c0_46] : memref<9x10xf32, #tpu.memory_space<vmem>>, vector<1x10xf32>
    %57 = vector.shape_cast %56 : vector<1x10xf32> to vector<1x1x10xf32>
    %58 = vector.broadcast %57 : vector<1x1x10xf32> to vector<8x8x10xf32>
    %59 = arith.mulf %55, %58 : vector<8x8x10xf32>
    %60 = arith.addf %54, %59 : vector<8x8x10xf32>
    %c0_47 = arith.constant 0 : index
    %c0_48 = arith.constant 0 : index
    %61 = vector.load %arg3[%c0_47, %c0_48] : memref<1x10xf32, #tpu.memory_space<vmem>>, vector<1x10xf32>
    %62 = vector.shape_cast %61 : vector<1x10xf32> to vector<1x1x10xf32>
    %63 = vector.broadcast %62 : vector<1x1x10xf32> to vector<8x8x10xf32>
    %64 = arith.addf %60, %63 : vector<8x8x10xf32>
    %cst_49 = arith.constant 0.000000e+00 : f32
    %65 = vector.broadcast %cst_49 : f32 to vector<8x8x10xf32>
    %66 = arith.subf %65, %64 : vector<8x8x10xf32>
    %67 = math.exp %66 : vector<8x8x10xf32>
    %cst_50 = arith.constant 1.000000e+00 : f32
    %68 = vector.broadcast %cst_50 : f32 to vector<8x8x10xf32>
    %69 = arith.addf %68, %67 : vector<8x8x10xf32>
    %cst_51 = arith.constant 1.000000e+00 : f32
    %70 = vector.broadcast %cst_51 : f32 to vector<8x8x10xf32>
    %71 = arith.divf %70, %69 : vector<8x8x10xf32>
    %72 = arith.mulf %64, %71 : vector<8x8x10xf32>
    %c0_52 = arith.constant 0 : index
    %c0_53 = arith.constant 0 : index
    %c0_54 = arith.constant 0 : index
    %c0_55 = arith.constant 0 : index
    %73 = vector.load %arg4[%c0_52, %c0_53, %c0_54, %c0_55] : memref<1x8x8x10xbf16, #tpu.memory_space<vmem>>, vector<1x8x8x10xbf16>
    %74 = vector.shape_cast %73 : vector<1x8x8x10xbf16> to vector<8x8x10xbf16>
    %75 = arith.extf %74 : vector<8x8x10xbf16> to vector<8x8x10xf32>
    %76 = arith.mulf %72, %75 : vector<8x8x10xf32>
    %77 = arith.truncf %76 : vector<8x8x10xf32> to vector<8x8x10xbf16>
    %c0_56 = arith.constant 0 : index
    %c0_57 = arith.constant 0 : index
    %c0_58 = arith.constant 0 : index
    %c0_59 = arith.constant 0 : index
    %78 = vector.load %arg5[%c0_56, %c0_57, %c0_58, %c0_59] : memref<1x8x8x10xbf16, #tpu.memory_space<vmem>>, vector<1x8x8x10xbf16>
    %79 = vector.shape_cast %78 : vector<1x8x8x10xbf16> to vector<8x8x10xbf16>
    %80 = vector.shape_cast %77 : vector<8x8x10xbf16> to vector<1x8x8x10xbf16>
    tpu.vector_store %arg5[%c0_56, %c0_57, %c0_58, %c0_59], %80 {strides = array<i32>} : memref<1x8x8x10xbf16, #tpu.memory_space<vmem>>, vector<1x8x8x10xbf16>,
    return
  }
  func.func @transform_0(%arg0: i32) -> (i32, i32, i32, i32) {
    %c0_i32 = arith.constant 0 : i32
    %c0_i32_0 = arith.constant 0 : i32
    %c0_i32_1 = arith.constant 0 : i32
    %c0_i32_2 = arith.constant 0 : i32
    return %arg0, %c0_i32, %c0_i32_0, %c0_i32_1 : i32, i32, i32, i32
  }
  func.func @transform_1(%arg0: i32) -> (i32, i32) {
    %c0_i32 = arith.constant 0 : i32
    %c0_i32_0 = arith.constant 0 : i32
    %c0_i32_1 = arith.constant 0 : i32
    return %c0_i32, %c0_i32_0 : i32, i32
  }
  func.func @transform_2(%arg0: i32) -> (i32, i32) {
    %c0_i32 = arith.constant 0 : i32
    %c0_i32_0 = arith.constant 0 : i32
    %c0_i32_1 = arith.constant 0 : i32
    return %c0_i32, %c0_i32_0 : i32, i32
  }
  func.func @transform_3(%arg0: i32) -> (i32, i32, i32, i32) {
    %c0_i32 = arith.constant 0 : i32
    %c0_i32_0 = arith.constant 0 : i32
    %c0_i32_1 = arith.constant 0 : i32
    %c0_i32_2 = arith.constant 0 : i32
    return %arg0, %c0_i32, %c0_i32_0, %c0_i32_1 : i32, i32, i32, i32
  }
  func.func @transform_4(%arg0: i32) -> (i32, i32, i32, i32) {
    %c0_i32 = arith.constant 0 : i32
    %c0_i32_0 = arith.constant 0 : i32
    %c0_i32_1 = arith.constant 0 : i32
    %c0_i32_2 = arith.constant 0 : i32
    return %arg0, %c0_i32, %c0_i32_0, %c0_i32_1 : i32, i32, i32, i32
  }
}

module attributes {stable_mosaic.version = 11 : i64} {
  func.func @_fused_matmul_kernel(%arg0: i32, %arg1: i32, %arg2: memref<128x10xbf16, #tpu.memory_space<vmem>>, %arg3: memref<128x16xf32, #tpu.memory_space<vmem>>, %arg4: memref<10x16xf32, #tpu.memory_space<vmem>>, %arg5: memref<1x16xf32, #tpu.memory_space<vmem>>, %arg6: memref<128x16xf32, #tpu.memory_space<vmem>>) attributes {dimension_semantics = [#tpu.dimension_semantics<parallel>, #tpu.dimension_semantics<parallel>], iteration_bounds = array<i64: 1, 1>, scalar_prefetch = 0 : i64, scratch_operands = 0 : i64, tpu.core_type = #tpu.core_type<tc>, window_params = [{transform_indices = @transform_0, window_bounds = array<i64: 128, 10>}, {transform_indices = @transform_1, window_bounds = array<i64: 128, 16>}, {transform_indices = @transform_2, window_bounds = array<i64: 10, 16>}, {transform_indices = @transform_3, window_bounds = array<i64: 1, 16>}, {transform_indices = @transform_4, window_bounds = array<i64: 128, 16>}]} {
    %c0 = arith.constant 0 : index
    %c0_0 = arith.constant 0 : index
    %0 = vector.load %arg2[%c0, %c0_0] : memref<128x10xbf16, #tpu.memory_space<vmem>>, vector<128x10xbf16>
    %1 = arith.extf %0 : vector<128x10xbf16> to vector<128x10xf32>
    %2 = arith.truncf %1 : vector<128x10xf32> to vector<128x10xbf16>
    %c0_1 = arith.constant 0 : index
    %c0_2 = arith.constant 0 : index
    %3 = vector.load %arg4[%c0_1, %c0_2] : memref<10x16xf32, #tpu.memory_space<vmem>>, vector<10x16xf32>
    %4 = arith.truncf %3 : vector<10x16xf32> to vector<10x16xbf16>
    %cst = arith.constant dense<0.000000e+00> : vector<128x16xf32>
    %5 = tpu.matmul %2, %4, %cst {dimension_numbers = #tpu.dot_dimension_numbers<[1], [0], [0], [1], [0, 0, 1, 1], [], []>} : vector<128x10xbf16>, vector<10x16xbf16>, vector<128x16xf32> -> vector<128x16xf32>
    %c0_3 = arith.constant 0 : index
    %c0_4 = arith.constant 0 : index
    %6 = vector.load %arg5[%c0_3, %c0_4] : memref<1x16xf32, #tpu.memory_space<vmem>>, vector<1x16xf32>
    %7 = vector.broadcast %6 : vector<1x16xf32> to vector<128x16xf32>
    %8 = arith.addf %5, %7 : vector<128x16xf32>
    %c0_5 = arith.constant 0 : index
    %c0_6 = arith.constant 0 : index
    %9 = vector.load %arg3[%c0_5, %c0_6] : memref<128x16xf32, #tpu.memory_space<vmem>>, vector<128x16xf32>
    %10 = arith.addf %8, %9 : vector<128x16xf32>
    %c0_7 = arith.constant 0 : index
    %c0_8 = arith.constant 0 : index
    %11 = vector.load %arg6[%c0_7, %c0_8] : memref<128x16xf32, #tpu.memory_space<vmem>>, vector<128x16xf32>
    tpu.vector_store %arg6[%c0_7, %c0_8], %10 {strides = array<i32>} : memref<128x16xf32, #tpu.memory_space<vmem>>, vector<128x16xf32>,
    return
  }
  func.func @transform_0(%arg0: i32, %arg1: i32) -> (i32, i32) {
    %c0_i32 = arith.constant 0 : i32
    %c0_i32_0 = arith.constant 0 : i32
    return %arg0, %c0_i32 : i32, i32
  }
  func.func @transform_1(%arg0: i32, %arg1: i32) -> (i32, i32) {
    %c0_i32 = arith.constant 0 : i32
    return %arg0, %arg1 : i32, i32
  }
  func.func @transform_2(%arg0: i32, %arg1: i32) -> (i32, i32) {
    %c0_i32 = arith.constant 0 : i32
    %c0_i32_0 = arith.constant 0 : i32
    return %c0_i32, %arg1 : i32, i32
  }
  func.func @transform_3(%arg0: i32, %arg1: i32) -> (i32, i32) {
    %c0_i32 = arith.constant 0 : i32
    %c0_i32_0 = arith.constant 0 : i32
    return %c0_i32, %arg1 : i32, i32
  }
  func.func @transform_4(%arg0: i32, %arg1: i32) -> (i32, i32) {
    %c0_i32 = arith.constant 0 : i32
    return %arg0, %arg1 : i32, i32
  }
}

</mosaic_0001>

<llo_original>
// kernel: vss_convg_forward.8
$region0: #{vss_convg_forward.8}
  #allocation0 [shape = 'u32[]', space=smem, size = 0x4, offset = 0x4, fixed_abs, tag = 'smem constant byte address 0x4 - core index']
  #allocation1 [shape = 'u32[144,128]{1,0:T(1,128)}', space=vmem, size = 0x12000, scoped, tag = 'internal scratch']
  %s0 = inlined_call_operand.hbm [shape: f32[128,16], index: 0, kind: input, shape index: {}]
  %s1 = inlined_call_operand.vmem [shape: f32[1,16], index: 1, kind: input, shape index: {}]
  %s2 = inlined_call_operand.vmem [shape: f32[1,16], index: 2, kind: input, shape index: {}]
  %s3 = inlined_call_operand.vmem [shape: f32[16,64], index: 3, kind: input, shape index: {}]
  %s4 = inlined_call_operand.vmem [shape: bf16[128,64], index: 4, kind: output, shape index: {}]
  %s5 = sld [smem:[#allocation0]]
  $region30: #{vss_convg_forward.8} parent=0
    _
  %s7 = ssub.s32 1, %s5
  %s8 = scalar_select 0, %s7, %s5
  $region1: #{vss_convg_forward.8} parent=0
    #allocation2 [shape = 'u8[65536]{0}', space=vmem, size = 0x10000, scoped, tag = 'input window, operand 0, single buffered']
    #allocation3 [shape = 's32[1]{0}', space=sflag, size = 0x4, scoped, tag = 'scoped memory for vss_convg_forward.8']
    %9 = vsyncpa [#allocation3], 0
    // Predicated region
    $region2: #{vss_convg_forward.8} parent=1 // pred_check
      _
    $region3: #{vss_convg_forward.8} parent=1 // pred_check_branch
      %11 = sbr.rel (0) target = $region5
    $region4: #{vss_convg_forward.8} parent=1 // pred_region
      %s13 = ssub.s32 2048, 2048
      %14 = vsyncadd [#allocation3], %s13
      %s15 = sshll.u32 [#allocation2], 4
      %s16 = int_to_ptr.vmem [resolvable:$true] %s15
      %21 = dma.hbm_to_vmem [thread:$0]  %s0, 2048, %s16, [#allocation3], 128, 128, 8
    $region5: #{vss_convg_forward.8} parent=1 // pred_fallthru
      _
    // Predicated region
    $region6: #{vss_convg_forward.8} parent=1 // pred_check
      _
    $region7: #{vss_convg_forward.8} parent=1 // pred_check_branch
      %23 = sbr.rel (0) target = $region9
    $region8: #{vss_convg_forward.8} parent=1 // pred_region
      _
    $region9: #{vss_convg_forward.8} parent=1 // pred_fallthru
      _
    // Predicated region
    $region10: #{vss_convg_forward.8} parent=1 // pred_check
      _
    $region11: #{vss_convg_forward.8} parent=1 // pred_check_branch
      %25 = sbr.rel (0) target = $region13
    $region12: #{vss_convg_forward.8} parent=1 // pred_region
      _
    $region13: #{vss_convg_forward.8} parent=1 // pred_fallthru
      _
    // Predicated region
    $region14: #{vss_convg_forward.8} parent=1 // pred_check
      _
    $region15: #{vss_convg_forward.8} parent=1 // pred_check_branch
      %27 = sbr.rel (0) target = $region17
    $region16: #{vss_convg_forward.8} parent=1 // pred_region
      _
    $region17: #{vss_convg_forward.8} parent=1 // pred_fallthru
      _
    // Predicated region
    $region18: #{vss_convg_forward.8} parent=1 // pred_check
      _
    $region19: #{vss_convg_forward.8} parent=1 // pred_check_branch
      %29 = sbr.rel (0) target = $region21
    $region20: #{vss_convg_forward.8} parent=1 // pred_region
      %30 = dma.done [#allocation3], 2048
    $region21: #{vss_convg_forward.8} parent=1 // pred_fallthru
      _
    %v32 = vld [vmem:[#allocation2] sm:$0xff]
    %v33 = vld [vmem:[#allocation2 + $0x8] sm:$0xff]
    %v34 = vld [vmem:[#allocation2 + $0x10] sm:$0xff]
    %v35 = vld [vmem:[#allocation2 + $0x18] sm:$0xff]
    %v36 = vld [vmem:[#allocation2 + $0x20] sm:$0xff]
    %v37 = vld [vmem:[#allocation2 + $0x28] sm:$0xff]
    %v38 = vld [vmem:[#allocation2 + $0x30] sm:$0xff]
    %v39 = vld [vmem:[#allocation2 + $0x38] sm:$0xff]
    %v40 = vld [vmem:[#allocation2 + $0x40] sm:$0xff]
    %v41 = vld [vmem:[#allocation2 + $0x48] sm:$0xff]
    %v42 = vld [vmem:[#allocation2 + $0x50] sm:$0xff]
    %v43 = vld [vmem:[#allocation2 + $0x58] sm:$0xff]
    %v44 = vld [vmem:[#allocation2 + $0x60] sm:$0xff]
    %v45 = vld [vmem:[#allocation2 + $0x68] sm:$0xff]
    %v46 = vld [vmem:[#allocation2 + $0x70] sm:$0xff]
    %v47 = vld [vmem:[#allocation2 + $0x78] sm:$0xff]
    %vm48 = vcmask 130048
    %v49 = vsel %vm48, %v32, 0.0
    %50 = vadd.xlane.f32.xlu0 %v49
    %v51 = vpop.xlane.xlu0 %50
    %v52 = vsel %vm48, %v33, 0.0
    %53 = vadd.xlane.f32.xlu0 %v52
    %v54 = vpop.xlane.xlu0 %53
    %v55 = vsel %vm48, %v34, 0.0
    %56 = vadd.xlane.f32.xlu0 %v55
    %v57 = vpop.xlane.xlu0 %56
    %v58 = vsel %vm48, %v35, 0.0
    %59 = vadd.xlane.f32.xlu0 %v58
    %v60 = vpop.xlane.xlu0 %59
    %v61 = vsel %vm48, %v36, 0.0
    %62 = vadd.xlane.f32.xlu0 %v61
    %v63 = vpop.xlane.xlu0 %62
    %v64 = vsel %vm48, %v37, 0.0
    %65 = vadd.xlane.f32.xlu0 %v64
    %v66 = vpop.xlane.xlu0 %65
    %v67 = vsel %vm48, %v38, 0.0
    %68 = vadd.xlane.f32.xlu0 %v67
    %v69 = vpop.xlane.xlu0 %68
    %v70 = vsel %vm48, %v39, 0.0
    %71 = vadd.xlane.f32.xlu0 %v70
    %v72 = vpop.xlane.xlu0 %71
    %v73 = vsel %vm48, %v40, 0.0
    %74 = vadd.xlane.f32.xlu0 %v73
    %v75 = vpop.xlane.xlu0 %74
    %v76 = vsel %vm48, %v41, 0.0
    %77 = vadd.xlane.f32.xlu0 %v76
    %v78 = vpop.xlane.xlu0 %77
    %v79 = vsel %vm48, %v42, 0.0
    %80 = vadd.xlane.f32.xlu0 %v79
    %v81 = vpop.xlane.xlu0 %80
    %v82 = vsel %vm48, %v43, 0.0
    %83 = vadd.xlane.f32.xlu0 %v82
    %v84 = vpop.xlane.xlu0 %83
    %v85 = vsel %vm48, %v44, 0.0
    %86 = vadd.xlane.f32.xlu0 %v85
    %v87 = vpop.xlane.xlu0 %86
    %v88 = vsel %vm48, %v45, 0.0
    %89 = vadd.xlane.f32.xlu0 %v88
    %v90 = vpop.xlane.xlu0 %89
    %v91 = vsel %vm48, %v46, 0.0
    %92 = vadd.xlane.f32.xlu0 %v91
    %v93 = vpop.xlane.xlu0 %92
    %v94 = vsel %vm48, %v47, 0.0
    %95 = vadd.xlane.f32.xlu0 %v94
    %v96 = vpop.xlane.xlu0 %95
    %v97 = vrcp.pop 16.0
    %v98 = vmul.f32 %v51, %v97
    %v99 = vmul.f32 %v54, %v97
    %v100 = vmul.f32 %v57, %v97
    %v101 = vmul.f32 %v60, %v97
    %v102 = vmul.f32 %v63, %v97
    %v103 = vmul.f32 %v66, %v97
    %v104 = vmul.f32 %v69, %v97
    %v105 = vmul.f32 %v72, %v97
    %v106 = vmul.f32 %v75, %v97
    %v107 = vmul.f32 %v78, %v97
    %v108 = vmul.f32 %v81, %v97
    %v109 = vmul.f32 %v84, %v97
    %v110 = vmul.f32 %v87, %v97
    %v111 = vmul.f32 %v90, %v97
    %v112 = vmul.f32 %v93, %v97
    %v113 = vmul.f32 %v96, %v97
    %v114 = vsub.f32 %v32, %v98
    %v115 = vsub.f32 %v33, %v99
    %v116 = vsub.f32 %v34, %v100
    %v117 = vsub.f32 %v35, %v101
    %v118 = vsub.f32 %v36, %v102
    %v119 = vsub.f32 %v37, %v103
    %v120 = vsub.f32 %v38, %v104
    %v121 = vsub.f32 %v39, %v105
    %v122 = vsub.f32 %v40, %v106
    %v123 = vsub.f32 %v41, %v107
    %v124 = vsub.f32 %v42, %v108
    %v125 = vsub.f32 %v43, %v109
    %v126 = vsub.f32 %v44, %v110
    %v127 = vsub.f32 %v45, %v111
    %v128 = vsub.f32 %v46, %v112
    %v129 = vsub.f32 %v47, %v113
    %v130 = vmul.f32 %v114, %v114
    %v131 = vmul.f32 %v115, %v115
    %v132 = vmul.f32 %v116, %v116
    %v133 = vmul.f32 %v117, %v117
    %v134 = vmul.f32 %v118, %v118
    %v135 = vmul.f32 %v119, %v119
    %v136 = vmul.f32 %v120, %v120
    %v137 = vmul.f32 %v121, %v121
    %v138 = vmul.f32 %v122, %v122
    %v139 = vmul.f32 %v123, %v123
    %v140 = vmul.f32 %v124, %v124
    %v141 = vmul.f32 %v125, %v125
    %v142 = vmul.f32 %v126, %v126
    %v143 = vmul.f32 %v127, %v127
    %v144 = vmul.f32 %v128, %v128
    %v145 = vmul.f32 %v129, %v129
    %v146 = vsel %vm48, %v130, 0.0
    %147 = vadd.xlane.f32.xlu0 %v146
    %v148 = vpop.xlane.xlu0 %147
    %v149 = vsel %vm48, %v131, 0.0
    %150 = vadd.xlane.f32.xlu0 %v149
    %v151 = vpop.xlane.xlu0 %150
    %v152 = vsel %vm48, %v132, 0.0
    %153 = vadd.xlane.f32.xlu0 %v152
    %v154 = vpop.xlane.xlu0 %153
    %v155 = vsel %vm48, %v133, 0.0
    %156 = vadd.xlane.f32.xlu0 %v155
    %v157 = vpop.xlane.xlu0 %156
    %v158 = vsel %vm48, %v134, 0.0
    %159 = vadd.xlane.f32.xlu0 %v158
    %v160 = vpop.xlane.xlu0 %159
    %v161 = vsel %vm48, %v135, 0.0
    %162 = vadd.xlane.f32.xlu0 %v161
    %v163 = vpop.xlane.xlu0 %162
    %v164 = vsel %vm48, %v136, 0.0
    %165 = vadd.xlane.f32.xlu0 %v164
    %v166 = vpop.xlane.xlu0 %165
    %v167 = vsel %vm48, %v137, 0.0
    %168 = vadd.xlane.f32.xlu0 %v167
    %v169 = vpop.xlane.xlu0 %168
    %v170 = vsel %vm48, %v138, 0.0
    %171 = vadd.xlane.f32.xlu0 %v170
    %v172 = vpop.xlane.xlu0 %171
    %v173 = vsel %vm48, %v139, 0.0
    %174 = vadd.xlane.f32.xlu0 %v173
    %v175 = vpop.xlane.xlu0 %174
    %v176 = vsel %vm48, %v140, 0.0
    %177 = vadd.xlane.f32.xlu0 %v176
    %v178 = vpop.xlane.xlu0 %177
    %v179 = vsel %vm48, %v141, 0.0
    %180 = vadd.xlane.f32.xlu0 %v179
    %v181 = vpop.xlane.xlu0 %180
    %v182 = vsel %vm48, %v142, 0.0
    %183 = vadd.xlane.f32.xlu0 %v182
    %v184 = vpop.xlane.xlu0 %183
    %v185 = vsel %vm48, %v143, 0.0
    %186 = vadd.xlane.f32.xlu0 %v185
    %v187 = vpop.xlane.xlu0 %186
    %v188 = vsel %vm48, %v144, 0.0
    %189 = vadd.xlane.f32.xlu0 %v188
    %v190 = vpop.xlane.xlu0 %189
    %v191 = vsel %vm48, %v145, 0.0
    %192 = vadd.xlane.f32.xlu0 %v191
    %v193 = vpop.xlane.xlu0 %192
    %v194 = vmul.f32 %v148, %v97
    %v195 = vmul.f32 %v151, %v97
    %v196 = vmul.f32 %v154, %v97
    %v197 = vmul.f32 %v157, %v97
    %v198 = vmul.f32 %v160, %v97
    %v199 = vmul.f32 %v163, %v97
    %v200 = vmul.f32 %v166, %v97
    %v201 = vmul.f32 %v169, %v97
    %v202 = vmul.f32 %v172, %v97
    %v203 = vmul.f32 %v175, %v97
    %v204 = vmul.f32 %v178, %v97
    %v205 = vmul.f32 %v181, %v97
    %v206 = vmul.f32 %v184, %v97
    %v207 = vmul.f32 %v187, %v97
    %v208 = vmul.f32 %v190, %v97
    %v209 = vmul.f32 %v193, %v97
    %v210 = vadd.f32 %v194, 1e-06
    %v211 = vadd.f32 %v195, 1e-06
    %v212 = vadd.f32 %v196, 1e-06
    %v213 = vadd.f32 %v197, 1e-06
    %v214 = vadd.f32 %v198, 1e-06
    %v215 = vadd.f32 %v199, 1e-06
    %v216 = vadd.f32 %v200, 1e-06
    %v217 = vadd.f32 %v201, 1e-06
    %v218 = vadd.f32 %v202, 1e-06
    %v219 = vadd.f32 %v203, 1e-06
    %v220 = vadd.f32 %v204, 1e-06
    %v221 = vadd.f32 %v205, 1e-06
    %v222 = vadd.f32 %v206, 1e-06
    %v223 = vadd.f32 %v207, 1e-06
    %v224 = vadd.f32 %v208, 1e-06
    %v225 = vadd.f32 %v209, 1e-06
    %v226 = vrsqrt.pop %v210
    %v227 = vrsqrt.pop %v211
    %v228 = vrsqrt.pop %v212
    %v229 = vrsqrt.pop %v213
    %v230 = vrsqrt.pop %v214
    %v231 = vrsqrt.pop %v215
    %v232 = vrsqrt.pop %v216
    %v233 = vrsqrt.pop %v217
    %v234 = vrsqrt.pop %v218
    %v235 = vrsqrt.pop %v219
    %v236 = vrsqrt.pop %v220
    %v237 = vrsqrt.pop %v221
    %v238 = vrsqrt.pop %v222
    %v239 = vrsqrt.pop %v223
    %v240 = vrsqrt.pop %v224
    %v241 = vrsqrt.pop %v225
    %v242 = vmul.f32 %v114, %v226
    %v243 = vmul.f32 %v115, %v227
    %v244 = vmul.f32 %v116, %v228
    %v245 = vmul.f32 %v117, %v229
    %v246 = vmul.f32 %v118, %v230
    %v247 = vmul.f32 %v119, %v231
    %v248 = vmul.f32 %v120, %v232
    %v249 = vmul.f32 %v121, %v233
    %v250 = vmul.f32 %v122, %v234
    %v251 = vmul.f32 %v123, %v235
    %v252 = vmul.f32 %v124, %v236
    %v253 = vmul.f32 %v125, %v237
    %v254 = vmul.f32 %v126, %v238
    %v255 = vmul.f32 %v127, %v239
    %v256 = vmul.f32 %v128, %v240
    %v257 = vmul.f32 %v129, %v241
    %v258 = vld [vmem:[%s1] sm:$0x1]
    %v260 = vlaneseq
    %v261 = vshrl.u32 %v260, 7
    %v262 = vsub.s32 0, %v261
    %v263 = vrot.slane %v258, %v262
    %v265 = vmul.f32 %v242, %v263
    %v266 = vmul.f32 %v243, %v263
    %v267 = vmul.f32 %v244, %v263
    %v268 = vmul.f32 %v245, %v263
    %v269 = vmul.f32 %v246, %v263
    %v270 = vmul.f32 %v247, %v263
    %v271 = vmul.f32 %v248, %v263
    %v272 = vmul.f32 %v249, %v263
    %v273 = vmul.f32 %v250, %v263
    %v274 = vmul.f32 %v251, %v263
    %v275 = vmul.f32 %v252, %v263
    %v276 = vmul.f32 %v253, %v263
    %v277 = vmul.f32 %v254, %v263
    %v278 = vmul.f32 %v255, %v263
    %v279 = vmul.f32 %v256, %v263
    %v280 = vmul.f32 %v257, %v263
    %v281 = vld [vmem:[%s2] sm:$0x1]
    %v283 = vlaneseq
    %v284 = vshrl.u32 %v283, 7
    %v285 = vsub.s32 0, %v284
    %v286 = vrot.slane %v281, %v285
    %v288 = vadd.f32 %v265, %v286
    %v289 = vadd.f32 %v266, %v286
    %v290 = vadd.f32 %v267, %v286
    %v291 = vadd.f32 %v268, %v286
    %v292 = vadd.f32 %v269, %v286
    %v293 = vadd.f32 %v270, %v286
    %v294 = vadd.f32 %v271, %v286
    %v295 = vadd.f32 %v272, %v286
    %v296 = vadd.f32 %v273, %v286
    %v297 = vadd.f32 %v274, %v286
    %v298 = vadd.f32 %v275, %v286
    %v299 = vadd.f32 %v276, %v286
    %v300 = vadd.f32 %v277, %v286
    %v301 = vadd.f32 %v278, %v286
    %v302 = vadd.f32 %v279, %v286
    %v303 = vadd.f32 %v280, %v286
    %v304 = vpack.c.bf16 %v289, %v288
    %v305 = vpack.c.bf16 %v291, %v290
    %v306 = vpack.c.bf16 %v293, %v292
    %v307 = vpack.c.bf16 %v295, %v294
    %v308 = vpack.c.bf16 %v297, %v296
    %v309 = vpack.c.bf16 %v299, %v298
    %v310 = vpack.c.bf16 %v301, %v300
    %v311 = vpack.c.bf16 %v303, %v302
    %v312 = vld [vmem:[%s3] sm:$0xff]
    %v313 = vld [vmem:[%s3 + $0x8] sm:$0xff]
    %v314 = vpack.c.bf16 %v313, %v312
    %v316 = vsel %vm48, %v304, 0
    %v319 = vsel %vm48, %v305, 0
    %v322 = vsel %vm48, %v306, 0
    %v325 = vsel %vm48, %v307, 0
    %v328 = vsel %vm48, %v308, 0
    %v331 = vsel %vm48, %v309, 0
    %v334 = vsel %vm48, %v310, 0
    %v337 = vsel %vm48, %v311, 0
    %339 = vmatprep.subr.bf16.mxu0 0
    %340 = vmatpush1.bf16.msra.mxu0 0
    %341 = vmatprep.subr.bf16.mxu0 0
    %342 = vmatpush1.bf16.msra.mxu0 0
    %343 = vmatprep.subr.bf16.mxu0 0
    %344 = vmatpush1.bf16.msra.mxu0 0
    %345 = vmatprep.subr.bf16.mxu0 0
    %346 = vmatpush1.bf16.msra.mxu0 0
    %347 = vmatprep.subr.bf16.mxu0 0
    %348 = vmatpush1.bf16.msra.mxu0 0
    %349 = vmatprep.subr.bf16.mxu0 0
    %350 = vmatpush1.bf16.msra.mxu0 0
    %351 = vmatprep.subr.bf16.mxu0 0
    %352 = vmatpush1.bf16.msra.mxu0 0
    %353 = vmatprep.subr.bf16.mxu0 0
    %354 = vmatpush1.bf16.msra.mxu0 %v314
    %355 = vmatprep.subr.bf16.mxu0 0
    %356 = vmatpush2.bf16.msra.mxu0 0
    %357 = vmatprep.subr.bf16.mxu0 0
    %358 = vmatpush2.bf16.msra.mxu0 0
    %359 = vmatprep.subr.bf16.mxu0 0
    %360 = vmatpush2.bf16.msra.mxu0 0
    %361 = vmatprep.subr.bf16.mxu0 0
    %362 = vmatpush2.bf16.msra.mxu0 0
    %363 = vmatprep.subr.bf16.mxu0 0
    %364 = vmatpush2.bf16.msra.mxu0 0
    %365 = vmatprep.subr.bf16.mxu0 0
    %366 = vmatpush2.bf16.msra.mxu0 0
    %367 = vmatprep.subr.bf16.mxu0 0
    %368 = vmatpush2.bf16.msra.mxu0 0
    %369 = vmatprep.subr.bf16.mxu0 0
    %370 = vmatpush2.bf16.msra.mxu0 0
    %371 = vmatprep.mubr.bf16.mxu0 0
    %372 = vmatmul.mubr.bf16.gmra.mxu0 %v316
    %v373 = vpop.f32.mrf.mxu0
    %v374 = vadd.f32 0.0, %v373
    %v375 = vpop.f32.mrf.mxu0
    %v376 = vpop.f32.mrf.mxu0
    %v377 = vadd.f32 0.0, %v376
    %v378 = vpop.f32.mrf.mxu0
    %379 = vmatprep.mubr.bf16.mxu0 0
    %380 = vmatmul.mubr.bf16.gmra.mxu0 %v319
    %v381 = vpop.f32.mrf.mxu0
    %v382 = vadd.f32 0.0, %v381
    %v383 = vpop.f32.mrf.mxu0
    %v384 = vpop.f32.mrf.mxu0
    %v385 = vadd.f32 0.0, %v384
    %v386 = vpop.f32.mrf.mxu0
    %387 = vmatprep.mubr.bf16.mxu0 0
    %388 = vmatmul.mubr.bf16.gmra.mxu0 %v322
    %v389 = vpop.f32.mrf.mxu0
    %v390 = vadd.f32 0.0, %v389
    %v391 = vpop.f32.mrf.mxu0
    %v392 = vpop.f32.mrf.mxu0
    %v393 = vadd.f32 0.0, %v392
    %v394 = vpop.f32.mrf.mxu0
    %395 = vmatprep.mubr.bf16.mxu0 0
    %396 = vmatmul.mubr.bf16.gmra.mxu0 %v325
    %v397 = vpop.f32.mrf.mxu0
    %v398 = vadd.f32 0.0, %v397
    %v399 = vpop.f32.mrf.mxu0
    %v400 = vpop.f32.mrf.mxu0
    %v401 = vadd.f32 0.0, %v400
    %v402 = vpop.f32.mrf.mxu0
    %403 = vmatprep.mubr.bf16.mxu0 0
    %404 = vmatmul.mubr.bf16.gmra.mxu0 %v328
    %v405 = vpop.f32.mrf.mxu0
    %v406 = vadd.f32 0.0, %v405
    %v407 = vpop.f32.mrf.mxu0
    %v408 = vpop.f32.mrf.mxu0
    %v409 = vadd.f32 0.0, %v408
    %v410 = vpop.f32.mrf.mxu0
    %411 = vmatprep.mubr.bf16.mxu0 0
    %412 = vmatmul.mubr.bf16.gmra.mxu0 %v331
    %v413 = vpop.f32.mrf.mxu0
    %v414 = vadd.f32 0.0, %v413
    %v415 = vpop.f32.mrf.mxu0
    %v416 = vpop.f32.mrf.mxu0
    %v417 = vadd.f32 0.0, %v416
    %v418 = vpop.f32.mrf.mxu0
    %419 = vmatprep.mubr.bf16.mxu0 0
    %420 = vmatmul.mubr.bf16.gmra.mxu0 %v334
    %v421 = vpop.f32.mrf.mxu0
    %v422 = vadd.f32 0.0, %v421
    %v423 = vpop.f32.mrf.mxu0
    %v424 = vpop.f32.mrf.mxu0
    %v425 = vadd.f32 0.0, %v424
    %v426 = vpop.f32.mrf.mxu0
    %427 = vmatprep.mubr.bf16.mxu0 0
    %428 = vmatmul.mubr.bf16.gmra.mxu0 %v337
    %v429 = vpop.f32.mrf.mxu0
    %v430 = vadd.f32 0.0, %v429
    %v431 = vpop.f32.mrf.mxu0
    %v432 = vpop.f32.mrf.mxu0
    %v433 = vadd.f32 0.0, %v432
    %v434 = vpop.f32.mrf.mxu0
    %435 = vdwg.mxu0
    %v436 = vpack.c.bf16 %v377, %v374
    %v437 = vpack.c.bf16 %v385, %v382
    %v438 = vpack.c.bf16 %v393, %v390
    %v439 = vpack.c.bf16 %v401, %v398
    %v440 = vpack.c.bf16 %v409, %v406
    %v441 = vpack.c.bf16 %v417, %v414
    %v442 = vpack.c.bf16 %v425, %v422
    %v443 = vpack.c.bf16 %v433, %v430
    %v452 = vunpack.c.l.b16 %v436
    %v453 = vunpack.c.h.b16 %v436
    %v454 = vunpack.c.l.b16 %v437
    %v455 = vunpack.c.h.b16 %v437
    %v456 = vunpack.c.l.b16 %v438
    %v457 = vunpack.c.h.b16 %v438
    %v458 = vunpack.c.l.b16 %v439
    %v459 = vunpack.c.h.b16 %v439
    %v460 = vunpack.c.l.b16 %v440
    %v461 = vunpack.c.h.b16 %v440
    %v462 = vunpack.c.l.b16 %v441
    %v463 = vunpack.c.h.b16 %v441
    %v464 = vunpack.c.l.b16 %v442
    %v465 = vunpack.c.h.b16 %v442
    %v466 = vunpack.c.l.b16 %v443
    %v467 = vunpack.c.h.b16 %v443
    %v468 = vpack.c.b16 %v452, %v452
    %v469 = vpack.c.b16 %v453, %v453
    %v470 = vpack.c.b16 %v454, %v454
    %v471 = vpack.c.b16 %v455, %v455
    %v472 = vpack.c.b16 %v456, %v456
    %v473 = vpack.c.b16 %v457, %v457
    %v474 = vpack.c.b16 %v458, %v458
    %v475 = vpack.c.b16 %v459, %v459
    %v476 = vpack.c.b16 %v460, %v460
    %v477 = vpack.c.b16 %v461, %v461
    %v478 = vpack.c.b16 %v462, %v462
    %v479 = vpack.c.b16 %v463, %v463
    %v480 = vpack.c.b16 %v464, %v464
    %v481 = vpack.c.b16 %v465, %v465
    %v482 = vpack.c.b16 %v466, %v466
    %v483 = vpack.c.b16 %v467, %v467
    %vm500 = vcmask 519168
    %501 = vst.msk [vmem:[%s4] sm:$0xf] %vm500, %v468
    %502 = vst.msk [vmem:[%s4 + $0x4] sm:$0xf] %vm500, %v469
    %503 = vst.msk [vmem:[%s4 + $0x8] sm:$0xf] %vm500, %v470
    %504 = vst.msk [vmem:[%s4 + $0xc] sm:$0xf] %vm500, %v471
    %505 = vst.msk [vmem:[%s4 + $0x10] sm:$0xf] %vm500, %v472
    %506 = vst.msk [vmem:[%s4 + $0x14] sm:$0xf] %vm500, %v473
    %507 = vst.msk [vmem:[%s4 + $0x18] sm:$0xf] %vm500, %v474
    %508 = vst.msk [vmem:[%s4 + $0x1c] sm:$0xf] %vm500, %v475
    %509 = vst.msk [vmem:[%s4 + $0x20] sm:$0xf] %vm500, %v476
    %510 = vst.msk [vmem:[%s4 + $0x24] sm:$0xf] %vm500, %v477
    %511 = vst.msk [vmem:[%s4 + $0x28] sm:$0xf] %vm500, %v478
    %512 = vst.msk [vmem:[%s4 + $0x2c] sm:$0xf] %vm500, %v479
    %513 = vst.msk [vmem:[%s4 + $0x30] sm:$0xf] %vm500, %v480
    %514 = vst.msk [vmem:[%s4 + $0x34] sm:$0xf] %vm500, %v481
    %515 = vst.msk [vmem:[%s4 + $0x38] sm:$0xf] %vm500, %v482
    %516 = vst.msk [vmem:[%s4 + $0x3c] sm:$0xf] %vm500, %v483
    // Predicated region
    $region22: #{vss_convg_forward.8} parent=1 // pred_check
      _
    $region23: #{vss_convg_forward.8} parent=1 // pred_check_branch
      %518 = sbr.rel (0) target = $region25
    $region24: #{vss_convg_forward.8} parent=1 // pred_region
      _
    $region25: #{vss_convg_forward.8} parent=1 // pred_fallthru
      _
    // Predicated region
    $region26: #{vss_convg_forward.8} parent=1 // pred_check
      _
    $region27: #{vss_convg_forward.8} parent=1 // pred_check_branch
      %520 = sbr.rel (0) target = $region29
    $region28: #{vss_convg_forward.8} parent=1 // pred_region
      _
    $region29: #{vss_convg_forward.8} parent=1 // pred_fallthru
      _
    %521 = vsyncpa [#allocation3], 1

// kernel: vss_convg_forward.9
$region0: #{vss_convg_forward.9}
  #allocation0 [shape = 'u32[]', space=smem, size = 0x4, offset = 0x4, fixed_abs, tag = 'smem constant byte address 0x4 - core index']
  #allocation1 [shape = 'u32[144,128]{1,0:T(1,128)}', space=vmem, size = 0x12000, scoped, tag = 'internal scratch']
  #allocation2 [shape = 'f32[10,10,32]{2,1,0:T(8,128)}', space=vmem, size = 0x14000, scoped, tag = 'scratch operand']
  %s0 = inlined_call_operand.vmem [shape: bf16[2,8,8,32], index: 0, kind: input, shape index: {}]
  %s1 = inlined_call_operand.vmem [shape: f32[9,32], index: 1, kind: input, shape index: {}]
  %s2 = inlined_call_operand.vmem [shape: f32[1,32], index: 2, kind: input, shape index: {}]
  %s3 = inlined_call_operand.vmem [shape: bf16[2,8,8,32], index: 3, kind: output, shape index: {}]
  %s4 = sld [smem:[#allocation0]]
  $region45: #{vss_convg_forward.9} parent=0
    _
  %s6 = ssub.s32 1, %s4
  %s7 = scalar_select 0, %s6, %s4
  loop: start=0, step=1, limit=4
  $region2: #{vss_convg_forward.9} parent=0 // loop_pre_header
    _
  $region3: #{vss_convg_forward.9} parent=0 // loop_header
    %s9 = sphi 0, %s13
    %p10 = scmp.ge.s32.totalorder %s9, 4
    %s19 = sphi 0, %s21
    %s22 = sphi 0, %s19
    %s23 = sphi 0, %s22
    %s39 = sphi 0, %s23
    %s43 = sphi 0, %s43
    %s45 = sphi 0, %s43
    %s46 = sphi 0, %s45
    %s60 = sphi 0, %s46
    %s64 = sphi 0, %s64
    %s66 = sphi 0, %s64
    %s67 = sphi 0, %s66
    %s81 = sphi 0, %s67
    %s87 = sphi 0, %s89
    %s90 = sphi 0, %s87
    %s91 = sphi 0, %s90
    %s107 = sphi 0, %s91
  $region4: #{vss_convg_forward.9} parent=0 // loop_header_branch
    %12 = sbr.rel (%p10) target = $region8
  $region5: #{vss_convg_forward.9} parent=0 // loop_body
    %s14 = ssub.s32 %s9, 1
    %s15 = ssub.s32 %s9, 2
    %s16 = sadd.s32 %s9, 1
    %s17 = ssub.s32 %s9, %s16
    %p18 = scmp.eq.s32.totalorder %s17, 0
    %s20 = sadd.s32 %s19, 1
    %s21 = scalar_select %p18, %s19, %s20
    %p24 = pneg %p18
    %p25 = scmp.eq.s32.totalorder %s9, 1
    %p26 = por %p24, %p25
    %p27 = scmp.ne.s32.totalorder %s19, %s22
    %p28 = scmp.eq.s32.totalorder %s9, 0
    %p29 = por %p27, %p28
    %p30 = scmp.ne.s32.totalorder %s19, %s22
    %p31 = scmp.eq.s32.totalorder %s14, 1
    %p32 = por %p30, %p31
    %p33 = scmp.ne.s32.totalorder %s22, %s23
    %p34 = scmp.eq.s32.totalorder %s14, 0
    %p35 = por %p33, %p34
    %p36 = scmp.ne.s32.totalorder %s22, %s23
    %p37 = scmp.eq.s32.totalorder %s15, 1
    %p38 = por %p36, %p37
    %p40 = scmp.ne.s32.totalorder %s23, %s39
    %p41 = scmp.eq.s32.totalorder %s15, 0
    %p42 = por %p40, %p41
    %s44 = sadd.s32 %s43, 1
    %p47 = scmp.eq.s32.totalorder %s9, 1
    %p48 = scmp.ne.s32.totalorder %s43, %s45
    %p49 = scmp.eq.s32.totalorder %s9, 0
    %p50 = por %p48, %p49
    %p51 = scmp.ne.s32.totalorder %s43, %s45
    %p52 = scmp.eq.s32.totalorder %s14, 1
    %p53 = por %p51, %p52
    %p54 = scmp.ne.s32.totalorder %s45, %s46
    %p55 = scmp.eq.s32.totalorder %s14, 0
    %p56 = por %p54, %p55
    %p57 = scmp.ne.s32.totalorder %s45, %s46
    %p58 = scmp.eq.s32.totalorder %s15, 1
    %p59 = por %p57, %p58
    %p61 = scmp.ne.s32.totalorder %s46, %s60
    %p62 = scmp.eq.s32.totalorder %s15, 0
    %p63 = por %p61, %p62
    %s65 = sadd.s32 %s64, 1
    %p68 = scmp.eq.s32.totalorder %s9, 1
    %p69 = scmp.ne.s32.totalorder %s64, %s66
    %p70 = scmp.eq.s32.totalorder %s9, 0
    %p71 = por %p69, %p70
    %p72 = scmp.ne.s32.totalorder %s64, %s66
    %p73 = scmp.eq.s32.totalorder %s14, 1
    %p74 = por %p72, %p73
    %p75 = scmp.ne.s32.totalorder %s66, %s67
    %p76 = scmp.eq.s32.totalorder %s14, 0
    %p77 = por %p75, %p76
    %p78 = scmp.ne.s32.totalorder %s66, %s67
    %p79 = scmp.eq.s32.totalorder %s15, 1
    %p80 = por %p78, %p79
    %p82 = scmp.ne.s32.totalorder %s67, %s81
    %p83 = scmp.eq.s32.totalorder %s15, 0
    %p84 = por %p82, %p83
    %s85 = ssub.s32 %s9, %s16
    %p86 = scmp.eq.s32.totalorder %s85, 0
    %s88 = sadd.s32 %s87, 1
    %s89 = scalar_select %p86, %s87, %s88
    %p92 = pneg %p86
    %p93 = scmp.eq.s32.totalorder %s9, 1
    %p94 = por %p92, %p93
    %p95 = scmp.ne.s32.totalorder %s87, %s90
    %p96 = scmp.eq.s32.totalorder %s9, 0
    %p97 = por %p95, %p96
    %p98 = scmp.ne.s32.totalorder %s87, %s90
    %p99 = scmp.eq.s32.totalorder %s14, 1
    %p100 = por %p98, %p99
    %p101 = scmp.ne.s32.totalorder %s90, %s91
    %p102 = scmp.eq.s32.totalorder %s14, 0
    %p103 = por %p101, %p102
    %p104 = scmp.ne.s32.totalorder %s90, %s91
    %p105 = scmp.eq.s32.totalorder %s15, 1
    %p106 = por %p104, %p105
    %p108 = scmp.ne.s32.totalorder %s91, %s107
    %p109 = scmp.eq.s32.totalorder %s15, 0
    %p110 = por %p108, %p109
    %p111 = scmp.le.s32.totalorder 1, %s9
    %p112 = scmp.lt.s32.totalorder %s9, 3
    %p113 = pnand %p111, %p112
    %p114 = pneg %p113
    // Predicated region
    $region9: #{vss_convg_forward.9} parent=5 // pred_check
      _
    $region10: #{vss_convg_forward.9} parent=5 // pred_check_branch
      %116 = sbr.rel (%p113) target = $region12
    $region11: #{vss_convg_forward.9} parent=5 // pred_region
      %s117 = ssub.s32 %s9, 1
      // Predicated region
      $region13: #{vss_convg_forward.9} parent=11 // pred_check
        %p118 = pneg %p56
      $region14: #{vss_convg_forward.9} parent=11 // pred_check_branch
        %120 = sbr.rel (%p118) target = $region16
      $region15: #{vss_convg_forward.9} parent=11 // pred_region
        _
      $region16: #{vss_convg_forward.9} parent=11 // pred_fallthru
        _
      // Predicated region
      $region17: #{vss_convg_forward.9} parent=11 // pred_check
        %p121 = pneg %p77
      $region18: #{vss_convg_forward.9} parent=11 // pred_check_branch
        %123 = sbr.rel (%p121) target = $region20
      $region19: #{vss_convg_forward.9} parent=11 // pred_region
        _
      $region20: #{vss_convg_forward.9} parent=11 // pred_fallthru
        _
    $region12: #{vss_convg_forward.9} parent=5 // pred_fallthru
      _
    %p124 = scmp.lt.s32.totalorder %s9, 2
    // Predicated region
    $region21: #{vss_convg_forward.9} parent=5 // pred_check
      %p125 = pneg %p124
    $region22: #{vss_convg_forward.9} parent=5 // pred_check_branch
      %127 = sbr.rel (%p125) target = $region24
    $region23: #{vss_convg_forward.9} parent=5 // pred_region
      // Predicated region
      $region25: #{vss_convg_forward.9} parent=23 // pred_check
        %p128 = pneg %p29
      $region26: #{vss_convg_forward.9} parent=23 // pred_check_branch
        %130 = sbr.rel (%p128) target = $region28
      $region27: #{vss_convg_forward.9} parent=23 // pred_region
        %p131 = scmp.lt.s32.totalorder %s9, 1
        %s132 = scalar_select %p131, %s9, 1
        %s133 = smul.addr %s132, 8
        %s134 = smul.addr %s133, 4
        %s135 = scalar_lea.vmem %s0, %s134
      $region28: #{vss_convg_forward.9} parent=23 // pred_fallthru
        _
    $region24: #{vss_convg_forward.9} parent=5 // pred_fallthru
      _
    %p136 = scmp.le.s32.totalorder 1, %s9
    %p137 = scmp.lt.s32.totalorder %s9, 3
    %p138 = pnand %p136, %p137
    %p139 = pneg %p138
    // Predicated region
    $region29: #{vss_convg_forward.9} parent=5 // pred_check
      _
    $region30: #{vss_convg_forward.9} parent=5 // pred_check_branch
      %141 = sbr.rel (%p138) target = $region32
    $region31: #{vss_convg_forward.9} parent=5 // pred_region
      %s142 = ssub.s32 %s9, 1
      %p143 = scmp.lt.s32.totalorder %s14, 1
      %s144 = scalar_select %p143, %s14, 1
      %s145 = smul.addr %s144, 8
      %s146 = smul.addr %s145, 4
      %s147 = scalar_lea.vmem %s0, %s146
      %p148 = pneg %p35
      %p149 = pneg %p32
      %p150 = pneg %p56
      %p151 = pneg %p53
      %p152 = pneg %p77
      %p153 = pneg %p74
      %p154 = pneg %p103
      %p155 = pneg %p100
      %p156 = scmp.lt.s32.totalorder %s14, 1
      %s157 = scalar_select %p156, %s14, 1
      %s158 = smul.addr %s157, 8
      %s159 = smul.addr %s158, 4
      %s160 = scalar_lea.vmem %s3, %s159
      %p161 = scmp.lt.s32.totalorder %s14, 1
      %s162 = scalar_select %p161, %s14, 1
      %s163 = smul.addr %s162, 8
      %s164 = smul.addr %s163, 4
      %s165 = scalar_lea.vmem %s0, %s164
      %p166 = scmp.lt.s32.totalorder %s14, 1
      %s167 = scalar_select %p166, %s14, 1
      %s168 = smul.addr %s167, 8
      %s169 = smul.addr %s168, 4
      %s170 = scalar_lea.vmem %s3, %s169
      %vm171 = vcmask 261120
      %172 = vst.msk [vmem:[#allocation2] sm:$0xff] %vm171, 0.0
      %vm173 = vcmask 254976
      %174 = vst.msk [vmem:[#allocation2 + $0x8] sm:$0x3] %vm173, 0.0
      %175 = vst.msk [vmem:[#allocation2 + $0x10] sm:$0xff] %vm171, 0.0
      %176 = vst.msk [vmem:[#allocation2 + $0x18] sm:$0x3] %vm173, 0.0
      %177 = vst.msk [vmem:[#allocation2 + $0x20] sm:$0xff] %vm171, 0.0
      %178 = vst.msk [vmem:[#allocation2 + $0x28] sm:$0x3] %vm173, 0.0
      %179 = vst.msk [vmem:[#allocation2 + $0x30] sm:$0xff] %vm171, 0.0
      %180 = vst.msk [vmem:[#allocation2 + $0x38] sm:$0x3] %vm173, 0.0
      %181 = vst.msk [vmem:[#allocation2 + $0x40] sm:$0xff] %vm171, 0.0
      %182 = vst.msk [vmem:[#allocation2 + $0x48] sm:$0x3] %vm173, 0.0
      %183 = vst.msk [vmem:[#allocation2 + $0x50] sm:$0xff] %vm171, 0.0
      %184 = vst.msk [vmem:[#allocation2 + $0x58] sm:$0x3] %vm173, 0.0
      %185 = vst.msk [vmem:[#allocation2 + $0x60] sm:$0xff] %vm171, 0.0
      %186 = vst.msk [vmem:[#allocation2 + $0x68] sm:$0x3] %vm173, 0.0
      %187 = vst.msk [vmem:[#allocation2 + $0x70] sm:$0xff] %vm171, 0.0
      %188 = vst.msk [vmem:[#allocation2 + $0x78] sm:$0x3] %vm173, 0.0
      %189 = vst.msk [vmem:[#allocation2 + $0x80] sm:$0xff] %vm171, 0.0
      %190 = vst.msk [vmem:[#allocation2 + $0x88] sm:$0x3] %vm173, 0.0
      %191 = vst.msk [vmem:[#allocation2 + $0x90] sm:$0xff] %vm171, 0.0
      %192 = vst.msk [vmem:[#allocation2 + $0x98] sm:$0x3] %vm173, 0.0
      %v193 = vld [vmem:[%s165] sm:$0xf]
      %v194 = vld [vmem:[%s165 + $0x4] sm:$0xf]
      %v195 = vld [vmem:[%s165 + $0x8] sm:$0xf]
      %v196 = vld [vmem:[%s165 + $0xc] sm:$0xf]
      %v197 = vld [vmem:[%s165 + $0x10] sm:$0xf]
      %v198 = vld [vmem:[%s165 + $0x14] sm:$0xf]
      %v199 = vld [vmem:[%s165 + $0x18] sm:$0xf]
      %v200 = vld [vmem:[%s165 + $0x1c] sm:$0xf]
      %v201 = vunpack.c.l.bf16 %v193
      %v202 = vunpack.c.l.bf16 %v194
      %v203 = vunpack.c.l.bf16 %v195
      %v204 = vunpack.c.l.bf16 %v196
      %v205 = vunpack.c.l.bf16 %v197
      %v206 = vunpack.c.l.bf16 %v198
      %v207 = vunpack.c.l.bf16 %v199
      %v208 = vunpack.c.l.bf16 %v200
      %s209 = scalar_lea.vmem [#allocation2], 16
      %210 = vst.msk [vmem:[%s209 + $0x1] sm:$0xff] %vm171, %v201
      %211 = vst.msk [vmem:[%s209 + $0x11] sm:$0xff] %vm171, %v202
      %212 = vst.msk [vmem:[%s209 + $0x21] sm:$0xff] %vm171, %v203
      %213 = vst.msk [vmem:[%s209 + $0x31] sm:$0xff] %vm171, %v204
      %214 = vst.msk [vmem:[%s209 + $0x41] sm:$0xff] %vm171, %v205
      %215 = vst.msk [vmem:[%s209 + $0x51] sm:$0xff] %vm171, %v206
      %216 = vst.msk [vmem:[%s209 + $0x61] sm:$0xff] %vm171, %v207
      %217 = vst.msk [vmem:[%s209 + $0x71] sm:$0xff] %vm171, %v208
      %v218 = vld [vmem:[#allocation2] sm:$0xff]
      %v219 = vld [vmem:[#allocation2 + $0x10] sm:$0xff]
      %v220 = vld [vmem:[#allocation2 + $0x20] sm:$0xff]
      %v221 = vld [vmem:[#allocation2 + $0x30] sm:$0xff]
      %v222 = vld [vmem:[#allocation2 + $0x40] sm:$0xff]
      %v223 = vld [vmem:[#allocation2 + $0x50] sm:$0xff]
      %v224 = vld [vmem:[#allocation2 + $0x60] sm:$0xff]
      %v225 = vld [vmem:[#allocation2 + $0x70] sm:$0xff]
      %v226 = vld [vmem:[%s1] sm:$0x1]
      %v227 = vlaneseq
      %v228 = vshrl.u32 %v227, 7
      %v229 = vsub.s32 0, %v228
      %v230 = vrot.slane %v226, %v229
      %v231 = vmul.f32 %v218, %v230
      %v232 = vmul.f32 %v219, %v230
      %v233 = vmul.f32 %v220, %v230
      %v234 = vmul.f32 %v221, %v230
      %v235 = vmul.f32 %v222, %v230
      %v236 = vmul.f32 %v223, %v230
      %v237 = vmul.f32 %v224, %v230
      %v238 = vmul.f32 %v225, %v230
      %v239 = vadd.f32 %v231, 0.0
      %v240 = vadd.f32 %v232, 0.0
      %v241 = vadd.f32 %v233, 0.0
      %v242 = vadd.f32 %v234, 0.0
      %v243 = vadd.f32 %v235, 0.0
      %v244 = vadd.f32 %v236, 0.0
      %v245 = vadd.f32 %v237, 0.0
      %v246 = vadd.f32 %v238, 0.0
      %v247 = vld [vmem:[#allocation2 + $0x1] sm:$0xff]
      %v248 = vld [vmem:[#allocation2 + $0x11] sm:$0xff]
      %v249 = vld [vmem:[#allocation2 + $0x21] sm:$0xff]
      %v250 = vld [vmem:[#allocation2 + $0x31] sm:$0xff]
      %v251 = vld [vmem:[#allocation2 + $0x41] sm:$0xff]
      %v252 = vld [vmem:[#allocation2 + $0x51] sm:$0xff]
      %v253 = vld [vmem:[#allocation2 + $0x61] sm:$0xff]
      %v254 = vld [vmem:[#allocation2 + $0x71] sm:$0xff]
      %v255 = vld [vmem:[%s1 + $0x1] sm:$0x1]
      %v256 = vlaneseq
      %v257 = vshrl.u32 %v256, 7
      %v258 = vsub.s32 0, %v257
      %v259 = vrot.slane %v255, %v258
      %v260 = vmul.f32 %v247, %v259
      %v261 = vmul.f32 %v248, %v259
      %v262 = vmul.f32 %v249, %v259
      %v263 = vmul.f32 %v250, %v259
      %v264 = vmul.f32 %v251, %v259
      %v265 = vmul.f32 %v252, %v259
      %v266 = vmul.f32 %v253, %v259
      %v267 = vmul.f32 %v254, %v259
      %v268 = vadd.f32 %v239, %v260
      %v269 = vadd.f32 %v240, %v261
      %v270 = vadd.f32 %v241, %v262
      %v271 = vadd.f32 %v242, %v263
      %v272 = vadd.f32 %v243, %v264
      %v273 = vadd.f32 %v244, %v265
      %v274 = vadd.f32 %v245, %v266
      %v275 = vadd.f32 %v246, %v267
      %v276 = vld [vmem:[#allocation2 + $0x2] sm:$0xff]
      %v277 = vld [vmem:[#allocation2 + $0x12] sm:$0xff]
      %v278 = vld [vmem:[#allocation2 + $0x22] sm:$0xff]
      %v279 = vld [vmem:[#allocation2 + $0x32] sm:$0xff]
      %v280 = vld [vmem:[#allocation2 + $0x42] sm:$0xff]
      %v281 = vld [vmem:[#allocation2 + $0x52] sm:$0xff]
      %v282 = vld [vmem:[#allocation2 + $0x62] sm:$0xff]
      %v283 = vld [vmem:[#allocation2 + $0x72] sm:$0xff]
      %v284 = vld [vmem:[%s1 + $0x2] sm:$0x1]
      %v285 = vlaneseq
      %v286 = vshrl.u32 %v285, 7
      %v287 = vsub.s32 0, %v286
      %v288 = vrot.slane %v284, %v287
      %v289 = vmul.f32 %v276, %v288
      %v290 = vmul.f32 %v277, %v288
      %v291 = vmul.f32 %v278, %v288
      %v292 = vmul.f32 %v279, %v288
      %v293 = vmul.f32 %v280, %v288
      %v294 = vmul.f32 %v281, %v288
      %v295 = vmul.f32 %v282, %v288
      %v296 = vmul.f32 %v283, %v288
      %v297 = vadd.f32 %v268, %v289
      %v298 = vadd.f32 %v269, %v290
      %v299 = vadd.f32 %v270, %v291
      %v300 = vadd.f32 %v271, %v292
      %v301 = vadd.f32 %v272, %v293
      %v302 = vadd.f32 %v273, %v294
      %v303 = vadd.f32 %v274, %v295
      %v304 = vadd.f32 %v275, %v296
      %v305 = vld [vmem:[%s209] sm:$0xff]
      %v306 = vld [vmem:[%s209 + $0x10] sm:$0xff]
      %v307 = vld [vmem:[%s209 + $0x20] sm:$0xff]
      %v308 = vld [vmem:[%s209 + $0x30] sm:$0xff]
      %v309 = vld [vmem:[%s209 + $0x40] sm:$0xff]
      %v310 = vld [vmem:[%s209 + $0x50] sm:$0xff]
      %v311 = vld [vmem:[%s209 + $0x60] sm:$0xff]
      %v312 = vld [vmem:[%s209 + $0x70] sm:$0xff]
      %v313 = vld [vmem:[%s1 + $0x3] sm:$0x1]
      %v314 = vlaneseq
      %v315 = vshrl.u32 %v314, 7
      %v316 = vsub.s32 0, %v315
      %v317 = vrot.slane %v313, %v316
      %v318 = vmul.f32 %v305, %v317
      %v319 = vmul.f32 %v306, %v317
      %v320 = vmul.f32 %v307, %v317
      %v321 = vmul.f32 %v308, %v317
      %v322 = vmul.f32 %v309, %v317
      %v323 = vmul.f32 %v310, %v317
      %v324 = vmul.f32 %v311, %v317
      %v325 = vmul.f32 %v312, %v317
      %v326 = vadd.f32 %v297, %v318
      %v327 = vadd.f32 %v298, %v319
      %v328 = vadd.f32 %v299, %v320
      %v329 = vadd.f32 %v300, %v321
      %v330 = vadd.f32 %v301, %v322
      %v331 = vadd.f32 %v302, %v323
      %v332 = vadd.f32 %v303, %v324
      %v333 = vadd.f32 %v304, %v325
      %v334 = vld [vmem:[%s209 + $0x1] sm:$0xff]
      %v335 = vld [vmem:[%s209 + $0x11] sm:$0xff]
      %v336 = vld [vmem:[%s209 + $0x21] sm:$0xff]
      %v337 = vld [vmem:[%s209 + $0x31] sm:$0xff]
      %v338 = vld [vmem:[%s209 + $0x41] sm:$0xff]
      %v339 = vld [vmem:[%s209 + $0x51] sm:$0xff]
      %v340 = vld [vmem:[%s209 + $0x61] sm:$0xff]
      %v341 = vld [vmem:[%s209 + $0x71] sm:$0xff]
      %v342 = vld [vmem:[%s1 + $0x4] sm:$0x1]
      %v343 = vlaneseq
      %v344 = vshrl.u32 %v343, 7
      %v345 = vsub.s32 0, %v344
      %v346 = vrot.slane %v342, %v345
      %v347 = vmul.f32 %v334, %v346
      %v348 = vmul.f32 %v335, %v346
      %v349 = vmul.f32 %v336, %v346
      %v350 = vmul.f32 %v337, %v346
      %v351 = vmul.f32 %v338, %v346
      %v352 = vmul.f32 %v339, %v346
      %v353 = vmul.f32 %v340, %v346
      %v354 = vmul.f32 %v341, %v346
      %v355 = vadd.f32 %v326, %v347
      %v356 = vadd.f32 %v327, %v348
      %v357 = vadd.f32 %v328, %v349
      %v358 = vadd.f32 %v329, %v350
      %v359 = vadd.f32 %v330, %v351
      %v360 = vadd.f32 %v331, %v352
      %v361 = vadd.f32 %v332, %v353
      %v362 = vadd.f32 %v333, %v354
      %v363 = vld [vmem:[%s209 + $0x2] sm:$0xff]
      %v364 = vld [vmem:[%s209 + $0x12] sm:$0xff]
      %v365 = vld [vmem:[%s209 + $0x22] sm:$0xff]
      %v366 = vld [vmem:[%s209 + $0x32] sm:$0xff]
      %v367 = vld [vmem:[%s209 + $0x42] sm:$0xff]
      %v368 = vld [vmem:[%s209 + $0x52] sm:$0xff]
      %v369 = vld [vmem:[%s209 + $0x62] sm:$0xff]
      %v370 = vld [vmem:[%s209 + $0x72] sm:$0xff]
      %v371 = vld [vmem:[%s1 + $0x5] sm:$0x1]
      %v372 = vlaneseq
      %v373 = vshrl.u32 %v372, 7
      %v374 = vsub.s32 0, %v373
      %v375 = vrot.slane %v371, %v374
      %v376 = vmul.f32 %v363, %v375
      %v377 = vmul.f32 %v364, %v375
      %v378 = vmul.f32 %v365, %v375
      %v379 = vmul.f32 %v366, %v375
      %v380 = vmul.f32 %v367, %v375
      %v381 = vmul.f32 %v368, %v375
      %v382 = vmul.f32 %v369, %v375
      %v383 = vmul.f32 %v370, %v375
      %v384 = vadd.f32 %v355, %v376
      %v385 = vadd.f32 %v356, %v377
      %v386 = vadd.f32 %v357, %v378
      %v387 = vadd.f32 %v358, %v379
      %v388 = vadd.f32 %v359, %v380
      %v389 = vadd.f32 %v360, %v381
      %v390 = vadd.f32 %v361, %v382
      %v391 = vadd.f32 %v362, %v383
      %s392 = scalar_lea.vmem [#allocation2], 32
      %v393 = vld [vmem:[%s392] sm:$0xff]
      %v394 = vld [vmem:[%s392 + $0x10] sm:$0xff]
      %v395 = vld [vmem:[%s392 + $0x20] sm:$0xff]
      %v396 = vld [vmem:[%s392 + $0x30] sm:$0xff]
      %v397 = vld [vmem:[%s392 + $0x40] sm:$0xff]
      %v398 = vld [vmem:[%s392 + $0x50] sm:$0xff]
      %v399 = vld [vmem:[%s392 + $0x60] sm:$0xff]
      %v400 = vld [vmem:[%s392 + $0x70] sm:$0xff]
      %v401 = vld [vmem:[%s1 + $0x6] sm:$0x1]
      %v402 = vlaneseq
      %v403 = vshrl.u32 %v402, 7
      %v404 = vsub.s32 0, %v403
      %v405 = vrot.slane %v401, %v404
      %v406 = vmul.f32 %v393, %v405
      %v407 = vmul.f32 %v394, %v405
      %v408 = vmul.f32 %v395, %v405
      %v409 = vmul.f32 %v396, %v405
      %v410 = vmul.f32 %v397, %v405
      %v411 = vmul.f32 %v398, %v405
      %v412 = vmul.f32 %v399, %v405
      %v413 = vmul.f32 %v400, %v405
      %v414 = vadd.f32 %v384, %v406
      %v415 = vadd.f32 %v385, %v407
      %v416 = vadd.f32 %v386, %v408
      %v417 = vadd.f32 %v387, %v409
      %v418 = vadd.f32 %v388, %v410
      %v419 = vadd.f32 %v389, %v411
      %v420 = vadd.f32 %v390, %v412
      %v421 = vadd.f32 %v391, %v413
      %v422 = vld [vmem:[%s392 + $0x1] sm:$0xff]
      %v423 = vld [vmem:[%s392 + $0x11] sm:$0xff]
      %v424 = vld [vmem:[%s392 + $0x21] sm:$0xff]
      %v425 = vld [vmem:[%s392 + $0x31] sm:$0xff]
      %v426 = vld [vmem:[%s392 + $0x41] sm:$0xff]
      %v427 = vld [vmem:[%s392 + $0x51] sm:$0xff]
      %v428 = vld [vmem:[%s392 + $0x61] sm:$0xff]
      %v429 = vld [vmem:[%s392 + $0x71] sm:$0xff]
      %v430 = vld [vmem:[%s1 + $0x7] sm:$0x1]
      %v431 = vlaneseq
      %v432 = vshrl.u32 %v431, 7
      %v433 = vsub.s32 0, %v432
      %v434 = vrot.slane %v430, %v433
      %v435 = vmul.f32 %v422, %v434
      %v436 = vmul.f32 %v423, %v434
      %v437 = vmul.f32 %v424, %v434
      %v438 = vmul.f32 %v425, %v434
      %v439 = vmul.f32 %v426, %v434
      %v440 = vmul.f32 %v427, %v434
      %v441 = vmul.f32 %v428, %v434
      %v442 = vmul.f32 %v429, %v434
      %v443 = vadd.f32 %v414, %v435
      %v444 = vadd.f32 %v415, %v436
      %v445 = vadd.f32 %v416, %v437
      %v446 = vadd.f32 %v417, %v438
      %v447 = vadd.f32 %v418, %v439
      %v448 = vadd.f32 %v419, %v440
      %v449 = vadd.f32 %v420, %v441
      %v450 = vadd.f32 %v421, %v442
      %v451 = vld [vmem:[%s392 + $0x2] sm:$0xff]
      %v452 = vld [vmem:[%s392 + $0x12] sm:$0xff]
      %v453 = vld [vmem:[%s392 + $0x22] sm:$0xff]
      %v454 = vld [vmem:[%s392 + $0x32] sm:$0xff]
      %v455 = vld [vmem:[%s392 + $0x42] sm:$0xff]
      %v456 = vld [vmem:[%s392 + $0x52] sm:$0xff]
      %v457 = vld [vmem:[%s392 + $0x62] sm:$0xff]
      %v458 = vld [vmem:[%s392 + $0x72] sm:$0xff]
      %v459 = vld [vmem:[%s1 + $0x8] sm:$0x1]
      %v460 = vlaneseq
      %v461 = vshrl.u32 %v460, 7
      %v462 = vsub.s32 0, %v461
      %v463 = vrot.slane %v459, %v462
      %v464 = vmul.f32 %v451, %v463
      %v465 = vmul.f32 %v452, %v463
      %v466 = vmul.f32 %v453, %v463
      %v467 = vmul.f32 %v454, %v463
      %v468 = vmul.f32 %v455, %v463
      %v469 = vmul.f32 %v456, %v463
      %v470 = vmul.f32 %v457, %v463
      %v471 = vmul.f32 %v458, %v463
      %v472 = vadd.f32 %v443, %v464
      %v473 = vadd.f32 %v444, %v465
      %v474 = vadd.f32 %v445, %v466
      %v475 = vadd.f32 %v446, %v467
      %v476 = vadd.f32 %v447, %v468
      %v477 = vadd.f32 %v448, %v469
      %v478 = vadd.f32 %v449, %v470
      %v479 = vadd.f32 %v450, %v471
      %v480 = vld [vmem:[%s2] sm:$0x1]
      %v482 = vlaneseq
      %v483 = vshrl.u32 %v482, 7
      %v484 = vsub.s32 0, %v483
      %v485 = vrot.slane %v480, %v484
      %v487 = vadd.f32 %v472, %v485
      %v488 = vadd.f32 %v473, %v485
      %v489 = vadd.f32 %v474, %v485
      %v490 = vadd.f32 %v475, %v485
      %v491 = vadd.f32 %v476, %v485
      %v492 = vadd.f32 %v477, %v485
      %v493 = vadd.f32 %v478, %v485
      %v494 = vadd.f32 %v479, %v485
      %v495 = vsub.f32 0.0, %v487
      %v496 = vsub.f32 0.0, %v488
      %v497 = vsub.f32 0.0, %v489
      %v498 = vsub.f32 0.0, %v490
      %v499 = vsub.f32 0.0, %v491
      %v500 = vsub.f32 0.0, %v492
      %v501 = vsub.f32 0.0, %v493
      %v502 = vsub.f32 0.0, %v494
      %v503 = vmul.f32 %v495, 1.442695
      %v504 = vpow.pop %v503
      %v505 = vmul.f32 %v496, 1.442695
      %v506 = vpow.pop %v505
      %v507 = vmul.f32 %v497, 1.442695
      %v508 = vpow.pop %v507
      %v509 = vmul.f32 %v498, 1.442695
      %v510 = vpow.pop %v509
      %v511 = vmul.f32 %v499, 1.442695
      %v512 = vpow.pop %v511
      %v513 = vmul.f32 %v500, 1.442695
      %v514 = vpow.pop %v513
      %v515 = vmul.f32 %v501, 1.442695
      %v516 = vpow.pop %v515
      %v517 = vmul.f32 %v502, 1.442695
      %v518 = vpow.pop %v517
      %v519 = vadd.f32 %v504, 1.0
      %v520 = vadd.f32 %v506, 1.0
      %v521 = vadd.f32 %v508, 1.0
      %v522 = vadd.f32 %v510, 1.0
      %v523 = vadd.f32 %v512, 1.0
      %v524 = vadd.f32 %v514, 1.0
      %v525 = vadd.f32 %v516, 1.0
      %v526 = vadd.f32 %v518, 1.0
      %v527 = vrcp.pop %v519
      %v528 = vmul.f32 1.0, %v527
      %v529 = vrcp.pop %v520
      %v530 = vmul.f32 1.0, %v529
      %v531 = vrcp.pop %v521
      %v532 = vmul.f32 1.0, %v531
      %v533 = vrcp.pop %v522
      %v534 = vmul.f32 1.0, %v533
      %v535 = vrcp.pop %v523
      %v536 = vmul.f32 1.0, %v535
      %v537 = vrcp.pop %v524
      %v538 = vmul.f32 1.0, %v537
      %v539 = vrcp.pop %v525
      %v540 = vmul.f32 1.0, %v539
      %v541 = vrcp.pop %v526
      %v542 = vmul.f32 1.0, %v541
      %v543 = vmul.f32 %v487, %v528
      %v544 = vmul.f32 %v488, %v530
      %v545 = vmul.f32 %v489, %v532
      %v546 = vmul.f32 %v490, %v534
      %v547 = vmul.f32 %v491, %v536
      %v548 = vmul.f32 %v492, %v538
      %v549 = vmul.f32 %v493, %v540
      %v550 = vmul.f32 %v494, %v542
      %v551 = vpack.c.bf16 %v543, %v543
      %v552 = vpack.c.bf16 %v544, %v544
      %v553 = vpack.c.bf16 %v545, %v545
      %v554 = vpack.c.bf16 %v546, %v546
      %v555 = vpack.c.bf16 %v547, %v547
      %v556 = vpack.c.bf16 %v548, %v548
      %v557 = vpack.c.bf16 %v549, %v549
      %v558 = vpack.c.bf16 %v550, %v550
      %vm559 = vcmask 257024
      %560 = vst.msk [vmem:[%s170] sm:$0xf] %vm559, %v551
      %561 = vst.msk [vmem:[%s170 + $0x4] sm:$0xf] %vm559, %v552
      %562 = vst.msk [vmem:[%s170 + $0x8] sm:$0xf] %vm559, %v553
      %563 = vst.msk [vmem:[%s170 + $0xc] sm:$0xf] %vm559, %v554
      %564 = vst.msk [vmem:[%s170 + $0x10] sm:$0xf] %vm559, %v555
      %565 = vst.msk [vmem:[%s170 + $0x14] sm:$0xf] %vm559, %v556
      %566 = vst.msk [vmem:[%s170 + $0x18] sm:$0xf] %vm559, %v557
      %567 = vst.msk [vmem:[%s170 + $0x1c] sm:$0xf] %vm559, %v558
      %p568 = scmp.lt.s32.totalorder %s14, 1
      %s569 = scalar_select %p568, %s14, 1
      %s570 = smul.addr %s569, 8
      %s571 = smul.addr %s570, 4
      %s572 = scalar_lea.vmem %s3, %s571
      // Predicated region
      $region33: #{vss_convg_forward.9} parent=31 // pred_check
        %p573 = pneg %p100
      $region34: #{vss_convg_forward.9} parent=31 // pred_check_branch
        %575 = sbr.rel (%p573) target = $region36
      $region35: #{vss_convg_forward.9} parent=31 // pred_region
        _
      $region36: #{vss_convg_forward.9} parent=31 // pred_fallthru
        _
    $region32: #{vss_convg_forward.9} parent=5 // pred_fallthru
      _
    %p576 = scmp.le.s32.totalorder 2, %s9
    // Predicated region
    $region37: #{vss_convg_forward.9} parent=5 // pred_check
      %p577 = pneg %p576
    $region38: #{vss_convg_forward.9} parent=5 // pred_check_branch
      %579 = sbr.rel (%p577) target = $region40
    $region39: #{vss_convg_forward.9} parent=5 // pred_region
      %s580 = ssub.s32 %s9, 2
      // Predicated region
      $region41: #{vss_convg_forward.9} parent=39 // pred_check
        %p581 = pneg %p106
      $region42: #{vss_convg_forward.9} parent=39 // pred_check_branch
        %583 = sbr.rel (%p581) target = $region44
      $region43: #{vss_convg_forward.9} parent=39 // pred_region
        %p584 = scmp.lt.s32.totalorder %s15, 1
        %s585 = scalar_select %p584, %s15, 1
        %s586 = smul.addr %s585, 8
        %s587 = smul.addr %s586, 4
        %s588 = scalar_lea.vmem %s3, %s587
      $region44: #{vss_convg_forward.9} parent=39 // pred_fallthru
        _
    $region40: #{vss_convg_forward.9} parent=5 // pred_fallthru
      _
  $region6: #{vss_convg_forward.9} parent=0 // loop_footer
    %s13 = sadd.s32 1, %s9
  $region7: #{vss_convg_forward.9} parent=0 // loop_footer_branch
    %8 = sbr.rel target = $region3
  $region8: #{vss_convg_forward.9} parent=0 // loop_exit
    _

// kernel: vss_convg_forward.10
$region0: #{vss_convg_forward.10}
  #allocation0 [shape = 'u32[]', space=smem, size = 0x4, offset = 0x4, fixed_abs, tag = 'smem constant byte address 0x4 - core index']
  #allocation1 [shape = 'u32[144,128]{1,0:T(1,128)}', space=vmem, size = 0x12000, scoped, tag = 'internal scratch']
  %s0 = inlined_call_operand.vmem [shape: bf16[2,128,32], index: 0, kind: input, shape index: {}]
  %s1 = inlined_call_operand.vmem [shape: f32[2,32,128], index: 1, kind: input, shape index: {}]
  %s2 = inlined_call_operand.vmem [shape: bf16[2,128,128], index: 2, kind: output, shape index: {}]
  %s3 = sld [smem:[#allocation0]]
  $region41: #{vss_convg_forward.10} parent=0
    _
  %s5 = ssub.s32 1, %s3
  %s6 = scalar_select 0, %s5, %s3
  loop: start=0, step=1, limit=4
  $region2: #{vss_convg_forward.10} parent=0 // loop_pre_header
    _
  $region3: #{vss_convg_forward.10} parent=0 // loop_header
    %s8 = sphi 0, %s12
    %p9 = scmp.ge.s32.totalorder %s8, 4
    %s15 = sphi 0, %s27
    %s16 = sphi 0, %s23
    %s17 = sphi 0, %s15
    %s18 = sphi 0, %s16
    %s19 = sphi 0, %s17
    %s20 = sphi 0, %s18
    %s32 = sphi 0, %s34
    %s35 = sphi 0, %s32
    %s36 = sphi 0, %s35
    %s52 = sphi 0, %s36
    %s58 = sphi 0, %s60
    %s61 = sphi 0, %s58
    %s62 = sphi 0, %s61
    %s78 = sphi 0, %s62
    %s86 = sphi 0, %s88
    %s89 = sphi 0, %s86
    %s90 = sphi 0, %s89
    %s106 = sphi 0, %s90
  $region4: #{vss_convg_forward.10} parent=0 // loop_header_branch
    %11 = sbr.rel (%p9) target = $region8
  $region5: #{vss_convg_forward.10} parent=0 // loop_body
    %s13 = ssub.s32 %s8, 1
    %s14 = ssub.s32 %s8, 2
    %s21 = sadd.s32 1, %s16
    %p22 = scmp.ge.s32.totalorder %s21, 1
    %s23 = scalar_select %p22, 0, %s21
    %s24 = sadd.s32 1, %s15
    %s25 = scalar_select %p22, %s24, %s15
    %p26 = scmp.ge.s32.totalorder %s25, 2
    %s27 = scalar_select %p26, 0, %s25
    %s28 = ssub.s32 %s15, %s27
    %s29 = ssub.s32 %s16, %s23
    %s30 = sor.u32 %s28, %s29
    %p31 = scmp.eq.s32.totalorder %s30, 0
    %s33 = sadd.s32 %s32, 1
    %s34 = scalar_select %p31, %s32, %s33
    %p37 = pneg %p31
    %p38 = scmp.eq.s32.totalorder %s8, 1
    %p39 = por %p37, %p38
    %p40 = scmp.ne.s32.totalorder %s32, %s35
    %p41 = scmp.eq.s32.totalorder %s8, 0
    %p42 = por %p40, %p41
    %p43 = scmp.ne.s32.totalorder %s32, %s35
    %p44 = scmp.eq.s32.totalorder %s13, 1
    %p45 = por %p43, %p44
    %p46 = scmp.ne.s32.totalorder %s35, %s36
    %p47 = scmp.eq.s32.totalorder %s13, 0
    %p48 = por %p46, %p47
    %p49 = scmp.ne.s32.totalorder %s35, %s36
    %p50 = scmp.eq.s32.totalorder %s14, 1
    %p51 = por %p49, %p50
    %p53 = scmp.ne.s32.totalorder %s36, %s52
    %p54 = scmp.eq.s32.totalorder %s14, 0
    %p55 = por %p53, %p54
    %s56 = ssub.s32 %s15, %s27
    %p57 = scmp.eq.s32.totalorder %s56, 0
    %s59 = sadd.s32 %s58, 1
    %s60 = scalar_select %p57, %s58, %s59
    %p63 = pneg %p57
    %p64 = scmp.eq.s32.totalorder %s8, 1
    %p65 = por %p63, %p64
    %p66 = scmp.ne.s32.totalorder %s58, %s61
    %p67 = scmp.eq.s32.totalorder %s8, 0
    %p68 = por %p66, %p67
    %p69 = scmp.ne.s32.totalorder %s58, %s61
    %p70 = scmp.eq.s32.totalorder %s13, 1
    %p71 = por %p69, %p70
    %p72 = scmp.ne.s32.totalorder %s61, %s62
    %p73 = scmp.eq.s32.totalorder %s13, 0
    %p74 = por %p72, %p73
    %p75 = scmp.ne.s32.totalorder %s61, %s62
    %p76 = scmp.eq.s32.totalorder %s14, 1
    %p77 = por %p75, %p76
    %p79 = scmp.ne.s32.totalorder %s62, %s78
    %p80 = scmp.eq.s32.totalorder %s14, 0
    %p81 = por %p79, %p80
    %s82 = ssub.s32 %s15, %s27
    %s83 = ssub.s32 %s16, %s23
    %s84 = sor.u32 %s82, %s83
    %p85 = scmp.eq.s32.totalorder %s84, 0
    %s87 = sadd.s32 %s86, 1
    %s88 = scalar_select %p85, %s86, %s87
    %p91 = pneg %p85
    %p92 = scmp.eq.s32.totalorder %s8, 1
    %p93 = por %p91, %p92
    %p94 = scmp.ne.s32.totalorder %s86, %s89
    %p95 = scmp.eq.s32.totalorder %s8, 0
    %p96 = por %p94, %p95
    %p97 = scmp.ne.s32.totalorder %s86, %s89
    %p98 = scmp.eq.s32.totalorder %s13, 1
    %p99 = por %p97, %p98
    %p100 = scmp.ne.s32.totalorder %s89, %s90
    %p101 = scmp.eq.s32.totalorder %s13, 0
    %p102 = por %p100, %p101
    %p103 = scmp.ne.s32.totalorder %s89, %s90
    %p104 = scmp.eq.s32.totalorder %s14, 1
    %p105 = por %p103, %p104
    %p107 = scmp.ne.s32.totalorder %s90, %s106
    %p108 = scmp.eq.s32.totalorder %s14, 0
    %p109 = por %p107, %p108
    %p110 = scmp.le.s32.totalorder 1, %s8
    %p111 = scmp.lt.s32.totalorder %s8, 3
    %p112 = pnand %p110, %p111
    %p113 = pneg %p112
    // Predicated region
    $region9: #{vss_convg_forward.10} parent=5 // pred_check
      _
    $region10: #{vss_convg_forward.10} parent=5 // pred_check_branch
      %115 = sbr.rel (%p112) target = $region12
    $region11: #{vss_convg_forward.10} parent=5 // pred_region
      %s116 = ssub.s32 %s8, 1
    $region12: #{vss_convg_forward.10} parent=5 // pred_fallthru
      _
    %p117 = scmp.lt.s32.totalorder %s8, 2
    // Predicated region
    $region13: #{vss_convg_forward.10} parent=5 // pred_check
      %p118 = pneg %p117
    $region14: #{vss_convg_forward.10} parent=5 // pred_check_branch
      %120 = sbr.rel (%p118) target = $region16
    $region15: #{vss_convg_forward.10} parent=5 // pred_region
      // Predicated region
      $region17: #{vss_convg_forward.10} parent=15 // pred_check
        %p121 = pneg %p42
      $region18: #{vss_convg_forward.10} parent=15 // pred_check_branch
        %123 = sbr.rel (%p121) target = $region20
      $region19: #{vss_convg_forward.10} parent=15 // pred_region
        %s124 = smul.u32 16, %s16
        %p125 = scmp.lt.s32.totalorder %s15, 1
        %s126 = scalar_select %p125, %s15, 1
        %p127 = scmp.lt.s32.totalorder %s124, 15
        %s128 = scalar_select %p127, %s124, 15
        %s129 = smul.addr %s126, 16
        %s130 = sadd.s32 %s128, %s129
        %s131 = smul.addr %s130, 4
        %s132 = scalar_lea.vmem %s0, %s131
        %s133 = smul.u32 16, %s16
      $region20: #{vss_convg_forward.10} parent=15 // pred_fallthru
        _
      // Predicated region
      $region21: #{vss_convg_forward.10} parent=15 // pred_check
        %p134 = pneg %p68
      $region22: #{vss_convg_forward.10} parent=15 // pred_check_branch
        %136 = sbr.rel (%p134) target = $region24
      $region23: #{vss_convg_forward.10} parent=15 // pred_region
        %p137 = scmp.lt.s32.totalorder %s15, 1
        %s138 = scalar_select %p137, %s15, 1
        %s139 = smul.addr %s138, 4
        %s140 = smul.addr %s139, 8
        %s141 = scalar_lea.vmem %s1, %s140
      $region24: #{vss_convg_forward.10} parent=15 // pred_fallthru
        _
    $region16: #{vss_convg_forward.10} parent=5 // pred_fallthru
      _
    %p142 = scmp.le.s32.totalorder 1, %s8
    %p143 = scmp.lt.s32.totalorder %s8, 3
    %p144 = pnand %p142, %p143
    %p145 = pneg %p144
    // Predicated region
    $region25: #{vss_convg_forward.10} parent=5 // pred_check
      _
    $region26: #{vss_convg_forward.10} parent=5 // pred_check_branch
      %147 = sbr.rel (%p144) target = $region28
    $region27: #{vss_convg_forward.10} parent=5 // pred_region
      %s148 = ssub.s32 %s8, 1
      %s149 = smul.u32 16, %s18
      %p150 = scmp.lt.s32.totalorder %s17, 1
      %s151 = scalar_select %p150, %s17, 1
      %p152 = scmp.lt.s32.totalorder %s149, 15
      %s153 = scalar_select %p152, %s149, 15
      %s154 = smul.addr %s151, 16
      %s155 = sadd.s32 %s153, %s154
      %s156 = smul.addr %s155, 4
      %s157 = scalar_lea.vmem %s0, %s156
      %p158 = pneg %p48
      %p159 = pneg %p45
      %p160 = scmp.lt.s32.totalorder %s17, 1
      %s161 = scalar_select %p160, %s17, 1
      %s162 = smul.addr %s161, 4
      %s163 = smul.addr %s162, 8
      %s164 = scalar_lea.vmem %s1, %s163
      %p165 = pneg %p74
      %p166 = pneg %p71
      %p167 = pneg %p102
      %p168 = pneg %p99
      %s169 = smul.u32 16, %s18
      %p170 = scmp.lt.s32.totalorder %s17, 1
      %s171 = scalar_select %p170, %s17, 1
      %p172 = scmp.lt.s32.totalorder %s169, 15
      %s173 = scalar_select %p172, %s169, 15
      %s174 = smul.addr %s171, 16
      %s175 = sadd.s32 %s173, %s174
      %s176 = smul.addr %s175, 4
      %s177 = scalar_lea.vmem %s2, %s176
      %s178 = smul.u32 16, %s18
      %p179 = scmp.lt.s32.totalorder %s17, 1
      %s180 = scalar_select %p179, %s17, 1
      %p181 = scmp.lt.s32.totalorder %s178, 15
      %s182 = scalar_select %p181, %s178, 15
      %s183 = smul.addr %s180, 16
      %s184 = sadd.s32 %s182, %s183
      %s185 = smul.addr %s184, 4
      %s186 = scalar_lea.vmem %s0, %s185
      %s187 = smul.u32 16, %s18
      %p188 = scmp.lt.s32.totalorder %s17, 1
      %s189 = scalar_select %p188, %s17, 1
      %s190 = smul.addr %s189, 4
      %s191 = smul.addr %s190, 8
      %s192 = scalar_lea.vmem %s1, %s191
      %s193 = smul.u32 16, %s18
      %p194 = scmp.lt.s32.totalorder %s17, 1
      %s195 = scalar_select %p194, %s17, 1
      %p196 = scmp.lt.s32.totalorder %s193, 15
      %s197 = scalar_select %p196, %s193, 15
      %s198 = smul.addr %s195, 16
      %s199 = sadd.s32 %s197, %s198
      %s200 = smul.addr %s199, 4
      %s201 = scalar_lea.vmem %s2, %s200
      %s202 = smul.u32 16, %s18
      %v204 = vld [vmem:[%s186] sm:$0xf]
      %v205 = vld [vmem:[%s186 + $0x4] sm:$0xf]
      %v206 = vld [vmem:[%s186 + $0x8] sm:$0xf]
      %v207 = vld [vmem:[%s186 + $0xc] sm:$0xf]
      %v208 = vld [vmem:[%s186 + $0x10] sm:$0xf]
      %v209 = vld [vmem:[%s186 + $0x14] sm:$0xf]
      %v210 = vld [vmem:[%s186 + $0x18] sm:$0xf]
      %v211 = vld [vmem:[%s186 + $0x1c] sm:$0xf]
      %v212 = vld [vmem:[%s186 + $0x20] sm:$0xf]
      %v213 = vld [vmem:[%s186 + $0x24] sm:$0xf]
      %v214 = vld [vmem:[%s186 + $0x28] sm:$0xf]
      %v215 = vld [vmem:[%s186 + $0x2c] sm:$0xf]
      %v216 = vld [vmem:[%s186 + $0x30] sm:$0xf]
      %v217 = vld [vmem:[%s186 + $0x34] sm:$0xf]
      %v218 = vld [vmem:[%s186 + $0x38] sm:$0xf]
      %v219 = vld [vmem:[%s186 + $0x3c] sm:$0xf]
      %v220 = vld [vmem:[%s192] sm:$0xff]
      %v221 = vld [vmem:[%s192 + $0x8] sm:$0xff]
      %v222 = vld [vmem:[%s192 + $0x10] sm:$0xff]
      %v223 = vld [vmem:[%s192 + $0x18] sm:$0xff]
      %v224 = vpack.c.bf16 %v221, %v220
      %v225 = vpack.c.bf16 %v223, %v222
      %v242 = vunpack.c.l.b16 %v204
      %v243 = vunpack.c.l.b16 %v205
      %v244 = vunpack.c.l.b16 %v206
      %v245 = vunpack.c.l.b16 %v207
      %v246 = vunpack.c.l.b16 %v208
      %v247 = vunpack.c.l.b16 %v209
      %v248 = vunpack.c.l.b16 %v210
      %v249 = vunpack.c.l.b16 %v211
      %v250 = vunpack.c.l.b16 %v212
      %v251 = vunpack.c.l.b16 %v213
      %v252 = vunpack.c.l.b16 %v214
      %v253 = vunpack.c.l.b16 %v215
      %v254 = vunpack.c.l.b16 %v216
      %v255 = vunpack.c.l.b16 %v217
      %v256 = vunpack.c.l.b16 %v218
      %v257 = vunpack.c.l.b16 %v219
      %v258 = vpack.c.b16 %v243, %v242
      %v259 = vpack.c.b16 %v245, %v244
      %v260 = vpack.c.b16 %v247, %v246
      %v261 = vpack.c.b16 %v249, %v248
      %v262 = vpack.c.b16 %v251, %v250
      %v263 = vpack.c.b16 %v253, %v252
      %v264 = vpack.c.b16 %v255, %v254
      %v265 = vpack.c.b16 %v257, %v256
      %vm266 = vcmask 261120
      %v268 = vsel %vm266, %v258, 0
      %v271 = vsel %vm266, %v259, 0
      %v274 = vsel %vm266, %v260, 0
      %v277 = vsel %vm266, %v261, 0
      %v280 = vsel %vm266, %v262, 0
      %v283 = vsel %vm266, %v263, 0
      %v286 = vsel %vm266, %v264, 0
      %v289 = vsel %vm266, %v265, 0
      %291 = vmatprep.subr.bf16.mxu0 0
      %292 = vmatpush1.bf16.msra.mxu0 0
      %293 = vmatprep.subr.bf16.mxu0 0
      %294 = vmatpush1.bf16.msra.mxu0 0
      %295 = vmatprep.subr.bf16.mxu0 0
      %296 = vmatpush1.bf16.msra.mxu0 0
      %297 = vmatprep.subr.bf16.mxu0 0
      %298 = vmatpush1.bf16.msra.mxu0 0
      %299 = vmatprep.subr.bf16.mxu0 0
      %300 = vmatpush1.bf16.msra.mxu0 0
      %301 = vmatprep.subr.bf16.mxu0 0
      %302 = vmatpush1.bf16.msra.mxu0 0
      %303 = vmatprep.subr.bf16.mxu0 0
      %304 = vmatpush1.bf16.msra.mxu0 %v225
      %305 = vmatprep.subr.bf16.mxu0 0
      %306 = vmatpush1.bf16.msra.mxu0 %v224
      %307 = vmatprep.subr.bf16.mxu0 0
      %308 = vmatpush2.bf16.msra.mxu0 0
      %309 = vmatprep.subr.bf16.mxu0 0
      %310 = vmatpush2.bf16.msra.mxu0 0
      %311 = vmatprep.subr.bf16.mxu0 0
      %312 = vmatpush2.bf16.msra.mxu0 0
      %313 = vmatprep.subr.bf16.mxu0 0
      %314 = vmatpush2.bf16.msra.mxu0 0
      %315 = vmatprep.subr.bf16.mxu0 0
      %316 = vmatpush2.bf16.msra.mxu0 0
      %317 = vmatprep.subr.bf16.mxu0 0
      %318 = vmatpush2.bf16.msra.mxu0 0
      %319 = vmatprep.subr.bf16.mxu0 0
      %320 = vmatpush2.bf16.msra.mxu0 0
      %321 = vmatprep.subr.bf16.mxu0 0
      %322 = vmatpush2.bf16.msra.mxu0 0
      %323 = vmatprep.mubr.bf16.mxu0 0
      %324 = vmatmul.mubr.bf16.gmra.mxu0 %v268
      %v325 = vpop.f32.mrf.mxu0
      %v326 = vadd.f32 0.0, %v325
      %v327 = vpop.f32.mrf.mxu0
      %v328 = vpop.f32.mrf.mxu0
      %v329 = vadd.f32 0.0, %v328
      %v330 = vpop.f32.mrf.mxu0
      %331 = vmatprep.mubr.bf16.mxu0 0
      %332 = vmatmul.mubr.bf16.gmra.mxu0 %v271
      %v333 = vpop.f32.mrf.mxu0
      %v334 = vadd.f32 0.0, %v333
      %v335 = vpop.f32.mrf.mxu0
      %v336 = vpop.f32.mrf.mxu0
      %v337 = vadd.f32 0.0, %v336
      %v338 = vpop.f32.mrf.mxu0
      %339 = vmatprep.mubr.bf16.mxu0 0
      %340 = vmatmul.mubr.bf16.gmra.mxu0 %v274
      %v341 = vpop.f32.mrf.mxu0
      %v342 = vadd.f32 0.0, %v341
      %v343 = vpop.f32.mrf.mxu0
      %v344 = vpop.f32.mrf.mxu0
      %v345 = vadd.f32 0.0, %v344
      %v346 = vpop.f32.mrf.mxu0
      %347 = vmatprep.mubr.bf16.mxu0 0
      %348 = vmatmul.mubr.bf16.gmra.mxu0 %v277
      %v349 = vpop.f32.mrf.mxu0
      %v350 = vadd.f32 0.0, %v349
      %v351 = vpop.f32.mrf.mxu0
      %v352 = vpop.f32.mrf.mxu0
      %v353 = vadd.f32 0.0, %v352
      %v354 = vpop.f32.mrf.mxu0
      %355 = vmatprep.mubr.bf16.mxu0 0
      %356 = vmatmul.mubr.bf16.gmra.mxu0 %v280
      %v357 = vpop.f32.mrf.mxu0
      %v358 = vadd.f32 0.0, %v357
      %v359 = vpop.f32.mrf.mxu0
      %v360 = vpop.f32.mrf.mxu0
      %v361 = vadd.f32 0.0, %v360
      %v362 = vpop.f32.mrf.mxu0
      %363 = vmatprep.mubr.bf16.mxu0 0
      %364 = vmatmul.mubr.bf16.gmra.mxu0 %v283
      %v365 = vpop.f32.mrf.mxu0
      %v366 = vadd.f32 0.0, %v365
      %v367 = vpop.f32.mrf.mxu0
      %v368 = vpop.f32.mrf.mxu0
      %v369 = vadd.f32 0.0, %v368
      %v370 = vpop.f32.mrf.mxu0
      %371 = vmatprep.mubr.bf16.mxu0 0
      %372 = vmatmul.mubr.bf16.gmra.mxu0 %v286
      %v373 = vpop.f32.mrf.mxu0
      %v374 = vadd.f32 0.0, %v373
      %v375 = vpop.f32.mrf.mxu0
      %v376 = vpop.f32.mrf.mxu0
      %v377 = vadd.f32 0.0, %v376
      %v378 = vpop.f32.mrf.mxu0
      %379 = vmatprep.mubr.bf16.mxu0 0
      %380 = vmatmul.mubr.bf16.gmra.mxu0 %v289
      %v381 = vpop.f32.mrf.mxu0
      %v382 = vadd.f32 0.0, %v381
      %v383 = vpop.f32.mrf.mxu0
      %v384 = vpop.f32.mrf.mxu0
      %v385 = vadd.f32 0.0, %v384
      %v386 = vpop.f32.mrf.mxu0
      %387 = vdwg.mxu0
      %v388 = vpack.c.bf16 %v329, %v326
      %v389 = vpack.c.bf16 %v337, %v334
      %v390 = vpack.c.bf16 %v345, %v342
      %v391 = vpack.c.bf16 %v353, %v350
      %v392 = vpack.c.bf16 %v361, %v358
      %v393 = vpack.c.bf16 %v369, %v366
      %v394 = vpack.c.bf16 %v377, %v374
      %v395 = vpack.c.bf16 %v385, %v382
      %v404 = vunpack.c.l.b16 %v388
      %v405 = vunpack.c.h.b16 %v388
      %v406 = vunpack.c.l.b16 %v389
      %v407 = vunpack.c.h.b16 %v389
      %v408 = vunpack.c.l.b16 %v390
      %v409 = vunpack.c.h.b16 %v390
      %v410 = vunpack.c.l.b16 %v391
      %v411 = vunpack.c.h.b16 %v391
      %v412 = vunpack.c.l.b16 %v392
      %v413 = vunpack.c.h.b16 %v392
      %v414 = vunpack.c.l.b16 %v393
      %v415 = vunpack.c.h.b16 %v393
      %v416 = vunpack.c.l.b16 %v394
      %v417 = vunpack.c.h.b16 %v394
      %v418 = vunpack.c.l.b16 %v395
      %v419 = vunpack.c.h.b16 %v395
      %v420 = vpack.c.b16 %v404, %v404
      %v421 = vpack.c.b16 %v405, %v405
      %v422 = vpack.c.b16 %v406, %v406
      %v423 = vpack.c.b16 %v407, %v407
      %v424 = vpack.c.b16 %v408, %v408
      %v425 = vpack.c.b16 %v409, %v409
      %v426 = vpack.c.b16 %v410, %v410
      %v427 = vpack.c.b16 %v411, %v411
      %v428 = vpack.c.b16 %v412, %v412
      %v429 = vpack.c.b16 %v413, %v413
      %v430 = vpack.c.b16 %v414, %v414
      %v431 = vpack.c.b16 %v415, %v415
      %v432 = vpack.c.b16 %v416, %v416
      %v433 = vpack.c.b16 %v417, %v417
      %v434 = vpack.c.b16 %v418, %v418
      %v435 = vpack.c.b16 %v419, %v419
      %452 = vst [vmem:[%s201] sm:$0xf] %v420
      %453 = vst [vmem:[%s201 + $0x4] sm:$0xf] %v421
      %454 = vst [vmem:[%s201 + $0x8] sm:$0xf] %v422
      %455 = vst [vmem:[%s201 + $0xc] sm:$0xf] %v423
      %456 = vst [vmem:[%s201 + $0x10] sm:$0xf] %v424
      %457 = vst [vmem:[%s201 + $0x14] sm:$0xf] %v425
      %458 = vst [vmem:[%s201 + $0x18] sm:$0xf] %v426
      %459 = vst [vmem:[%s201 + $0x1c] sm:$0xf] %v427
      %460 = vst [vmem:[%s201 + $0x20] sm:$0xf] %v428
      %461 = vst [vmem:[%s201 + $0x24] sm:$0xf] %v429
      %462 = vst [vmem:[%s201 + $0x28] sm:$0xf] %v430
      %463 = vst [vmem:[%s201 + $0x2c] sm:$0xf] %v431
      %464 = vst [vmem:[%s201 + $0x30] sm:$0xf] %v432
      %465 = vst [vmem:[%s201 + $0x34] sm:$0xf] %v433
      %466 = vst [vmem:[%s201 + $0x38] sm:$0xf] %v434
      %467 = vst [vmem:[%s201 + $0x3c] sm:$0xf] %v435
      %s468 = smul.u32 16, %s18
      %p469 = scmp.lt.s32.totalorder %s17, 1
      %s470 = scalar_select %p469, %s17, 1
      %p471 = scmp.lt.s32.totalorder %s468, 15
      %s472 = scalar_select %p471, %s468, 15
      %s473 = smul.addr %s470, 16
      %s474 = sadd.s32 %s472, %s473
      %s475 = smul.addr %s474, 4
      %s476 = scalar_lea.vmem %s2, %s475
      // Predicated region
      $region29: #{vss_convg_forward.10} parent=27 // pred_check
        %p477 = pneg %p99
      $region30: #{vss_convg_forward.10} parent=27 // pred_check_branch
        %479 = sbr.rel (%p477) target = $region32
      $region31: #{vss_convg_forward.10} parent=27 // pred_region
        %s480 = smul.u32 16, %s18
      $region32: #{vss_convg_forward.10} parent=27 // pred_fallthru
        _
    $region28: #{vss_convg_forward.10} parent=5 // pred_fallthru
      _
    %p481 = scmp.le.s32.totalorder 2, %s8
    // Predicated region
    $region33: #{vss_convg_forward.10} parent=5 // pred_check
      %p482 = pneg %p481
    $region34: #{vss_convg_forward.10} parent=5 // pred_check_branch
      %484 = sbr.rel (%p482) target = $region36
    $region35: #{vss_convg_forward.10} parent=5 // pred_region
      %s485 = ssub.s32 %s8, 2
      // Predicated region
      $region37: #{vss_convg_forward.10} parent=35 // pred_check
        %p486 = pneg %p105
      $region38: #{vss_convg_forward.10} parent=35 // pred_check_branch
        %488 = sbr.rel (%p486) target = $region40
      $region39: #{vss_convg_forward.10} parent=35 // pred_region
        %s489 = smul.u32 16, %s20
        %p490 = scmp.lt.s32.totalorder %s19, 1
        %s491 = scalar_select %p490, %s19, 1
        %p492 = scmp.lt.s32.totalorder %s489, 15
        %s493 = scalar_select %p492, %s489, 15
        %s494 = smul.addr %s491, 16
        %s495 = sadd.s32 %s493, %s494
        %s496 = smul.addr %s495, 4
        %s497 = scalar_lea.vmem %s2, %s496
      $region40: #{vss_convg_forward.10} parent=35 // pred_fallthru
        _
    $region36: #{vss_convg_forward.10} parent=5 // pred_fallthru
      _
  $region6: #{vss_convg_forward.10} parent=0 // loop_footer
    %s12 = sadd.s32 1, %s8
  $region7: #{vss_convg_forward.10} parent=0 // loop_footer_branch
    %7 = sbr.rel target = $region3
  $region8: #{vss_convg_forward.10} parent=0 // loop_exit
    _

// kernel: vss_convg_forward.13
$region0: #{vss_convg_forward.13}
  #allocation0 [shape = 'u32[]', space=smem, size = 0x4, offset = 0x4, fixed_abs, tag = 'smem constant byte address 0x4 - core index']
  #allocation1 [shape = 'u32[144,128]{1,0:T(1,128)}', space=vmem, size = 0x12000, scoped, tag = 'internal scratch']
  %s0 = inlined_call_operand.vmem [shape: f32[128,16], index: 0, kind: input, shape index: {}]
  %s1 = inlined_call_operand.vmem [shape: f32[1,16], index: 1, kind: input, shape index: {}]
  %s2 = inlined_call_operand.vmem [shape: f32[1,16], index: 2, kind: input, shape index: {}]
  %s3 = inlined_call_operand.vmem [shape: f32[16,20], index: 3, kind: input, shape index: {}]
  %s4 = inlined_call_operand.vmem [shape: f32[1,20], index: 4, kind: input, shape index: {}]
  %s5 = inlined_call_operand.vmem [shape: bf16[128,20], index: 5, kind: output, shape index: {}]
  %s6 = sld [smem:[#allocation0]]
  $region30: #{vss_convg_forward.13} parent=0
    _
  %s8 = ssub.s32 1, %s6
  %s9 = scalar_select 0, %s8, %s6
  // Predicated region
  $region2: #{vss_convg_forward.13} parent=0 // pred_check
    _
  $region3: #{vss_convg_forward.13} parent=0 // pred_check_branch
    %11 = sbr.rel (0) target = $region5
  $region4: #{vss_convg_forward.13} parent=0 // pred_region
    _
  $region5: #{vss_convg_forward.13} parent=0 // pred_fallthru
    _
  // Predicated region
  $region6: #{vss_convg_forward.13} parent=0 // pred_check
    _
  $region7: #{vss_convg_forward.13} parent=0 // pred_check_branch
    %13 = sbr.rel (0) target = $region9
  $region8: #{vss_convg_forward.13} parent=0 // pred_region
    _
  $region9: #{vss_convg_forward.13} parent=0 // pred_fallthru
    _
  // Predicated region
  $region10: #{vss_convg_forward.13} parent=0 // pred_check
    _
  $region11: #{vss_convg_forward.13} parent=0 // pred_check_branch
    %15 = sbr.rel (0) target = $region13
  $region12: #{vss_convg_forward.13} parent=0 // pred_region
    _
  $region13: #{vss_convg_forward.13} parent=0 // pred_fallthru
    _
  // Predicated region
  $region14: #{vss_convg_forward.13} parent=0 // pred_check
    _
  $region15: #{vss_convg_forward.13} parent=0 // pred_check_branch
    %17 = sbr.rel (0) target = $region17
  $region16: #{vss_convg_forward.13} parent=0 // pred_region
    _
  $region17: #{vss_convg_forward.13} parent=0 // pred_fallthru
    _
  // Predicated region
  $region18: #{vss_convg_forward.13} parent=0 // pred_check
    _
  $region19: #{vss_convg_forward.13} parent=0 // pred_check_branch
    %19 = sbr.rel (0) target = $region21
  $region20: #{vss_convg_forward.13} parent=0 // pred_region
    _
  $region21: #{vss_convg_forward.13} parent=0 // pred_fallthru
    _
  %v21 = vld [vmem:[%s0] sm:$0xff]
  %v22 = vld [vmem:[%s0 + $0x8] sm:$0xff]
  %v23 = vld [vmem:[%s0 + $0x10] sm:$0xff]
  %v24 = vld [vmem:[%s0 + $0x18] sm:$0xff]
  %v25 = vld [vmem:[%s0 + $0x20] sm:$0xff]
  %v26 = vld [vmem:[%s0 + $0x28] sm:$0xff]
  %v27 = vld [vmem:[%s0 + $0x30] sm:$0xff]
  %v28 = vld [vmem:[%s0 + $0x38] sm:$0xff]
  %v29 = vld [vmem:[%s0 + $0x40] sm:$0xff]
  %v30 = vld [vmem:[%s0 + $0x48] sm:$0xff]
  %v31 = vld [vmem:[%s0 + $0x50] sm:$0xff]
  %v32 = vld [vmem:[%s0 + $0x58] sm:$0xff]
  %v33 = vld [vmem:[%s0 + $0x60] sm:$0xff]
  %v34 = vld [vmem:[%s0 + $0x68] sm:$0xff]
  %v35 = vld [vmem:[%s0 + $0x70] sm:$0xff]
  %v36 = vld [vmem:[%s0 + $0x78] sm:$0xff]
  %vm37 = vcmask 130048
  %v38 = vsel %vm37, %v21, 0.0
  %39 = vadd.xlane.f32.xlu0 %v38
  %v40 = vpop.xlane.xlu0 %39
  %v41 = vsel %vm37, %v22, 0.0
  %42 = vadd.xlane.f32.xlu0 %v41
  %v43 = vpop.xlane.xlu0 %42
  %v44 = vsel %vm37, %v23, 0.0
  %45 = vadd.xlane.f32.xlu0 %v44
  %v46 = vpop.xlane.xlu0 %45
  %v47 = vsel %vm37, %v24, 0.0
  %48 = vadd.xlane.f32.xlu0 %v47
  %v49 = vpop.xlane.xlu0 %48
  %v50 = vsel %vm37, %v25, 0.0
  %51 = vadd.xlane.f32.xlu0 %v50
  %v52 = vpop.xlane.xlu0 %51
  %v53 = vsel %vm37, %v26, 0.0
  %54 = vadd.xlane.f32.xlu0 %v53
  %v55 = vpop.xlane.xlu0 %54
  %v56 = vsel %vm37, %v27, 0.0
  %57 = vadd.xlane.f32.xlu0 %v56
  %v58 = vpop.xlane.xlu0 %57
  %v59 = vsel %vm37, %v28, 0.0
  %60 = vadd.xlane.f32.xlu0 %v59
  %v61 = vpop.xlane.xlu0 %60
  %v62 = vsel %vm37, %v29, 0.0
  %63 = vadd.xlane.f32.xlu0 %v62
  %v64 = vpop.xlane.xlu0 %63
  %v65 = vsel %vm37, %v30, 0.0
  %66 = vadd.xlane.f32.xlu0 %v65
  %v67 = vpop.xlane.xlu0 %66
  %v68 = vsel %vm37, %v31, 0.0
  %69 = vadd.xlane.f32.xlu0 %v68
  %v70 = vpop.xlane.xlu0 %69
  %v71 = vsel %vm37, %v32, 0.0
  %72 = vadd.xlane.f32.xlu0 %v71
  %v73 = vpop.xlane.xlu0 %72
  %v74 = vsel %vm37, %v33, 0.0
  %75 = vadd.xlane.f32.xlu0 %v74
  %v76 = vpop.xlane.xlu0 %75
  %v77 = vsel %vm37, %v34, 0.0
  %78 = vadd.xlane.f32.xlu0 %v77
  %v79 = vpop.xlane.xlu0 %78
  %v80 = vsel %vm37, %v35, 0.0
  %81 = vadd.xlane.f32.xlu0 %v80
  %v82 = vpop.xlane.xlu0 %81
  %v83 = vsel %vm37, %v36, 0.0
  %84 = vadd.xlane.f32.xlu0 %v83
  %v85 = vpop.xlane.xlu0 %84
  %v86 = vrcp.pop 16.0
  %v87 = vmul.f32 %v40, %v86
  %v88 = vmul.f32 %v43, %v86
  %v89 = vmul.f32 %v46, %v86
  %v90 = vmul.f32 %v49, %v86
  %v91 = vmul.f32 %v52, %v86
  %v92 = vmul.f32 %v55, %v86
  %v93 = vmul.f32 %v58, %v86
  %v94 = vmul.f32 %v61, %v86
  %v95 = vmul.f32 %v64, %v86
  %v96 = vmul.f32 %v67, %v86
  %v97 = vmul.f32 %v70, %v86
  %v98 = vmul.f32 %v73, %v86
  %v99 = vmul.f32 %v76, %v86
  %v100 = vmul.f32 %v79, %v86
  %v101 = vmul.f32 %v82, %v86
  %v102 = vmul.f32 %v85, %v86
  %v103 = vsub.f32 %v21, %v87
  %v104 = vsub.f32 %v22, %v88
  %v105 = vsub.f32 %v23, %v89
  %v106 = vsub.f32 %v24, %v90
  %v107 = vsub.f32 %v25, %v91
  %v108 = vsub.f32 %v26, %v92
  %v109 = vsub.f32 %v27, %v93
  %v110 = vsub.f32 %v28, %v94
  %v111 = vsub.f32 %v29, %v95
  %v112 = vsub.f32 %v30, %v96
  %v113 = vsub.f32 %v31, %v97
  %v114 = vsub.f32 %v32, %v98
  %v115 = vsub.f32 %v33, %v99
  %v116 = vsub.f32 %v34, %v100
  %v117 = vsub.f32 %v35, %v101
  %v118 = vsub.f32 %v36, %v102
  %v119 = vmul.f32 %v103, %v103
  %v120 = vmul.f32 %v104, %v104
  %v121 = vmul.f32 %v105, %v105
  %v122 = vmul.f32 %v106, %v106
  %v123 = vmul.f32 %v107, %v107
  %v124 = vmul.f32 %v108, %v108
  %v125 = vmul.f32 %v109, %v109
  %v126 = vmul.f32 %v110, %v110
  %v127 = vmul.f32 %v111, %v111
  %v128 = vmul.f32 %v112, %v112
  %v129 = vmul.f32 %v113, %v113
  %v130 = vmul.f32 %v114, %v114
  %v131 = vmul.f32 %v115, %v115
  %v132 = vmul.f32 %v116, %v116
  %v133 = vmul.f32 %v117, %v117
  %v134 = vmul.f32 %v118, %v118
  %v135 = vsel %vm37, %v119, 0.0
  %136 = vadd.xlane.f32.xlu0 %v135
  %v137 = vpop.xlane.xlu0 %136
  %v138 = vsel %vm37, %v120, 0.0
  %139 = vadd.xlane.f32.xlu0 %v138
  %v140 = vpop.xlane.xlu0 %139
  %v141 = vsel %vm37, %v121, 0.0
  %142 = vadd.xlane.f32.xlu0 %v141
  %v143 = vpop.xlane.xlu0 %142
  %v144 = vsel %vm37, %v122, 0.0
  %145 = vadd.xlane.f32.xlu0 %v144
  %v146 = vpop.xlane.xlu0 %145
  %v147 = vsel %vm37, %v123, 0.0
  %148 = vadd.xlane.f32.xlu0 %v147
  %v149 = vpop.xlane.xlu0 %148
  %v150 = vsel %vm37, %v124, 0.0
  %151 = vadd.xlane.f32.xlu0 %v150
  %v152 = vpop.xlane.xlu0 %151
  %v153 = vsel %vm37, %v125, 0.0
  %154 = vadd.xlane.f32.xlu0 %v153
  %v155 = vpop.xlane.xlu0 %154
  %v156 = vsel %vm37, %v126, 0.0
  %157 = vadd.xlane.f32.xlu0 %v156
  %v158 = vpop.xlane.xlu0 %157
  %v159 = vsel %vm37, %v127, 0.0
  %160 = vadd.xlane.f32.xlu0 %v159
  %v161 = vpop.xlane.xlu0 %160
  %v162 = vsel %vm37, %v128, 0.0
  %163 = vadd.xlane.f32.xlu0 %v162
  %v164 = vpop.xlane.xlu0 %163
  %v165 = vsel %vm37, %v129, 0.0
  %166 = vadd.xlane.f32.xlu0 %v165
  %v167 = vpop.xlane.xlu0 %166
  %v168 = vsel %vm37, %v130, 0.0
  %169 = vadd.xlane.f32.xlu0 %v168
  %v170 = vpop.xlane.xlu0 %169
  %v171 = vsel %vm37, %v131, 0.0
  %172 = vadd.xlane.f32.xlu0 %v171
  %v173 = vpop.xlane.xlu0 %172
  %v174 = vsel %vm37, %v132, 0.0
  %175 = vadd.xlane.f32.xlu0 %v174
  %v176 = vpop.xlane.xlu0 %175
  %v177 = vsel %vm37, %v133, 0.0
  %178 = vadd.xlane.f32.xlu0 %v177
  %v179 = vpop.xlane.xlu0 %178
  %v180 = vsel %vm37, %v134, 0.0
  %181 = vadd.xlane.f32.xlu0 %v180
  %v182 = vpop.xlane.xlu0 %181
  %v183 = vmul.f32 %v137, %v86
  %v184 = vmul.f32 %v140, %v86
  %v185 = vmul.f32 %v143, %v86
  %v186 = vmul.f32 %v146, %v86
  %v187 = vmul.f32 %v149, %v86
  %v188 = vmul.f32 %v152, %v86
  %v189 = vmul.f32 %v155, %v86
  %v190 = vmul.f32 %v158, %v86
  %v191 = vmul.f32 %v161, %v86
  %v192 = vmul.f32 %v164, %v86
  %v193 = vmul.f32 %v167, %v86
  %v194 = vmul.f32 %v170, %v86
  %v195 = vmul.f32 %v173, %v86
  %v196 = vmul.f32 %v176, %v86
  %v197 = vmul.f32 %v179, %v86
  %v198 = vmul.f32 %v182, %v86
  %v199 = vadd.f32 %v183, 1e-06
  %v200 = vadd.f32 %v184, 1e-06
  %v201 = vadd.f32 %v185, 1e-06
  %v202 = vadd.f32 %v186, 1e-06
  %v203 = vadd.f32 %v187, 1e-06
  %v204 = vadd.f32 %v188, 1e-06
  %v205 = vadd.f32 %v189, 1e-06
  %v206 = vadd.f32 %v190, 1e-06
  %v207 = vadd.f32 %v191, 1e-06
  %v208 = vadd.f32 %v192, 1e-06
  %v209 = vadd.f32 %v193, 1e-06
  %v210 = vadd.f32 %v194, 1e-06
  %v211 = vadd.f32 %v195, 1e-06
  %v212 = vadd.f32 %v196, 1e-06
  %v213 = vadd.f32 %v197, 1e-06
  %v214 = vadd.f32 %v198, 1e-06
  %v215 = vrsqrt.pop %v199
  %v216 = vrsqrt.pop %v200
  %v217 = vrsqrt.pop %v201
  %v218 = vrsqrt.pop %v202
  %v219 = vrsqrt.pop %v203
  %v220 = vrsqrt.pop %v204
  %v221 = vrsqrt.pop %v205
  %v222 = vrsqrt.pop %v206
  %v223 = vrsqrt.pop %v207
  %v224 = vrsqrt.pop %v208
  %v225 = vrsqrt.pop %v209
  %v226 = vrsqrt.pop %v210
  %v227 = vrsqrt.pop %v211
  %v228 = vrsqrt.pop %v212
  %v229 = vrsqrt.pop %v213
  %v230 = vrsqrt.pop %v214
  %v231 = vmul.f32 %v103, %v215
  %v232 = vmul.f32 %v104, %v216
  %v233 = vmul.f32 %v105, %v217
  %v234 = vmul.f32 %v106, %v218
  %v235 = vmul.f32 %v107, %v219
  %v236 = vmul.f32 %v108, %v220
  %v237 = vmul.f32 %v109, %v221
  %v238 = vmul.f32 %v110, %v222
  %v239 = vmul.f32 %v111, %v223
  %v240 = vmul.f32 %v112, %v224
  %v241 = vmul.f32 %v113, %v225
  %v242 = vmul.f32 %v114, %v226
  %v243 = vmul.f32 %v115, %v227
  %v244 = vmul.f32 %v116, %v228
  %v245 = vmul.f32 %v117, %v229
  %v246 = vmul.f32 %v118, %v230
  %v247 = vld [vmem:[%s1] sm:$0x1]
  %v249 = vlaneseq
  %v250 = vshrl.u32 %v249, 7
  %v251 = vsub.s32 0, %v250
  %v252 = vrot.slane %v247, %v251
  %v254 = vmul.f32 %v231, %v252
  %v255 = vmul.f32 %v232, %v252
  %v256 = vmul.f32 %v233, %v252
  %v257 = vmul.f32 %v234, %v252
  %v258 = vmul.f32 %v235, %v252
  %v259 = vmul.f32 %v236, %v252
  %v260 = vmul.f32 %v237, %v252
  %v261 = vmul.f32 %v238, %v252
  %v262 = vmul.f32 %v239, %v252
  %v263 = vmul.f32 %v240, %v252
  %v264 = vmul.f32 %v241, %v252
  %v265 = vmul.f32 %v242, %v252
  %v266 = vmul.f32 %v243, %v252
  %v267 = vmul.f32 %v244, %v252
  %v268 = vmul.f32 %v245, %v252
  %v269 = vmul.f32 %v246, %v252
  %v270 = vld [vmem:[%s2] sm:$0x1]
  %v272 = vlaneseq
  %v273 = vshrl.u32 %v272, 7
  %v274 = vsub.s32 0, %v273
  %v275 = vrot.slane %v270, %v274
  %v277 = vadd.f32 %v254, %v275
  %v278 = vadd.f32 %v255, %v275
  %v279 = vadd.f32 %v256, %v275
  %v280 = vadd.f32 %v257, %v275
  %v281 = vadd.f32 %v258, %v275
  %v282 = vadd.f32 %v259, %v275
  %v283 = vadd.f32 %v260, %v275
  %v284 = vadd.f32 %v261, %v275
  %v285 = vadd.f32 %v262, %v275
  %v286 = vadd.f32 %v263, %v275
  %v287 = vadd.f32 %v264, %v275
  %v288 = vadd.f32 %v265, %v275
  %v289 = vadd.f32 %v266, %v275
  %v290 = vadd.f32 %v267, %v275
  %v291 = vadd.f32 %v268, %v275
  %v292 = vadd.f32 %v269, %v275
  %v293 = vpack.c.bf16 %v278, %v277
  %v294 = vpack.c.bf16 %v280, %v279
  %v295 = vpack.c.bf16 %v282, %v281
  %v296 = vpack.c.bf16 %v284, %v283
  %v297 = vpack.c.bf16 %v286, %v285
  %v298 = vpack.c.bf16 %v288, %v287
  %v299 = vpack.c.bf16 %v290, %v289
  %v300 = vpack.c.bf16 %v292, %v291
  %v301 = vld [vmem:[%s3] sm:$0xff]
  %v302 = vld [vmem:[%s3 + $0x8] sm:$0xff]
  %v303 = vpack.c.bf16 %v302, %v301
  %v304 = vld [vmem:[%s4] sm:$0x1]
  %v306 = vlaneseq
  %v307 = vshrl.u32 %v306, 7
  %v308 = vsub.s32 0, %v307
  %v309 = vrot.slane %v304, %v308
  %v312 = vsel %vm37, %v293, 0
  %v315 = vsel %vm37, %v294, 0
  %v318 = vsel %vm37, %v295, 0
  %v321 = vsel %vm37, %v296, 0
  %v324 = vsel %vm37, %v297, 0
  %v327 = vsel %vm37, %v298, 0
  %v330 = vsel %vm37, %v299, 0
  %v333 = vsel %vm37, %v300, 0
  %335 = vmatprep.subr.bf16.mxu0 0
  %336 = vmatpush1.bf16.msra.mxu0 0
  %337 = vmatprep.subr.bf16.mxu0 0
  %338 = vmatpush1.bf16.msra.mxu0 0
  %339 = vmatprep.subr.bf16.mxu0 0
  %340 = vmatpush1.bf16.msra.mxu0 0
  %341 = vmatprep.subr.bf16.mxu0 0
  %342 = vmatpush1.bf16.msra.mxu0 0
  %343 = vmatprep.subr.bf16.mxu0 0
  %344 = vmatpush1.bf16.msra.mxu0 0
  %345 = vmatprep.subr.bf16.mxu0 0
  %346 = vmatpush1.bf16.msra.mxu0 0
  %347 = vmatprep.subr.bf16.mxu0 0
  %348 = vmatpush1.bf16.msra.mxu0 0
  %349 = vmatprep.subr.bf16.mxu0 0
  %350 = vmatpush1.bf16.msra.mxu0 %v303
  %351 = vmatprep.subr.bf16.mxu0 0
  %352 = vmatpush2.bf16.msra.mxu0 0
  %353 = vmatprep.subr.bf16.mxu0 0
  %354 = vmatpush2.bf16.msra.mxu0 0
  %355 = vmatprep.subr.bf16.mxu0 0
  %356 = vmatpush2.bf16.msra.mxu0 0
  %357 = vmatprep.subr.bf16.mxu0 0
  %358 = vmatpush2.bf16.msra.mxu0 0
  %359 = vmatprep.subr.bf16.mxu0 0
  %360 = vmatpush2.bf16.msra.mxu0 0
  %361 = vmatprep.subr.bf16.mxu0 0
  %362 = vmatpush2.bf16.msra.mxu0 0
  %363 = vmatprep.subr.bf16.mxu0 0
  %364 = vmatpush2.bf16.msra.mxu0 0
  %365 = vmatprep.subr.bf16.mxu0 0
  %366 = vmatpush2.bf16.msra.mxu0 0
  %367 = vmatprep.mubr.bf16.mxu0 0
  %368 = vmatmul.mubr.bf16.gmra.mxu0 %v312
  %v369 = vpop.f32.mrf.mxu0
  %v370 = vadd.f32 %v309, %v369
  %v371 = vpop.f32.mrf.mxu0
  %v372 = vpop.f32.mrf.mxu0
  %v373 = vadd.f32 %v309, %v372
  %v374 = vpop.f32.mrf.mxu0
  %375 = vmatprep.mubr.bf16.mxu0 0
  %376 = vmatmul.mubr.bf16.gmra.mxu0 %v315
  %v377 = vpop.f32.mrf.mxu0
  %v378 = vadd.f32 %v309, %v377
  %v379 = vpop.f32.mrf.mxu0
  %v380 = vpop.f32.mrf.mxu0
  %v381 = vadd.f32 %v309, %v380
  %v382 = vpop.f32.mrf.mxu0
  %383 = vmatprep.mubr.bf16.mxu0 0
  %384 = vmatmul.mubr.bf16.gmra.mxu0 %v318
  %v385 = vpop.f32.mrf.mxu0
  %v386 = vadd.f32 %v309, %v385
  %v387 = vpop.f32.mrf.mxu0
  %v388 = vpop.f32.mrf.mxu0
  %v389 = vadd.f32 %v309, %v388
  %v390 = vpop.f32.mrf.mxu0
  %391 = vmatprep.mubr.bf16.mxu0 0
  %392 = vmatmul.mubr.bf16.gmra.mxu0 %v321
  %v393 = vpop.f32.mrf.mxu0
  %v394 = vadd.f32 %v309, %v393
  %v395 = vpop.f32.mrf.mxu0
  %v396 = vpop.f32.mrf.mxu0
  %v397 = vadd.f32 %v309, %v396
  %v398 = vpop.f32.mrf.mxu0
  %399 = vmatprep.mubr.bf16.mxu0 0
  %400 = vmatmul.mubr.bf16.gmra.mxu0 %v324
  %v401 = vpop.f32.mrf.mxu0
  %v402 = vadd.f32 %v309, %v401
  %v403 = vpop.f32.mrf.mxu0
  %v404 = vpop.f32.mrf.mxu0
  %v405 = vadd.f32 %v309, %v404
  %v406 = vpop.f32.mrf.mxu0
  %407 = vmatprep.mubr.bf16.mxu0 0
  %408 = vmatmul.mubr.bf16.gmra.mxu0 %v327
  %v409 = vpop.f32.mrf.mxu0
  %v410 = vadd.f32 %v309, %v409
  %v411 = vpop.f32.mrf.mxu0
  %v412 = vpop.f32.mrf.mxu0
  %v413 = vadd.f32 %v309, %v412
  %v414 = vpop.f32.mrf.mxu0
  %415 = vmatprep.mubr.bf16.mxu0 0
  %416 = vmatmul.mubr.bf16.gmra.mxu0 %v330
  %v417 = vpop.f32.mrf.mxu0
  %v418 = vadd.f32 %v309, %v417
  %v419 = vpop.f32.mrf.mxu0
  %v420 = vpop.f32.mrf.mxu0
  %v421 = vadd.f32 %v309, %v420
  %v422 = vpop.f32.mrf.mxu0
  %423 = vmatprep.mubr.bf16.mxu0 0
  %424 = vmatmul.mubr.bf16.gmra.mxu0 %v333
  %v425 = vpop.f32.mrf.mxu0
  %v426 = vadd.f32 %v309, %v425
  %v427 = vpop.f32.mrf.mxu0
  %v428 = vpop.f32.mrf.mxu0
  %v429 = vadd.f32 %v309, %v428
  %v430 = vpop.f32.mrf.mxu0
  %431 = vdwg.mxu0
  %v432 = vpack.c.bf16 %v373, %v370
  %v433 = vpack.c.bf16 %v381, %v378
  %v434 = vpack.c.bf16 %v389, %v386
  %v435 = vpack.c.bf16 %v397, %v394
  %v436 = vpack.c.bf16 %v405, %v402
  %v437 = vpack.c.bf16 %v413, %v410
  %v438 = vpack.c.bf16 %v421, %v418
  %v439 = vpack.c.bf16 %v429, %v426
  %v448 = vunpack.c.l.b16 %v432
  %v449 = vunpack.c.h.b16 %v432
  %v450 = vunpack.c.l.b16 %v433
  %v451 = vunpack.c.h.b16 %v433
  %v452 = vunpack.c.l.b16 %v434
  %v453 = vunpack.c.h.b16 %v434
  %v454 = vunpack.c.l.b16 %v435
  %v455 = vunpack.c.h.b16 %v435
  %v456 = vunpack.c.l.b16 %v436
  %v457 = vunpack.c.h.b16 %v436
  %v458 = vunpack.c.l.b16 %v437
  %v459 = vunpack.c.h.b16 %v437
  %v460 = vunpack.c.l.b16 %v438
  %v461 = vunpack.c.h.b16 %v438
  %v462 = vunpack.c.l.b16 %v439
  %v463 = vunpack.c.h.b16 %v439
  %v464 = vpack.c.b16 %v448, %v448
  %v465 = vpack.c.b16 %v449, %v449
  %v466 = vpack.c.b16 %v450, %v450
  %v467 = vpack.c.b16 %v451, %v451
  %v468 = vpack.c.b16 %v452, %v452
  %v469 = vpack.c.b16 %v453, %v453
  %v470 = vpack.c.b16 %v454, %v454
  %v471 = vpack.c.b16 %v455, %v455
  %v472 = vpack.c.b16 %v456, %v456
  %v473 = vpack.c.b16 %v457, %v457
  %v474 = vpack.c.b16 %v458, %v458
  %v475 = vpack.c.b16 %v459, %v459
  %v476 = vpack.c.b16 %v460, %v460
  %v477 = vpack.c.b16 %v461, %v461
  %v478 = vpack.c.b16 %v462, %v462
  %v479 = vpack.c.b16 %v463, %v463
  %vm496 = vcmask 158720
  %497 = vst.msk [vmem:[%s5] sm:$0xf] %vm496, %v464
  %498 = vst.msk [vmem:[%s5 + $0x4] sm:$0xf] %vm496, %v465
  %499 = vst.msk [vmem:[%s5 + $0x8] sm:$0xf] %vm496, %v466
  %500 = vst.msk [vmem:[%s5 + $0xc] sm:$0xf] %vm496, %v467
  %501 = vst.msk [vmem:[%s5 + $0x10] sm:$0xf] %vm496, %v468
  %502 = vst.msk [vmem:[%s5 + $0x14] sm:$0xf] %vm496, %v469
  %503 = vst.msk [vmem:[%s5 + $0x18] sm:$0xf] %vm496, %v470
  %504 = vst.msk [vmem:[%s5 + $0x1c] sm:$0xf] %vm496, %v471
  %505 = vst.msk [vmem:[%s5 + $0x20] sm:$0xf] %vm496, %v472
  %506 = vst.msk [vmem:[%s5 + $0x24] sm:$0xf] %vm496, %v473
  %507 = vst.msk [vmem:[%s5 + $0x28] sm:$0xf] %vm496, %v474
  %508 = vst.msk [vmem:[%s5 + $0x2c] sm:$0xf] %vm496, %v475
  %509 = vst.msk [vmem:[%s5 + $0x30] sm:$0xf] %vm496, %v476
  %510 = vst.msk [vmem:[%s5 + $0x34] sm:$0xf] %vm496, %v477
  %511 = vst.msk [vmem:[%s5 + $0x38] sm:$0xf] %vm496, %v478
  %512 = vst.msk [vmem:[%s5 + $0x3c] sm:$0xf] %vm496, %v479
  // Predicated region
  $region22: #{vss_convg_forward.13} parent=0 // pred_check
    _
  $region23: #{vss_convg_forward.13} parent=0 // pred_check_branch
    %514 = sbr.rel (0) target = $region25
  $region24: #{vss_convg_forward.13} parent=0 // pred_region
    _
  $region25: #{vss_convg_forward.13} parent=0 // pred_fallthru
    _
  // Predicated region
  $region26: #{vss_convg_forward.13} parent=0 // pred_check
    _
  $region27: #{vss_convg_forward.13} parent=0 // pred_check_branch
    %516 = sbr.rel (0) target = $region29
  $region28: #{vss_convg_forward.13} parent=0 // pred_region
    _
  $region29: #{vss_convg_forward.13} parent=0 // pred_fallthru
    _

// kernel: vss_convg_forward.12
$region0: #{vss_convg_forward.12}
  #allocation0 [shape = 'u32[]', space=smem, size = 0x4, offset = 0x4, fixed_abs, tag = 'smem constant byte address 0x4 - core index']
  #allocation1 [shape = 'u32[144,128]{1,0:T(1,128)}', space=vmem, size = 0x12000, scoped, tag = 'internal scratch']
  %s0 = inlined_call_operand.vmem [shape: bf16[128,32], index: 0, kind: input, shape index: {}]
  %s1 = inlined_call_operand.vmem [shape: bf16[128,32], index: 1, kind: input, shape index: {}]
  %s2 = inlined_call_operand.vmem [shape: f32[128,16], index: 2, kind: input, shape index: {}]
  %s3 = inlined_call_operand.vmem [shape: f32[1,32], index: 3, kind: input, shape index: {}]
  %s4 = inlined_call_operand.vmem [shape: f32[1,32], index: 4, kind: input, shape index: {}]
  %s5 = inlined_call_operand.vmem [shape: f32[32,16], index: 5, kind: input, shape index: {}]
  %s6 = inlined_call_operand.vmem [shape: f32[128,16], index: 6, kind: output, shape index: {}]
  %s7 = sld [smem:[#allocation0]]
  $region34: #{vss_convg_forward.12} parent=0
    _
  %s9 = ssub.s32 1, %s7
  %s10 = scalar_select 0, %s9, %s7
  // Predicated region
  $region2: #{vss_convg_forward.12} parent=0 // pred_check
    _
  $region3: #{vss_convg_forward.12} parent=0 // pred_check_branch
    %12 = sbr.rel (0) target = $region5
  $region4: #{vss_convg_forward.12} parent=0 // pred_region
    _
  $region5: #{vss_convg_forward.12} parent=0 // pred_fallthru
    _
  // Predicated region
  $region6: #{vss_convg_forward.12} parent=0 // pred_check
    _
  $region7: #{vss_convg_forward.12} parent=0 // pred_check_branch
    %14 = sbr.rel (0) target = $region9
  $region8: #{vss_convg_forward.12} parent=0 // pred_region
    _
  $region9: #{vss_convg_forward.12} parent=0 // pred_fallthru
    _
  // Predicated region
  $region10: #{vss_convg_forward.12} parent=0 // pred_check
    _
  $region11: #{vss_convg_forward.12} parent=0 // pred_check_branch
    %16 = sbr.rel (0) target = $region13
  $region12: #{vss_convg_forward.12} parent=0 // pred_region
    _
  $region13: #{vss_convg_forward.12} parent=0 // pred_fallthru
    _
  // Predicated region
  $region14: #{vss_convg_forward.12} parent=0 // pred_check
    _
  $region15: #{vss_convg_forward.12} parent=0 // pred_check_branch
    %18 = sbr.rel (0) target = $region17
  $region16: #{vss_convg_forward.12} parent=0 // pred_region
    _
  $region17: #{vss_convg_forward.12} parent=0 // pred_fallthru
    _
  // Predicated region
  $region18: #{vss_convg_forward.12} parent=0 // pred_check
    _
  $region19: #{vss_convg_forward.12} parent=0 // pred_check_branch
    %20 = sbr.rel (0) target = $region21
  $region20: #{vss_convg_forward.12} parent=0 // pred_region
    _
  $region21: #{vss_convg_forward.12} parent=0 // pred_fallthru
    _
  // Predicated region
  $region22: #{vss_convg_forward.12} parent=0 // pred_check
    _
  $region23: #{vss_convg_forward.12} parent=0 // pred_check_branch
    %22 = sbr.rel (0) target = $region25
  $region24: #{vss_convg_forward.12} parent=0 // pred_region
    _
  $region25: #{vss_convg_forward.12} parent=0 // pred_fallthru
    _
  %v24 = vld [vmem:[%s0] sm:$0xf]
  %v25 = vld [vmem:[%s0 + $0x4] sm:$0xf]
  %v26 = vld [vmem:[%s0 + $0x8] sm:$0xf]
  %v27 = vld [vmem:[%s0 + $0xc] sm:$0xf]
  %v28 = vld [vmem:[%s0 + $0x10] sm:$0xf]
  %v29 = vld [vmem:[%s0 + $0x14] sm:$0xf]
  %v30 = vld [vmem:[%s0 + $0x18] sm:$0xf]
  %v31 = vld [vmem:[%s0 + $0x1c] sm:$0xf]
  %v32 = vld [vmem:[%s0 + $0x20] sm:$0xf]
  %v33 = vld [vmem:[%s0 + $0x24] sm:$0xf]
  %v34 = vld [vmem:[%s0 + $0x28] sm:$0xf]
  %v35 = vld [vmem:[%s0 + $0x2c] sm:$0xf]
  %v36 = vld [vmem:[%s0 + $0x30] sm:$0xf]
  %v37 = vld [vmem:[%s0 + $0x34] sm:$0xf]
  %v38 = vld [vmem:[%s0 + $0x38] sm:$0xf]
  %v39 = vld [vmem:[%s0 + $0x3c] sm:$0xf]
  %v40 = vunpack.c.l.bf16 %v24
  %v41 = vunpack.c.l.bf16 %v25
  %v42 = vunpack.c.l.bf16 %v26
  %v43 = vunpack.c.l.bf16 %v27
  %v44 = vunpack.c.l.bf16 %v28
  %v45 = vunpack.c.l.bf16 %v29
  %v46 = vunpack.c.l.bf16 %v30
  %v47 = vunpack.c.l.bf16 %v31
  %v48 = vunpack.c.l.bf16 %v32
  %v49 = vunpack.c.l.bf16 %v33
  %v50 = vunpack.c.l.bf16 %v34
  %v51 = vunpack.c.l.bf16 %v35
  %v52 = vunpack.c.l.bf16 %v36
  %v53 = vunpack.c.l.bf16 %v37
  %v54 = vunpack.c.l.bf16 %v38
  %v55 = vunpack.c.l.bf16 %v39
  %vm56 = vcmask 261120
  %v57 = vsel %vm56, %v40, 0.0
  %58 = vadd.xlane.f32.xlu0 %v57
  %v59 = vpop.xlane.xlu0 %58
  %v60 = vsel %vm56, %v41, 0.0
  %61 = vadd.xlane.f32.xlu0 %v60
  %v62 = vpop.xlane.xlu0 %61
  %v63 = vsel %vm56, %v42, 0.0
  %64 = vadd.xlane.f32.xlu0 %v63
  %v65 = vpop.xlane.xlu0 %64
  %v66 = vsel %vm56, %v43, 0.0
  %67 = vadd.xlane.f32.xlu0 %v66
  %v68 = vpop.xlane.xlu0 %67
  %v69 = vsel %vm56, %v44, 0.0
  %70 = vadd.xlane.f32.xlu0 %v69
  %v71 = vpop.xlane.xlu0 %70
  %v72 = vsel %vm56, %v45, 0.0
  %73 = vadd.xlane.f32.xlu0 %v72
  %v74 = vpop.xlane.xlu0 %73
  %v75 = vsel %vm56, %v46, 0.0
  %76 = vadd.xlane.f32.xlu0 %v75
  %v77 = vpop.xlane.xlu0 %76
  %v78 = vsel %vm56, %v47, 0.0
  %79 = vadd.xlane.f32.xlu0 %v78
  %v80 = vpop.xlane.xlu0 %79
  %v81 = vsel %vm56, %v48, 0.0
  %82 = vadd.xlane.f32.xlu0 %v81
  %v83 = vpop.xlane.xlu0 %82
  %v84 = vsel %vm56, %v49, 0.0
  %85 = vadd.xlane.f32.xlu0 %v84
  %v86 = vpop.xlane.xlu0 %85
  %v87 = vsel %vm56, %v50, 0.0
  %88 = vadd.xlane.f32.xlu0 %v87
  %v89 = vpop.xlane.xlu0 %88
  %v90 = vsel %vm56, %v51, 0.0
  %91 = vadd.xlane.f32.xlu0 %v90
  %v92 = vpop.xlane.xlu0 %91
  %v93 = vsel %vm56, %v52, 0.0
  %94 = vadd.xlane.f32.xlu0 %v93
  %v95 = vpop.xlane.xlu0 %94
  %v96 = vsel %vm56, %v53, 0.0
  %97 = vadd.xlane.f32.xlu0 %v96
  %v98 = vpop.xlane.xlu0 %97
  %v99 = vsel %vm56, %v54, 0.0
  %100 = vadd.xlane.f32.xlu0 %v99
  %v101 = vpop.xlane.xlu0 %100
  %v102 = vsel %vm56, %v55, 0.0
  %103 = vadd.xlane.f32.xlu0 %v102
  %v104 = vpop.xlane.xlu0 %103
  %v105 = vrcp.pop 32.0
  %v106 = vmul.f32 %v59, %v105
  %v107 = vmul.f32 %v62, %v105
  %v108 = vmul.f32 %v65, %v105
  %v109 = vmul.f32 %v68, %v105
  %v110 = vmul.f32 %v71, %v105
  %v111 = vmul.f32 %v74, %v105
  %v112 = vmul.f32 %v77, %v105
  %v113 = vmul.f32 %v80, %v105
  %v114 = vmul.f32 %v83, %v105
  %v115 = vmul.f32 %v86, %v105
  %v116 = vmul.f32 %v89, %v105
  %v117 = vmul.f32 %v92, %v105
  %v118 = vmul.f32 %v95, %v105
  %v119 = vmul.f32 %v98, %v105
  %v120 = vmul.f32 %v101, %v105
  %v121 = vmul.f32 %v104, %v105
  %v122 = vsub.f32 %v40, %v106
  %v123 = vsub.f32 %v41, %v107
  %v124 = vsub.f32 %v42, %v108
  %v125 = vsub.f32 %v43, %v109
  %v126 = vsub.f32 %v44, %v110
  %v127 = vsub.f32 %v45, %v111
  %v128 = vsub.f32 %v46, %v112
  %v129 = vsub.f32 %v47, %v113
  %v130 = vsub.f32 %v48, %v114
  %v131 = vsub.f32 %v49, %v115
  %v132 = vsub.f32 %v50, %v116
  %v133 = vsub.f32 %v51, %v117
  %v134 = vsub.f32 %v52, %v118
  %v135 = vsub.f32 %v53, %v119
  %v136 = vsub.f32 %v54, %v120
  %v137 = vsub.f32 %v55, %v121
  %v138 = vmul.f32 %v122, %v122
  %v139 = vmul.f32 %v123, %v123
  %v140 = vmul.f32 %v124, %v124
  %v141 = vmul.f32 %v125, %v125
  %v142 = vmul.f32 %v126, %v126
  %v143 = vmul.f32 %v127, %v127
  %v144 = vmul.f32 %v128, %v128
  %v145 = vmul.f32 %v129, %v129
  %v146 = vmul.f32 %v130, %v130
  %v147 = vmul.f32 %v131, %v131
  %v148 = vmul.f32 %v132, %v132
  %v149 = vmul.f32 %v133, %v133
  %v150 = vmul.f32 %v134, %v134
  %v151 = vmul.f32 %v135, %v135
  %v152 = vmul.f32 %v136, %v136
  %v153 = vmul.f32 %v137, %v137
  %v154 = vsel %vm56, %v138, 0.0
  %155 = vadd.xlane.f32.xlu0 %v154
  %v156 = vpop.xlane.xlu0 %155
  %v157 = vsel %vm56, %v139, 0.0
  %158 = vadd.xlane.f32.xlu0 %v157
  %v159 = vpop.xlane.xlu0 %158
  %v160 = vsel %vm56, %v140, 0.0
  %161 = vadd.xlane.f32.xlu0 %v160
  %v162 = vpop.xlane.xlu0 %161
  %v163 = vsel %vm56, %v141, 0.0
  %164 = vadd.xlane.f32.xlu0 %v163
  %v165 = vpop.xlane.xlu0 %164
  %v166 = vsel %vm56, %v142, 0.0
  %167 = vadd.xlane.f32.xlu0 %v166
  %v168 = vpop.xlane.xlu0 %167
  %v169 = vsel %vm56, %v143, 0.0
  %170 = vadd.xlane.f32.xlu0 %v169
  %v171 = vpop.xlane.xlu0 %170
  %v172 = vsel %vm56, %v144, 0.0
  %173 = vadd.xlane.f32.xlu0 %v172
  %v174 = vpop.xlane.xlu0 %173
  %v175 = vsel %vm56, %v145, 0.0
  %176 = vadd.xlane.f32.xlu0 %v175
  %v177 = vpop.xlane.xlu0 %176
  %v178 = vsel %vm56, %v146, 0.0
  %179 = vadd.xlane.f32.xlu0 %v178
  %v180 = vpop.xlane.xlu0 %179
  %v181 = vsel %vm56, %v147, 0.0
  %182 = vadd.xlane.f32.xlu0 %v181
  %v183 = vpop.xlane.xlu0 %182
  %v184 = vsel %vm56, %v148, 0.0
  %185 = vadd.xlane.f32.xlu0 %v184
  %v186 = vpop.xlane.xlu0 %185
  %v187 = vsel %vm56, %v149, 0.0
  %188 = vadd.xlane.f32.xlu0 %v187
  %v189 = vpop.xlane.xlu0 %188
  %v190 = vsel %vm56, %v150, 0.0
  %191 = vadd.xlane.f32.xlu0 %v190
  %v192 = vpop.xlane.xlu0 %191
  %v193 = vsel %vm56, %v151, 0.0
  %194 = vadd.xlane.f32.xlu0 %v193
  %v195 = vpop.xlane.xlu0 %194
  %v196 = vsel %vm56, %v152, 0.0
  %197 = vadd.xlane.f32.xlu0 %v196
  %v198 = vpop.xlane.xlu0 %197
  %v199 = vsel %vm56, %v153, 0.0
  %200 = vadd.xlane.f32.xlu0 %v199
  %v201 = vpop.xlane.xlu0 %200
  %v202 = vmul.f32 %v156, %v105
  %v203 = vmul.f32 %v159, %v105
  %v204 = vmul.f32 %v162, %v105
  %v205 = vmul.f32 %v165, %v105
  %v206 = vmul.f32 %v168, %v105
  %v207 = vmul.f32 %v171, %v105
  %v208 = vmul.f32 %v174, %v105
  %v209 = vmul.f32 %v177, %v105
  %v210 = vmul.f32 %v180, %v105
  %v211 = vmul.f32 %v183, %v105
  %v212 = vmul.f32 %v186, %v105
  %v213 = vmul.f32 %v189, %v105
  %v214 = vmul.f32 %v192, %v105
  %v215 = vmul.f32 %v195, %v105
  %v216 = vmul.f32 %v198, %v105
  %v217 = vmul.f32 %v201, %v105
  %v218 = vadd.f32 %v202, 1e-05
  %v219 = vadd.f32 %v203, 1e-05
  %v220 = vadd.f32 %v204, 1e-05
  %v221 = vadd.f32 %v205, 1e-05
  %v222 = vadd.f32 %v206, 1e-05
  %v223 = vadd.f32 %v207, 1e-05
  %v224 = vadd.f32 %v208, 1e-05
  %v225 = vadd.f32 %v209, 1e-05
  %v226 = vadd.f32 %v210, 1e-05
  %v227 = vadd.f32 %v211, 1e-05
  %v228 = vadd.f32 %v212, 1e-05
  %v229 = vadd.f32 %v213, 1e-05
  %v230 = vadd.f32 %v214, 1e-05
  %v231 = vadd.f32 %v215, 1e-05
  %v232 = vadd.f32 %v216, 1e-05
  %v233 = vadd.f32 %v217, 1e-05
  %v234 = vrsqrt.pop %v218
  %v235 = vrsqrt.pop %v219
  %v236 = vrsqrt.pop %v220
  %v237 = vrsqrt.pop %v221
  %v238 = vrsqrt.pop %v222
  %v239 = vrsqrt.pop %v223
  %v240 = vrsqrt.pop %v224
  %v241 = vrsqrt.pop %v225
  %v242 = vrsqrt.pop %v226
  %v243 = vrsqrt.pop %v227
  %v244 = vrsqrt.pop %v228
  %v245 = vrsqrt.pop %v229
  %v246 = vrsqrt.pop %v230
  %v247 = vrsqrt.pop %v231
  %v248 = vrsqrt.pop %v232
  %v249 = vrsqrt.pop %v233
  %v250 = vmul.f32 %v122, %v234
  %v251 = vmul.f32 %v123, %v235
  %v252 = vmul.f32 %v124, %v236
  %v253 = vmul.f32 %v125, %v237
  %v254 = vmul.f32 %v126, %v238
  %v255 = vmul.f32 %v127, %v239
  %v256 = vmul.f32 %v128, %v240
  %v257 = vmul.f32 %v129, %v241
  %v258 = vmul.f32 %v130, %v242
  %v259 = vmul.f32 %v131, %v243
  %v260 = vmul.f32 %v132, %v244
  %v261 = vmul.f32 %v133, %v245
  %v262 = vmul.f32 %v134, %v246
  %v263 = vmul.f32 %v135, %v247
  %v264 = vmul.f32 %v136, %v248
  %v265 = vmul.f32 %v137, %v249
  %v266 = vld [vmem:[%s3] sm:$0x1]
  %v268 = vlaneseq
  %v269 = vshrl.u32 %v268, 7
  %v270 = vsub.s32 0, %v269
  %v271 = vrot.slane %v266, %v270
  %v273 = vmul.f32 %v250, %v271
  %v274 = vmul.f32 %v251, %v271
  %v275 = vmul.f32 %v252, %v271
  %v276 = vmul.f32 %v253, %v271
  %v277 = vmul.f32 %v254, %v271
  %v278 = vmul.f32 %v255, %v271
  %v279 = vmul.f32 %v256, %v271
  %v280 = vmul.f32 %v257, %v271
  %v281 = vmul.f32 %v258, %v271
  %v282 = vmul.f32 %v259, %v271
  %v283 = vmul.f32 %v260, %v271
  %v284 = vmul.f32 %v261, %v271
  %v285 = vmul.f32 %v262, %v271
  %v286 = vmul.f32 %v263, %v271
  %v287 = vmul.f32 %v264, %v271
  %v288 = vmul.f32 %v265, %v271
  %v289 = vld [vmem:[%s4] sm:$0x1]
  %v291 = vlaneseq
  %v292 = vshrl.u32 %v291, 7
  %v293 = vsub.s32 0, %v292
  %v294 = vrot.slane %v289, %v293
  %v296 = vadd.f32 %v273, %v294
  %v297 = vadd.f32 %v274, %v294
  %v298 = vadd.f32 %v275, %v294
  %v299 = vadd.f32 %v276, %v294
  %v300 = vadd.f32 %v277, %v294
  %v301 = vadd.f32 %v278, %v294
  %v302 = vadd.f32 %v279, %v294
  %v303 = vadd.f32 %v280, %v294
  %v304 = vadd.f32 %v281, %v294
  %v305 = vadd.f32 %v282, %v294
  %v306 = vadd.f32 %v283, %v294
  %v307 = vadd.f32 %v284, %v294
  %v308 = vadd.f32 %v285, %v294
  %v309 = vadd.f32 %v286, %v294
  %v310 = vadd.f32 %v287, %v294
  %v311 = vadd.f32 %v288, %v294
  %v312 = vld [vmem:[%s1] sm:$0xf]
  %v313 = vld [vmem:[%s1 + $0x4] sm:$0xf]
  %v314 = vld [vmem:[%s1 + $0x8] sm:$0xf]
  %v315 = vld [vmem:[%s1 + $0xc] sm:$0xf]
  %v316 = vld [vmem:[%s1 + $0x10] sm:$0xf]
  %v317 = vld [vmem:[%s1 + $0x14] sm:$0xf]
  %v318 = vld [vmem:[%s1 + $0x18] sm:$0xf]
  %v319 = vld [vmem:[%s1 + $0x1c] sm:$0xf]
  %v320 = vld [vmem:[%s1 + $0x20] sm:$0xf]
  %v321 = vld [vmem:[%s1 + $0x24] sm:$0xf]
  %v322 = vld [vmem:[%s1 + $0x28] sm:$0xf]
  %v323 = vld [vmem:[%s1 + $0x2c] sm:$0xf]
  %v324 = vld [vmem:[%s1 + $0x30] sm:$0xf]
  %v325 = vld [vmem:[%s1 + $0x34] sm:$0xf]
  %v326 = vld [vmem:[%s1 + $0x38] sm:$0xf]
  %v327 = vld [vmem:[%s1 + $0x3c] sm:$0xf]
  %v328 = vunpack.c.l.bf16 %v312
  %v329 = vunpack.c.l.bf16 %v313
  %v330 = vunpack.c.l.bf16 %v314
  %v331 = vunpack.c.l.bf16 %v315
  %v332 = vunpack.c.l.bf16 %v316
  %v333 = vunpack.c.l.bf16 %v317
  %v334 = vunpack.c.l.bf16 %v318
  %v335 = vunpack.c.l.bf16 %v319
  %v336 = vunpack.c.l.bf16 %v320
  %v337 = vunpack.c.l.bf16 %v321
  %v338 = vunpack.c.l.bf16 %v322
  %v339 = vunpack.c.l.bf16 %v323
  %v340 = vunpack.c.l.bf16 %v324
  %v341 = vunpack.c.l.bf16 %v325
  %v342 = vunpack.c.l.bf16 %v326
  %v343 = vunpack.c.l.bf16 %v327
  %v344 = vsub.f32 0.0, %v328
  %v345 = vsub.f32 0.0, %v329
  %v346 = vsub.f32 0.0, %v330
  %v347 = vsub.f32 0.0, %v331
  %v348 = vsub.f32 0.0, %v332
  %v349 = vsub.f32 0.0, %v333
  %v350 = vsub.f32 0.0, %v334
  %v351 = vsub.f32 0.0, %v335
  %v352 = vsub.f32 0.0, %v336
  %v353 = vsub.f32 0.0, %v337
  %v354 = vsub.f32 0.0, %v338
  %v355 = vsub.f32 0.0, %v339
  %v356 = vsub.f32 0.0, %v340
  %v357 = vsub.f32 0.0, %v341
  %v358 = vsub.f32 0.0, %v342
  %v359 = vsub.f32 0.0, %v343
  %v360 = vmul.f32 %v344, 1.442695
  %v361 = vpow.pop %v360
  %v362 = vmul.f32 %v345, 1.442695
  %v363 = vpow.pop %v362
  %v364 = vmul.f32 %v346, 1.442695
  %v365 = vpow.pop %v364
  %v366 = vmul.f32 %v347, 1.442695
  %v367 = vpow.pop %v366
  %v368 = vmul.f32 %v348, 1.442695
  %v369 = vpow.pop %v368
  %v370 = vmul.f32 %v349, 1.442695
  %v371 = vpow.pop %v370
  %v372 = vmul.f32 %v350, 1.442695
  %v373 = vpow.pop %v372
  %v374 = vmul.f32 %v351, 1.442695
  %v375 = vpow.pop %v374
  %v376 = vmul.f32 %v352, 1.442695
  %v377 = vpow.pop %v376
  %v378 = vmul.f32 %v353, 1.442695
  %v379 = vpow.pop %v378
  %v380 = vmul.f32 %v354, 1.442695
  %v381 = vpow.pop %v380
  %v382 = vmul.f32 %v355, 1.442695
  %v383 = vpow.pop %v382
  %v384 = vmul.f32 %v356, 1.442695
  %v385 = vpow.pop %v384
  %v386 = vmul.f32 %v357, 1.442695
  %v387 = vpow.pop %v386
  %v388 = vmul.f32 %v358, 1.442695
  %v389 = vpow.pop %v388
  %v390 = vmul.f32 %v359, 1.442695
  %v391 = vpow.pop %v390
  %v392 = vadd.f32 %v361, 1.0
  %v393 = vadd.f32 %v363, 1.0
  %v394 = vadd.f32 %v365, 1.0
  %v395 = vadd.f32 %v367, 1.0
  %v396 = vadd.f32 %v369, 1.0
  %v397 = vadd.f32 %v371, 1.0
  %v398 = vadd.f32 %v373, 1.0
  %v399 = vadd.f32 %v375, 1.0
  %v400 = vadd.f32 %v377, 1.0
  %v401 = vadd.f32 %v379, 1.0
  %v402 = vadd.f32 %v381, 1.0
  %v403 = vadd.f32 %v383, 1.0
  %v404 = vadd.f32 %v385, 1.0
  %v405 = vadd.f32 %v387, 1.0
  %v406 = vadd.f32 %v389, 1.0
  %v407 = vadd.f32 %v391, 1.0
  %v408 = vrcp.pop %v392
  %v409 = vmul.f32 1.0, %v408
  %v410 = vrcp.pop %v393
  %v411 = vmul.f32 1.0, %v410
  %v412 = vrcp.pop %v394
  %v413 = vmul.f32 1.0, %v412
  %v414 = vrcp.pop %v395
  %v415 = vmul.f32 1.0, %v414
  %v416 = vrcp.pop %v396
  %v417 = vmul.f32 1.0, %v416
  %v418 = vrcp.pop %v397
  %v419 = vmul.f32 1.0, %v418
  %v420 = vrcp.pop %v398
  %v421 = vmul.f32 1.0, %v420
  %v422 = vrcp.pop %v399
  %v423 = vmul.f32 1.0, %v422
  %v424 = vrcp.pop %v400
  %v425 = vmul.f32 1.0, %v424
  %v426 = vrcp.pop %v401
  %v427 = vmul.f32 1.0, %v426
  %v428 = vrcp.pop %v402
  %v429 = vmul.f32 1.0, %v428
  %v430 = vrcp.pop %v403
  %v431 = vmul.f32 1.0, %v430
  %v432 = vrcp.pop %v404
  %v433 = vmul.f32 1.0, %v432
  %v434 = vrcp.pop %v405
  %v435 = vmul.f32 1.0, %v434
  %v436 = vrcp.pop %v406
  %v437 = vmul.f32 1.0, %v436
  %v438 = vrcp.pop %v407
  %v439 = vmul.f32 1.0, %v438
  %v440 = vmul.f32 %v328, %v409
  %v441 = vmul.f32 %v329, %v411
  %v442 = vmul.f32 %v330, %v413
  %v443 = vmul.f32 %v331, %v415
  %v444 = vmul.f32 %v332, %v417
  %v445 = vmul.f32 %v333, %v419
  %v446 = vmul.f32 %v334, %v421
  %v447 = vmul.f32 %v335, %v423
  %v448 = vmul.f32 %v336, %v425
  %v449 = vmul.f32 %v337, %v427
  %v450 = vmul.f32 %v338, %v429
  %v451 = vmul.f32 %v339, %v431
  %v452 = vmul.f32 %v340, %v433
  %v453 = vmul.f32 %v341, %v435
  %v454 = vmul.f32 %v342, %v437
  %v455 = vmul.f32 %v343, %v439
  %v456 = vmul.f32 %v296, %v440
  %v457 = vmul.f32 %v297, %v441
  %v458 = vmul.f32 %v298, %v442
  %v459 = vmul.f32 %v299, %v443
  %v460 = vmul.f32 %v300, %v444
  %v461 = vmul.f32 %v301, %v445
  %v462 = vmul.f32 %v302, %v446
  %v463 = vmul.f32 %v303, %v447
  %v464 = vmul.f32 %v304, %v448
  %v465 = vmul.f32 %v305, %v449
  %v466 = vmul.f32 %v306, %v450
  %v467 = vmul.f32 %v307, %v451
  %v468 = vmul.f32 %v308, %v452
  %v469 = vmul.f32 %v309, %v453
  %v470 = vmul.f32 %v310, %v454
  %v471 = vmul.f32 %v311, %v455
  %v472 = vpack.c.bf16 %v457, %v456
  %v473 = vpack.c.bf16 %v459, %v458
  %v474 = vpack.c.bf16 %v461, %v460
  %v475 = vpack.c.bf16 %v463, %v462
  %v476 = vpack.c.bf16 %v465, %v464
  %v477 = vpack.c.bf16 %v467, %v466
  %v478 = vpack.c.bf16 %v469, %v468
  %v479 = vpack.c.bf16 %v471, %v470
  %v480 = vld [vmem:[%s5] sm:$0xff]
  %v481 = vld [vmem:[%s5 + $0x8] sm:$0xff]
  %v482 = vld [vmem:[%s5 + $0x10] sm:$0xff]
  %v483 = vld [vmem:[%s5 + $0x18] sm:$0xff]
  %v484 = vpack.c.bf16 %v481, %v480
  %v485 = vpack.c.bf16 %v483, %v482
  %v486 = vld [vmem:[%s2] sm:$0xff]
  %v487 = vld [vmem:[%s2 + $0x8] sm:$0xff]
  %v488 = vld [vmem:[%s2 + $0x10] sm:$0xff]
  %v489 = vld [vmem:[%s2 + $0x18] sm:$0xff]
  %v490 = vld [vmem:[%s2 + $0x20] sm:$0xff]
  %v491 = vld [vmem:[%s2 + $0x28] sm:$0xff]
  %v492 = vld [vmem:[%s2 + $0x30] sm:$0xff]
  %v493 = vld [vmem:[%s2 + $0x38] sm:$0xff]
  %v494 = vld [vmem:[%s2 + $0x40] sm:$0xff]
  %v495 = vld [vmem:[%s2 + $0x48] sm:$0xff]
  %v496 = vld [vmem:[%s2 + $0x50] sm:$0xff]
  %v497 = vld [vmem:[%s2 + $0x58] sm:$0xff]
  %v498 = vld [vmem:[%s2 + $0x60] sm:$0xff]
  %v499 = vld [vmem:[%s2 + $0x68] sm:$0xff]
  %v500 = vld [vmem:[%s2 + $0x70] sm:$0xff]
  %v501 = vld [vmem:[%s2 + $0x78] sm:$0xff]
  %v503 = vsel %vm56, %v472, 0
  %v506 = vsel %vm56, %v473, 0
  %v509 = vsel %vm56, %v474, 0
  %v512 = vsel %vm56, %v475, 0
  %v515 = vsel %vm56, %v476, 0
  %v518 = vsel %vm56, %v477, 0
  %v521 = vsel %vm56, %v478, 0
  %v524 = vsel %vm56, %v479, 0
  %526 = vmatprep.subr.bf16.mxu0 0
  %527 = vmatpush1.bf16.msra.mxu0 0
  %528 = vmatprep.subr.bf16.mxu0 0
  %529 = vmatpush1.bf16.msra.mxu0 0
  %530 = vmatprep.subr.bf16.mxu0 0
  %531 = vmatpush1.bf16.msra.mxu0 0
  %532 = vmatprep.subr.bf16.mxu0 0
  %533 = vmatpush1.bf16.msra.mxu0 0
  %534 = vmatprep.subr.bf16.mxu0 0
  %535 = vmatpush1.bf16.msra.mxu0 0
  %536 = vmatprep.subr.bf16.mxu0 0
  %537 = vmatpush1.bf16.msra.mxu0 0
  %538 = vmatprep.subr.bf16.mxu0 0
  %539 = vmatpush1.bf16.msra.mxu0 %v485
  %540 = vmatprep.subr.bf16.mxu0 0
  %541 = vmatpush1.bf16.msra.mxu0 %v484
  %542 = vmatprep.subr.bf16.mxu0 0
  %543 = vmatpush2.bf16.msra.mxu0 0
  %544 = vmatprep.subr.bf16.mxu0 0
  %545 = vmatpush2.bf16.msra.mxu0 0
  %546 = vmatprep.subr.bf16.mxu0 0
  %547 = vmatpush2.bf16.msra.mxu0 0
  %548 = vmatprep.subr.bf16.mxu0 0
  %549 = vmatpush2.bf16.msra.mxu0 0
  %550 = vmatprep.subr.bf16.mxu0 0
  %551 = vmatpush2.bf16.msra.mxu0 0
  %552 = vmatprep.subr.bf16.mxu0 0
  %553 = vmatpush2.bf16.msra.mxu0 0
  %554 = vmatprep.subr.bf16.mxu0 0
  %555 = vmatpush2.bf16.msra.mxu0 0
  %556 = vmatprep.subr.bf16.mxu0 0
  %557 = vmatpush2.bf16.msra.mxu0 0
  %558 = vmatprep.mubr.bf16.mxu0 0
  %559 = vmatmul.mubr.bf16.gmra.mxu0 %v503
  %v560 = vpop.f32.mrf.mxu0
  %v561 = vadd.f32 %v486, %v560
  %v562 = vpop.f32.mrf.mxu0
  %v563 = vpop.f32.mrf.mxu0
  %v564 = vadd.f32 %v487, %v563
  %v565 = vpop.f32.mrf.mxu0
  %566 = vmatprep.mubr.bf16.mxu0 0
  %567 = vmatmul.mubr.bf16.gmra.mxu0 %v506
  %v568 = vpop.f32.mrf.mxu0
  %v569 = vadd.f32 %v488, %v568
  %v570 = vpop.f32.mrf.mxu0
  %v571 = vpop.f32.mrf.mxu0
  %v572 = vadd.f32 %v489, %v571
  %v573 = vpop.f32.mrf.mxu0
  %574 = vmatprep.mubr.bf16.mxu0 0
  %575 = vmatmul.mubr.bf16.gmra.mxu0 %v509
  %v576 = vpop.f32.mrf.mxu0
  %v577 = vadd.f32 %v490, %v576
  %v578 = vpop.f32.mrf.mxu0
  %v579 = vpop.f32.mrf.mxu0
  %v580 = vadd.f32 %v491, %v579
  %v581 = vpop.f32.mrf.mxu0
  %582 = vmatprep.mubr.bf16.mxu0 0
  %583 = vmatmul.mubr.bf16.gmra.mxu0 %v512
  %v584 = vpop.f32.mrf.mxu0
  %v585 = vadd.f32 %v492, %v584
  %v586 = vpop.f32.mrf.mxu0
  %v587 = vpop.f32.mrf.mxu0
  %v588 = vadd.f32 %v493, %v587
  %v589 = vpop.f32.mrf.mxu0
  %590 = vmatprep.mubr.bf16.mxu0 0
  %591 = vmatmul.mubr.bf16.gmra.mxu0 %v515
  %v592 = vpop.f32.mrf.mxu0
  %v593 = vadd.f32 %v494, %v592
  %v594 = vpop.f32.mrf.mxu0
  %v595 = vpop.f32.mrf.mxu0
  %v596 = vadd.f32 %v495, %v595
  %v597 = vpop.f32.mrf.mxu0
  %598 = vmatprep.mubr.bf16.mxu0 0
  %599 = vmatmul.mubr.bf16.gmra.mxu0 %v518
  %v600 = vpop.f32.mrf.mxu0
  %v601 = vadd.f32 %v496, %v600
  %v602 = vpop.f32.mrf.mxu0
  %v603 = vpop.f32.mrf.mxu0
  %v604 = vadd.f32 %v497, %v603
  %v605 = vpop.f32.mrf.mxu0
  %606 = vmatprep.mubr.bf16.mxu0 0
  %607 = vmatmul.mubr.bf16.gmra.mxu0 %v521
  %v608 = vpop.f32.mrf.mxu0
  %v609 = vadd.f32 %v498, %v608
  %v610 = vpop.f32.mrf.mxu0
  %v611 = vpop.f32.mrf.mxu0
  %v612 = vadd.f32 %v499, %v611
  %v613 = vpop.f32.mrf.mxu0
  %614 = vmatprep.mubr.bf16.mxu0 0
  %615 = vmatmul.mubr.bf16.gmra.mxu0 %v524
  %v616 = vpop.f32.mrf.mxu0
  %v617 = vadd.f32 %v500, %v616
  %v618 = vpop.f32.mrf.mxu0
  %v619 = vpop.f32.mrf.mxu0
  %v620 = vadd.f32 %v501, %v619
  %v621 = vpop.f32.mrf.mxu0
  %622 = vdwg.mxu0
  %vm623 = vcmask 130048
  %624 = vst.msk [vmem:[%s6] sm:$0xff] %vm623, %v561
  %625 = vst.msk [vmem:[%s6 + $0x8] sm:$0xff] %vm623, %v564
  %626 = vst.msk [vmem:[%s6 + $0x10] sm:$0xff] %vm623, %v569
  %627 = vst.msk [vmem:[%s6 + $0x18] sm:$0xff] %vm623, %v572
  %628 = vst.msk [vmem:[%s6 + $0x20] sm:$0xff] %vm623, %v577
  %629 = vst.msk [vmem:[%s6 + $0x28] sm:$0xff] %vm623, %v580
  %630 = vst.msk [vmem:[%s6 + $0x30] sm:$0xff] %vm623, %v585
  %631 = vst.msk [vmem:[%s6 + $0x38] sm:$0xff] %vm623, %v588
  %632 = vst.msk [vmem:[%s6 + $0x40] sm:$0xff] %vm623, %v593
  %633 = vst.msk [vmem:[%s6 + $0x48] sm:$0xff] %vm623, %v596
  %634 = vst.msk [vmem:[%s6 + $0x50] sm:$0xff] %vm623, %v601
  %635 = vst.msk [vmem:[%s6 + $0x58] sm:$0xff] %vm623, %v604
  %636 = vst.msk [vmem:[%s6 + $0x60] sm:$0xff] %vm623, %v609
  %637 = vst.msk [vmem:[%s6 + $0x68] sm:$0xff] %vm623, %v612
  %638 = vst.msk [vmem:[%s6 + $0x70] sm:$0xff] %vm623, %v617
  %639 = vst.msk [vmem:[%s6 + $0x78] sm:$0xff] %vm623, %v620
  // Predicated region
  $region26: #{vss_convg_forward.12} parent=0 // pred_check
    _
  $region27: #{vss_convg_forward.12} parent=0 // pred_check_branch
    %641 = sbr.rel (0) target = $region29
  $region28: #{vss_convg_forward.12} parent=0 // pred_region
    _
  $region29: #{vss_convg_forward.12} parent=0 // pred_fallthru
    _
  // Predicated region
  $region30: #{vss_convg_forward.12} parent=0 // pred_check
    _
  $region31: #{vss_convg_forward.12} parent=0 // pred_check_branch
    %643 = sbr.rel (0) target = $region33
  $region32: #{vss_convg_forward.12} parent=0 // pred_region
    _
  $region33: #{vss_convg_forward.12} parent=0 // pred_fallthru
    _

// kernel: vss_convg_forward.11
$region0: #{vss_convg_forward.11}
  #allocation0 [shape = 'u32[]', space=smem, size = 0x4, offset = 0x4, fixed_abs, tag = 'smem constant byte address 0x4 - core index']
  #allocation1 [shape = 'u32[144,128]{1,0:T(1,128)}', space=vmem, size = 0x12000, scoped, tag = 'internal scratch']
  #allocation2 [shape = 'f32[64,32]{1,0:T(8,128)}', space=vmem, size = 0x8000, scoped, tag = 'scratch operand']
  %s0 = inlined_call_operand.vmem [shape: bf16[2,2,64,32], index: 0, kind: input, shape index: {}]
  %s1 = inlined_call_operand.vmem [shape: bf16[2,2,64,128], index: 1, kind: input, shape index: {}]
  %s2 = inlined_call_operand.vmem [shape: f32[2,2,16,32], index: 2, kind: input, shape index: {}]
  %s3 = inlined_call_operand.vmem [shape: f32[2,2,1,32], index: 3, kind: input, shape index: {}]
  %s4 = inlined_call_operand.vmem [shape: f32[2,2,1,32], index: 4, kind: input, shape index: {}]
  %s5 = inlined_call_operand.vmem [shape: bf16[2,2,64,32], index: 5, kind: output, shape index: {}]
  %s6 = sld [smem:[#allocation0]]
  $region67: #{vss_convg_forward.11} parent=0
    _
  %s8 = ssub.s32 1, %s6
  %s9 = scalar_select 0, %s8, %s6
  loop: start=0, step=1, limit=6
  $region2: #{vss_convg_forward.11} parent=0 // loop_pre_header
    _
  $region3: #{vss_convg_forward.11} parent=0 // loop_header
    %s11 = sphi 0, %s15
    %p12 = scmp.ge.s32.totalorder %s11, 6
    %s18 = sphi 0, %s30
    %s19 = sphi 0, %s26
    %s20 = sphi 0, %s18
    %s21 = sphi 0, %s19
    %s22 = sphi 0, %s20
    %s23 = sphi 0, %s21
    %s35 = sphi 0, %s37
    %s38 = sphi 0, %s35
    %s39 = sphi 0, %s38
    %s55 = sphi 0, %s39
    %s63 = sphi 0, %s65
    %s66 = sphi 0, %s63
    %s67 = sphi 0, %s66
    %s83 = sphi 0, %s67
    %s89 = sphi 0, %s91
    %s92 = sphi 0, %s89
    %s93 = sphi 0, %s92
    %s109 = sphi 0, %s93
    %s115 = sphi 0, %s117
    %s118 = sphi 0, %s115
    %s119 = sphi 0, %s118
    %s135 = sphi 0, %s119
    %s141 = sphi 0, %s143
    %s144 = sphi 0, %s141
    %s145 = sphi 0, %s144
    %s161 = sphi 0, %s145
    %s169 = sphi 0, %s171
    %s172 = sphi 0, %s169
    %s173 = sphi 0, %s172
    %s189 = sphi 0, %s173
  $region4: #{vss_convg_forward.11} parent=0 // loop_header_branch
    %14 = sbr.rel (%p12) target = $region8
  $region5: #{vss_convg_forward.11} parent=0 // loop_body
    %s16 = ssub.s32 %s11, 1
    %s17 = ssub.s32 %s11, 2
    %s24 = sadd.s32 1, %s19
    %p25 = scmp.ge.s32.totalorder %s24, 2
    %s26 = scalar_select %p25, 0, %s24
    %s27 = sadd.s32 1, %s18
    %s28 = scalar_select %p25, %s27, %s18
    %p29 = scmp.ge.s32.totalorder %s28, 2
    %s30 = scalar_select %p29, 0, %s28
    %s31 = ssub.s32 %s19, %s26
    %s32 = ssub.s32 %s18, %s30
    %s33 = sor.u32 %s31, %s32
    %p34 = scmp.eq.s32.totalorder %s33, 0
    %s36 = sadd.s32 %s35, 1
    %s37 = scalar_select %p34, %s35, %s36
    %p40 = pneg %p34
    %p41 = scmp.eq.s32.totalorder %s11, 3
    %p42 = por %p40, %p41
    %p43 = scmp.ne.s32.totalorder %s35, %s38
    %p44 = scmp.eq.s32.totalorder %s11, 0
    %p45 = por %p43, %p44
    %p46 = scmp.ne.s32.totalorder %s35, %s38
    %p47 = scmp.eq.s32.totalorder %s16, 3
    %p48 = por %p46, %p47
    %p49 = scmp.ne.s32.totalorder %s38, %s39
    %p50 = scmp.eq.s32.totalorder %s16, 0
    %p51 = por %p49, %p50
    %p52 = scmp.ne.s32.totalorder %s38, %s39
    %p53 = scmp.eq.s32.totalorder %s17, 3
    %p54 = por %p52, %p53
    %p56 = scmp.ne.s32.totalorder %s39, %s55
    %p57 = scmp.eq.s32.totalorder %s17, 0
    %p58 = por %p56, %p57
    %s59 = ssub.s32 %s19, %s26
    %s60 = ssub.s32 %s18, %s30
    %s61 = sor.u32 %s59, %s60
    %p62 = scmp.eq.s32.totalorder %s61, 0
    %s64 = sadd.s32 %s63, 1
    %s65 = scalar_select %p62, %s63, %s64
    %p68 = pneg %p62
    %p69 = scmp.eq.s32.totalorder %s11, 3
    %p70 = por %p68, %p69
    %p71 = scmp.ne.s32.totalorder %s63, %s66
    %p72 = scmp.eq.s32.totalorder %s11, 0
    %p73 = por %p71, %p72
    %p74 = scmp.ne.s32.totalorder %s63, %s66
    %p75 = scmp.eq.s32.totalorder %s16, 3
    %p76 = por %p74, %p75
    %p77 = scmp.ne.s32.totalorder %s66, %s67
    %p78 = scmp.eq.s32.totalorder %s16, 0
    %p79 = por %p77, %p78
    %p80 = scmp.ne.s32.totalorder %s66, %s67
    %p81 = scmp.eq.s32.totalorder %s17, 3
    %p82 = por %p80, %p81
    %p84 = scmp.ne.s32.totalorder %s67, %s83
    %p85 = scmp.eq.s32.totalorder %s17, 0
    %p86 = por %p84, %p85
    %s87 = ssub.s32 %s19, %s26
    %p88 = scmp.eq.s32.totalorder %s87, 0
    %s90 = sadd.s32 %s89, 1
    %s91 = scalar_select %p88, %s89, %s90
    %p94 = pneg %p88
    %p95 = scmp.eq.s32.totalorder %s11, 3
    %p96 = por %p94, %p95
    %p97 = scmp.ne.s32.totalorder %s89, %s92
    %p98 = scmp.eq.s32.totalorder %s11, 0
    %p99 = por %p97, %p98
    %p100 = scmp.ne.s32.totalorder %s89, %s92
    %p101 = scmp.eq.s32.totalorder %s16, 3
    %p102 = por %p100, %p101
    %p103 = scmp.ne.s32.totalorder %s92, %s93
    %p104 = scmp.eq.s32.totalorder %s16, 0
    %p105 = por %p103, %p104
    %p106 = scmp.ne.s32.totalorder %s92, %s93
    %p107 = scmp.eq.s32.totalorder %s17, 3
    %p108 = por %p106, %p107
    %p110 = scmp.ne.s32.totalorder %s93, %s109
    %p111 = scmp.eq.s32.totalorder %s17, 0
    %p112 = por %p110, %p111
    %s113 = ssub.s32 %s19, %s26
    %p114 = scmp.eq.s32.totalorder %s113, 0
    %s116 = sadd.s32 %s115, 1
    %s117 = scalar_select %p114, %s115, %s116
    %p120 = pneg %p114
    %p121 = scmp.eq.s32.totalorder %s11, 3
    %p122 = por %p120, %p121
    %p123 = scmp.ne.s32.totalorder %s115, %s118
    %p124 = scmp.eq.s32.totalorder %s11, 0
    %p125 = por %p123, %p124
    %p126 = scmp.ne.s32.totalorder %s115, %s118
    %p127 = scmp.eq.s32.totalorder %s16, 3
    %p128 = por %p126, %p127
    %p129 = scmp.ne.s32.totalorder %s118, %s119
    %p130 = scmp.eq.s32.totalorder %s16, 0
    %p131 = por %p129, %p130
    %p132 = scmp.ne.s32.totalorder %s118, %s119
    %p133 = scmp.eq.s32.totalorder %s17, 3
    %p134 = por %p132, %p133
    %p136 = scmp.ne.s32.totalorder %s119, %s135
    %p137 = scmp.eq.s32.totalorder %s17, 0
    %p138 = por %p136, %p137
    %s139 = ssub.s32 %s19, %s26
    %p140 = scmp.eq.s32.totalorder %s139, 0
    %s142 = sadd.s32 %s141, 1
    %s143 = scalar_select %p140, %s141, %s142
    %p146 = pneg %p140
    %p147 = scmp.eq.s32.totalorder %s11, 3
    %p148 = por %p146, %p147
    %p149 = scmp.ne.s32.totalorder %s141, %s144
    %p150 = scmp.eq.s32.totalorder %s11, 0
    %p151 = por %p149, %p150
    %p152 = scmp.ne.s32.totalorder %s141, %s144
    %p153 = scmp.eq.s32.totalorder %s16, 3
    %p154 = por %p152, %p153
    %p155 = scmp.ne.s32.totalorder %s144, %s145
    %p156 = scmp.eq.s32.totalorder %s16, 0
    %p157 = por %p155, %p156
    %p158 = scmp.ne.s32.totalorder %s144, %s145
    %p159 = scmp.eq.s32.totalorder %s17, 3
    %p160 = por %p158, %p159
    %p162 = scmp.ne.s32.totalorder %s145, %s161
    %p163 = scmp.eq.s32.totalorder %s17, 0
    %p164 = por %p162, %p163
    %s165 = ssub.s32 %s19, %s26
    %s166 = ssub.s32 %s18, %s30
    %s167 = sor.u32 %s165, %s166
    %p168 = scmp.eq.s32.totalorder %s167, 0
    %s170 = sadd.s32 %s169, 1
    %s171 = scalar_select %p168, %s169, %s170
    %p174 = pneg %p168
    %p175 = scmp.eq.s32.totalorder %s11, 3
    %p176 = por %p174, %p175
    %p177 = scmp.ne.s32.totalorder %s169, %s172
    %p178 = scmp.eq.s32.totalorder %s11, 0
    %p179 = por %p177, %p178
    %p180 = scmp.ne.s32.totalorder %s169, %s172
    %p181 = scmp.eq.s32.totalorder %s16, 3
    %p182 = por %p180, %p181
    %p183 = scmp.ne.s32.totalorder %s172, %s173
    %p184 = scmp.eq.s32.totalorder %s16, 0
    %p185 = por %p183, %p184
    %p186 = scmp.ne.s32.totalorder %s172, %s173
    %p187 = scmp.eq.s32.totalorder %s17, 3
    %p188 = por %p186, %p187
    %p190 = scmp.ne.s32.totalorder %s173, %s189
    %p191 = scmp.eq.s32.totalorder %s17, 0
    %p192 = por %p190, %p191
    %p193 = scmp.le.s32.totalorder 1, %s11
    %p194 = scmp.lt.s32.totalorder %s11, 5
    %p195 = pnand %p193, %p194
    %p196 = pneg %p195
    // Predicated region
    $region9: #{vss_convg_forward.11} parent=5 // pred_check
      _
    $region10: #{vss_convg_forward.11} parent=5 // pred_check_branch
      %198 = sbr.rel (%p195) target = $region12
    $region11: #{vss_convg_forward.11} parent=5 // pred_region
      %s199 = ssub.s32 %s11, 1
    $region12: #{vss_convg_forward.11} parent=5 // pred_fallthru
      _
    %p200 = scmp.lt.s32.totalorder %s11, 4
    // Predicated region
    $region13: #{vss_convg_forward.11} parent=5 // pred_check
      %p201 = pneg %p200
    $region14: #{vss_convg_forward.11} parent=5 // pred_check_branch
      %203 = sbr.rel (%p201) target = $region16
    $region15: #{vss_convg_forward.11} parent=5 // pred_region
      // Predicated region
      $region17: #{vss_convg_forward.11} parent=15 // pred_check
        %p204 = pneg %p45
      $region18: #{vss_convg_forward.11} parent=15 // pred_check_branch
        %206 = sbr.rel (%p204) target = $region20
      $region19: #{vss_convg_forward.11} parent=15 // pred_region
        %p207 = scmp.lt.s32.totalorder %s19, 1
        %s208 = scalar_select %p207, %s19, 1
        %p209 = scmp.lt.s32.totalorder %s18, 1
        %s210 = scalar_select %p209, %s18, 1
        %s211 = smul.addr %s210, 8
        %s212 = smul.addr %s208, 16
        %s213 = sadd.s32 %s211, %s212
        %s214 = smul.addr %s213, 4
        %s215 = scalar_lea.vmem %s0, %s214
      $region20: #{vss_convg_forward.11} parent=15 // pred_fallthru
        _
      // Predicated region
      $region21: #{vss_convg_forward.11} parent=15 // pred_check
        %p216 = pneg %p73
      $region22: #{vss_convg_forward.11} parent=15 // pred_check_branch
        %218 = sbr.rel (%p216) target = $region24
      $region23: #{vss_convg_forward.11} parent=15 // pred_region
        %p219 = scmp.lt.s32.totalorder %s19, 1
        %s220 = scalar_select %p219, %s19, 1
        %p221 = scmp.lt.s32.totalorder %s18, 1
        %s222 = scalar_select %p221, %s18, 1
        %s223 = smul.addr %s222, 8
        %s224 = smul.addr %s220, 16
        %s225 = sadd.s32 %s223, %s224
        %s226 = smul.addr %s225, 4
        %s227 = scalar_lea.vmem %s1, %s226
      $region24: #{vss_convg_forward.11} parent=15 // pred_fallthru
        _
      // Predicated region
      $region25: #{vss_convg_forward.11} parent=15 // pred_check
        %p228 = pneg %p99
      $region26: #{vss_convg_forward.11} parent=15 // pred_check_branch
        %230 = sbr.rel (%p228) target = $region28
      $region27: #{vss_convg_forward.11} parent=15 // pred_region
        %p231 = scmp.lt.s32.totalorder %s19, 1
        %s232 = scalar_select %p231, %s19, 1
        %s233 = smul.addr %s232, 4
        %s234 = smul.addr %s233, 8
        %s235 = scalar_lea.vmem %s2, %s234
      $region28: #{vss_convg_forward.11} parent=15 // pred_fallthru
        _
      // Predicated region
      $region29: #{vss_convg_forward.11} parent=15 // pred_check
        %p236 = pneg %p125
      $region30: #{vss_convg_forward.11} parent=15 // pred_check_branch
        %238 = sbr.rel (%p236) target = $region32
      $region31: #{vss_convg_forward.11} parent=15 // pred_region
        %p239 = scmp.lt.s32.totalorder %s19, 1
        %s240 = scalar_select %p239, %s19, 1
        %s241 = smul.addr %s240, 2
        %s242 = scalar_lea.vmem %s3, %s241
      $region32: #{vss_convg_forward.11} parent=15 // pred_fallthru
        _
      // Predicated region
      $region33: #{vss_convg_forward.11} parent=15 // pred_check
        %p243 = pneg %p151
      $region34: #{vss_convg_forward.11} parent=15 // pred_check_branch
        %245 = sbr.rel (%p243) target = $region36
      $region35: #{vss_convg_forward.11} parent=15 // pred_region
        %p246 = scmp.lt.s32.totalorder %s19, 1
        %s247 = scalar_select %p246, %s19, 1
        %s248 = smul.addr %s247, 2
        %s249 = scalar_lea.vmem %s4, %s248
      $region36: #{vss_convg_forward.11} parent=15 // pred_fallthru
        _
    $region16: #{vss_convg_forward.11} parent=5 // pred_fallthru
      _
    %p250 = scmp.le.s32.totalorder 1, %s11
    %p251 = scmp.lt.s32.totalorder %s11, 5
    %p252 = pnand %p250, %p251
    %p253 = pneg %p252
    // Predicated region
    $region37: #{vss_convg_forward.11} parent=5 // pred_check
      _
    $region38: #{vss_convg_forward.11} parent=5 // pred_check_branch
      %255 = sbr.rel (%p252) target = $region40
    $region39: #{vss_convg_forward.11} parent=5 // pred_region
      %s256 = ssub.s32 %s11, 1
      %p257 = scmp.lt.s32.totalorder %s21, 1
      %s258 = scalar_select %p257, %s21, 1
      %p259 = scmp.lt.s32.totalorder %s20, 1
      %s260 = scalar_select %p259, %s20, 1
      %s261 = smul.addr %s260, 8
      %s262 = smul.addr %s258, 16
      %s263 = sadd.s32 %s261, %s262
      %s264 = smul.addr %s263, 4
      %s265 = scalar_lea.vmem %s0, %s264
      %p266 = pneg %p51
      %p267 = pneg %p48
      %p268 = scmp.lt.s32.totalorder %s21, 1
      %s269 = scalar_select %p268, %s21, 1
      %p270 = scmp.lt.s32.totalorder %s20, 1
      %s271 = scalar_select %p270, %s20, 1
      %s272 = smul.addr %s271, 8
      %s273 = smul.addr %s269, 16
      %s274 = sadd.s32 %s272, %s273
      %s275 = smul.addr %s274, 4
      %s276 = scalar_lea.vmem %s1, %s275
      %p277 = pneg %p79
      %p278 = pneg %p76
      %p279 = scmp.lt.s32.totalorder %s21, 1
      %s280 = scalar_select %p279, %s21, 1
      %s281 = smul.addr %s280, 4
      %s282 = smul.addr %s281, 8
      %s283 = scalar_lea.vmem %s2, %s282
      %p284 = pneg %p105
      %p285 = pneg %p102
      %p286 = scmp.lt.s32.totalorder %s21, 1
      %s287 = scalar_select %p286, %s21, 1
      %s288 = smul.addr %s287, 2
      %s289 = scalar_lea.vmem %s3, %s288
      %p290 = pneg %p131
      %p291 = pneg %p128
      %p292 = scmp.lt.s32.totalorder %s21, 1
      %s293 = scalar_select %p292, %s21, 1
      %s294 = smul.addr %s293, 2
      %s295 = scalar_lea.vmem %s4, %s294
      %p296 = pneg %p157
      %p297 = pneg %p154
      %p298 = pneg %p185
      %p299 = pneg %p182
      %p300 = scmp.lt.s32.totalorder %s21, 1
      %s301 = scalar_select %p300, %s21, 1
      %p302 = scmp.lt.s32.totalorder %s20, 1
      %s303 = scalar_select %p302, %s20, 1
      %s304 = smul.addr %s303, 8
      %s305 = smul.addr %s301, 16
      %s306 = sadd.s32 %s304, %s305
      %s307 = smul.addr %s306, 4
      %s308 = scalar_lea.vmem %s5, %s307
      %p309 = scmp.lt.s32.totalorder %s21, 1
      %s310 = scalar_select %p309, %s21, 1
      %p311 = scmp.lt.s32.totalorder %s20, 1
      %s312 = scalar_select %p311, %s20, 1
      %s313 = smul.addr %s312, 8
      %s314 = smul.addr %s310, 16
      %s315 = sadd.s32 %s313, %s314
      %s316 = smul.addr %s315, 4
      %s317 = scalar_lea.vmem %s0, %s316
      %p318 = scmp.lt.s32.totalorder %s21, 1
      %s319 = scalar_select %p318, %s21, 1
      %p320 = scmp.lt.s32.totalorder %s20, 1
      %s321 = scalar_select %p320, %s20, 1
      %s322 = smul.addr %s321, 8
      %s323 = smul.addr %s319, 16
      %s324 = sadd.s32 %s322, %s323
      %s325 = smul.addr %s324, 4
      %s326 = scalar_lea.vmem %s1, %s325
      %p327 = scmp.lt.s32.totalorder %s21, 1
      %s328 = scalar_select %p327, %s21, 1
      %s329 = smul.addr %s328, 4
      %s330 = smul.addr %s329, 8
      %s331 = scalar_lea.vmem %s2, %s330
      %p332 = scmp.lt.s32.totalorder %s21, 1
      %s333 = scalar_select %p332, %s21, 1
      %s334 = smul.addr %s333, 2
      %s335 = scalar_lea.vmem %s3, %s334
      %p336 = scmp.lt.s32.totalorder %s21, 1
      %s337 = scalar_select %p336, %s21, 1
      %s338 = smul.addr %s337, 2
      %s339 = scalar_lea.vmem %s4, %s338
      %p340 = scmp.lt.s32.totalorder %s21, 1
      %s341 = scalar_select %p340, %s21, 1
      %p342 = scmp.lt.s32.totalorder %s20, 1
      %s343 = scalar_select %p342, %s20, 1
      %s344 = smul.addr %s343, 8
      %s345 = smul.addr %s341, 16
      %s346 = sadd.s32 %s344, %s345
      %s347 = smul.addr %s346, 4
      %s348 = scalar_lea.vmem %s5, %s347
      %v349 = vld [vmem:[%s331] sm:$0xff]
      %v350 = vld [vmem:[%s331 + $0x8] sm:$0xff]
      %v351 = vld [vmem:[%s335] sm:$0x1]
      %v352 = vld [vmem:[%s339] sm:$0x1]
      loop: start=0, step=1, limit=8
      $region41: #{vss_convg_forward.11} parent=39 // loop_pre_header
        _
      $region42: #{vss_convg_forward.11} parent=39 // loop_header
        %s354 = sphi 0, %s358
        %p355 = scmp.ge.s32.totalorder %s354, 8
        %v359 = vphi 0.0, %v900
        %v360 = vphi 0.0, %v901
      $region43: #{vss_convg_forward.11} parent=39 // loop_header_branch
        %357 = sbr.rel (%p355) target = $region47
      $region44: #{vss_convg_forward.11} parent=39 // loop_body
        %s361 = smul.u32 %s354, 8
        %s362 = sshra.s32 %s361, 3
        %s363 = sand.u32 %s361, 7
        %s364 = smul.addr %s362, 4
        %s365 = scalar_lea.vmem %s317, %s364
        %v366 = vld [vmem:[%s365] sm:$0xf]
        %v367 = vunpack.c.l.bf16 %v366
        %s368 = smul.addr %s362, 4
        %s369 = scalar_lea.vmem %s326, %s368
        %v370 = vld [vmem:[%s369] sm:$0xf]
        %v371 = vunpack.c.l.bf16 %v370
        %v373 = vlaneseq
        %v374 = vshrl.u32 %v373, 7
        %v375 = vsub.s32 0, %v374
        %v376 = vrot.slane %v352, %v375
        %v378 = vadd.f32 %v371, %v376
        %vm379 = vcmp.gt.f32.partialorder %v378, 20.0
        %v380 = vmin.f32 %v378, 20.0
        %v381 = vmul.f32 %v380, 1.442695
        %v382 = vpow.pop %v381
        %v383 = vadd.f32 %v382, 1.0
        %v384 = vlog2.pop %v383
        %v385 = vmul.f32 %v384, 0.6931472
        %v386 = vsel %vm379, %v378, %v385
        %v387 = vmul.f32 %v386, %v367
        %v389 = vcombine.high %v386, %v386
        %v391 = vunpack.c.l.s4 1966171168
        %v392 = vunpack.c.0.s8 %v391
        %v393 = vlaneseq
        %v394 = vshrl.u32 %v393, 7
        %v395 = vsub.s32 %v392, %v394
        %v396 = vrot.slane %v386, %v395
        %v398 = vunpack.c.l.s4 1966171168
        %v399 = vunpack.c.0.s8 %v398
        %v400 = vlaneseq
        %v401 = vshrl.u32 %v400, 7
        %v402 = vsub.s32 %v399, %v401
        %v403 = vrot.slane %v389, %v402
        %v404 = vcombine.high %v396, %v396
        %v405 = vcombine.high %v403, %v403
        %v407 = vunpack.c.l.s4 1966171168
        %v408 = vunpack.c.0.s8 %v407
        %v409 = vlaneseq
        %v410 = vshrl.u32 %v409, 7
        %v411 = vsub.s32 %v408, %v410
        %v412 = vrot.slane %v396, %v411
        %v414 = vunpack.c.l.s4 1966171168
        %v415 = vunpack.c.0.s8 %v414
        %v416 = vlaneseq
        %v417 = vshrl.u32 %v416, 7
        %v418 = vsub.s32 %v415, %v417
        %v419 = vrot.slane %v403, %v418
        %v421 = vunpack.c.l.s4 1966171168
        %v422 = vunpack.c.0.s8 %v421
        %v423 = vlaneseq
        %v424 = vshrl.u32 %v423, 7
        %v425 = vsub.s32 %v422, %v424
        %v426 = vrot.slane %v404, %v425
        %v428 = vunpack.c.l.s4 1966171168
        %v429 = vunpack.c.0.s8 %v428
        %v430 = vlaneseq
        %v431 = vshrl.u32 %v430, 7
        %v432 = vsub.s32 %v429, %v431
        %v433 = vrot.slane %v405, %v432
        %v434 = vcombine.high %v412, %v412
        %v435 = vcombine.high %v419, %v419
        %v436 = vcombine.high %v426, %v426
        %v437 = vcombine.high %v433, %v433
        %v438 = vlaneseq
        %v439 = vshrl.u32 %v438, 7
        %v440 = vsub.s32 0, %v439
        %v441 = vrot.slane %v412, %v440
        %v442 = vlaneseq
        %v443 = vshrl.u32 %v442, 7
        %v444 = vsub.s32 0, %v443
        %v445 = vrot.slane %v426, %v444
        %v446 = vlaneseq
        %v447 = vshrl.u32 %v446, 7
        %v448 = vsub.s32 0, %v447
        %v449 = vrot.slane %v434, %v448
        %v450 = vlaneseq
        %v451 = vshrl.u32 %v450, 7
        %v452 = vsub.s32 0, %v451
        %v453 = vrot.slane %v436, %v452
        %v454 = vlaneseq
        %v455 = vshrl.u32 %v454, 7
        %v456 = vsub.s32 0, %v455
        %v457 = vrot.slane %v419, %v456
        %v458 = vlaneseq
        %v459 = vshrl.u32 %v458, 7
        %v460 = vsub.s32 0, %v459
        %v461 = vrot.slane %v433, %v460
        %v462 = vlaneseq
        %v463 = vshrl.u32 %v462, 7
        %v464 = vsub.s32 0, %v463
        %v465 = vrot.slane %v435, %v464
        %v466 = vlaneseq
        %v467 = vshrl.u32 %v466, 7
        %v468 = vsub.s32 0, %v467
        %v469 = vrot.slane %v437, %v468
        %v478 = vmul.f32 %v441, %v349
        %v479 = vmul.f32 %v441, %v350
        %v480 = vmul.f32 %v445, %v349
        %v481 = vmul.f32 %v445, %v350
        %v482 = vmul.f32 %v449, %v349
        %v483 = vmul.f32 %v449, %v350
        %v484 = vmul.f32 %v453, %v349
        %v485 = vmul.f32 %v453, %v350
        %v486 = vmul.f32 %v457, %v349
        %v487 = vmul.f32 %v457, %v350
        %v488 = vmul.f32 %v461, %v349
        %v489 = vmul.f32 %v461, %v350
        %v490 = vmul.f32 %v465, %v349
        %v491 = vmul.f32 %v465, %v350
        %v492 = vmul.f32 %v469, %v349
        %v493 = vmul.f32 %v469, %v350
        %v494 = vmul.f32 %v478, 1.442695
        %v495 = vpow.pop %v494
        %v496 = vmul.f32 %v479, 1.442695
        %v497 = vpow.pop %v496
        %v498 = vmul.f32 %v480, 1.442695
        %v499 = vpow.pop %v498
        %v500 = vmul.f32 %v481, 1.442695
        %v501 = vpow.pop %v500
        %v502 = vmul.f32 %v482, 1.442695
        %v503 = vpow.pop %v502
        %v504 = vmul.f32 %v483, 1.442695
        %v505 = vpow.pop %v504
        %v506 = vmul.f32 %v484, 1.442695
        %v507 = vpow.pop %v506
        %v508 = vmul.f32 %v485, 1.442695
        %v509 = vpow.pop %v508
        %v510 = vmul.f32 %v486, 1.442695
        %v511 = vpow.pop %v510
        %v512 = vmul.f32 %v487, 1.442695
        %v513 = vpow.pop %v512
        %v514 = vmul.f32 %v488, 1.442695
        %v515 = vpow.pop %v514
        %v516 = vmul.f32 %v489, 1.442695
        %v517 = vpow.pop %v516
        %v518 = vmul.f32 %v490, 1.442695
        %v519 = vpow.pop %v518
        %v520 = vmul.f32 %v491, 1.442695
        %v521 = vpow.pop %v520
        %v522 = vmul.f32 %v492, 1.442695
        %v523 = vpow.pop %v522
        %v524 = vmul.f32 %v493, 1.442695
        %v525 = vpow.pop %v524
        %v526 = vlaneseq
        %v527 = vshrl.u32 %v526, 7
        %v528 = vsub.s32 0, %v527
        %v529 = vrot.slane %v371, %v528
        %s531 = sor.u32 256, 32
        %532 = vbcast.lane.b32.xlu0 %v529, %s531
        %v533 = vpop.permute.xlu0 %532
        %s535 = sor.u32 256, 40
        %536 = vbcast.lane.b32.xlu0 %v529, %s535
        %v537 = vpop.permute.xlu0 %536
        %v538 = vlaneseq
        %v539 = vshrl.u32 %v538, 7
        %v540 = vsub.s32 1, %v539
        %v541 = vrot.slane %v371, %v540
        %s543 = sor.u32 256, 32
        %544 = vbcast.lane.b32.xlu0 %v541, %s543
        %v545 = vpop.permute.xlu0 %544
        %s547 = sor.u32 256, 40
        %548 = vbcast.lane.b32.xlu0 %v541, %s547
        %v549 = vpop.permute.xlu0 %548
        %v550 = vlaneseq
        %v551 = vshrl.u32 %v550, 7
        %v552 = vsub.s32 2, %v551
        %v553 = vrot.slane %v371, %v552
        %s555 = sor.u32 256, 32
        %556 = vbcast.lane.b32.xlu0 %v553, %s555
        %v557 = vpop.permute.xlu0 %556
        %s559 = sor.u32 256, 40
        %560 = vbcast.lane.b32.xlu0 %v553, %s559
        %v561 = vpop.permute.xlu0 %560
        %v562 = vlaneseq
        %v563 = vshrl.u32 %v562, 7
        %v564 = vsub.s32 3, %v563
        %v565 = vrot.slane %v371, %v564
        %s567 = sor.u32 256, 32
        %568 = vbcast.lane.b32.xlu0 %v565, %s567
        %v569 = vpop.permute.xlu0 %568
        %s571 = sor.u32 256, 40
        %572 = vbcast.lane.b32.xlu0 %v565, %s571
        %v573 = vpop.permute.xlu0 %572
        %v574 = vlaneseq
        %v575 = vshrl.u32 %v574, 7
        %v576 = vsub.s32 4, %v575
        %v577 = vrot.slane %v371, %v576
        %s579 = sor.u32 256, 32
        %580 = vbcast.lane.b32.xlu0 %v577, %s579
        %v581 = vpop.permute.xlu0 %580
        %s583 = sor.u32 256, 40
        %584 = vbcast.lane.b32.xlu0 %v577, %s583
        %v585 = vpop.permute.xlu0 %584
        %v586 = vlaneseq
        %v587 = vshrl.u32 %v586, 7
        %v588 = vsub.s32 5, %v587
        %v589 = vrot.slane %v371, %v588
        %s591 = sor.u32 256, 32
        %592 = vbcast.lane.b32.xlu0 %v589, %s591
        %v593 = vpop.permute.xlu0 %592
        %s595 = sor.u32 256, 40
        %596 = vbcast.lane.b32.xlu0 %v589, %s595
        %v597 = vpop.permute.xlu0 %596
        %v598 = vlaneseq
        %v599 = vshrl.u32 %v598, 7
        %v600 = vsub.s32 6, %v599
        %v601 = vrot.slane %v371, %v600
        %s603 = sor.u32 256, 32
        %604 = vbcast.lane.b32.xlu0 %v601, %s603
        %v605 = vpop.permute.xlu0 %604
        %s607 = sor.u32 256, 40
        %608 = vbcast.lane.b32.xlu0 %v601, %s607
        %v609 = vpop.permute.xlu0 %608
        %v610 = vlaneseq
        %v611 = vshrl.u32 %v610, 7
        %v612 = vsub.s32 7, %v611
        %v613 = vrot.slane %v371, %v612
        %s615 = sor.u32 256, 32
        %616 = vbcast.lane.b32.xlu0 %v613, %s615
        %v617 = vpop.permute.xlu0 %616
        %s619 = sor.u32 256, 40
        %620 = vbcast.lane.b32.xlu0 %v613, %s619
        %v621 = vpop.permute.xlu0 %620
        %v623 = vcombine.high %v387, %v387
        %v625 = vunpack.c.l.s4 1966171168
        %v626 = vunpack.c.0.s8 %v625
        %v627 = vlaneseq
        %v628 = vshrl.u32 %v627, 7
        %v629 = vsub.s32 %v626, %v628
        %v630 = vrot.slane %v387, %v629
        %v632 = vunpack.c.l.s4 1966171168
        %v633 = vunpack.c.0.s8 %v632
        %v634 = vlaneseq
        %v635 = vshrl.u32 %v634, 7
        %v636 = vsub.s32 %v633, %v635
        %v637 = vrot.slane %v623, %v636
        %v638 = vcombine.high %v630, %v630
        %v639 = vcombine.high %v637, %v637
        %v641 = vunpack.c.l.s4 1966171168
        %v642 = vunpack.c.0.s8 %v641
        %v643 = vlaneseq
        %v644 = vshrl.u32 %v643, 7
        %v645 = vsub.s32 %v642, %v644
        %v646 = vrot.slane %v630, %v645
        %v648 = vunpack.c.l.s4 1966171168
        %v649 = vunpack.c.0.s8 %v648
        %v650 = vlaneseq
        %v651 = vshrl.u32 %v650, 7
        %v652 = vsub.s32 %v649, %v651
        %v653 = vrot.slane %v637, %v652
        %v655 = vunpack.c.l.s4 1966171168
        %v656 = vunpack.c.0.s8 %v655
        %v657 = vlaneseq
        %v658 = vshrl.u32 %v657, 7
        %v659 = vsub.s32 %v656, %v658
        %v660 = vrot.slane %v638, %v659
        %v662 = vunpack.c.l.s4 1966171168
        %v663 = vunpack.c.0.s8 %v662
        %v664 = vlaneseq
        %v665 = vshrl.u32 %v664, 7
        %v666 = vsub.s32 %v663, %v665
        %v667 = vrot.slane %v639, %v666
        %v668 = vcombine.high %v646, %v646
        %v669 = vcombine.high %v653, %v653
        %v670 = vcombine.high %v660, %v660
        %v671 = vcombine.high %v667, %v667
        %v672 = vlaneseq
        %v673 = vshrl.u32 %v672, 7
        %v674 = vsub.s32 0, %v673
        %v675 = vrot.slane %v646, %v674
        %v676 = vlaneseq
        %v677 = vshrl.u32 %v676, 7
        %v678 = vsub.s32 0, %v677
        %v679 = vrot.slane %v660, %v678
        %v680 = vlaneseq
        %v681 = vshrl.u32 %v680, 7
        %v682 = vsub.s32 0, %v681
        %v683 = vrot.slane %v668, %v682
        %v684 = vlaneseq
        %v685 = vshrl.u32 %v684, 7
        %v686 = vsub.s32 0, %v685
        %v687 = vrot.slane %v670, %v686
        %v688 = vlaneseq
        %v689 = vshrl.u32 %v688, 7
        %v690 = vsub.s32 0, %v689
        %v691 = vrot.slane %v653, %v690
        %v692 = vlaneseq
        %v693 = vshrl.u32 %v692, 7
        %v694 = vsub.s32 0, %v693
        %v695 = vrot.slane %v667, %v694
        %v696 = vlaneseq
        %v697 = vshrl.u32 %v696, 7
        %v698 = vsub.s32 0, %v697
        %v699 = vrot.slane %v669, %v698
        %v700 = vlaneseq
        %v701 = vshrl.u32 %v700, 7
        %v702 = vsub.s32 0, %v701
        %v703 = vrot.slane %v671, %v702
        %v712 = vmul.f32 %v533, %v675
        %v713 = vmul.f32 %v537, %v675
        %v714 = vmul.f32 %v545, %v679
        %v715 = vmul.f32 %v549, %v679
        %v716 = vmul.f32 %v557, %v683
        %v717 = vmul.f32 %v561, %v683
        %v718 = vmul.f32 %v569, %v687
        %v719 = vmul.f32 %v573, %v687
        %v720 = vmul.f32 %v581, %v691
        %v721 = vmul.f32 %v585, %v691
        %v722 = vmul.f32 %v593, %v695
        %v723 = vmul.f32 %v597, %v695
        %v724 = vmul.f32 %v605, %v699
        %v725 = vmul.f32 %v609, %v699
        %v726 = vmul.f32 %v617, %v703
        %v727 = vmul.f32 %v621, %v703
        %s729 = sor.u32 256, 48
        %730 = vbcast.lane.b32.xlu0 %v529, %s729
        %v731 = vpop.permute.xlu0 %730
        %s733 = sor.u32 256, 56
        %734 = vbcast.lane.b32.xlu0 %v529, %s733
        %v735 = vpop.permute.xlu0 %734
        %s737 = sor.u32 256, 48
        %738 = vbcast.lane.b32.xlu0 %v541, %s737
        %v739 = vpop.permute.xlu0 %738
        %s741 = sor.u32 256, 56
        %742 = vbcast.lane.b32.xlu0 %v541, %s741
        %v743 = vpop.permute.xlu0 %742
        %s745 = sor.u32 256, 48
        %746 = vbcast.lane.b32.xlu0 %v553, %s745
        %v747 = vpop.permute.xlu0 %746
        %s749 = sor.u32 256, 56
        %750 = vbcast.lane.b32.xlu0 %v553, %s749
        %v751 = vpop.permute.xlu0 %750
        %s753 = sor.u32 256, 48
        %754 = vbcast.lane.b32.xlu0 %v565, %s753
        %v755 = vpop.permute.xlu0 %754
        %s757 = sor.u32 256, 56
        %758 = vbcast.lane.b32.xlu0 %v565, %s757
        %v759 = vpop.permute.xlu0 %758
        %s761 = sor.u32 256, 48
        %762 = vbcast.lane.b32.xlu0 %v577, %s761
        %v763 = vpop.permute.xlu0 %762
        %s765 = sor.u32 256, 56
        %766 = vbcast.lane.b32.xlu0 %v577, %s765
        %v767 = vpop.permute.xlu0 %766
        %s769 = sor.u32 256, 48
        %770 = vbcast.lane.b32.xlu0 %v589, %s769
        %v771 = vpop.permute.xlu0 %770
        %s773 = sor.u32 256, 56
        %774 = vbcast.lane.b32.xlu0 %v589, %s773
        %v775 = vpop.permute.xlu0 %774
        %s777 = sor.u32 256, 48
        %778 = vbcast.lane.b32.xlu0 %v601, %s777
        %v779 = vpop.permute.xlu0 %778
        %s781 = sor.u32 256, 56
        %782 = vbcast.lane.b32.xlu0 %v601, %s781
        %v783 = vpop.permute.xlu0 %782
        %s785 = sor.u32 256, 48
        %786 = vbcast.lane.b32.xlu0 %v613, %s785
        %v787 = vpop.permute.xlu0 %786
        %s789 = sor.u32 256, 56
        %790 = vbcast.lane.b32.xlu0 %v613, %s789
        %v791 = vpop.permute.xlu0 %790
        %v792 = vmul.f32 %v495, %v359
        %v793 = vmul.f32 %v497, %v360
        %v794 = vadd.f32 %v792, %v712
        %v795 = vadd.f32 %v793, %v713
        %v796 = vmul.f32 %v794, %v731
        %v797 = vmul.f32 %v795, %v735
        %vm798 = vcmask 261120
        %v799 = vsel %vm798, %v796, 0.0
        %v800 = vsel %vm798, %v797, 0.0
        %v801 = vadd.f32 %v799, %v800
        %v802 = vrot.slane %v801, 4
        %v803 = vadd.f32 %v801, %v802
        %v804 = vrot.slane %v803, 2
        %v805 = vadd.f32 %v803, %v804
        %v806 = vrot.slane %v805, 1
        %v807 = vadd.f32 %v805, %v806
        %v808 = vmul.f32 %v499, %v794
        %v809 = vmul.f32 %v501, %v795
        %v810 = vadd.f32 %v808, %v714
        %v811 = vadd.f32 %v809, %v715
        %v812 = vmul.f32 %v810, %v739
        %v813 = vmul.f32 %v811, %v743
        %v814 = vsel %vm798, %v812, 0.0
        %v815 = vsel %vm798, %v813, 0.0
        %v816 = vadd.f32 %v814, %v815
        %v817 = vrot.slane %v816, 4
        %v818 = vadd.f32 %v816, %v817
        %v819 = vrot.slane %v818, 2
        %v820 = vadd.f32 %v818, %v819
        %v821 = vrot.slane %v820, 1
        %v822 = vadd.f32 %v820, %v821
        %v823 = vmul.f32 %v503, %v810
        %v824 = vmul.f32 %v505, %v811
        %v825 = vadd.f32 %v823, %v716
        %v826 = vadd.f32 %v824, %v717
        %v827 = vmul.f32 %v825, %v747
        %v828 = vmul.f32 %v826, %v751
        %v829 = vsel %vm798, %v827, 0.0
        %v830 = vsel %vm798, %v828, 0.0
        %v831 = vadd.f32 %v829, %v830
        %v832 = vrot.slane %v831, 4
        %v833 = vadd.f32 %v831, %v832
        %v834 = vrot.slane %v833, 2
        %v835 = vadd.f32 %v833, %v834
        %v836 = vrot.slane %v835, 1
        %v837 = vadd.f32 %v835, %v836
        %v838 = vmul.f32 %v507, %v825
        %v839 = vmul.f32 %v509, %v826
        %v840 = vadd.f32 %v838, %v718
        %v841 = vadd.f32 %v839, %v719
        %v842 = vmul.f32 %v840, %v755
        %v843 = vmul.f32 %v841, %v759
        %v844 = vsel %vm798, %v842, 0.0
        %v845 = vsel %vm798, %v843, 0.0
        %v846 = vadd.f32 %v844, %v845
        %v847 = vrot.slane %v846, 4
        %v848 = vadd.f32 %v846, %v847
        %v849 = vrot.slane %v848, 2
        %v850 = vadd.f32 %v848, %v849
        %v851 = vrot.slane %v850, 1
        %v852 = vadd.f32 %v850, %v851
        %v853 = vmul.f32 %v511, %v840
        %v854 = vmul.f32 %v513, %v841
        %v855 = vadd.f32 %v853, %v720
        %v856 = vadd.f32 %v854, %v721
        %v857 = vmul.f32 %v855, %v763
        %v858 = vmul.f32 %v856, %v767
        %v859 = vsel %vm798, %v857, 0.0
        %v860 = vsel %vm798, %v858, 0.0
        %v861 = vadd.f32 %v859, %v860
        %v862 = vrot.slane %v861, 4
        %v863 = vadd.f32 %v861, %v862
        %v864 = vrot.slane %v863, 2
        %v865 = vadd.f32 %v863, %v864
        %v866 = vrot.slane %v865, 1
        %v867 = vadd.f32 %v865, %v866
        %v868 = vmul.f32 %v515, %v855
        %v869 = vmul.f32 %v517, %v856
        %v870 = vadd.f32 %v868, %v722
        %v871 = vadd.f32 %v869, %v723
        %v872 = vmul.f32 %v870, %v771
        %v873 = vmul.f32 %v871, %v775
        %v874 = vsel %vm798, %v872, 0.0
        %v875 = vsel %vm798, %v873, 0.0
        %v876 = vadd.f32 %v874, %v875
        %v877 = vrot.slane %v876, 4
        %v878 = vadd.f32 %v876, %v877
        %v879 = vrot.slane %v878, 2
        %v880 = vadd.f32 %v878, %v879
        %v881 = vrot.slane %v880, 1
        %v882 = vadd.f32 %v880, %v881
        %v883 = vmul.f32 %v519, %v870
        %v884 = vmul.f32 %v521, %v871
        %v885 = vadd.f32 %v883, %v724
        %v886 = vadd.f32 %v884, %v725
        %v887 = vmul.f32 %v885, %v779
        %v888 = vmul.f32 %v886, %v783
        %v889 = vsel %vm798, %v887, 0.0
        %v890 = vsel %vm798, %v888, 0.0
        %v891 = vadd.f32 %v889, %v890
        %v892 = vrot.slane %v891, 4
        %v893 = vadd.f32 %v891, %v892
        %v894 = vrot.slane %v893, 2
        %v895 = vadd.f32 %v893, %v894
        %v896 = vrot.slane %v895, 1
        %v897 = vadd.f32 %v895, %v896
        %v898 = vmul.f32 %v523, %v885
        %v899 = vmul.f32 %v525, %v886
        %v900 = vadd.f32 %v898, %v726
        %v901 = vadd.f32 %v899, %v727
        %v902 = vmul.f32 %v900, %v787
        %v903 = vmul.f32 %v901, %v791
        %v904 = vsel %vm798, %v902, 0.0
        %v905 = vsel %vm798, %v903, 0.0
        %v906 = vadd.f32 %v904, %v905
        %v907 = vrot.slane %v906, 4
        %v908 = vadd.f32 %v906, %v907
        %v909 = vrot.slane %v908, 2
        %v910 = vadd.f32 %v908, %v909
        %v911 = vrot.slane %v910, 1
        %v912 = vadd.f32 %v910, %v911
        %vm913 = vcmask 1040384
        %v914 = vsel %vm913, %v807, %v822
        %vm915 = vcmask 1041408
        %v916 = vsel %vm915, %v914, %v837
        %vm917 = vcmask 1042432
        %v918 = vsel %vm917, %v916, %v852
        %vm919 = vcmask 1043456
        %v920 = vsel %vm919, %v918, %v867
        %vm921 = vcmask 1044480
        %v922 = vsel %vm921, %v920, %v882
        %vm923 = vcmask 1045504
        %v924 = vsel %vm923, %v922, %v897
        %vm925 = vcmask 1046528
        %v926 = vsel %vm925, %v924, %v912
        %v928 = vlaneseq
        %v929 = vshrl.u32 %v928, 7
        %v930 = vsub.s32 0, %v929
        %v931 = vrot.slane %v351, %v930
        %v933 = vmul.f32 %v931, %v367
        %v934 = vadd.f32 %v926, %v933
        %s935 = scalar_lea.vmem [#allocation2], %s361
        %936 = vst.msk [vmem:[%s935] sm:$0xff] %vm798, %v934
      $region45: #{vss_convg_forward.11} parent=39 // loop_footer
        %s358 = sadd.s32 1, %s354
      $region46: #{vss_convg_forward.11} parent=39 // loop_footer_branch
        %353 = sbr.rel target = $region42
      $region47: #{vss_convg_forward.11} parent=39 // loop_exit
        _
      %s937 = scalar_lea.vmem %s331, 16
      %v938 = vld [vmem:[%s937] sm:$0xff]
      %v939 = vld [vmem:[%s937 + $0x8] sm:$0xff]
      %s940 = scalar_lea.vmem %s335, 1
      %v941 = vld [vmem:[%s940] sm:$0x1]
      %s942 = scalar_lea.vmem %s339, 1
      %v943 = vld [vmem:[%s942] sm:$0x1]
      loop: start=0, step=1, limit=8
      $region48: #{vss_convg_forward.11} parent=39 // loop_pre_header
        _
      $region49: #{vss_convg_forward.11} parent=39 // loop_header
        %s945 = sphi 0, %s949
        %p946 = scmp.ge.s32.totalorder %s945, 8
        %v950 = vphi 0.0, %v1507
        %v951 = vphi 0.0, %v1508
      $region50: #{vss_convg_forward.11} parent=39 // loop_header_branch
        %948 = sbr.rel (%p946) target = $region54
      $region51: #{vss_convg_forward.11} parent=39 // loop_body
        %s952 = sadd.s32 %s945, 1
        %s953 = smul.u32 %s952, 8
        %s954 = ssub.s32 64, %s953
        %s955 = sshra.s32 %s954, 3
        %s956 = sand.u32 %s954, 7
        %s957 = smul.addr %s955, 4
        %s958 = scalar_lea.vmem %s317, %s957
        %v959 = vld [vmem:[%s958] sm:$0xf]
        %v960 = vunpack.c.l.bf16 %v959
        %s961 = smul.addr %s955, 4
        %s962 = scalar_lea.vmem %s326, %s961
        %v963 = vld [vmem:[%s962] sm:$0xf]
        %v964 = vunpack.c.l.bf16 %v963
        %v966 = vlaneseq
        %v967 = vshrl.u32 %v966, 7
        %v968 = vsub.s32 0, %v967
        %v969 = vrot.slane %v943, %v968
        %970 = vrot.lane.b32.xlu0 %v969, 64
        %v971 = vpop.permute.xlu0 %970
        %v973 = vadd.f32 %v964, %v971
        %vm974 = vcmp.gt.f32.partialorder %v973, 20.0
        %v975 = vmin.f32 %v973, 20.0
        %v976 = vmul.f32 %v975, 1.442695
        %v977 = vpow.pop %v976
        %v978 = vadd.f32 %v977, 1.0
        %v979 = vlog2.pop %v978
        %v980 = vmul.f32 %v979, 0.6931472
        %v981 = vsel %vm974, %v973, %v980
        %983 = vrot.lane.b32.xlu0 %v960, 64
        %v984 = vpop.permute.xlu0 %983
        %v986 = vmul.f32 %v981, %v984
        %v988 = vcombine.high %v981, %v981
        %v990 = vunpack.c.l.s4 1966171168
        %v991 = vunpack.c.0.s8 %v990
        %v992 = vlaneseq
        %v993 = vshrl.u32 %v992, 7
        %v994 = vsub.s32 %v991, %v993
        %v995 = vrot.slane %v981, %v994
        %v997 = vunpack.c.l.s4 1966171168
        %v998 = vunpack.c.0.s8 %v997
        %v999 = vlaneseq
        %v1000 = vshrl.u32 %v999, 7
        %v1001 = vsub.s32 %v998, %v1000
        %v1002 = vrot.slane %v988, %v1001
        %v1003 = vcombine.high %v995, %v995
        %v1004 = vcombine.high %v1002, %v1002
        %v1006 = vunpack.c.l.s4 1966171168
        %v1007 = vunpack.c.0.s8 %v1006
        %v1008 = vlaneseq
        %v1009 = vshrl.u32 %v1008, 7
        %v1010 = vsub.s32 %v1007, %v1009
        %v1011 = vrot.slane %v995, %v1010
        %v1013 = vunpack.c.l.s4 1966171168
        %v1014 = vunpack.c.0.s8 %v1013
        %v1015 = vlaneseq
        %v1016 = vshrl.u32 %v1015, 7
        %v1017 = vsub.s32 %v1014, %v1016
        %v1018 = vrot.slane %v1002, %v1017
        %v1020 = vunpack.c.l.s4 1966171168
        %v1021 = vunpack.c.0.s8 %v1020
        %v1022 = vlaneseq
        %v1023 = vshrl.u32 %v1022, 7
        %v1024 = vsub.s32 %v1021, %v1023
        %v1025 = vrot.slane %v1003, %v1024
        %v1027 = vunpack.c.l.s4 1966171168
        %v1028 = vunpack.c.0.s8 %v1027
        %v1029 = vlaneseq
        %v1030 = vshrl.u32 %v1029, 7
        %v1031 = vsub.s32 %v1028, %v1030
        %v1032 = vrot.slane %v1004, %v1031
        %v1033 = vcombine.high %v1011, %v1011
        %v1034 = vcombine.high %v1018, %v1018
        %v1035 = vcombine.high %v1025, %v1025
        %v1036 = vcombine.high %v1032, %v1032
        %v1037 = vlaneseq
        %v1038 = vshrl.u32 %v1037, 7
        %v1039 = vsub.s32 0, %v1038
        %v1040 = vrot.slane %v1011, %v1039
        %v1041 = vlaneseq
        %v1042 = vshrl.u32 %v1041, 7
        %v1043 = vsub.s32 0, %v1042
        %v1044 = vrot.slane %v1025, %v1043
        %v1045 = vlaneseq
        %v1046 = vshrl.u32 %v1045, 7
        %v1047 = vsub.s32 0, %v1046
        %v1048 = vrot.slane %v1033, %v1047
        %v1049 = vlaneseq
        %v1050 = vshrl.u32 %v1049, 7
        %v1051 = vsub.s32 0, %v1050
        %v1052 = vrot.slane %v1035, %v1051
        %v1053 = vlaneseq
        %v1054 = vshrl.u32 %v1053, 7
        %v1055 = vsub.s32 0, %v1054
        %v1056 = vrot.slane %v1018, %v1055
        %v1057 = vlaneseq
        %v1058 = vshrl.u32 %v1057, 7
        %v1059 = vsub.s32 0, %v1058
        %v1060 = vrot.slane %v1032, %v1059
        %v1061 = vlaneseq
        %v1062 = vshrl.u32 %v1061, 7
        %v1063 = vsub.s32 0, %v1062
        %v1064 = vrot.slane %v1034, %v1063
        %v1065 = vlaneseq
        %v1066 = vshrl.u32 %v1065, 7
        %v1067 = vsub.s32 0, %v1066
        %v1068 = vrot.slane %v1036, %v1067
        %1079 = vrot.lane.b32.xlu0 %v938, 64
        %v1080 = vpop.permute.xlu0 %1079
        %1081 = vrot.lane.b32.xlu0 %v939, 64
        %v1082 = vpop.permute.xlu0 %1081
        %v1085 = vmul.f32 %v1040, %v1080
        %v1086 = vmul.f32 %v1040, %v1082
        %v1087 = vmul.f32 %v1044, %v1080
        %v1088 = vmul.f32 %v1044, %v1082
        %v1089 = vmul.f32 %v1048, %v1080
        %v1090 = vmul.f32 %v1048, %v1082
        %v1091 = vmul.f32 %v1052, %v1080
        %v1092 = vmul.f32 %v1052, %v1082
        %v1093 = vmul.f32 %v1056, %v1080
        %v1094 = vmul.f32 %v1056, %v1082
        %v1095 = vmul.f32 %v1060, %v1080
        %v1096 = vmul.f32 %v1060, %v1082
        %v1097 = vmul.f32 %v1064, %v1080
        %v1098 = vmul.f32 %v1064, %v1082
        %v1099 = vmul.f32 %v1068, %v1080
        %v1100 = vmul.f32 %v1068, %v1082
        %v1101 = vmul.f32 %v1085, 1.442695
        %v1102 = vpow.pop %v1101
        %v1103 = vmul.f32 %v1086, 1.442695
        %v1104 = vpow.pop %v1103
        %v1105 = vmul.f32 %v1087, 1.442695
        %v1106 = vpow.pop %v1105
        %v1107 = vmul.f32 %v1088, 1.442695
        %v1108 = vpow.pop %v1107
        %v1109 = vmul.f32 %v1089, 1.442695
        %v1110 = vpow.pop %v1109
        %v1111 = vmul.f32 %v1090, 1.442695
        %v1112 = vpow.pop %v1111
        %v1113 = vmul.f32 %v1091, 1.442695
        %v1114 = vpow.pop %v1113
        %v1115 = vmul.f32 %v1092, 1.442695
        %v1116 = vpow.pop %v1115
        %v1117 = vmul.f32 %v1093, 1.442695
        %v1118 = vpow.pop %v1117
        %v1119 = vmul.f32 %v1094, 1.442695
        %v1120 = vpow.pop %v1119
        %v1121 = vmul.f32 %v1095, 1.442695
        %v1122 = vpow.pop %v1121
        %v1123 = vmul.f32 %v1096, 1.442695
        %v1124 = vpow.pop %v1123
        %v1125 = vmul.f32 %v1097, 1.442695
        %v1126 = vpow.pop %v1125
        %v1127 = vmul.f32 %v1098, 1.442695
        %v1128 = vpow.pop %v1127
        %v1129 = vmul.f32 %v1099, 1.442695
        %v1130 = vpow.pop %v1129
        %v1131 = vmul.f32 %v1100, 1.442695
        %v1132 = vpow.pop %v1131
        %v1133 = vlaneseq
        %v1134 = vshrl.u32 %v1133, 7
        %v1135 = vsub.s32 0, %v1134
        %v1136 = vrot.slane %v964, %v1135
        %s1138 = sor.u32 256, 96
        %1139 = vbcast.lane.b32.xlu0 %v1136, %s1138
        %v1140 = vpop.permute.xlu0 %1139
        %s1142 = sor.u32 256, 104
        %1143 = vbcast.lane.b32.xlu0 %v1136, %s1142
        %v1144 = vpop.permute.xlu0 %1143
        %v1145 = vlaneseq
        %v1146 = vshrl.u32 %v1145, 7
        %v1147 = vsub.s32 1, %v1146
        %v1148 = vrot.slane %v964, %v1147
        %s1150 = sor.u32 256, 96
        %1151 = vbcast.lane.b32.xlu0 %v1148, %s1150
        %v1152 = vpop.permute.xlu0 %1151
        %s1154 = sor.u32 256, 104
        %1155 = vbcast.lane.b32.xlu0 %v1148, %s1154
        %v1156 = vpop.permute.xlu0 %1155
        %v1157 = vlaneseq
        %v1158 = vshrl.u32 %v1157, 7
        %v1159 = vsub.s32 2, %v1158
        %v1160 = vrot.slane %v964, %v1159
        %s1162 = sor.u32 256, 96
        %1163 = vbcast.lane.b32.xlu0 %v1160, %s1162
        %v1164 = vpop.permute.xlu0 %1163
        %s1166 = sor.u32 256, 104
        %1167 = vbcast.lane.b32.xlu0 %v1160, %s1166
        %v1168 = vpop.permute.xlu0 %1167
        %v1169 = vlaneseq
        %v1170 = vshrl.u32 %v1169, 7
        %v1171 = vsub.s32 3, %v1170
        %v1172 = vrot.slane %v964, %v1171
        %s1174 = sor.u32 256, 96
        %1175 = vbcast.lane.b32.xlu0 %v1172, %s1174
        %v1176 = vpop.permute.xlu0 %1175
        %s1178 = sor.u32 256, 104
        %1179 = vbcast.lane.b32.xlu0 %v1172, %s1178
        %v1180 = vpop.permute.xlu0 %1179
        %v1181 = vlaneseq
        %v1182 = vshrl.u32 %v1181, 7
        %v1183 = vsub.s32 4, %v1182
        %v1184 = vrot.slane %v964, %v1183
        %s1186 = sor.u32 256, 96
        %1187 = vbcast.lane.b32.xlu0 %v1184, %s1186
        %v1188 = vpop.permute.xlu0 %1187
        %s1190 = sor.u32 256, 104
        %1191 = vbcast.lane.b32.xlu0 %v1184, %s1190
        %v1192 = vpop.permute.xlu0 %1191
        %v1193 = vlaneseq
        %v1194 = vshrl.u32 %v1193, 7
        %v1195 = vsub.s32 5, %v1194
        %v1196 = vrot.slane %v964, %v1195
        %s1198 = sor.u32 256, 96
        %1199 = vbcast.lane.b32.xlu0 %v1196, %s1198
        %v1200 = vpop.permute.xlu0 %1199
        %s1202 = sor.u32 256, 104
        %1203 = vbcast.lane.b32.xlu0 %v1196, %s1202
        %v1204 = vpop.permute.xlu0 %1203
        %v1205 = vlaneseq
        %v1206 = vshrl.u32 %v1205, 7
        %v1207 = vsub.s32 6, %v1206
        %v1208 = vrot.slane %v964, %v1207
        %s1210 = sor.u32 256, 96
        %1211 = vbcast.lane.b32.xlu0 %v1208, %s1210
        %v1212 = vpop.permute.xlu0 %1211
        %s1214 = sor.u32 256, 104
        %1215 = vbcast.lane.b32.xlu0 %v1208, %s1214
        %v1216 = vpop.permute.xlu0 %1215
        %v1217 = vlaneseq
        %v1218 = vshrl.u32 %v1217, 7
        %v1219 = vsub.s32 7, %v1218
        %v1220 = vrot.slane %v964, %v1219
        %s1222 = sor.u32 256, 96
        %1223 = vbcast.lane.b32.xlu0 %v1220, %s1222
        %v1224 = vpop.permute.xlu0 %1223
        %s1226 = sor.u32 256, 104
        %1227 = vbcast.lane.b32.xlu0 %v1220, %s1226
        %v1228 = vpop.permute.xlu0 %1227
        %v1230 = vcombine.high %v986, %v986
        %v1232 = vunpack.c.l.s4 1966171168
        %v1233 = vunpack.c.0.s8 %v1232
        %v1234 = vlaneseq
        %v1235 = vshrl.u32 %v1234, 7
        %v1236 = vsub.s32 %v1233, %v1235
        %v1237 = vrot.slane %v986, %v1236
        %v1239 = vunpack.c.l.s4 1966171168
        %v1240 = vunpack.c.0.s8 %v1239
        %v1241 = vlaneseq
        %v1242 = vshrl.u32 %v1241, 7
        %v1243 = vsub.s32 %v1240, %v1242
        %v1244 = vrot.slane %v1230, %v1243
        %v1245 = vcombine.high %v1237, %v1237
        %v1246 = vcombine.high %v1244, %v1244
        %v1248 = vunpack.c.l.s4 1966171168
        %v1249 = vunpack.c.0.s8 %v1248
        %v1250 = vlaneseq
        %v1251 = vshrl.u32 %v1250, 7
        %v1252 = vsub.s32 %v1249, %v1251
        %v1253 = vrot.slane %v1237, %v1252
        %v1255 = vunpack.c.l.s4 1966171168
        %v1256 = vunpack.c.0.s8 %v1255
        %v1257 = vlaneseq
        %v1258 = vshrl.u32 %v1257, 7
        %v1259 = vsub.s32 %v1256, %v1258
        %v1260 = vrot.slane %v1244, %v1259
        %v1262 = vunpack.c.l.s4 1966171168
        %v1263 = vunpack.c.0.s8 %v1262
        %v1264 = vlaneseq
        %v1265 = vshrl.u32 %v1264, 7
        %v1266 = vsub.s32 %v1263, %v1265
        %v1267 = vrot.slane %v1245, %v1266
        %v1269 = vunpack.c.l.s4 1966171168
        %v1270 = vunpack.c.0.s8 %v1269
        %v1271 = vlaneseq
        %v1272 = vshrl.u32 %v1271, 7
        %v1273 = vsub.s32 %v1270, %v1272
        %v1274 = vrot.slane %v1246, %v1273
        %v1275 = vcombine.high %v1253, %v1253
        %v1276 = vcombine.high %v1260, %v1260
        %v1277 = vcombine.high %v1267, %v1267
        %v1278 = vcombine.high %v1274, %v1274
        %v1279 = vlaneseq
        %v1280 = vshrl.u32 %v1279, 7
        %v1281 = vsub.s32 0, %v1280
        %v1282 = vrot.slane %v1253, %v1281
        %v1283 = vlaneseq
        %v1284 = vshrl.u32 %v1283, 7
        %v1285 = vsub.s32 0, %v1284
        %v1286 = vrot.slane %v1267, %v1285
        %v1287 = vlaneseq
        %v1288 = vshrl.u32 %v1287, 7
        %v1289 = vsub.s32 0, %v1288
        %v1290 = vrot.slane %v1275, %v1289
        %v1291 = vlaneseq
        %v1292 = vshrl.u32 %v1291, 7
        %v1293 = vsub.s32 0, %v1292
        %v1294 = vrot.slane %v1277, %v1293
        %v1295 = vlaneseq
        %v1296 = vshrl.u32 %v1295, 7
        %v1297 = vsub.s32 0, %v1296
        %v1298 = vrot.slane %v1260, %v1297
        %v1299 = vlaneseq
        %v1300 = vshrl.u32 %v1299, 7
        %v1301 = vsub.s32 0, %v1300
        %v1302 = vrot.slane %v1274, %v1301
        %v1303 = vlaneseq
        %v1304 = vshrl.u32 %v1303, 7
        %v1305 = vsub.s32 0, %v1304
        %v1306 = vrot.slane %v1276, %v1305
        %v1307 = vlaneseq
        %v1308 = vshrl.u32 %v1307, 7
        %v1309 = vsub.s32 0, %v1308
        %v1310 = vrot.slane %v1278, %v1309
        %v1319 = vmul.f32 %v1140, %v1282
        %v1320 = vmul.f32 %v1144, %v1282
        %v1321 = vmul.f32 %v1152, %v1286
        %v1322 = vmul.f32 %v1156, %v1286
        %v1323 = vmul.f32 %v1164, %v1290
        %v1324 = vmul.f32 %v1168, %v1290
        %v1325 = vmul.f32 %v1176, %v1294
        %v1326 = vmul.f32 %v1180, %v1294
        %v1327 = vmul.f32 %v1188, %v1298
        %v1328 = vmul.f32 %v1192, %v1298
        %v1329 = vmul.f32 %v1200, %v1302
        %v1330 = vmul.f32 %v1204, %v1302
        %v1331 = vmul.f32 %v1212, %v1306
        %v1332 = vmul.f32 %v1216, %v1306
        %v1333 = vmul.f32 %v1224, %v1310
        %v1334 = vmul.f32 %v1228, %v1310
        %s1336 = sor.u32 256, 112
        %1337 = vbcast.lane.b32.xlu0 %v1136, %s1336
        %v1338 = vpop.permute.xlu0 %1337
        %s1340 = sor.u32 256, 120
        %1341 = vbcast.lane.b32.xlu0 %v1136, %s1340
        %v1342 = vpop.permute.xlu0 %1341
        %s1344 = sor.u32 256, 112
        %1345 = vbcast.lane.b32.xlu0 %v1148, %s1344
        %v1346 = vpop.permute.xlu0 %1345
        %s1348 = sor.u32 256, 120
        %1349 = vbcast.lane.b32.xlu0 %v1148, %s1348
        %v1350 = vpop.permute.xlu0 %1349
        %s1352 = sor.u32 256, 112
        %1353 = vbcast.lane.b32.xlu0 %v1160, %s1352
        %v1354 = vpop.permute.xlu0 %1353
        %s1356 = sor.u32 256, 120
        %1357 = vbcast.lane.b32.xlu0 %v1160, %s1356
        %v1358 = vpop.permute.xlu0 %1357
        %s1360 = sor.u32 256, 112
        %1361 = vbcast.lane.b32.xlu0 %v1172, %s1360
        %v1362 = vpop.permute.xlu0 %1361
        %s1364 = sor.u32 256, 120
        %1365 = vbcast.lane.b32.xlu0 %v1172, %s1364
        %v1366 = vpop.permute.xlu0 %1365
        %s1368 = sor.u32 256, 112
        %1369 = vbcast.lane.b32.xlu0 %v1184, %s1368
        %v1370 = vpop.permute.xlu0 %1369
        %s1372 = sor.u32 256, 120
        %1373 = vbcast.lane.b32.xlu0 %v1184, %s1372
        %v1374 = vpop.permute.xlu0 %1373
        %s1376 = sor.u32 256, 112
        %1377 = vbcast.lane.b32.xlu0 %v1196, %s1376
        %v1378 = vpop.permute.xlu0 %1377
        %s1380 = sor.u32 256, 120
        %1381 = vbcast.lane.b32.xlu0 %v1196, %s1380
        %v1382 = vpop.permute.xlu0 %1381
        %s1384 = sor.u32 256, 112
        %1385 = vbcast.lane.b32.xlu0 %v1208, %s1384
        %v1386 = vpop.permute.xlu0 %1385
        %s1388 = sor.u32 256, 120
        %1389 = vbcast.lane.b32.xlu0 %v1208, %s1388
        %v1390 = vpop.permute.xlu0 %1389
        %s1392 = sor.u32 256, 112
        %1393 = vbcast.lane.b32.xlu0 %v1220, %s1392
        %v1394 = vpop.permute.xlu0 %1393
        %s1396 = sor.u32 256, 120
        %1397 = vbcast.lane.b32.xlu0 %v1220, %s1396
        %v1398 = vpop.permute.xlu0 %1397
        %v1399 = vmul.f32 %v1130, %v950
        %v1400 = vmul.f32 %v1132, %v951
        %v1401 = vadd.f32 %v1399, %v1333
        %v1402 = vadd.f32 %v1400, %v1334
        %v1403 = vmul.f32 %v1401, %v1394
        %v1404 = vmul.f32 %v1402, %v1398
        %vm1405 = vcmask 785920
        %v1406 = vsel %vm1405, %v1403, 0.0
        %v1407 = vsel %vm1405, %v1404, 0.0
        %v1408 = vadd.f32 %v1406, %v1407
        %v1409 = vrot.slane %v1408, 4
        %v1410 = vadd.f32 %v1408, %v1409
        %v1411 = vrot.slane %v1410, 2
        %v1412 = vadd.f32 %v1410, %v1411
        %v1413 = vrot.slane %v1412, 1
        %v1414 = vadd.f32 %v1412, %v1413
        %v1415 = vmul.f32 %v1126, %v1401
        %v1416 = vmul.f32 %v1128, %v1402
        %v1417 = vadd.f32 %v1415, %v1331
        %v1418 = vadd.f32 %v1416, %v1332
        %v1419 = vmul.f32 %v1417, %v1386
        %v1420 = vmul.f32 %v1418, %v1390
        %v1421 = vsel %vm1405, %v1419, 0.0
        %v1422 = vsel %vm1405, %v1420, 0.0
        %v1423 = vadd.f32 %v1421, %v1422
        %v1424 = vrot.slane %v1423, 4
        %v1425 = vadd.f32 %v1423, %v1424
        %v1426 = vrot.slane %v1425, 2
        %v1427 = vadd.f32 %v1425, %v1426
        %v1428 = vrot.slane %v1427, 1
        %v1429 = vadd.f32 %v1427, %v1428
        %v1430 = vmul.f32 %v1122, %v1417
        %v1431 = vmul.f32 %v1124, %v1418
        %v1432 = vadd.f32 %v1430, %v1329
        %v1433 = vadd.f32 %v1431, %v1330
        %v1434 = vmul.f32 %v1432, %v1378
        %v1435 = vmul.f32 %v1433, %v1382
        %v1436 = vsel %vm1405, %v1434, 0.0
        %v1437 = vsel %vm1405, %v1435, 0.0
        %v1438 = vadd.f32 %v1436, %v1437
        %v1439 = vrot.slane %v1438, 4
        %v1440 = vadd.f32 %v1438, %v1439
        %v1441 = vrot.slane %v1440, 2
        %v1442 = vadd.f32 %v1440, %v1441
        %v1443 = vrot.slane %v1442, 1
        %v1444 = vadd.f32 %v1442, %v1443
        %v1445 = vmul.f32 %v1118, %v1432
        %v1446 = vmul.f32 %v1120, %v1433
        %v1447 = vadd.f32 %v1445, %v1327
        %v1448 = vadd.f32 %v1446, %v1328
        %v1449 = vmul.f32 %v1447, %v1370
        %v1450 = vmul.f32 %v1448, %v1374
        %v1451 = vsel %vm1405, %v1449, 0.0
        %v1452 = vsel %vm1405, %v1450, 0.0
        %v1453 = vadd.f32 %v1451, %v1452
        %v1454 = vrot.slane %v1453, 4
        %v1455 = vadd.f32 %v1453, %v1454
        %v1456 = vrot.slane %v1455, 2
        %v1457 = vadd.f32 %v1455, %v1456
        %v1458 = vrot.slane %v1457, 1
        %v1459 = vadd.f32 %v1457, %v1458
        %v1460 = vmul.f32 %v1114, %v1447
        %v1461 = vmul.f32 %v1116, %v1448
        %v1462 = vadd.f32 %v1460, %v1325
        %v1463 = vadd.f32 %v1461, %v1326
        %v1464 = vmul.f32 %v1462, %v1362
        %v1465 = vmul.f32 %v1463, %v1366
        %v1466 = vsel %vm1405, %v1464, 0.0
        %v1467 = vsel %vm1405, %v1465, 0.0
        %v1468 = vadd.f32 %v1466, %v1467
        %v1469 = vrot.slane %v1468, 4
        %v1470 = vadd.f32 %v1468, %v1469
        %v1471 = vrot.slane %v1470, 2
        %v1472 = vadd.f32 %v1470, %v1471
        %v1473 = vrot.slane %v1472, 1
        %v1474 = vadd.f32 %v1472, %v1473
        %v1475 = vmul.f32 %v1110, %v1462
        %v1476 = vmul.f32 %v1112, %v1463
        %v1477 = vadd.f32 %v1475, %v1323
        %v1478 = vadd.f32 %v1476, %v1324
        %v1479 = vmul.f32 %v1477, %v1354
        %v1480 = vmul.f32 %v1478, %v1358
        %v1481 = vsel %vm1405, %v1479, 0.0
        %v1482 = vsel %vm1405, %v1480, 0.0
        %v1483 = vadd.f32 %v1481, %v1482
        %v1484 = vrot.slane %v1483, 4
        %v1485 = vadd.f32 %v1483, %v1484
        %v1486 = vrot.slane %v1485, 2
        %v1487 = vadd.f32 %v1485, %v1486
        %v1488 = vrot.slane %v1487, 1
        %v1489 = vadd.f32 %v1487, %v1488
        %v1490 = vmul.f32 %v1106, %v1477
        %v1491 = vmul.f32 %v1108, %v1478
        %v1492 = vadd.f32 %v1490, %v1321
        %v1493 = vadd.f32 %v1491, %v1322
        %v1494 = vmul.f32 %v1492, %v1346
        %v1495 = vmul.f32 %v1493, %v1350
        %v1496 = vsel %vm1405, %v1494, 0.0
        %v1497 = vsel %vm1405, %v1495, 0.0
        %v1498 = vadd.f32 %v1496, %v1497
        %v1499 = vrot.slane %v1498, 4
        %v1500 = vadd.f32 %v1498, %v1499
        %v1501 = vrot.slane %v1500, 2
        %v1502 = vadd.f32 %v1500, %v1501
        %v1503 = vrot.slane %v1502, 1
        %v1504 = vadd.f32 %v1502, %v1503
        %v1505 = vmul.f32 %v1102, %v1492
        %v1506 = vmul.f32 %v1104, %v1493
        %v1507 = vadd.f32 %v1505, %v1319
        %v1508 = vadd.f32 %v1506, %v1320
        %v1509 = vmul.f32 %v1507, %v1338
        %v1510 = vmul.f32 %v1508, %v1342
        %v1511 = vsel %vm1405, %v1509, 0.0
        %v1512 = vsel %vm1405, %v1510, 0.0
        %v1513 = vadd.f32 %v1511, %v1512
        %v1514 = vrot.slane %v1513, 4
        %v1515 = vadd.f32 %v1513, %v1514
        %v1516 = vrot.slane %v1515, 2
        %v1517 = vadd.f32 %v1515, %v1516
        %v1518 = vrot.slane %v1517, 1
        %v1519 = vadd.f32 %v1517, %v1518
        %vm1520 = vcmask 1040384
        %v1521 = vsel %vm1520, %v1519, %v1504
        %vm1522 = vcmask 1041408
        %v1523 = vsel %vm1522, %v1521, %v1489
        %vm1524 = vcmask 1042432
        %v1525 = vsel %vm1524, %v1523, %v1474
        %vm1526 = vcmask 1043456
        %v1527 = vsel %vm1526, %v1525, %v1459
        %vm1528 = vcmask 1044480
        %v1529 = vsel %vm1528, %v1527, %v1444
        %vm1530 = vcmask 1045504
        %v1531 = vsel %vm1530, %v1529, %v1429
        %vm1532 = vcmask 1046528
        %v1533 = vsel %vm1532, %v1531, %v1414
        %v1535 = vlaneseq
        %v1536 = vshrl.u32 %v1535, 7
        %v1537 = vsub.s32 0, %v1536
        %v1538 = vrot.slane %v941, %v1537
        %v1540 = vmul.f32 %v1538, %v960
        %1542 = vrot.lane.b32.xlu0 %v1540, 64
        %v1543 = vpop.permute.xlu0 %1542
        %v1545 = vadd.f32 %v1533, %v1543
        %s1546 = scalar_lea.vmem [#allocation2], %s954
        %v1547 = vld [vmem:[%s1546] sm:$0xff]
        %1549 = vrot.lane.b32.xlu0 %v1545, 64
        %v1550 = vpop.permute.xlu0 %1549
        %v1552 = vadd.f32 %v1547, %v1550
        %vm1553 = vcmask 261120
        %1554 = vst.msk [vmem:[%s1546] sm:$0xff] %vm1553, %v1552
      $region52: #{vss_convg_forward.11} parent=39 // loop_footer
        %s949 = sadd.s32 1, %s945
      $region53: #{vss_convg_forward.11} parent=39 // loop_footer_branch
        %944 = sbr.rel target = $region49
      $region54: #{vss_convg_forward.11} parent=39 // loop_exit
        _
      %v1555 = vld [vmem:[#allocation2] sm:$0xff]
      %v1556 = vld [vmem:[#allocation2 + $0x8] sm:$0xff]
      %v1557 = vld [vmem:[#allocation2 + $0x10] sm:$0xff]
      %v1558 = vld [vmem:[#allocation2 + $0x18] sm:$0xff]
      %v1559 = vld [vmem:[#allocation2 + $0x20] sm:$0xff]
      %v1560 = vld [vmem:[#allocation2 + $0x28] sm:$0xff]
      %v1561 = vld [vmem:[#allocation2 + $0x30] sm:$0xff]
      %v1562 = vld [vmem:[#allocation2 + $0x38] sm:$0xff]
      %v1563 = vpack.c.bf16 %v1556, %v1555
      %v1564 = vpack.c.bf16 %v1558, %v1557
      %v1565 = vpack.c.bf16 %v1560, %v1559
      %v1566 = vpack.c.bf16 %v1562, %v1561
      %v1571 = vunpack.c.l.b16 %v1563
      %v1572 = vunpack.c.h.b16 %v1563
      %v1573 = vunpack.c.l.b16 %v1564
      %v1574 = vunpack.c.h.b16 %v1564
      %v1575 = vunpack.c.l.b16 %v1565
      %v1576 = vunpack.c.h.b16 %v1565
      %v1577 = vunpack.c.l.b16 %v1566
      %v1578 = vunpack.c.h.b16 %v1566
      %v1579 = vpack.c.b16 %v1571, %v1571
      %v1580 = vpack.c.b16 %v1572, %v1572
      %v1581 = vpack.c.b16 %v1573, %v1573
      %v1582 = vpack.c.b16 %v1574, %v1574
      %v1583 = vpack.c.b16 %v1575, %v1575
      %v1584 = vpack.c.b16 %v1576, %v1576
      %v1585 = vpack.c.b16 %v1577, %v1577
      %v1586 = vpack.c.b16 %v1578, %v1578
      %vm1595 = vcmask 257024
      %1596 = vst.msk [vmem:[%s348] sm:$0xf] %vm1595, %v1579
      %1597 = vst.msk [vmem:[%s348 + $0x4] sm:$0xf] %vm1595, %v1580
      %1598 = vst.msk [vmem:[%s348 + $0x8] sm:$0xf] %vm1595, %v1581
      %1599 = vst.msk [vmem:[%s348 + $0xc] sm:$0xf] %vm1595, %v1582
      %1600 = vst.msk [vmem:[%s348 + $0x10] sm:$0xf] %vm1595, %v1583
      %1601 = vst.msk [vmem:[%s348 + $0x14] sm:$0xf] %vm1595, %v1584
      %1602 = vst.msk [vmem:[%s348 + $0x18] sm:$0xf] %vm1595, %v1585
      %1603 = vst.msk [vmem:[%s348 + $0x1c] sm:$0xf] %vm1595, %v1586
      %p1604 = scmp.lt.s32.totalorder %s21, 1
      %s1605 = scalar_select %p1604, %s21, 1
      %p1606 = scmp.lt.s32.totalorder %s20, 1
      %s1607 = scalar_select %p1606, %s20, 1
      %s1608 = smul.addr %s1607, 8
      %s1609 = smul.addr %s1605, 16
      %s1610 = sadd.s32 %s1608, %s1609
      %s1611 = smul.addr %s1610, 4
      %s1612 = scalar_lea.vmem %s5, %s1611
      // Predicated region
      $region55: #{vss_convg_forward.11} parent=39 // pred_check
        %p1613 = pneg %p182
      $region56: #{vss_convg_forward.11} parent=39 // pred_check_branch
        %1615 = sbr.rel (%p1613) target = $region58
      $region57: #{vss_convg_forward.11} parent=39 // pred_region
        _
      $region58: #{vss_convg_forward.11} parent=39 // pred_fallthru
        _
    $region40: #{vss_convg_forward.11} parent=5 // pred_fallthru
      _
    %p1616 = scmp.le.s32.totalorder 2, %s11
    // Predicated region
    $region59: #{vss_convg_forward.11} parent=5 // pred_check
      %p1617 = pneg %p1616
    $region60: #{vss_convg_forward.11} parent=5 // pred_check_branch
      %1619 = sbr.rel (%p1617) target = $region62
    $region61: #{vss_convg_forward.11} parent=5 // pred_region
      %s1620 = ssub.s32 %s11, 2
      // Predicated region
      $region63: #{vss_convg_forward.11} parent=61 // pred_check
        %p1621 = pneg %p188
      $region64: #{vss_convg_forward.11} parent=61 // pred_check_branch
        %1623 = sbr.rel (%p1621) target = $region66
      $region65: #{vss_convg_forward.11} parent=61 // pred_region
        %p1624 = scmp.lt.s32.totalorder %s23, 1
        %s1625 = scalar_select %p1624, %s23, 1
        %p1626 = scmp.lt.s32.totalorder %s22, 1
        %s1627 = scalar_select %p1626, %s22, 1
        %s1628 = smul.addr %s1627, 8
        %s1629 = smul.addr %s1625, 16
        %s1630 = sadd.s32 %s1628, %s1629
        %s1631 = smul.addr %s1630, 4
        %s1632 = scalar_lea.vmem %s5, %s1631
      $region66: #{vss_convg_forward.11} parent=61 // pred_fallthru
        _
    $region62: #{vss_convg_forward.11} parent=5 // pred_fallthru
      _
  $region6: #{vss_convg_forward.11} parent=0 // loop_footer
    %s15 = sadd.s32 1, %s11
  $region7: #{vss_convg_forward.11} parent=0 // loop_footer_branch
    %10 = sbr.rel target = $region3
  $region8: #{vss_convg_forward.11} parent=0 // loop_exit
    _

// kernel: vss_convg_forward.15
$region0: #{vss_convg_forward.15}
  #allocation0 [shape = 'u32[]', space=smem, size = 0x4, offset = 0x4, fixed_abs, tag = 'smem constant byte address 0x4 - core index']
  #allocation1 [shape = 'u32[144,128]{1,0:T(1,128)}', space=vmem, size = 0x12000, scoped, tag = 'internal scratch']
  %s0 = inlined_call_operand.vmem [shape: bf16[128,10], index: 0, kind: input, shape index: {}]
  %s1 = inlined_call_operand.vmem [shape: f32[128,16], index: 1, kind: input, shape index: {}]
  %s2 = inlined_call_operand.vmem [shape: f32[10,16], index: 2, kind: input, shape index: {}]
  %s3 = inlined_call_operand.vmem [shape: f32[1,16], index: 3, kind: input, shape index: {}]
  %s4 = inlined_call_operand.hbm [shape: f32[128,16], index: 4, kind: output, shape index: {}]
  %s5 = sld [smem:[#allocation0]]
  $region26: #{vss_convg_forward.15} parent=0
    _
  %s7 = ssub.s32 1, %s5
  %s8 = scalar_select 0, %s7, %s5
  $region1: #{vss_convg_forward.15} parent=0
    #allocation2 [shape = 'u8[65536]{0}', space=vmem, size = 0x10000, scoped, tag = 'output window, operand 0, single buffered']
    #allocation3 [shape = 's32[1]{0}', space=sflag, size = 0x4, scoped, tag = 'scoped memory for vss_convg_forward.15']
    %9 = vsyncpa [#allocation3], 0
    // Predicated region
    $region2: #{vss_convg_forward.15} parent=1 // pred_check
      _
    $region3: #{vss_convg_forward.15} parent=1 // pred_check_branch
      %11 = sbr.rel (0) target = $region5
    $region4: #{vss_convg_forward.15} parent=1 // pred_region
      _
    $region5: #{vss_convg_forward.15} parent=1 // pred_fallthru
      _
    // Predicated region
    $region6: #{vss_convg_forward.15} parent=1 // pred_check
      _
    $region7: #{vss_convg_forward.15} parent=1 // pred_check_branch
      %13 = sbr.rel (0) target = $region9
    $region8: #{vss_convg_forward.15} parent=1 // pred_region
      _
    $region9: #{vss_convg_forward.15} parent=1 // pred_fallthru
      _
    // Predicated region
    $region10: #{vss_convg_forward.15} parent=1 // pred_check
      _
    $region11: #{vss_convg_forward.15} parent=1 // pred_check_branch
      %15 = sbr.rel (0) target = $region13
    $region12: #{vss_convg_forward.15} parent=1 // pred_region
      _
    $region13: #{vss_convg_forward.15} parent=1 // pred_fallthru
      _
    // Predicated region
    $region14: #{vss_convg_forward.15} parent=1 // pred_check
      _
    $region15: #{vss_convg_forward.15} parent=1 // pred_check_branch
      %17 = sbr.rel (0) target = $region17
    $region16: #{vss_convg_forward.15} parent=1 // pred_region
      _
    $region17: #{vss_convg_forward.15} parent=1 // pred_fallthru
      _
    %v19 = vld [vmem:[%s0] sm:$0xf]
    %v20 = vld [vmem:[%s0 + $0x4] sm:$0xf]
    %v21 = vld [vmem:[%s0 + $0x8] sm:$0xf]
    %v22 = vld [vmem:[%s0 + $0xc] sm:$0xf]
    %v23 = vld [vmem:[%s0 + $0x10] sm:$0xf]
    %v24 = vld [vmem:[%s0 + $0x14] sm:$0xf]
    %v25 = vld [vmem:[%s0 + $0x18] sm:$0xf]
    %v26 = vld [vmem:[%s0 + $0x1c] sm:$0xf]
    %v27 = vld [vmem:[%s0 + $0x20] sm:$0xf]
    %v28 = vld [vmem:[%s0 + $0x24] sm:$0xf]
    %v29 = vld [vmem:[%s0 + $0x28] sm:$0xf]
    %v30 = vld [vmem:[%s0 + $0x2c] sm:$0xf]
    %v31 = vld [vmem:[%s0 + $0x30] sm:$0xf]
    %v32 = vld [vmem:[%s0 + $0x34] sm:$0xf]
    %v33 = vld [vmem:[%s0 + $0x38] sm:$0xf]
    %v34 = vld [vmem:[%s0 + $0x3c] sm:$0xf]
    %v35 = vld [vmem:[%s2] sm:$0xff]
    %v36 = vld [vmem:[%s2 + $0x8] sm:$0x3]
    %v37 = vpack.c.bf16 %v36, %v35
    %v38 = vld [vmem:[%s3] sm:$0x1]
    %v40 = vlaneseq
    %v41 = vshrl.u32 %v40, 7
    %v42 = vsub.s32 0, %v41
    %v43 = vrot.slane %v38, %v42
    %v61 = vunpack.c.l.b16 %v19
    %v62 = vunpack.c.l.b16 %v20
    %v63 = vunpack.c.l.b16 %v21
    %v64 = vunpack.c.l.b16 %v22
    %v65 = vunpack.c.l.b16 %v23
    %v66 = vunpack.c.l.b16 %v24
    %v67 = vunpack.c.l.b16 %v25
    %v68 = vunpack.c.l.b16 %v26
    %v69 = vunpack.c.l.b16 %v27
    %v70 = vunpack.c.l.b16 %v28
    %v71 = vunpack.c.l.b16 %v29
    %v72 = vunpack.c.l.b16 %v30
    %v73 = vunpack.c.l.b16 %v31
    %v74 = vunpack.c.l.b16 %v32
    %v75 = vunpack.c.l.b16 %v33
    %v76 = vunpack.c.l.b16 %v34
    %v77 = vpack.c.b16 %v62, %v61
    %v78 = vpack.c.b16 %v64, %v63
    %v79 = vpack.c.b16 %v66, %v65
    %v80 = vpack.c.b16 %v68, %v67
    %v81 = vpack.c.b16 %v70, %v69
    %v82 = vpack.c.b16 %v72, %v71
    %v83 = vpack.c.b16 %v74, %v73
    %v84 = vpack.c.b16 %v76, %v75
    %vm85 = vcmask 80896
    %v87 = vsel %vm85, %v77, 0
    %v90 = vsel %vm85, %v78, 0
    %v93 = vsel %vm85, %v79, 0
    %v96 = vsel %vm85, %v80, 0
    %v99 = vsel %vm85, %v81, 0
    %v102 = vsel %vm85, %v82, 0
    %v105 = vsel %vm85, %v83, 0
    %v108 = vsel %vm85, %v84, 0
    %vm110 = vcmask 1044480
    %v112 = vsel %vm110, %v37, 0
    %114 = vmatprep.subr.bf16.mxu0 0
    %115 = vmatpush1.bf16.msra.mxu0 0
    %116 = vmatprep.subr.bf16.mxu0 0
    %117 = vmatpush1.bf16.msra.mxu0 0
    %118 = vmatprep.subr.bf16.mxu0 0
    %119 = vmatpush1.bf16.msra.mxu0 0
    %120 = vmatprep.subr.bf16.mxu0 0
    %121 = vmatpush1.bf16.msra.mxu0 0
    %122 = vmatprep.subr.bf16.mxu0 0
    %123 = vmatpush1.bf16.msra.mxu0 0
    %124 = vmatprep.subr.bf16.mxu0 0
    %125 = vmatpush1.bf16.msra.mxu0 0
    %126 = vmatprep.subr.bf16.mxu0 0
    %127 = vmatpush1.bf16.msra.mxu0 0
    %128 = vmatprep.subr.bf16.mxu0 0
    %129 = vmatpush1.bf16.msra.mxu0 %v112
    %130 = vmatprep.subr.bf16.mxu0 0
    %131 = vmatpush2.bf16.msra.mxu0 0
    %132 = vmatprep.subr.bf16.mxu0 0
    %133 = vmatpush2.bf16.msra.mxu0 0
    %134 = vmatprep.subr.bf16.mxu0 0
    %135 = vmatpush2.bf16.msra.mxu0 0
    %136 = vmatprep.subr.bf16.mxu0 0
    %137 = vmatpush2.bf16.msra.mxu0 0
    %138 = vmatprep.subr.bf16.mxu0 0
    %139 = vmatpush2.bf16.msra.mxu0 0
    %140 = vmatprep.subr.bf16.mxu0 0
    %141 = vmatpush2.bf16.msra.mxu0 0
    %142 = vmatprep.subr.bf16.mxu0 0
    %143 = vmatpush2.bf16.msra.mxu0 0
    %144 = vmatprep.subr.bf16.mxu0 0
    %145 = vmatpush2.bf16.msra.mxu0 0
    %146 = vmatprep.mubr.bf16.mxu0 0
    %147 = vmatmul.mubr.bf16.gmra.mxu0 %v87
    %v148 = vpop.f32.mrf.mxu0
    %v149 = vadd.f32 %v43, %v148
    %v150 = vpop.f32.mrf.mxu0
    %v151 = vpop.f32.mrf.mxu0
    %v152 = vadd.f32 %v43, %v151
    %v153 = vpop.f32.mrf.mxu0
    %154 = vmatprep.mubr.bf16.mxu0 0
    %155 = vmatmul.mubr.bf16.gmra.mxu0 %v90
    %v156 = vpop.f32.mrf.mxu0
    %v157 = vadd.f32 %v43, %v156
    %v158 = vpop.f32.mrf.mxu0
    %v159 = vpop.f32.mrf.mxu0
    %v160 = vadd.f32 %v43, %v159
    %v161 = vpop.f32.mrf.mxu0
    %162 = vmatprep.mubr.bf16.mxu0 0
    %163 = vmatmul.mubr.bf16.gmra.mxu0 %v93
    %v164 = vpop.f32.mrf.mxu0
    %v165 = vadd.f32 %v43, %v164
    %v166 = vpop.f32.mrf.mxu0
    %v167 = vpop.f32.mrf.mxu0
    %v168 = vadd.f32 %v43, %v167
    %v169 = vpop.f32.mrf.mxu0
    %170 = vmatprep.mubr.bf16.mxu0 0
    %171 = vmatmul.mubr.bf16.gmra.mxu0 %v96
    %v172 = vpop.f32.mrf.mxu0
    %v173 = vadd.f32 %v43, %v172
    %v174 = vpop.f32.mrf.mxu0
    %v175 = vpop.f32.mrf.mxu0
    %v176 = vadd.f32 %v43, %v175
    %v177 = vpop.f32.mrf.mxu0
    %178 = vmatprep.mubr.bf16.mxu0 0
    %179 = vmatmul.mubr.bf16.gmra.mxu0 %v99
    %v180 = vpop.f32.mrf.mxu0
    %v181 = vadd.f32 %v43, %v180
    %v182 = vpop.f32.mrf.mxu0
    %v183 = vpop.f32.mrf.mxu0
    %v184 = vadd.f32 %v43, %v183
    %v185 = vpop.f32.mrf.mxu0
    %186 = vmatprep.mubr.bf16.mxu0 0
    %187 = vmatmul.mubr.bf16.gmra.mxu0 %v102
    %v188 = vpop.f32.mrf.mxu0
    %v189 = vadd.f32 %v43, %v188
    %v190 = vpop.f32.mrf.mxu0
    %v191 = vpop.f32.mrf.mxu0
    %v192 = vadd.f32 %v43, %v191
    %v193 = vpop.f32.mrf.mxu0
    %194 = vmatprep.mubr.bf16.mxu0 0
    %195 = vmatmul.mubr.bf16.gmra.mxu0 %v105
    %v196 = vpop.f32.mrf.mxu0
    %v197 = vadd.f32 %v43, %v196
    %v198 = vpop.f32.mrf.mxu0
    %v199 = vpop.f32.mrf.mxu0
    %v200 = vadd.f32 %v43, %v199
    %v201 = vpop.f32.mrf.mxu0
    %202 = vmatprep.mubr.bf16.mxu0 0
    %203 = vmatmul.mubr.bf16.gmra.mxu0 %v108
    %v204 = vpop.f32.mrf.mxu0
    %v205 = vadd.f32 %v43, %v204
    %v206 = vpop.f32.mrf.mxu0
    %v207 = vpop.f32.mrf.mxu0
    %v208 = vadd.f32 %v43, %v207
    %v209 = vpop.f32.mrf.mxu0
    %210 = vdwg.mxu0
    %v211 = vld [vmem:[%s1] sm:$0xff]
    %v212 = vld [vmem:[%s1 + $0x8] sm:$0xff]
    %v213 = vld [vmem:[%s1 + $0x10] sm:$0xff]
    %v214 = vld [vmem:[%s1 + $0x18] sm:$0xff]
    %v215 = vld [vmem:[%s1 + $0x20] sm:$0xff]
    %v216 = vld [vmem:[%s1 + $0x28] sm:$0xff]
    %v217 = vld [vmem:[%s1 + $0x30] sm:$0xff]
    %v218 = vld [vmem:[%s1 + $0x38] sm:$0xff]
    %v219 = vld [vmem:[%s1 + $0x40] sm:$0xff]
    %v220 = vld [vmem:[%s1 + $0x48] sm:$0xff]
    %v221 = vld [vmem:[%s1 + $0x50] sm:$0xff]
    %v222 = vld [vmem:[%s1 + $0x58] sm:$0xff]
    %v223 = vld [vmem:[%s1 + $0x60] sm:$0xff]
    %v224 = vld [vmem:[%s1 + $0x68] sm:$0xff]
    %v225 = vld [vmem:[%s1 + $0x70] sm:$0xff]
    %v226 = vld [vmem:[%s1 + $0x78] sm:$0xff]
    %v227 = vadd.f32 %v149, %v211
    %v228 = vadd.f32 %v152, %v212
    %v229 = vadd.f32 %v157, %v213
    %v230 = vadd.f32 %v160, %v214
    %v231 = vadd.f32 %v165, %v215
    %v232 = vadd.f32 %v168, %v216
    %v233 = vadd.f32 %v173, %v217
    %v234 = vadd.f32 %v176, %v218
    %v235 = vadd.f32 %v181, %v219
    %v236 = vadd.f32 %v184, %v220
    %v237 = vadd.f32 %v189, %v221
    %v238 = vadd.f32 %v192, %v222
    %v239 = vadd.f32 %v197, %v223
    %v240 = vadd.f32 %v200, %v224
    %v241 = vadd.f32 %v205, %v225
    %v242 = vadd.f32 %v208, %v226
    %vm243 = vcmask 130048
    %244 = vst.msk [vmem:[#allocation2] sm:$0xff] %vm243, %v227
    %245 = vst.msk [vmem:[#allocation2 + $0x8] sm:$0xff] %vm243, %v228
    %246 = vst.msk [vmem:[#allocation2 + $0x10] sm:$0xff] %vm243, %v229
    %247 = vst.msk [vmem:[#allocation2 + $0x18] sm:$0xff] %vm243, %v230
    %248 = vst.msk [vmem:[#allocation2 + $0x20] sm:$0xff] %vm243, %v231
    %249 = vst.msk [vmem:[#allocation2 + $0x28] sm:$0xff] %vm243, %v232
    %250 = vst.msk [vmem:[#allocation2 + $0x30] sm:$0xff] %vm243, %v233
    %251 = vst.msk [vmem:[#allocation2 + $0x38] sm:$0xff] %vm243, %v234
    %252 = vst.msk [vmem:[#allocation2 + $0x40] sm:$0xff] %vm243, %v235
    %253 = vst.msk [vmem:[#allocation2 + $0x48] sm:$0xff] %vm243, %v236
    %254 = vst.msk [vmem:[#allocation2 + $0x50] sm:$0xff] %vm243, %v237
    %255 = vst.msk [vmem:[#allocation2 + $0x58] sm:$0xff] %vm243, %v238
    %256 = vst.msk [vmem:[#allocation2 + $0x60] sm:$0xff] %vm243, %v239
    %257 = vst.msk [vmem:[#allocation2 + $0x68] sm:$0xff] %vm243, %v240
    %258 = vst.msk [vmem:[#allocation2 + $0x70] sm:$0xff] %vm243, %v241
    %259 = vst.msk [vmem:[#allocation2 + $0x78] sm:$0xff] %vm243, %v242
    // Predicated region
    $region18: #{vss_convg_forward.15} parent=1 // pred_check
      _
    $region19: #{vss_convg_forward.15} parent=1 // pred_check_branch
      %261 = sbr.rel (0) target = $region21
    $region20: #{vss_convg_forward.15} parent=1 // pred_region
      %s263 = ssub.s32 2048, 2048
      %264 = vsyncadd [#allocation3], %s263
      %s265 = sshll.u32 [#allocation2], 4
      %s266 = int_to_ptr.vmem [resolvable:$true] %s265
      %271 = dma.vmem_to_hbm [thread:$0]  %s266, 2048, %s4, [#allocation3], 128, 128, 8
    $region21: #{vss_convg_forward.15} parent=1 // pred_fallthru
      _
    // Predicated region
    $region22: #{vss_convg_forward.15} parent=1 // pred_check
      _
    $region23: #{vss_convg_forward.15} parent=1 // pred_check_branch
      %273 = sbr.rel (0) target = $region25
    $region24: #{vss_convg_forward.15} parent=1 // pred_region
      %274 = dma.done [#allocation3], 2048
    $region25: #{vss_convg_forward.15} parent=1 // pred_fallthru
      _
    %275 = vsyncpa [#allocation3], 1

// kernel: vss_convg_forward.14
$region0: #{vss_convg_forward.14}
  #allocation0 [shape = 'u32[]', space=smem, size = 0x4, offset = 0x4, fixed_abs, tag = 'smem constant byte address 0x4 - core index']
  #allocation1 [shape = 'u32[144,128]{1,0:T(1,128)}', space=vmem, size = 0x12000, scoped, tag = 'internal scratch']
  #allocation2 [shape = 'f32[10,10,10]{2,1,0:T(8,128)}', space=vmem, size = 0x14000, scoped, tag = 'scratch operand']
  %s0 = inlined_call_operand.vmem [shape: bf16[2,8,8,10], index: 0, kind: input, shape index: {}]
  %s1 = inlined_call_operand.vmem [shape: f32[9,10], index: 1, kind: input, shape index: {}]
  %s2 = inlined_call_operand.vmem [shape: f32[1,10], index: 2, kind: input, shape index: {}]
  %s3 = inlined_call_operand.vmem [shape: bf16[2,8,8,10], index: 3, kind: input, shape index: {}]
  %s4 = inlined_call_operand.vmem [shape: bf16[2,8,8,10], index: 4, kind: output, shape index: {}]
  %s5 = sld [smem:[#allocation0]]
  $region49: #{vss_convg_forward.14} parent=0
    _
  %s7 = ssub.s32 1, %s5
  %s8 = scalar_select 0, %s7, %s5
  loop: start=0, step=1, limit=4
  $region2: #{vss_convg_forward.14} parent=0 // loop_pre_header
    _
  $region3: #{vss_convg_forward.14} parent=0 // loop_header
    %s10 = sphi 0, %s14
    %p11 = scmp.ge.s32.totalorder %s10, 4
    %s20 = sphi 0, %s22
    %s23 = sphi 0, %s20
    %s24 = sphi 0, %s23
    %s40 = sphi 0, %s24
    %s44 = sphi 0, %s44
    %s46 = sphi 0, %s44
    %s47 = sphi 0, %s46
    %s61 = sphi 0, %s47
    %s65 = sphi 0, %s65
    %s67 = sphi 0, %s65
    %s68 = sphi 0, %s67
    %s82 = sphi 0, %s68
    %s88 = sphi 0, %s90
    %s91 = sphi 0, %s88
    %s92 = sphi 0, %s91
    %s108 = sphi 0, %s92
    %s114 = sphi 0, %s116
    %s117 = sphi 0, %s114
    %s118 = sphi 0, %s117
    %s134 = sphi 0, %s118
  $region4: #{vss_convg_forward.14} parent=0 // loop_header_branch
    %13 = sbr.rel (%p11) target = $region8
  $region5: #{vss_convg_forward.14} parent=0 // loop_body
    %s15 = ssub.s32 %s10, 1
    %s16 = ssub.s32 %s10, 2
    %s17 = sadd.s32 %s10, 1
    %s18 = ssub.s32 %s10, %s17
    %p19 = scmp.eq.s32.totalorder %s18, 0
    %s21 = sadd.s32 %s20, 1
    %s22 = scalar_select %p19, %s20, %s21
    %p25 = pneg %p19
    %p26 = scmp.eq.s32.totalorder %s10, 1
    %p27 = por %p25, %p26
    %p28 = scmp.ne.s32.totalorder %s20, %s23
    %p29 = scmp.eq.s32.totalorder %s10, 0
    %p30 = por %p28, %p29
    %p31 = scmp.ne.s32.totalorder %s20, %s23
    %p32 = scmp.eq.s32.totalorder %s15, 1
    %p33 = por %p31, %p32
    %p34 = scmp.ne.s32.totalorder %s23, %s24
    %p35 = scmp.eq.s32.totalorder %s15, 0
    %p36 = por %p34, %p35
    %p37 = scmp.ne.s32.totalorder %s23, %s24
    %p38 = scmp.eq.s32.totalorder %s16, 1
    %p39 = por %p37, %p38
    %p41 = scmp.ne.s32.totalorder %s24, %s40
    %p42 = scmp.eq.s32.totalorder %s16, 0
    %p43 = por %p41, %p42
    %s45 = sadd.s32 %s44, 1
    %p48 = scmp.eq.s32.totalorder %s10, 1
    %p49 = scmp.ne.s32.totalorder %s44, %s46
    %p50 = scmp.eq.s32.totalorder %s10, 0
    %p51 = por %p49, %p50
    %p52 = scmp.ne.s32.totalorder %s44, %s46
    %p53 = scmp.eq.s32.totalorder %s15, 1
    %p54 = por %p52, %p53
    %p55 = scmp.ne.s32.totalorder %s46, %s47
    %p56 = scmp.eq.s32.totalorder %s15, 0
    %p57 = por %p55, %p56
    %p58 = scmp.ne.s32.totalorder %s46, %s47
    %p59 = scmp.eq.s32.totalorder %s16, 1
    %p60 = por %p58, %p59
    %p62 = scmp.ne.s32.totalorder %s47, %s61
    %p63 = scmp.eq.s32.totalorder %s16, 0
    %p64 = por %p62, %p63
    %s66 = sadd.s32 %s65, 1
    %p69 = scmp.eq.s32.totalorder %s10, 1
    %p70 = scmp.ne.s32.totalorder %s65, %s67
    %p71 = scmp.eq.s32.totalorder %s10, 0
    %p72 = por %p70, %p71
    %p73 = scmp.ne.s32.totalorder %s65, %s67
    %p74 = scmp.eq.s32.totalorder %s15, 1
    %p75 = por %p73, %p74
    %p76 = scmp.ne.s32.totalorder %s67, %s68
    %p77 = scmp.eq.s32.totalorder %s15, 0
    %p78 = por %p76, %p77
    %p79 = scmp.ne.s32.totalorder %s67, %s68
    %p80 = scmp.eq.s32.totalorder %s16, 1
    %p81 = por %p79, %p80
    %p83 = scmp.ne.s32.totalorder %s68, %s82
    %p84 = scmp.eq.s32.totalorder %s16, 0
    %p85 = por %p83, %p84
    %s86 = ssub.s32 %s10, %s17
    %p87 = scmp.eq.s32.totalorder %s86, 0
    %s89 = sadd.s32 %s88, 1
    %s90 = scalar_select %p87, %s88, %s89
    %p93 = pneg %p87
    %p94 = scmp.eq.s32.totalorder %s10, 1
    %p95 = por %p93, %p94
    %p96 = scmp.ne.s32.totalorder %s88, %s91
    %p97 = scmp.eq.s32.totalorder %s10, 0
    %p98 = por %p96, %p97
    %p99 = scmp.ne.s32.totalorder %s88, %s91
    %p100 = scmp.eq.s32.totalorder %s15, 1
    %p101 = por %p99, %p100
    %p102 = scmp.ne.s32.totalorder %s91, %s92
    %p103 = scmp.eq.s32.totalorder %s15, 0
    %p104 = por %p102, %p103
    %p105 = scmp.ne.s32.totalorder %s91, %s92
    %p106 = scmp.eq.s32.totalorder %s16, 1
    %p107 = por %p105, %p106
    %p109 = scmp.ne.s32.totalorder %s92, %s108
    %p110 = scmp.eq.s32.totalorder %s16, 0
    %p111 = por %p109, %p110
    %s112 = ssub.s32 %s10, %s17
    %p113 = scmp.eq.s32.totalorder %s112, 0
    %s115 = sadd.s32 %s114, 1
    %s116 = scalar_select %p113, %s114, %s115
    %p119 = pneg %p113
    %p120 = scmp.eq.s32.totalorder %s10, 1
    %p121 = por %p119, %p120
    %p122 = scmp.ne.s32.totalorder %s114, %s117
    %p123 = scmp.eq.s32.totalorder %s10, 0
    %p124 = por %p122, %p123
    %p125 = scmp.ne.s32.totalorder %s114, %s117
    %p126 = scmp.eq.s32.totalorder %s15, 1
    %p127 = por %p125, %p126
    %p128 = scmp.ne.s32.totalorder %s117, %s118
    %p129 = scmp.eq.s32.totalorder %s15, 0
    %p130 = por %p128, %p129
    %p131 = scmp.ne.s32.totalorder %s117, %s118
    %p132 = scmp.eq.s32.totalorder %s16, 1
    %p133 = por %p131, %p132
    %p135 = scmp.ne.s32.totalorder %s118, %s134
    %p136 = scmp.eq.s32.totalorder %s16, 0
    %p137 = por %p135, %p136
    %p138 = scmp.le.s32.totalorder 1, %s10
    %p139 = scmp.lt.s32.totalorder %s10, 3
    %p140 = pnand %p138, %p139
    %p141 = pneg %p140
    // Predicated region
    $region9: #{vss_convg_forward.14} parent=5 // pred_check
      _
    $region10: #{vss_convg_forward.14} parent=5 // pred_check_branch
      %143 = sbr.rel (%p140) target = $region12
    $region11: #{vss_convg_forward.14} parent=5 // pred_region
      %s144 = ssub.s32 %s10, 1
      // Predicated region
      $region13: #{vss_convg_forward.14} parent=11 // pred_check
        %p145 = pneg %p57
      $region14: #{vss_convg_forward.14} parent=11 // pred_check_branch
        %147 = sbr.rel (%p145) target = $region16
      $region15: #{vss_convg_forward.14} parent=11 // pred_region
        _
      $region16: #{vss_convg_forward.14} parent=11 // pred_fallthru
        _
      // Predicated region
      $region17: #{vss_convg_forward.14} parent=11 // pred_check
        %p148 = pneg %p78
      $region18: #{vss_convg_forward.14} parent=11 // pred_check_branch
        %150 = sbr.rel (%p148) target = $region20
      $region19: #{vss_convg_forward.14} parent=11 // pred_region
        _
      $region20: #{vss_convg_forward.14} parent=11 // pred_fallthru
        _
    $region12: #{vss_convg_forward.14} parent=5 // pred_fallthru
      _
    %p151 = scmp.lt.s32.totalorder %s10, 2
    // Predicated region
    $region21: #{vss_convg_forward.14} parent=5 // pred_check
      %p152 = pneg %p151
    $region22: #{vss_convg_forward.14} parent=5 // pred_check_branch
      %154 = sbr.rel (%p152) target = $region24
    $region23: #{vss_convg_forward.14} parent=5 // pred_region
      // Predicated region
      $region25: #{vss_convg_forward.14} parent=23 // pred_check
        %p155 = pneg %p30
      $region26: #{vss_convg_forward.14} parent=23 // pred_check_branch
        %157 = sbr.rel (%p155) target = $region28
      $region27: #{vss_convg_forward.14} parent=23 // pred_region
        %p158 = scmp.lt.s32.totalorder %s10, 1
        %s159 = scalar_select %p158, %s10, 1
        %s160 = smul.addr %s159, 8
        %s161 = smul.addr %s160, 4
        %s162 = scalar_lea.vmem %s0, %s161
      $region28: #{vss_convg_forward.14} parent=23 // pred_fallthru
        _
      // Predicated region
      $region29: #{vss_convg_forward.14} parent=23 // pred_check
        %p163 = pneg %p98
      $region30: #{vss_convg_forward.14} parent=23 // pred_check_branch
        %165 = sbr.rel (%p163) target = $region32
      $region31: #{vss_convg_forward.14} parent=23 // pred_region
        %p166 = scmp.lt.s32.totalorder %s10, 1
        %s167 = scalar_select %p166, %s10, 1
        %s168 = smul.addr %s167, 8
        %s169 = smul.addr %s168, 4
        %s170 = scalar_lea.vmem %s3, %s169
      $region32: #{vss_convg_forward.14} parent=23 // pred_fallthru
        _
    $region24: #{vss_convg_forward.14} parent=5 // pred_fallthru
      _
    %p171 = scmp.le.s32.totalorder 1, %s10
    %p172 = scmp.lt.s32.totalorder %s10, 3
    %p173 = pnand %p171, %p172
    %p174 = pneg %p173
    // Predicated region
    $region33: #{vss_convg_forward.14} parent=5 // pred_check
      _
    $region34: #{vss_convg_forward.14} parent=5 // pred_check_branch
      %176 = sbr.rel (%p173) target = $region36
    $region35: #{vss_convg_forward.14} parent=5 // pred_region
      %s177 = ssub.s32 %s10, 1
      %p178 = scmp.lt.s32.totalorder %s15, 1
      %s179 = scalar_select %p178, %s15, 1
      %s180 = smul.addr %s179, 8
      %s181 = smul.addr %s180, 4
      %s182 = scalar_lea.vmem %s0, %s181
      %p183 = pneg %p36
      %p184 = pneg %p33
      %p185 = pneg %p57
      %p186 = pneg %p54
      %p187 = pneg %p78
      %p188 = pneg %p75
      %p189 = scmp.lt.s32.totalorder %s15, 1
      %s190 = scalar_select %p189, %s15, 1
      %s191 = smul.addr %s190, 8
      %s192 = smul.addr %s191, 4
      %s193 = scalar_lea.vmem %s3, %s192
      %p194 = pneg %p104
      %p195 = pneg %p101
      %p196 = pneg %p130
      %p197 = pneg %p127
      %p198 = scmp.lt.s32.totalorder %s15, 1
      %s199 = scalar_select %p198, %s15, 1
      %s200 = smul.addr %s199, 8
      %s201 = smul.addr %s200, 4
      %s202 = scalar_lea.vmem %s4, %s201
      %p203 = scmp.lt.s32.totalorder %s15, 1
      %s204 = scalar_select %p203, %s15, 1
      %s205 = smul.addr %s204, 8
      %s206 = smul.addr %s205, 4
      %s207 = scalar_lea.vmem %s0, %s206
      %p208 = scmp.lt.s32.totalorder %s15, 1
      %s209 = scalar_select %p208, %s15, 1
      %s210 = smul.addr %s209, 8
      %s211 = smul.addr %s210, 4
      %s212 = scalar_lea.vmem %s3, %s211
      %p213 = scmp.lt.s32.totalorder %s15, 1
      %s214 = scalar_select %p213, %s15, 1
      %s215 = smul.addr %s214, 8
      %s216 = smul.addr %s215, 4
      %s217 = scalar_lea.vmem %s4, %s216
      %vm218 = vcmask 80896
      %219 = vst.msk [vmem:[#allocation2] sm:$0xff] %vm218, 0.0
      %vm220 = vcmask 74752
      %221 = vst.msk [vmem:[#allocation2 + $0x8] sm:$0x3] %vm220, 0.0
      %222 = vst.msk [vmem:[#allocation2 + $0x10] sm:$0xff] %vm218, 0.0
      %223 = vst.msk [vmem:[#allocation2 + $0x18] sm:$0x3] %vm220, 0.0
      %224 = vst.msk [vmem:[#allocation2 + $0x20] sm:$0xff] %vm218, 0.0
      %225 = vst.msk [vmem:[#allocation2 + $0x28] sm:$0x3] %vm220, 0.0
      %226 = vst.msk [vmem:[#allocation2 + $0x30] sm:$0xff] %vm218, 0.0
      %227 = vst.msk [vmem:[#allocation2 + $0x38] sm:$0x3] %vm220, 0.0
      %228 = vst.msk [vmem:[#allocation2 + $0x40] sm:$0xff] %vm218, 0.0
      %229 = vst.msk [vmem:[#allocation2 + $0x48] sm:$0x3] %vm220, 0.0
      %230 = vst.msk [vmem:[#allocation2 + $0x50] sm:$0xff] %vm218, 0.0
      %231 = vst.msk [vmem:[#allocation2 + $0x58] sm:$0x3] %vm220, 0.0
      %232 = vst.msk [vmem:[#allocation2 + $0x60] sm:$0xff] %vm218, 0.0
      %233 = vst.msk [vmem:[#allocation2 + $0x68] sm:$0x3] %vm220, 0.0
      %234 = vst.msk [vmem:[#allocation2 + $0x70] sm:$0xff] %vm218, 0.0
      %235 = vst.msk [vmem:[#allocation2 + $0x78] sm:$0x3] %vm220, 0.0
      %236 = vst.msk [vmem:[#allocation2 + $0x80] sm:$0xff] %vm218, 0.0
      %237 = vst.msk [vmem:[#allocation2 + $0x88] sm:$0x3] %vm220, 0.0
      %238 = vst.msk [vmem:[#allocation2 + $0x90] sm:$0xff] %vm218, 0.0
      %239 = vst.msk [vmem:[#allocation2 + $0x98] sm:$0x3] %vm220, 0.0
      %v240 = vld [vmem:[%s207] sm:$0xf]
      %v241 = vld [vmem:[%s207 + $0x4] sm:$0xf]
      %v242 = vld [vmem:[%s207 + $0x8] sm:$0xf]
      %v243 = vld [vmem:[%s207 + $0xc] sm:$0xf]
      %v244 = vld [vmem:[%s207 + $0x10] sm:$0xf]
      %v245 = vld [vmem:[%s207 + $0x14] sm:$0xf]
      %v246 = vld [vmem:[%s207 + $0x18] sm:$0xf]
      %v247 = vld [vmem:[%s207 + $0x1c] sm:$0xf]
      %v248 = vunpack.c.l.bf16 %v240
      %v249 = vunpack.c.l.bf16 %v241
      %v250 = vunpack.c.l.bf16 %v242
      %v251 = vunpack.c.l.bf16 %v243
      %v252 = vunpack.c.l.bf16 %v244
      %v253 = vunpack.c.l.bf16 %v245
      %v254 = vunpack.c.l.bf16 %v246
      %v255 = vunpack.c.l.bf16 %v247
      %s256 = scalar_lea.vmem [#allocation2], 16
      %257 = vst.msk [vmem:[%s256 + $0x1] sm:$0xff] %vm218, %v248
      %258 = vst.msk [vmem:[%s256 + $0x11] sm:$0xff] %vm218, %v249
      %259 = vst.msk [vmem:[%s256 + $0x21] sm:$0xff] %vm218, %v250
      %260 = vst.msk [vmem:[%s256 + $0x31] sm:$0xff] %vm218, %v251
      %261 = vst.msk [vmem:[%s256 + $0x41] sm:$0xff] %vm218, %v252
      %262 = vst.msk [vmem:[%s256 + $0x51] sm:$0xff] %vm218, %v253
      %263 = vst.msk [vmem:[%s256 + $0x61] sm:$0xff] %vm218, %v254
      %264 = vst.msk [vmem:[%s256 + $0x71] sm:$0xff] %vm218, %v255
      %v265 = vld [vmem:[#allocation2] sm:$0xff]
      %v266 = vld [vmem:[#allocation2 + $0x10] sm:$0xff]
      %v267 = vld [vmem:[#allocation2 + $0x20] sm:$0xff]
      %v268 = vld [vmem:[#allocation2 + $0x30] sm:$0xff]
      %v269 = vld [vmem:[#allocation2 + $0x40] sm:$0xff]
      %v270 = vld [vmem:[#allocation2 + $0x50] sm:$0xff]
      %v271 = vld [vmem:[#allocation2 + $0x60] sm:$0xff]
      %v272 = vld [vmem:[#allocation2 + $0x70] sm:$0xff]
      %v273 = vld [vmem:[%s1] sm:$0x1]
      %v274 = vlaneseq
      %v275 = vshrl.u32 %v274, 7
      %v276 = vsub.s32 0, %v275
      %v277 = vrot.slane %v273, %v276
      %v278 = vmul.f32 %v265, %v277
      %v279 = vmul.f32 %v266, %v277
      %v280 = vmul.f32 %v267, %v277
      %v281 = vmul.f32 %v268, %v277
      %v282 = vmul.f32 %v269, %v277
      %v283 = vmul.f32 %v270, %v277
      %v284 = vmul.f32 %v271, %v277
      %v285 = vmul.f32 %v272, %v277
      %v286 = vadd.f32 %v278, 0.0
      %v287 = vadd.f32 %v279, 0.0
      %v288 = vadd.f32 %v280, 0.0
      %v289 = vadd.f32 %v281, 0.0
      %v290 = vadd.f32 %v282, 0.0
      %v291 = vadd.f32 %v283, 0.0
      %v292 = vadd.f32 %v284, 0.0
      %v293 = vadd.f32 %v285, 0.0
      %v294 = vld [vmem:[#allocation2 + $0x1] sm:$0xff]
      %v295 = vld [vmem:[#allocation2 + $0x11] sm:$0xff]
      %v296 = vld [vmem:[#allocation2 + $0x21] sm:$0xff]
      %v297 = vld [vmem:[#allocation2 + $0x31] sm:$0xff]
      %v298 = vld [vmem:[#allocation2 + $0x41] sm:$0xff]
      %v299 = vld [vmem:[#allocation2 + $0x51] sm:$0xff]
      %v300 = vld [vmem:[#allocation2 + $0x61] sm:$0xff]
      %v301 = vld [vmem:[#allocation2 + $0x71] sm:$0xff]
      %v302 = vld [vmem:[%s1 + $0x1] sm:$0x1]
      %v303 = vlaneseq
      %v304 = vshrl.u32 %v303, 7
      %v305 = vsub.s32 0, %v304
      %v306 = vrot.slane %v302, %v305
      %v307 = vmul.f32 %v294, %v306
      %v308 = vmul.f32 %v295, %v306
      %v309 = vmul.f32 %v296, %v306
      %v310 = vmul.f32 %v297, %v306
      %v311 = vmul.f32 %v298, %v306
      %v312 = vmul.f32 %v299, %v306
      %v313 = vmul.f32 %v300, %v306
      %v314 = vmul.f32 %v301, %v306
      %v315 = vadd.f32 %v286, %v307
      %v316 = vadd.f32 %v287, %v308
      %v317 = vadd.f32 %v288, %v309
      %v318 = vadd.f32 %v289, %v310
      %v319 = vadd.f32 %v290, %v311
      %v320 = vadd.f32 %v291, %v312
      %v321 = vadd.f32 %v292, %v313
      %v322 = vadd.f32 %v293, %v314
      %v323 = vld [vmem:[#allocation2 + $0x2] sm:$0xff]
      %v324 = vld [vmem:[#allocation2 + $0x12] sm:$0xff]
      %v325 = vld [vmem:[#allocation2 + $0x22] sm:$0xff]
      %v326 = vld [vmem:[#allocation2 + $0x32] sm:$0xff]
      %v327 = vld [vmem:[#allocation2 + $0x42] sm:$0xff]
      %v328 = vld [vmem:[#allocation2 + $0x52] sm:$0xff]
      %v329 = vld [vmem:[#allocation2 + $0x62] sm:$0xff]
      %v330 = vld [vmem:[#allocation2 + $0x72] sm:$0xff]
      %v331 = vld [vmem:[%s1 + $0x2] sm:$0x1]
      %v332 = vlaneseq
      %v333 = vshrl.u32 %v332, 7
      %v334 = vsub.s32 0, %v333
      %v335 = vrot.slane %v331, %v334
      %v336 = vmul.f32 %v323, %v335
      %v337 = vmul.f32 %v324, %v335
      %v338 = vmul.f32 %v325, %v335
      %v339 = vmul.f32 %v326, %v335
      %v340 = vmul.f32 %v327, %v335
      %v341 = vmul.f32 %v328, %v335
      %v342 = vmul.f32 %v329, %v335
      %v343 = vmul.f32 %v330, %v335
      %v344 = vadd.f32 %v315, %v336
      %v345 = vadd.f32 %v316, %v337
      %v346 = vadd.f32 %v317, %v338
      %v347 = vadd.f32 %v318, %v339
      %v348 = vadd.f32 %v319, %v340
      %v349 = vadd.f32 %v320, %v341
      %v350 = vadd.f32 %v321, %v342
      %v351 = vadd.f32 %v322, %v343
      %v352 = vld [vmem:[%s256] sm:$0xff]
      %v353 = vld [vmem:[%s256 + $0x10] sm:$0xff]
      %v354 = vld [vmem:[%s256 + $0x20] sm:$0xff]
      %v355 = vld [vmem:[%s256 + $0x30] sm:$0xff]
      %v356 = vld [vmem:[%s256 + $0x40] sm:$0xff]
      %v357 = vld [vmem:[%s256 + $0x50] sm:$0xff]
      %v358 = vld [vmem:[%s256 + $0x60] sm:$0xff]
      %v359 = vld [vmem:[%s256 + $0x70] sm:$0xff]
      %v360 = vld [vmem:[%s1 + $0x3] sm:$0x1]
      %v361 = vlaneseq
      %v362 = vshrl.u32 %v361, 7
      %v363 = vsub.s32 0, %v362
      %v364 = vrot.slane %v360, %v363
      %v365 = vmul.f32 %v352, %v364
      %v366 = vmul.f32 %v353, %v364
      %v367 = vmul.f32 %v354, %v364
      %v368 = vmul.f32 %v355, %v364
      %v369 = vmul.f32 %v356, %v364
      %v370 = vmul.f32 %v357, %v364
      %v371 = vmul.f32 %v358, %v364
      %v372 = vmul.f32 %v359, %v364
      %v373 = vadd.f32 %v344, %v365
      %v374 = vadd.f32 %v345, %v366
      %v375 = vadd.f32 %v346, %v367
      %v376 = vadd.f32 %v347, %v368
      %v377 = vadd.f32 %v348, %v369
      %v378 = vadd.f32 %v349, %v370
      %v379 = vadd.f32 %v350, %v371
      %v380 = vadd.f32 %v351, %v372
      %v381 = vld [vmem:[%s256 + $0x1] sm:$0xff]
      %v382 = vld [vmem:[%s256 + $0x11] sm:$0xff]
      %v383 = vld [vmem:[%s256 + $0x21] sm:$0xff]
      %v384 = vld [vmem:[%s256 + $0x31] sm:$0xff]
      %v385 = vld [vmem:[%s256 + $0x41] sm:$0xff]
      %v386 = vld [vmem:[%s256 + $0x51] sm:$0xff]
      %v387 = vld [vmem:[%s256 + $0x61] sm:$0xff]
      %v388 = vld [vmem:[%s256 + $0x71] sm:$0xff]
      %v389 = vld [vmem:[%s1 + $0x4] sm:$0x1]
      %v390 = vlaneseq
      %v391 = vshrl.u32 %v390, 7
      %v392 = vsub.s32 0, %v391
      %v393 = vrot.slane %v389, %v392
      %v394 = vmul.f32 %v381, %v393
      %v395 = vmul.f32 %v382, %v393
      %v396 = vmul.f32 %v383, %v393
      %v397 = vmul.f32 %v384, %v393
      %v398 = vmul.f32 %v385, %v393
      %v399 = vmul.f32 %v386, %v393
      %v400 = vmul.f32 %v387, %v393
      %v401 = vmul.f32 %v388, %v393
      %v402 = vadd.f32 %v373, %v394
      %v403 = vadd.f32 %v374, %v395
      %v404 = vadd.f32 %v375, %v396
      %v405 = vadd.f32 %v376, %v397
      %v406 = vadd.f32 %v377, %v398
      %v407 = vadd.f32 %v378, %v399
      %v408 = vadd.f32 %v379, %v400
      %v409 = vadd.f32 %v380, %v401
      %v410 = vld [vmem:[%s256 + $0x2] sm:$0xff]
      %v411 = vld [vmem:[%s256 + $0x12] sm:$0xff]
      %v412 = vld [vmem:[%s256 + $0x22] sm:$0xff]
      %v413 = vld [vmem:[%s256 + $0x32] sm:$0xff]
      %v414 = vld [vmem:[%s256 + $0x42] sm:$0xff]
      %v415 = vld [vmem:[%s256 + $0x52] sm:$0xff]
      %v416 = vld [vmem:[%s256 + $0x62] sm:$0xff]
      %v417 = vld [vmem:[%s256 + $0x72] sm:$0xff]
      %v418 = vld [vmem:[%s1 + $0x5] sm:$0x1]
      %v419 = vlaneseq
      %v420 = vshrl.u32 %v419, 7
      %v421 = vsub.s32 0, %v420
      %v422 = vrot.slane %v418, %v421
      %v423 = vmul.f32 %v410, %v422
      %v424 = vmul.f32 %v411, %v422
      %v425 = vmul.f32 %v412, %v422
      %v426 = vmul.f32 %v413, %v422
      %v427 = vmul.f32 %v414, %v422
      %v428 = vmul.f32 %v415, %v422
      %v429 = vmul.f32 %v416, %v422
      %v430 = vmul.f32 %v417, %v422
      %v431 = vadd.f32 %v402, %v423
      %v432 = vadd.f32 %v403, %v424
      %v433 = vadd.f32 %v404, %v425
      %v434 = vadd.f32 %v405, %v426
      %v435 = vadd.f32 %v406, %v427
      %v436 = vadd.f32 %v407, %v428
      %v437 = vadd.f32 %v408, %v429
      %v438 = vadd.f32 %v409, %v430
      %s439 = scalar_lea.vmem [#allocation2], 32
      %v440 = vld [vmem:[%s439] sm:$0xff]
      %v441 = vld [vmem:[%s439 + $0x10] sm:$0xff]
      %v442 = vld [vmem:[%s439 + $0x20] sm:$0xff]
      %v443 = vld [vmem:[%s439 + $0x30] sm:$0xff]
      %v444 = vld [vmem:[%s439 + $0x40] sm:$0xff]
      %v445 = vld [vmem:[%s439 + $0x50] sm:$0xff]
      %v446 = vld [vmem:[%s439 + $0x60] sm:$0xff]
      %v447 = vld [vmem:[%s439 + $0x70] sm:$0xff]
      %v448 = vld [vmem:[%s1 + $0x6] sm:$0x1]
      %v449 = vlaneseq
      %v450 = vshrl.u32 %v449, 7
      %v451 = vsub.s32 0, %v450
      %v452 = vrot.slane %v448, %v451
      %v453 = vmul.f32 %v440, %v452
      %v454 = vmul.f32 %v441, %v452
      %v455 = vmul.f32 %v442, %v452
      %v456 = vmul.f32 %v443, %v452
      %v457 = vmul.f32 %v444, %v452
      %v458 = vmul.f32 %v445, %v452
      %v459 = vmul.f32 %v446, %v452
      %v460 = vmul.f32 %v447, %v452
      %v461 = vadd.f32 %v431, %v453
      %v462 = vadd.f32 %v432, %v454
      %v463 = vadd.f32 %v433, %v455
      %v464 = vadd.f32 %v434, %v456
      %v465 = vadd.f32 %v435, %v457
      %v466 = vadd.f32 %v436, %v458
      %v467 = vadd.f32 %v437, %v459
      %v468 = vadd.f32 %v438, %v460
      %v469 = vld [vmem:[%s439 + $0x1] sm:$0xff]
      %v470 = vld [vmem:[%s439 + $0x11] sm:$0xff]
      %v471 = vld [vmem:[%s439 + $0x21] sm:$0xff]
      %v472 = vld [vmem:[%s439 + $0x31] sm:$0xff]
      %v473 = vld [vmem:[%s439 + $0x41] sm:$0xff]
      %v474 = vld [vmem:[%s439 + $0x51] sm:$0xff]
      %v475 = vld [vmem:[%s439 + $0x61] sm:$0xff]
      %v476 = vld [vmem:[%s439 + $0x71] sm:$0xff]
      %v477 = vld [vmem:[%s1 + $0x7] sm:$0x1]
      %v478 = vlaneseq
      %v479 = vshrl.u32 %v478, 7
      %v480 = vsub.s32 0, %v479
      %v481 = vrot.slane %v477, %v480
      %v482 = vmul.f32 %v469, %v481
      %v483 = vmul.f32 %v470, %v481
      %v484 = vmul.f32 %v471, %v481
      %v485 = vmul.f32 %v472, %v481
      %v486 = vmul.f32 %v473, %v481
      %v487 = vmul.f32 %v474, %v481
      %v488 = vmul.f32 %v475, %v481
      %v489 = vmul.f32 %v476, %v481
      %v490 = vadd.f32 %v461, %v482
      %v491 = vadd.f32 %v462, %v483
      %v492 = vadd.f32 %v463, %v484
      %v493 = vadd.f32 %v464, %v485
      %v494 = vadd.f32 %v465, %v486
      %v495 = vadd.f32 %v466, %v487
      %v496 = vadd.f32 %v467, %v488
      %v497 = vadd.f32 %v468, %v489
      %v498 = vld [vmem:[%s439 + $0x2] sm:$0xff]
      %v499 = vld [vmem:[%s439 + $0x12] sm:$0xff]
      %v500 = vld [vmem:[%s439 + $0x22] sm:$0xff]
      %v501 = vld [vmem:[%s439 + $0x32] sm:$0xff]
      %v502 = vld [vmem:[%s439 + $0x42] sm:$0xff]
      %v503 = vld [vmem:[%s439 + $0x52] sm:$0xff]
      %v504 = vld [vmem:[%s439 + $0x62] sm:$0xff]
      %v505 = vld [vmem:[%s439 + $0x72] sm:$0xff]
      %v506 = vld [vmem:[%s1 + $0x8] sm:$0x1]
      %v507 = vlaneseq
      %v508 = vshrl.u32 %v507, 7
      %v509 = vsub.s32 0, %v508
      %v510 = vrot.slane %v506, %v509
      %v511 = vmul.f32 %v498, %v510
      %v512 = vmul.f32 %v499, %v510
      %v513 = vmul.f32 %v500, %v510
      %v514 = vmul.f32 %v501, %v510
      %v515 = vmul.f32 %v502, %v510
      %v516 = vmul.f32 %v503, %v510
      %v517 = vmul.f32 %v504, %v510
      %v518 = vmul.f32 %v505, %v510
      %v519 = vadd.f32 %v490, %v511
      %v520 = vadd.f32 %v491, %v512
      %v521 = vadd.f32 %v492, %v513
      %v522 = vadd.f32 %v493, %v514
      %v523 = vadd.f32 %v494, %v515
      %v524 = vadd.f32 %v495, %v516
      %v525 = vadd.f32 %v496, %v517
      %v526 = vadd.f32 %v497, %v518
      %v527 = vld [vmem:[%s2] sm:$0x1]
      %v529 = vlaneseq
      %v530 = vshrl.u32 %v529, 7
      %v531 = vsub.s32 0, %v530
      %v532 = vrot.slane %v527, %v531
      %v534 = vadd.f32 %v519, %v532
      %v535 = vadd.f32 %v520, %v532
      %v536 = vadd.f32 %v521, %v532
      %v537 = vadd.f32 %v522, %v532
      %v538 = vadd.f32 %v523, %v532
      %v539 = vadd.f32 %v524, %v532
      %v540 = vadd.f32 %v525, %v532
      %v541 = vadd.f32 %v526, %v532
      %v542 = vsub.f32 0.0, %v534
      %v543 = vsub.f32 0.0, %v535
      %v544 = vsub.f32 0.0, %v536
      %v545 = vsub.f32 0.0, %v537
      %v546 = vsub.f32 0.0, %v538
      %v547 = vsub.f32 0.0, %v539
      %v548 = vsub.f32 0.0, %v540
      %v549 = vsub.f32 0.0, %v541
      %v550 = vmul.f32 %v542, 1.442695
      %v551 = vpow.pop %v550
      %v552 = vmul.f32 %v543, 1.442695
      %v553 = vpow.pop %v552
      %v554 = vmul.f32 %v544, 1.442695
      %v555 = vpow.pop %v554
      %v556 = vmul.f32 %v545, 1.442695
      %v557 = vpow.pop %v556
      %v558 = vmul.f32 %v546, 1.442695
      %v559 = vpow.pop %v558
      %v560 = vmul.f32 %v547, 1.442695
      %v561 = vpow.pop %v560
      %v562 = vmul.f32 %v548, 1.442695
      %v563 = vpow.pop %v562
      %v564 = vmul.f32 %v549, 1.442695
      %v565 = vpow.pop %v564
      %v566 = vadd.f32 %v551, 1.0
      %v567 = vadd.f32 %v553, 1.0
      %v568 = vadd.f32 %v555, 1.0
      %v569 = vadd.f32 %v557, 1.0
      %v570 = vadd.f32 %v559, 1.0
      %v571 = vadd.f32 %v561, 1.0
      %v572 = vadd.f32 %v563, 1.0
      %v573 = vadd.f32 %v565, 1.0
      %v574 = vrcp.pop %v566
      %v575 = vmul.f32 1.0, %v574
      %v576 = vrcp.pop %v567
      %v577 = vmul.f32 1.0, %v576
      %v578 = vrcp.pop %v568
      %v579 = vmul.f32 1.0, %v578
      %v580 = vrcp.pop %v569
      %v581 = vmul.f32 1.0, %v580
      %v582 = vrcp.pop %v570
      %v583 = vmul.f32 1.0, %v582
      %v584 = vrcp.pop %v571
      %v585 = vmul.f32 1.0, %v584
      %v586 = vrcp.pop %v572
      %v587 = vmul.f32 1.0, %v586
      %v588 = vrcp.pop %v573
      %v589 = vmul.f32 1.0, %v588
      %v590 = vmul.f32 %v534, %v575
      %v591 = vmul.f32 %v535, %v577
      %v592 = vmul.f32 %v536, %v579
      %v593 = vmul.f32 %v537, %v581
      %v594 = vmul.f32 %v538, %v583
      %v595 = vmul.f32 %v539, %v585
      %v596 = vmul.f32 %v540, %v587
      %v597 = vmul.f32 %v541, %v589
      %v598 = vld [vmem:[%s212] sm:$0xf]
      %v599 = vld [vmem:[%s212 + $0x4] sm:$0xf]
      %v600 = vld [vmem:[%s212 + $0x8] sm:$0xf]
      %v601 = vld [vmem:[%s212 + $0xc] sm:$0xf]
      %v602 = vld [vmem:[%s212 + $0x10] sm:$0xf]
      %v603 = vld [vmem:[%s212 + $0x14] sm:$0xf]
      %v604 = vld [vmem:[%s212 + $0x18] sm:$0xf]
      %v605 = vld [vmem:[%s212 + $0x1c] sm:$0xf]
      %v606 = vunpack.c.l.bf16 %v598
      %v607 = vunpack.c.l.bf16 %v599
      %v608 = vunpack.c.l.bf16 %v600
      %v609 = vunpack.c.l.bf16 %v601
      %v610 = vunpack.c.l.bf16 %v602
      %v611 = vunpack.c.l.bf16 %v603
      %v612 = vunpack.c.l.bf16 %v604
      %v613 = vunpack.c.l.bf16 %v605
      %v614 = vmul.f32 %v590, %v606
      %v615 = vmul.f32 %v591, %v607
      %v616 = vmul.f32 %v592, %v608
      %v617 = vmul.f32 %v593, %v609
      %v618 = vmul.f32 %v594, %v610
      %v619 = vmul.f32 %v595, %v611
      %v620 = vmul.f32 %v596, %v612
      %v621 = vmul.f32 %v597, %v613
      %v622 = vpack.c.bf16 %v614, %v614
      %v623 = vpack.c.bf16 %v615, %v615
      %v624 = vpack.c.bf16 %v616, %v616
      %v625 = vpack.c.bf16 %v617, %v617
      %v626 = vpack.c.bf16 %v618, %v618
      %v627 = vpack.c.bf16 %v619, %v619
      %v628 = vpack.c.bf16 %v620, %v620
      %v629 = vpack.c.bf16 %v621, %v621
      %vm630 = vcmask 76800
      %631 = vst.msk [vmem:[%s217] sm:$0xf] %vm630, %v622
      %632 = vst.msk [vmem:[%s217 + $0x4] sm:$0xf] %vm630, %v623
      %633 = vst.msk [vmem:[%s217 + $0x8] sm:$0xf] %vm630, %v624
      %634 = vst.msk [vmem:[%s217 + $0xc] sm:$0xf] %vm630, %v625
      %635 = vst.msk [vmem:[%s217 + $0x10] sm:$0xf] %vm630, %v626
      %636 = vst.msk [vmem:[%s217 + $0x14] sm:$0xf] %vm630, %v627
      %637 = vst.msk [vmem:[%s217 + $0x18] sm:$0xf] %vm630, %v628
      %638 = vst.msk [vmem:[%s217 + $0x1c] sm:$0xf] %vm630, %v629
      %p639 = scmp.lt.s32.totalorder %s15, 1
      %s640 = scalar_select %p639, %s15, 1
      %s641 = smul.addr %s640, 8
      %s642 = smul.addr %s641, 4
      %s643 = scalar_lea.vmem %s4, %s642
      // Predicated region
      $region37: #{vss_convg_forward.14} parent=35 // pred_check
        %p644 = pneg %p127
      $region38: #{vss_convg_forward.14} parent=35 // pred_check_branch
        %646 = sbr.rel (%p644) target = $region40
      $region39: #{vss_convg_forward.14} parent=35 // pred_region
        _
      $region40: #{vss_convg_forward.14} parent=35 // pred_fallthru
        _
    $region36: #{vss_convg_forward.14} parent=5 // pred_fallthru
      _
    %p647 = scmp.le.s32.totalorder 2, %s10
    // Predicated region
    $region41: #{vss_convg_forward.14} parent=5 // pred_check
      %p648 = pneg %p647
    $region42: #{vss_convg_forward.14} parent=5 // pred_check_branch
      %650 = sbr.rel (%p648) target = $region44
    $region43: #{vss_convg_forward.14} parent=5 // pred_region
      %s651 = ssub.s32 %s10, 2
      // Predicated region
      $region45: #{vss_convg_forward.14} parent=43 // pred_check
        %p652 = pneg %p133
      $region46: #{vss_convg_forward.14} parent=43 // pred_check_branch
        %654 = sbr.rel (%p652) target = $region48
      $region47: #{vss_convg_forward.14} parent=43 // pred_region
        %p655 = scmp.lt.s32.totalorder %s16, 1
        %s656 = scalar_select %p655, %s16, 1
        %s657 = smul.addr %s656, 8
        %s658 = smul.addr %s657, 4
        %s659 = scalar_lea.vmem %s4, %s658
      $region48: #{vss_convg_forward.14} parent=43 // pred_fallthru
        _
    $region44: #{vss_convg_forward.14} parent=5 // pred_fallthru
      _
  $region6: #{vss_convg_forward.14} parent=0 // loop_footer
    %s14 = sadd.s32 1, %s10
  $region7: #{vss_convg_forward.14} parent=0 // loop_footer_branch
    %9 = sbr.rel target = $region3
  $region8: #{vss_convg_forward.14} parent=0 // loop_exit
    _

</llo_original>
